<compile_context>
chip_gen: v7x
topology: tpu7x:2x2x1
jax: 0.10.0
libtpu: 0.0.40
codegen_flags: <defaults>
</compile_context>

<pallas_src>
import functools

import jax
import jax.numpy as jnp
from jax.experimental import pallas as pl
from jax.experimental.pallas import tpu as pltpu


def _round_up(x, m):
    return (x + m - 1) // m * m


# ----------------------------------------------------------------------------
# Fused kernel: conv1+relu+pool1 -> conv2+relu -> pool2+up -> conv3+relu
#               -> up -> conv4 (+bias), all per image (one grid step).
# ----------------------------------------------------------------------------
def _fused_autoencoder_kernel(
        cols_ref,                       # (1, H*W, 16)  bf16  im2col of conv1 (pool-grouped rows)
        w1_ref, b1_ref,                 # (16, 64) bf16 , (1, 64) f32
        w2_ref, b2_ref,                 # (9, 64, 128) bf16 , (1, 128) f32
        w3_ref, b3_ref,                 # (9, 128, 64) bf16 , (1, 64) f32
        w4_ref, b4_ref,                 # (9, 64, 8) bf16 , (1, 8) f32
        out_ref,                        # (1, H*W, 8) f32  (channel 0 is the real output)
        pad2_ref, pad3_ref, pad4_ref,   # VMEM scratch: padded flat conv inputs
        *, H, W):
    f32 = jnp.float32
    bf16 = jnp.bfloat16

    H2, W2 = H // 2, W // 2             # conv2 / conv3 spatial size
    Ho, Wo = H2 // 2, W2 // 2           # spatial size after pool2
    Wp2 = W2 + 2                        # padded row stride for conv2/conv3
    Wp4 = W + 2                         # padded row stride for conv4
    P2 = H2 * Wp2                       # conv2/conv3 flat rows (incl. junk cols)
    QB = H2 * W2                        # rows per pool-parity block of conv1 output

    # ---------------- conv1 (1->64) + ReLU + 2x2 max-pool --------------------
    # cols rows are grouped by pool-window parity, so pooling is a running
    # elementwise max over 4 contiguous row blocks (only one block live at a time).
    def conv1_block(blk):
        a = jnp.dot(cols_ref[0, blk * QB:(blk + 1) * QB, :], w1_ref[...],
                    preferred_element_type=f32)
        return jnp.maximum(a + b1_ref[...], 0.0)

    p1 = conv1_block(0)
    for blk in range(1, 4):
        p1 = jnp.maximum(p1, conv1_block(blk))          # (QB, 64): pooled H2 x W2 x 64

    # ---------------- conv2 (64->128) + ReLU ----------------------------------
    pad2_ref[...] = jnp.zeros_like(pad2_ref)
    for h in range(H2):
        pad2_ref[pl.ds((h + 1) * Wp2 + 1, W2), :] = p1[h * W2:(h + 1) * W2, :]

    acc2 = jnp.zeros((P2, 128), f32)
    for kh in range(3):
        for kw in range(3):
            patch = pad2_ref[pl.ds(kh * Wp2 + kw, P2), :].astype(bf16)
            acc2 = acc2 + jnp.dot(patch, w2_ref[kh * 3 + kw],
                                  preferred_element_type=f32)
    acc2 = jnp.maximum(acc2 + b2_ref[...], 0.0)          # valid at rows h*Wp2+w, w<W2

    # ---------------- 2x2 max-pool + 2x nearest upsample, fused into conv3 prep
    pad3_ref[...] = jnp.zeros_like(pad3_ref)
    for ho in range(Ho):
        for wo in range(Wo):
            base = (2 * ho) * Wp2 + 2 * wo
            v = jnp.maximum(
                jnp.maximum(acc2[base:base + 1, :], acc2[base + 1:base + 2, :]),
                jnp.maximum(acc2[base + Wp2:base + Wp2 + 1, :],
                            acc2[base + Wp2 + 1:base + Wp2 + 2, :]))   # (1, 128)
            v2 = jnp.concatenate([v, v], axis=0)          # duplicate along w
            for dh in range(2):                           # duplicate along h
                s = (2 * ho + dh + 1) * Wp2 + (2 * wo + 1)
                pad3_ref[pl.ds(s, 2), :] = v2

    # ---------------- conv3 (128->64) + ReLU ----------------------------------
    acc3 = jnp.zeros((P2, 64), f32)
    for kh in range(3):
        for kw in range(3):
            patch = pad3_ref[pl.ds(kh * Wp2 + kw, P2), :].astype(bf16)
            acc3 = acc3 + jnp.dot(patch, w3_ref[kh * 3 + kw],
                                  preferred_element_type=f32)
    acc3 = jnp.maximum(acc3 + b3_ref[...], 0.0)          # valid at rows h*Wp2+w, w<W2

    # ---------------- 2x nearest upsample fused into conv4 input prep ---------
    pad4_ref[...] = jnp.zeros_like(pad4_ref)
    for h in range(H2):
        up = jnp.concatenate(
            [acc3[h * Wp2 + w:h * Wp2 + w + 1, :]
             for w in range(W2) for _ in (0, 1)], axis=0)  # (W, 64): w-duplicated row
        for dh in range(2):
            s = (2 * h + dh + 1) * Wp4 + 1
            pad4_ref[pl.ds(s, W), :] = up

    # ---------------- conv4 (64->1, no ReLU), chunks of 4 output rows ---------
    hc = 4
    rows = hc * Wp4
    for h0 in range(0, H, hc):
        acc4 = jnp.zeros((rows, 8), f32)
        for kh in range(3):
            for kw in range(3):
                patch = pad4_ref[pl.ds((h0 + kh) * Wp4 + kw, rows), :].astype(bf16)
                acc4 = acc4 + jnp.dot(patch, w4_ref[kh * 3 + kw],
                                      preferred_element_type=f32)
        acc4 = acc4 + b4_ref[...]
        for hh in range(hc):                              # strip junk columns
            out_ref[0, pl.ds((h0 + hh) * W, W), :] = (
                acc4[hh * Wp4:hh * Wp4 + W, :].astype(out_ref.dtype))


# ----------------------------------------------------------------------------
# Wrapper: NCHW in/out, all layers in one pallas_call.
# ----------------------------------------------------------------------------
def autoencoder_forward(x_nchw, params):
    N, C, H, W = x_nchw.shape
    assert C == 1 and H % 4 == 0 and W % 4 == 0
    H2, W2 = H // 2, W // 2
    Wp2, Wp4 = W2 + 2, W + 2

    # conv1 im2col (tiny, on the raw input) so conv1 is a single K=16 matmul.
    x = x_nchw[:, 0, :, :]
    xp = jnp.pad(x, ((0, 0), (1, 1), (1, 1)))
    taps = [xp[:, kh:kh + H, kw:kw + W] for kh in range(3) for kw in range(3)]
    cols = jnp.stack(taps, axis=-1)                       # (N, H, W, 9)
    # Group rows by 2x2 pool-window parity -> in-kernel pool = 4 block maxes.
    blocks = [cols[:, dh::2, dw::2, :].reshape(N, H2 * W2, 9)
              for dh in range(2) for dw in range(2)]
    cols = jnp.concatenate(blocks, axis=1)                # (N, H*W, 9)
    cols = jnp.pad(cols, ((0, 0), (0, 0), (0, 7))).astype(jnp.bfloat16)

    # Weights to bf16 (single-pass MXU, half the HBM traffic); pad conv1's K
    # 9->16 and conv4's Cout 1->8 with zeros (exact no-ops).
    w1 = jnp.pad(params["w1"].reshape(9, 64), ((0, 7), (0, 0))).astype(jnp.bfloat16)
    w2 = params["w2"].astype(jnp.bfloat16)
    w3 = params["w3"].astype(jnp.bfloat16)
    w4 = jnp.pad(params["w4"], ((0, 0), (0, 0), (0, 7))).astype(jnp.bfloat16)
    b1, b2, b3 = params["b1"], params["b2"], params["b3"]
    b4 = jnp.pad(params["b4"], ((0, 0), (0, 7)))

    rows2 = _round_up((H2 + 2) * Wp2 + 2, 8)              # padded flat rows + slack
    rows4 = _round_up((H + 2) * Wp4 + 2, 8)

    kernel = functools.partial(_fused_autoencoder_kernel, H=H, W=W)
    out = pl.pallas_call(
        kernel,
        out_shape=jax.ShapeDtypeStruct((N, H * W, 8), jnp.float32),
        grid_spec=pltpu.PrefetchScalarGridSpec(
            num_scalar_prefetch=0,
            grid=(N,),
            in_specs=[
                pl.BlockSpec((1, H * W, 16), lambda n: (n, 0, 0)),   # cols
                pl.BlockSpec((16, 64), lambda n: (0, 0)),            # w1
                pl.BlockSpec((1, 64), lambda n: (0, 0)),             # b1
                pl.BlockSpec((9, 64, 128), lambda n: (0, 0, 0)),     # w2
                pl.BlockSpec((1, 128), lambda n: (0, 0)),            # b2
                pl.BlockSpec((9, 128, 64), lambda n: (0, 0, 0)),     # w3
                pl.BlockSpec((1, 64), lambda n: (0, 0)),             # b3
                pl.BlockSpec((9, 64, 8), lambda n: (0, 0, 0)),       # w4
                pl.BlockSpec((1, 8), lambda n: (0, 0)),              # b4
            ],
            out_specs=pl.BlockSpec((1, H * W, 8), lambda n: (n, 0, 0)),
            scratch_shapes=[
                pltpu.VMEM((rows2, 64), jnp.float32),     # conv2 padded input
                pltpu.VMEM((rows2, 128), jnp.float32),    # conv3 padded input
                pltpu.VMEM((rows4, 64), jnp.float32),     # conv4 padded input
            ]),
        compiler_params=pltpu.CompilerParams(
            dimension_semantics=("parallel",)),           # batch across v7x cores
    )(cols, w1, b1, w2, b2, w3, b3, w4, b4)

    # channel 0 holds the real 1-channel output; rows are h*W + w.
    return out[:, :, 0].reshape(N, 1, H, W)


def init_params(key):
    # Weight layout: (tap = kh*3 + kw, Cin, Cout); torch Conv2d weight
    # (Cout, Cin, kh, kw) maps as w[kh*3+kw, cin, cout] = w_torch[cout, cin, kh, kw].
    def init_conv(kw_, kb, cin, cout):
        std = (2.0 / (9 * cin)) ** 0.5
        w = std * jax.random.normal(kw_, (9, cin, cout), dtype=jnp.float32)
        b = 0.01 * jax.random.normal(kb, (1, cout), dtype=jnp.float32)
        return w, b

    ks = jax.random.split(key, 8)
    w1, b1 = init_conv(ks[0], ks[1], 1, 64)
    w2, b2 = init_conv(ks[2], ks[3], 64, 128)
    w3, b3 = init_conv(ks[4], ks[5], 128, 64)
    w4, b4 = init_conv(ks[6], ks[7], 64, 1)
    return dict(w1=w1, b1=b1, w2=w2, b2=b2, w3=w3, b3=b3, w4=w4, b4=b4)


if __name__ == "__main__":
    root = jax.random.PRNGKey(0)
    k_x, k_p = jax.random.split(root)
    x = jax.random.normal(k_x, (2, 1, 16, 16), dtype=jnp.float32)  # NCHW like torch
    params = init_params(k_p)

    fwd = jax.jit(autoencoder_forward)
    y = fwd(x, params)
    jax.block_until_ready(y)

    assert y.shape == (2, 1, 16, 16), y.shape
    assert y.dtype == jnp.float32
    print("KERNEL_OK")
</pallas_src>

<mosaic_0001>
module attributes {stable_mosaic.version = 11 : i64} {
  func.func @_fused_autoencoder_kernel(%arg0: i32, %arg1: memref<1x256x16xbf16, #tpu.memory_space<vmem>>, %arg2: memref<16x64xbf16, #tpu.memory_space<vmem>>, %arg3: memref<1x64xf32, #tpu.memory_space<vmem>>, %arg4: memref<9x64x128xbf16, #tpu.memory_space<vmem>>, %arg5: memref<1x128xf32, #tpu.memory_space<vmem>>, %arg6: memref<9x128x64xbf16, #tpu.memory_space<vmem>>, %arg7: memref<1x64xf32, #tpu.memory_space<vmem>>, %arg8: memref<9x64x8xbf16, #tpu.memory_space<vmem>>, %arg9: memref<1x8xf32, #tpu.memory_space<vmem>>, %arg10: memref<1x256x8xf32, #tpu.memory_space<vmem>>, %arg11: memref<104x64xf32, #tpu.memory_space<vmem>>, %arg12: memref<104x128xf32, #tpu.memory_space<vmem>>, %arg13: memref<328x64xf32, #tpu.memory_space<vmem>>) attributes {dimension_semantics = [#tpu.dimension_semantics<parallel>], iteration_bounds = array<i64: 2>, scalar_prefetch = 0 : i64, scratch_operands = 3 : i64, tpu.core_type = #tpu.core_type<tc>, window_params = [{transform_indices = @transform_0, window_bounds = array<i64: 1, 256, 16>}, {pipeline_mode = #tpu.pipeline_mode<synchronous>, transform_indices = @transform_1, window_bounds = array<i64: 16, 64>}, {pipeline_mode = #tpu.pipeline_mode<synchronous>, transform_indices = @transform_2, window_bounds = array<i64: 1, 64>}, {pipeline_mode = #tpu.pipeline_mode<synchronous>, transform_indices = @transform_3, window_bounds = array<i64: 9, 64, 128>}, {pipeline_mode = #tpu.pipeline_mode<synchronous>, transform_indices = @transform_4, window_bounds = array<i64: 1, 128>}, {pipeline_mode = #tpu.pipeline_mode<synchronous>, transform_indices = @transform_5, window_bounds = array<i64: 9, 128, 64>}, {pipeline_mode = #tpu.pipeline_mode<synchronous>, transform_indices = @transform_6, window_bounds = array<i64: 1, 64>}, {pipeline_mode = #tpu.pipeline_mode<synchronous>, transform_indices = @transform_7, window_bounds = array<i64: 9, 64, 8>}, {pipeline_mode = #tpu.pipeline_mode<synchronous>, transform_indices = @transform_8, window_bounds = array<i64: 1, 8>}, {transform_indices = @transform_9, window_bounds = array<i64: 1, 256, 8>}]} {
    %c0 = arith.constant 0 : index
    %c0_0 = arith.constant 0 : index
    %c0_1 = arith.constant 0 : index
    %0 = vector.load %arg1[%c0, %c0_0, %c0_1] : memref<1x256x16xbf16, #tpu.memory_space<vmem>>, vector<1x64x16xbf16>
    %1 = vector.shape_cast %0 : vector<1x64x16xbf16> to vector<64x16xbf16>
    %c0_2 = arith.constant 0 : index
    %c0_3 = arith.constant 0 : index
    %2 = vector.load %arg2[%c0_2, %c0_3] : memref<16x64xbf16, #tpu.memory_space<vmem>>, vector<16x64xbf16>
    %cst = arith.constant dense<0.000000e+00> : vector<64x64xf32>
    %3 = tpu.matmul %1, %2, %cst {dimension_numbers = #tpu.dot_dimension_numbers<[1], [0], [0], [1], [0, 0, 1, 1], [], []>} : vector<64x16xbf16>, vector<16x64xbf16>, vector<64x64xf32> -> vector<64x64xf32>
    %c0_4 = arith.constant 0 : index
    %c0_5 = arith.constant 0 : index
    %4 = vector.load %arg3[%c0_4, %c0_5] : memref<1x64xf32, #tpu.memory_space<vmem>>, vector<1x64xf32>
    %5 = vector.broadcast %4 : vector<1x64xf32> to vector<64x64xf32>
    %6 = arith.addf %3, %5 : vector<64x64xf32>
    %cst_6 = arith.constant 0.000000e+00 : f32
    %7 = vector.broadcast %cst_6 : f32 to vector<64x64xf32>
    %8 = arith.maximumf %6, %7 : vector<64x64xf32>
    %c0_7 = arith.constant 0 : index
    %c64 = arith.constant 64 : index
    %c0_8 = arith.constant 0 : index
    %9 = vector.load %arg1[%c0_7, %c64, %c0_8] : memref<1x256x16xbf16, #tpu.memory_space<vmem>>, vector<1x64x16xbf16>
    %10 = vector.shape_cast %9 : vector<1x64x16xbf16> to vector<64x16xbf16>
    %c0_9 = arith.constant 0 : index
    %c0_10 = arith.constant 0 : index
    %11 = vector.load %arg2[%c0_9, %c0_10] : memref<16x64xbf16, #tpu.memory_space<vmem>>, vector<16x64xbf16>
    %cst_11 = arith.constant dense<0.000000e+00> : vector<64x64xf32>
    %12 = tpu.matmul %10, %11, %cst_11 {dimension_numbers = #tpu.dot_dimension_numbers<[1], [0], [0], [1], [0, 0, 1, 1], [], []>} : vector<64x16xbf16>, vector<16x64xbf16>, vector<64x64xf32> -> vector<64x64xf32>
    %c0_12 = arith.constant 0 : index
    %c0_13 = arith.constant 0 : index
    %13 = vector.load %arg3[%c0_12, %c0_13] : memref<1x64xf32, #tpu.memory_space<vmem>>, vector<1x64xf32>
    %14 = vector.broadcast %13 : vector<1x64xf32> to vector<64x64xf32>
    %15 = arith.addf %12, %14 : vector<64x64xf32>
    %cst_14 = arith.constant 0.000000e+00 : f32
    %16 = vector.broadcast %cst_14 : f32 to vector<64x64xf32>
    %17 = arith.maximumf %15, %16 : vector<64x64xf32>
    %18 = arith.maximumf %8, %17 : vector<64x64xf32>
    %c0_15 = arith.constant 0 : index
    %c128 = arith.constant 128 : index
    %c0_16 = arith.constant 0 : index
    %19 = vector.load %arg1[%c0_15, %c128, %c0_16] : memref<1x256x16xbf16, #tpu.memory_space<vmem>>, vector<1x64x16xbf16>
    %20 = vector.shape_cast %19 : vector<1x64x16xbf16> to vector<64x16xbf16>
    %c0_17 = arith.constant 0 : index
    %c0_18 = arith.constant 0 : index
    %21 = vector.load %arg2[%c0_17, %c0_18] : memref<16x64xbf16, #tpu.memory_space<vmem>>, vector<16x64xbf16>
    %cst_19 = arith.constant dense<0.000000e+00> : vector<64x64xf32>
    %22 = tpu.matmul %20, %21, %cst_19 {dimension_numbers = #tpu.dot_dimension_numbers<[1], [0], [0], [1], [0, 0, 1, 1], [], []>} : vector<64x16xbf16>, vector<16x64xbf16>, vector<64x64xf32> -> vector<64x64xf32>
    %c0_20 = arith.constant 0 : index
    %c0_21 = arith.constant 0 : index
    %23 = vector.load %arg3[%c0_20, %c0_21] : memref<1x64xf32, #tpu.memory_space<vmem>>, vector<1x64xf32>
    %24 = vector.broadcast %23 : vector<1x64xf32> to vector<64x64xf32>
    %25 = arith.addf %22, %24 : vector<64x64xf32>
    %cst_22 = arith.constant 0.000000e+00 : f32
    %26 = vector.broadcast %cst_22 : f32 to vector<64x64xf32>
    %27 = arith.maximumf %25, %26 : vector<64x64xf32>
    %28 = arith.maximumf %18, %27 : vector<64x64xf32>
    %c0_23 = arith.constant 0 : index
    %c192 = arith.constant 192 : index
    %c0_24 = arith.constant 0 : index
    %29 = vector.load %arg1[%c0_23, %c192, %c0_24] : memref<1x256x16xbf16, #tpu.memory_space<vmem>>, vector<1x64x16xbf16>
    %30 = vector.shape_cast %29 : vector<1x64x16xbf16> to vector<64x16xbf16>
    %c0_25 = arith.constant 0 : index
    %c0_26 = arith.constant 0 : index
    %31 = vector.load %arg2[%c0_25, %c0_26] : memref<16x64xbf16, #tpu.memory_space<vmem>>, vector<16x64xbf16>
    %cst_27 = arith.constant dense<0.000000e+00> : vector<64x64xf32>
    %32 = tpu.matmul %30, %31, %cst_27 {dimension_numbers = #tpu.dot_dimension_numbers<[1], [0], [0], [1], [0, 0, 1, 1], [], []>} : vector<64x16xbf16>, vector<16x64xbf16>, vector<64x64xf32> -> vector<64x64xf32>
    %c0_28 = arith.constant 0 : index
    %c0_29 = arith.constant 0 : index
    %33 = vector.load %arg3[%c0_28, %c0_29] : memref<1x64xf32, #tpu.memory_space<vmem>>, vector<1x64xf32>
    %34 = vector.broadcast %33 : vector<1x64xf32> to vector<64x64xf32>
    %35 = arith.addf %32, %34 : vector<64x64xf32>
    %cst_30 = arith.constant 0.000000e+00 : f32
    %36 = vector.broadcast %cst_30 : f32 to vector<64x64xf32>
    %37 = arith.maximumf %35, %36 : vector<64x64xf32>
    %38 = arith.maximumf %28, %37 : vector<64x64xf32>
    %cst_31 = arith.constant 0.000000e+00 : f32
    %39 = vector.broadcast %cst_31 : f32 to vector<104x64xf32>
    %c0_32 = arith.constant 0 : index
    %c0_33 = arith.constant 0 : index
    %40 = vector.load %arg11[%c0_32, %c0_33] : memref<104x64xf32, #tpu.memory_space<vmem>>, vector<104x64xf32>
    tpu.vector_store %arg11[%c0_32, %c0_33], %39 {strides = array<i32>} : memref<104x64xf32, #tpu.memory_space<vmem>>, vector<104x64xf32>,
    %41 = vector.extract_strided_slice %38 {offsets = [0, 0], sizes = [8, 64], strides = [1, 1]} : vector<64x64xf32> to vector<8x64xf32>
    %c11 = arith.constant 11 : index
    %c0_34 = arith.constant 0 : index
    %42 = vector.load %arg11[%c11, %c0_34] : memref<104x64xf32, #tpu.memory_space<vmem>>, vector<8x64xf32>
    tpu.vector_store %arg11[%c11, %c0_34], %41 {strides = array<i32>} : memref<104x64xf32, #tpu.memory_space<vmem>>, vector<8x64xf32>,
    %43 = vector.extract_strided_slice %38 {offsets = [8, 0], sizes = [8, 64], strides = [1, 1]} : vector<64x64xf32> to vector<8x64xf32>
    %c21 = arith.constant 21 : index
    %c0_35 = arith.constant 0 : index
    %44 = vector.load %arg11[%c21, %c0_35] : memref<104x64xf32, #tpu.memory_space<vmem>>, vector<8x64xf32>
    tpu.vector_store %arg11[%c21, %c0_35], %43 {strides = array<i32>} : memref<104x64xf32, #tpu.memory_space<vmem>>, vector<8x64xf32>,
    %45 = vector.extract_strided_slice %38 {offsets = [16, 0], sizes = [8, 64], strides = [1, 1]} : vector<64x64xf32> to vector<8x64xf32>
    %c31 = arith.constant 31 : index
    %c0_36 = arith.constant 0 : index
    %46 = vector.load %arg11[%c31, %c0_36] : memref<104x64xf32, #tpu.memory_space<vmem>>, vector<8x64xf32>
    tpu.vector_store %arg11[%c31, %c0_36], %45 {strides = array<i32>} : memref<104x64xf32, #tpu.memory_space<vmem>>, vector<8x64xf32>,
    %47 = vector.extract_strided_slice %38 {offsets = [24, 0], sizes = [8, 64], strides = [1, 1]} : vector<64x64xf32> to vector<8x64xf32>
    %c41 = arith.constant 41 : index
    %c0_37 = arith.constant 0 : index
    %48 = vector.load %arg11[%c41, %c0_37] : memref<104x64xf32, #tpu.memory_space<vmem>>, vector<8x64xf32>
    tpu.vector_store %arg11[%c41, %c0_37], %47 {strides = array<i32>} : memref<104x64xf32, #tpu.memory_space<vmem>>, vector<8x64xf32>,
    %49 = vector.extract_strided_slice %38 {offsets = [32, 0], sizes = [8, 64], strides = [1, 1]} : vector<64x64xf32> to vector<8x64xf32>
    %c51 = arith.constant 51 : index
    %c0_38 = arith.constant 0 : index
    %50 = vector.load %arg11[%c51, %c0_38] : memref<104x64xf32, #tpu.memory_space<vmem>>, vector<8x64xf32>
    tpu.vector_store %arg11[%c51, %c0_38], %49 {strides = array<i32>} : memref<104x64xf32, #tpu.memory_space<vmem>>, vector<8x64xf32>,
    %51 = vector.extract_strided_slice %38 {offsets = [40, 0], sizes = [8, 64], strides = [1, 1]} : vector<64x64xf32> to vector<8x64xf32>
    %c61 = arith.constant 61 : index
    %c0_39 = arith.constant 0 : index
    %52 = vector.load %arg11[%c61, %c0_39] : memref<104x64xf32, #tpu.memory_space<vmem>>, vector<8x64xf32>
    tpu.vector_store %arg11[%c61, %c0_39], %51 {strides = array<i32>} : memref<104x64xf32, #tpu.memory_space<vmem>>, vector<8x64xf32>,
    %53 = vector.extract_strided_slice %38 {offsets = [48, 0], sizes = [8, 64], strides = [1, 1]} : vector<64x64xf32> to vector<8x64xf32>
    %c71 = arith.constant 71 : index
    %c0_40 = arith.constant 0 : index
    %54 = vector.load %arg11[%c71, %c0_40] : memref<104x64xf32, #tpu.memory_space<vmem>>, vector<8x64xf32>
    tpu.vector_store %arg11[%c71, %c0_40], %53 {strides = array<i32>} : memref<104x64xf32, #tpu.memory_space<vmem>>, vector<8x64xf32>,
    %55 = vector.extract_strided_slice %38 {offsets = [56, 0], sizes = [8, 64], strides = [1, 1]} : vector<64x64xf32> to vector<8x64xf32>
    %c81 = arith.constant 81 : index
    %c0_41 = arith.constant 0 : index
    %56 = vector.load %arg11[%c81, %c0_41] : memref<104x64xf32, #tpu.memory_space<vmem>>, vector<8x64xf32>
    tpu.vector_store %arg11[%c81, %c0_41], %55 {strides = array<i32>} : memref<104x64xf32, #tpu.memory_space<vmem>>, vector<8x64xf32>,
    %cst_42 = arith.constant 0.000000e+00 : f32
    %57 = vector.broadcast %cst_42 : f32 to vector<80x128xf32>
    %c0_43 = arith.constant 0 : index
    %c0_44 = arith.constant 0 : index
    %58 = vector.load %arg11[%c0_43, %c0_44] : memref<104x64xf32, #tpu.memory_space<vmem>>, vector<80x64xf32>
    %59 = arith.truncf %58 : vector<80x64xf32> to vector<80x64xbf16>
    %c0_45 = arith.constant 0 : index
    %c0_46 = arith.constant 0 : index
    %c0_47 = arith.constant 0 : index
    %60 = vector.load %arg4[%c0_45, %c0_46, %c0_47] : memref<9x64x128xbf16, #tpu.memory_space<vmem>>, vector<1x64x128xbf16>
    %61 = vector.shape_cast %60 : vector<1x64x128xbf16> to vector<64x128xbf16>
    %cst_48 = arith.constant dense<0.000000e+00> : vector<80x128xf32>
    %62 = tpu.matmul %59, %61, %cst_48 {dimension_numbers = #tpu.dot_dimension_numbers<[1], [0], [0], [1], [0, 0, 1, 1], [], []>} : vector<80x64xbf16>, vector<64x128xbf16>, vector<80x128xf32> -> vector<80x128xf32>
    %63 = arith.addf %57, %62 : vector<80x128xf32>
    %c1 = arith.constant 1 : index
    %c0_49 = arith.constant 0 : index
    %64 = vector.load %arg11[%c1, %c0_49] : memref<104x64xf32, #tpu.memory_space<vmem>>, vector<80x64xf32>
    %65 = arith.truncf %64 : vector<80x64xf32> to vector<80x64xbf16>
    %c1_50 = arith.constant 1 : index
    %c0_51 = arith.constant 0 : index
    %c0_52 = arith.constant 0 : index
    %66 = vector.load %arg4[%c1_50, %c0_51, %c0_52] : memref<9x64x128xbf16, #tpu.memory_space<vmem>>, vector<1x64x128xbf16>
    %67 = vector.shape_cast %66 : vector<1x64x128xbf16> to vector<64x128xbf16>
    %cst_53 = arith.constant dense<0.000000e+00> : vector<80x128xf32>
    %68 = tpu.matmul %65, %67, %cst_53 {dimension_numbers = #tpu.dot_dimension_numbers<[1], [0], [0], [1], [0, 0, 1, 1], [], []>} : vector<80x64xbf16>, vector<64x128xbf16>, vector<80x128xf32> -> vector<80x128xf32>
    %69 = arith.addf %63, %68 : vector<80x128xf32>
    %c2 = arith.constant 2 : index
    %c0_54 = arith.constant 0 : index
    %70 = vector.load %arg11[%c2, %c0_54] : memref<104x64xf32, #tpu.memory_space<vmem>>, vector<80x64xf32>
    %71 = arith.truncf %70 : vector<80x64xf32> to vector<80x64xbf16>
    %c2_55 = arith.constant 2 : index
    %c0_56 = arith.constant 0 : index
    %c0_57 = arith.constant 0 : index
    %72 = vector.load %arg4[%c2_55, %c0_56, %c0_57] : memref<9x64x128xbf16, #tpu.memory_space<vmem>>, vector<1x64x128xbf16>
    %73 = vector.shape_cast %72 : vector<1x64x128xbf16> to vector<64x128xbf16>
    %cst_58 = arith.constant dense<0.000000e+00> : vector<80x128xf32>
    %74 = tpu.matmul %71, %73, %cst_58 {dimension_numbers = #tpu.dot_dimension_numbers<[1], [0], [0], [1], [0, 0, 1, 1], [], []>} : vector<80x64xbf16>, vector<64x128xbf16>, vector<80x128xf32> -> vector<80x128xf32>
    %75 = arith.addf %69, %74 : vector<80x128xf32>
    %c10 = arith.constant 10 : index
    %c0_59 = arith.constant 0 : index
    %76 = vector.load %arg11[%c10, %c0_59] : memref<104x64xf32, #tpu.memory_space<vmem>>, vector<80x64xf32>
    %77 = arith.truncf %76 : vector<80x64xf32> to vector<80x64xbf16>
    %c3 = arith.constant 3 : index
    %c0_60 = arith.constant 0 : index
    %c0_61 = arith.constant 0 : index
    %78 = vector.load %arg4[%c3, %c0_60, %c0_61] : memref<9x64x128xbf16, #tpu.memory_space<vmem>>, vector<1x64x128xbf16>
    %79 = vector.shape_cast %78 : vector<1x64x128xbf16> to vector<64x128xbf16>
    %cst_62 = arith.constant dense<0.000000e+00> : vector<80x128xf32>
    %80 = tpu.matmul %77, %79, %cst_62 {dimension_numbers = #tpu.dot_dimension_numbers<[1], [0], [0], [1], [0, 0, 1, 1], [], []>} : vector<80x64xbf16>, vector<64x128xbf16>, vector<80x128xf32> -> vector<80x128xf32>
    %81 = arith.addf %75, %80 : vector<80x128xf32>
    %c11_63 = arith.constant 11 : index
    %c0_64 = arith.constant 0 : index
    %82 = vector.load %arg11[%c11_63, %c0_64] : memref<104x64xf32, #tpu.memory_space<vmem>>, vector<80x64xf32>
    %83 = arith.truncf %82 : vector<80x64xf32> to vector<80x64xbf16>
    %c4 = arith.constant 4 : index
    %c0_65 = arith.constant 0 : index
    %c0_66 = arith.constant 0 : index
    %84 = vector.load %arg4[%c4, %c0_65, %c0_66] : memref<9x64x128xbf16, #tpu.memory_space<vmem>>, vector<1x64x128xbf16>
    %85 = vector.shape_cast %84 : vector<1x64x128xbf16> to vector<64x128xbf16>
    %cst_67 = arith.constant dense<0.000000e+00> : vector<80x128xf32>
    %86 = tpu.matmul %83, %85, %cst_67 {dimension_numbers = #tpu.dot_dimension_numbers<[1], [0], [0], [1], [0, 0, 1, 1], [], []>} : vector<80x64xbf16>, vector<64x128xbf16>, vector<80x128xf32> -> vector<80x128xf32>
    %87 = arith.addf %81, %86 : vector<80x128xf32>
    %c12 = arith.constant 12 : index
    %c0_68 = arith.constant 0 : index
    %88 = vector.load %arg11[%c12, %c0_68] : memref<104x64xf32, #tpu.memory_space<vmem>>, vector<80x64xf32>
    %89 = arith.truncf %88 : vector<80x64xf32> to vector<80x64xbf16>
    %c5 = arith.constant 5 : index
    %c0_69 = arith.constant 0 : index
    %c0_70 = arith.constant 0 : index
    %90 = vector.load %arg4[%c5, %c0_69, %c0_70] : memref<9x64x128xbf16, #tpu.memory_space<vmem>>, vector<1x64x128xbf16>
    %91 = vector.shape_cast %90 : vector<1x64x128xbf16> to vector<64x128xbf16>
    %cst_71 = arith.constant dense<0.000000e+00> : vector<80x128xf32>
    %92 = tpu.matmul %89, %91, %cst_71 {dimension_numbers = #tpu.dot_dimension_numbers<[1], [0], [0], [1], [0, 0, 1, 1], [], []>} : vector<80x64xbf16>, vector<64x128xbf16>, vector<80x128xf32> -> vector<80x128xf32>
    %93 = arith.addf %87, %92 : vector<80x128xf32>
    %c20 = arith.constant 20 : index
    %c0_72 = arith.constant 0 : index
    %94 = vector.load %arg11[%c20, %c0_72] : memref<104x64xf32, #tpu.memory_space<vmem>>, vector<80x64xf32>
    %95 = arith.truncf %94 : vector<80x64xf32> to vector<80x64xbf16>
    %c6 = arith.constant 6 : index
    %c0_73 = arith.constant 0 : index
    %c0_74 = arith.constant 0 : index
    %96 = vector.load %arg4[%c6, %c0_73, %c0_74] : memref<9x64x128xbf16, #tpu.memory_space<vmem>>, vector<1x64x128xbf16>
    %97 = vector.shape_cast %96 : vector<1x64x128xbf16> to vector<64x128xbf16>
    %cst_75 = arith.constant dense<0.000000e+00> : vector<80x128xf32>
    %98 = tpu.matmul %95, %97, %cst_75 {dimension_numbers = #tpu.dot_dimension_numbers<[1], [0], [0], [1], [0, 0, 1, 1], [], []>} : vector<80x64xbf16>, vector<64x128xbf16>, vector<80x128xf32> -> vector<80x128xf32>
    %99 = arith.addf %93, %98 : vector<80x128xf32>
    %c21_76 = arith.constant 21 : index
    %c0_77 = arith.constant 0 : index
    %100 = vector.load %arg11[%c21_76, %c0_77] : memref<104x64xf32, #tpu.memory_space<vmem>>, vector<80x64xf32>
    %101 = arith.truncf %100 : vector<80x64xf32> to vector<80x64xbf16>
    %c7 = arith.constant 7 : index
    %c0_78 = arith.constant 0 : index
    %c0_79 = arith.constant 0 : index
    %102 = vector.load %arg4[%c7, %c0_78, %c0_79] : memref<9x64x128xbf16, #tpu.memory_space<vmem>>, vector<1x64x128xbf16>
    %103 = vector.shape_cast %102 : vector<1x64x128xbf16> to vector<64x128xbf16>
    %cst_80 = arith.constant dense<0.000000e+00> : vector<80x128xf32>
    %104 = tpu.matmul %101, %103, %cst_80 {dimension_numbers = #tpu.dot_dimension_numbers<[1], [0], [0], [1], [0, 0, 1, 1], [], []>} : vector<80x64xbf16>, vector<64x128xbf16>, vector<80x128xf32> -> vector<80x128xf32>
    %105 = arith.addf %99, %104 : vector<80x128xf32>
    %c22 = arith.constant 22 : index
    %c0_81 = arith.constant 0 : index
    %106 = vector.load %arg11[%c22, %c0_81] : memref<104x64xf32, #tpu.memory_space<vmem>>, vector<80x64xf32>
    %107 = arith.truncf %106 : vector<80x64xf32> to vector<80x64xbf16>
    %c8 = arith.constant 8 : index
    %c0_82 = arith.constant 0 : index
    %c0_83 = arith.constant 0 : index
    %108 = vector.load %arg4[%c8, %c0_82, %c0_83] : memref<9x64x128xbf16, #tpu.memory_space<vmem>>, vector<1x64x128xbf16>
    %109 = vector.shape_cast %108 : vector<1x64x128xbf16> to vector<64x128xbf16>
    %cst_84 = arith.constant dense<0.000000e+00> : vector<80x128xf32>
    %110 = tpu.matmul %107, %109, %cst_84 {dimension_numbers = #tpu.dot_dimension_numbers<[1], [0], [0], [1], [0, 0, 1, 1], [], []>} : vector<80x64xbf16>, vector<64x128xbf16>, vector<80x128xf32> -> vector<80x128xf32>
    %111 = arith.addf %105, %110 : vector<80x128xf32>
    %c0_85 = arith.constant 0 : index
    %c0_86 = arith.constant 0 : index
    %112 = vector.load %arg5[%c0_85, %c0_86] : memref<1x128xf32, #tpu.memory_space<vmem>>, vector<1x128xf32>
    %113 = vector.broadcast %112 : vector<1x128xf32> to vector<80x128xf32>
    %114 = arith.addf %111, %113 : vector<80x128xf32>
    %cst_87 = arith.constant 0.000000e+00 : f32
    %115 = vector.broadcast %cst_87 : f32 to vector<80x128xf32>
    %116 = arith.maximumf %114, %115 : vector<80x128xf32>
    %cst_88 = arith.constant 0.000000e+00 : f32
    %117 = vector.broadcast %cst_88 : f32 to vector<104x128xf32>
    %c0_89 = arith.constant 0 : index
    %c0_90 = arith.constant 0 : index
    %118 = vector.load %arg12[%c0_89, %c0_90] : memref<104x128xf32, #tpu.memory_space<vmem>>, vector<104x128xf32>
    tpu.vector_store %arg12[%c0_89, %c0_90], %117 {strides = array<i32>} : memref<104x128xf32, #tpu.memory_space<vmem>>, vector<104x128xf32>,
    %119 = vector.extract_strided_slice %116 {offsets = [0, 0], sizes = [1, 128], strides = [1, 1]} : vector<80x128xf32> to vector<1x128xf32>
    %120 = vector.extract_strided_slice %116 {offsets = [1, 0], sizes = [1, 128], strides = [1, 1]} : vector<80x128xf32> to vector<1x128xf32>
    %121 = arith.maximumf %119, %120 : vector<1x128xf32>
    %122 = vector.extract_strided_slice %116 {offsets = [10, 0], sizes = [1, 128], strides = [1, 1]} : vector<80x128xf32> to vector<1x128xf32>
    %123 = vector.extract_strided_slice %116 {offsets = [11, 0], sizes = [1, 128], strides = [1, 1]} : vector<80x128xf32> to vector<1x128xf32>
    %124 = arith.maximumf %122, %123 : vector<1x128xf32>
    %125 = arith.maximumf %121, %124 : vector<1x128xf32>
    %126 = tpu.concatenate %125, %125 in 0 : vector<1x128xf32>, vector<1x128xf32> -> vector<2x128xf32>
    %c11_91 = arith.constant 11 : index
    %c0_92 = arith.constant 0 : index
    %127 = vector.load %arg12[%c11_91, %c0_92] : memref<104x128xf32, #tpu.memory_space<vmem>>, vector<2x128xf32>
    tpu.vector_store %arg12[%c11_91, %c0_92], %126 {strides = array<i32>} : memref<104x128xf32, #tpu.memory_space<vmem>>, vector<2x128xf32>,
    %c21_93 = arith.constant 21 : index
    %c0_94 = arith.constant 0 : index
    %128 = vector.load %arg12[%c21_93, %c0_94] : memref<104x128xf32, #tpu.memory_space<vmem>>, vector<2x128xf32>
    tpu.vector_store %arg12[%c21_93, %c0_94], %126 {strides = array<i32>} : memref<104x128xf32, #tpu.memory_space<vmem>>, vector<2x128xf32>,
    %129 = vector.extract_strided_slice %116 {offsets = [2, 0], sizes = [1, 128], strides = [1, 1]} : vector<80x128xf32> to vector<1x128xf32>
    %130 = vector.extract_strided_slice %116 {offsets = [3, 0], sizes = [1, 128], strides = [1, 1]} : vector<80x128xf32> to vector<1x128xf32>
    %131 = arith.maximumf %129, %130 : vector<1x128xf32>
    %132 = vector.extract_strided_slice %116 {offsets = [12, 0], sizes = [1, 128], strides = [1, 1]} : vector<80x128xf32> to vector<1x128xf32>
    %133 = vector.extract_strided_slice %116 {offsets = [13, 0], sizes = [1, 128], strides = [1, 1]} : vector<80x128xf32> to vector<1x128xf32>
    %134 = arith.maximumf %132, %133 : vector<1x128xf32>
    %135 = arith.maximumf %131, %134 : vector<1x128xf32>
    %136 = tpu.concatenate %135, %135 in 0 : vector<1x128xf32>, vector<1x128xf32> -> vector<2x128xf32>
    %c13 = arith.constant 13 : index
    %c0_95 = arith.constant 0 : index
    %137 = vector.load %arg12[%c13, %c0_95] : memref<104x128xf32, #tpu.memory_space<vmem>>, vector<2x128xf32>
    tpu.vector_store %arg12[%c13, %c0_95], %136 {strides = array<i32>} : memref<104x128xf32, #tpu.memory_space<vmem>>, vector<2x128xf32>,
    %c23 = arith.constant 23 : index
    %c0_96 = arith.constant 0 : index
    %138 = vector.load %arg12[%c23, %c0_96] : memref<104x128xf32, #tpu.memory_space<vmem>>, vector<2x128xf32>
    tpu.vector_store %arg12[%c23, %c0_96], %136 {strides = array<i32>} : memref<104x128xf32, #tpu.memory_space<vmem>>, vector<2x128xf32>,
    %139 = vector.extract_strided_slice %116 {offsets = [4, 0], sizes = [1, 128], strides = [1, 1]} : vector<80x128xf32> to vector<1x128xf32>
    %140 = vector.extract_strided_slice %116 {offsets = [5, 0], sizes = [1, 128], strides = [1, 1]} : vector<80x128xf32> to vector<1x128xf32>
    %141 = arith.maximumf %139, %140 : vector<1x128xf32>
    %142 = vector.extract_strided_slice %116 {offsets = [14, 0], sizes = [1, 128], strides = [1, 1]} : vector<80x128xf32> to vector<1x128xf32>
    %143 = vector.extract_strided_slice %116 {offsets = [15, 0], sizes = [1, 128], strides = [1, 1]} : vector<80x128xf32> to vector<1x128xf32>
    %144 = arith.maximumf %142, %143 : vector<1x128xf32>
    %145 = arith.maximumf %141, %144 : vector<1x128xf32>
    %146 = tpu.concatenate %145, %145 in 0 : vector<1x128xf32>, vector<1x128xf32> -> vector<2x128xf32>
    %c15 = arith.constant 15 : index
    %c0_97 = arith.constant 0 : index
    %147 = vector.load %arg12[%c15, %c0_97] : memref<104x128xf32, #tpu.memory_space<vmem>>, vector<2x128xf32>
    tpu.vector_store %arg12[%c15, %c0_97], %146 {strides = array<i32>} : memref<104x128xf32, #tpu.memory_space<vmem>>, vector<2x128xf32>,
    %c25 = arith.constant 25 : index
    %c0_98 = arith.constant 0 : index
    %148 = vector.load %arg12[%c25, %c0_98] : memref<104x128xf32, #tpu.memory_space<vmem>>, vector<2x128xf32>
    tpu.vector_store %arg12[%c25, %c0_98], %146 {strides = array<i32>} : memref<104x128xf32, #tpu.memory_space<vmem>>, vector<2x128xf32>,
    %149 = vector.extract_strided_slice %116 {offsets = [6, 0], sizes = [1, 128], strides = [1, 1]} : vector<80x128xf32> to vector<1x128xf32>
    %150 = vector.extract_strided_slice %116 {offsets = [7, 0], sizes = [1, 128], strides = [1, 1]} : vector<80x128xf32> to vector<1x128xf32>
    %151 = arith.maximumf %149, %150 : vector<1x128xf32>
    %152 = vector.extract_strided_slice %116 {offsets = [16, 0], sizes = [1, 128], strides = [1, 1]} : vector<80x128xf32> to vector<1x128xf32>
    %153 = vector.extract_strided_slice %116 {offsets = [17, 0], sizes = [1, 128], strides = [1, 1]} : vector<80x128xf32> to vector<1x128xf32>
    %154 = arith.maximumf %152, %153 : vector<1x128xf32>
    %155 = arith.maximumf %151, %154 : vector<1x128xf32>
    %156 = tpu.concatenate %155, %155 in 0 : vector<1x128xf32>, vector<1x128xf32> -> vector<2x128xf32>
    %c17 = arith.constant 17 : index
    %c0_99 = arith.constant 0 : index
    %157 = vector.load %arg12[%c17, %c0_99] : memref<104x128xf32, #tpu.memory_space<vmem>>, vector<2x128xf32>
    tpu.vector_store %arg12[%c17, %c0_99], %156 {strides = array<i32>} : memref<104x128xf32, #tpu.memory_space<vmem>>, vector<2x128xf32>,
    %c27 = arith.constant 27 : index
    %c0_100 = arith.constant 0 : index
    %158 = vector.load %arg12[%c27, %c0_100] : memref<104x128xf32, #tpu.memory_space<vmem>>, vector<2x128xf32>
    tpu.vector_store %arg12[%c27, %c0_100], %156 {strides = array<i32>} : memref<104x128xf32, #tpu.memory_space<vmem>>, vector<2x128xf32>,
    %159 = vector.extract_strided_slice %116 {offsets = [20, 0], sizes = [1, 128], strides = [1, 1]} : vector<80x128xf32> to vector<1x128xf32>
    %160 = vector.extract_strided_slice %116 {offsets = [21, 0], sizes = [1, 128], strides = [1, 1]} : vector<80x128xf32> to vector<1x128xf32>
    %161 = arith.maximumf %159, %160 : vector<1x128xf32>
    %162 = vector.extract_strided_slice %116 {offsets = [30, 0], sizes = [1, 128], strides = [1, 1]} : vector<80x128xf32> to vector<1x128xf32>
    %163 = vector.extract_strided_slice %116 {offsets = [31, 0], sizes = [1, 128], strides = [1, 1]} : vector<80x128xf32> to vector<1x128xf32>
    %164 = arith.maximumf %162, %163 : vector<1x128xf32>
    %165 = arith.maximumf %161, %164 : vector<1x128xf32>
    %166 = tpu.concatenate %165, %165 in 0 : vector<1x128xf32>, vector<1x128xf32> -> vector<2x128xf32>
    %c31_101 = arith.constant 31 : index
    %c0_102 = arith.constant 0 : index
    %167 = vector.load %arg12[%c31_101, %c0_102] : memref<104x128xf32, #tpu.memory_space<vmem>>, vector<2x128xf32>
    tpu.vector_store %arg12[%c31_101, %c0_102], %166 {strides = array<i32>} : memref<104x128xf32, #tpu.memory_space<vmem>>, vector<2x128xf32>,
    %c41_103 = arith.constant 41 : index
    %c0_104 = arith.constant 0 : index
    %168 = vector.load %arg12[%c41_103, %c0_104] : memref<104x128xf32, #tpu.memory_space<vmem>>, vector<2x128xf32>
    tpu.vector_store %arg12[%c41_103, %c0_104], %166 {strides = array<i32>} : memref<104x128xf32, #tpu.memory_space<vmem>>, vector<2x128xf32>,
    %169 = vector.extract_strided_slice %116 {offsets = [22, 0], sizes = [1, 128], strides = [1, 1]} : vector<80x128xf32> to vector<1x128xf32>
    %170 = vector.extract_strided_slice %116 {offsets = [23, 0], sizes = [1, 128], strides = [1, 1]} : vector<80x128xf32> to vector<1x128xf32>
    %171 = arith.maximumf %169, %170 : vector<1x128xf32>
    %172 = vector.extract_strided_slice %116 {offsets = [32, 0], sizes = [1, 128], strides = [1, 1]} : vector<80x128xf32> to vector<1x128xf32>
    %173 = vector.extract_strided_slice %116 {offsets = [33, 0], sizes = [1, 128], strides = [1, 1]} : vector<80x128xf32> to vector<1x128xf32>
    %174 = arith.maximumf %172, %173 : vector<1x128xf32>
    %175 = arith.maximumf %171, %174 : vector<1x128xf32>
    %176 = tpu.concatenate %175, %175 in 0 : vector<1x128xf32>, vector<1x128xf32> -> vector<2x128xf32>
    %c33 = arith.constant 33 : index
    %c0_105 = arith.constant 0 : index
    %177 = vector.load %arg12[%c33, %c0_105] : memref<104x128xf32, #tpu.memory_space<vmem>>, vector<2x128xf32>
    tpu.vector_store %arg12[%c33, %c0_105], %176 {strides = array<i32>} : memref<104x128xf32, #tpu.memory_space<vmem>>, vector<2x128xf32>,
    %c43 = arith.constant 43 : index
    %c0_106 = arith.constant 0 : index
    %178 = vector.load %arg12[%c43, %c0_106] : memref<104x128xf32, #tpu.memory_space<vmem>>, vector<2x128xf32>
    tpu.vector_store %arg12[%c43, %c0_106], %176 {strides = array<i32>} : memref<104x128xf32, #tpu.memory_space<vmem>>, vector<2x128xf32>,
    %179 = vector.extract_strided_slice %116 {offsets = [24, 0], sizes = [1, 128], strides = [1, 1]} : vector<80x128xf32> to vector<1x128xf32>
    %180 = vector.extract_strided_slice %116 {offsets = [25, 0], sizes = [1, 128], strides = [1, 1]} : vector<80x128xf32> to vector<1x128xf32>
    %181 = arith.maximumf %179, %180 : vector<1x128xf32>
    %182 = vector.extract_strided_slice %116 {offsets = [34, 0], sizes = [1, 128], strides = [1, 1]} : vector<80x128xf32> to vector<1x128xf32>
    %183 = vector.extract_strided_slice %116 {offsets = [35, 0], sizes = [1, 128], strides = [1, 1]} : vector<80x128xf32> to vector<1x128xf32>
    %184 = arith.maximumf %182, %183 : vector<1x128xf32>
    %185 = arith.maximumf %181, %184 : vector<1x128xf32>
    %186 = tpu.concatenate %185, %185 in 0 : vector<1x128xf32>, vector<1x128xf32> -> vector<2x128xf32>
    %c35 = arith.constant 35 : index
    %c0_107 = arith.constant 0 : index
    %187 = vector.load %arg12[%c35, %c0_107] : memref<104x128xf32, #tpu.memory_space<vmem>>, vector<2x128xf32>
    tpu.vector_store %arg12[%c35, %c0_107], %186 {strides = array<i32>} : memref<104x128xf32, #tpu.memory_space<vmem>>, vector<2x128xf32>,
    %c45 = arith.constant 45 : index
    %c0_108 = arith.constant 0 : index
    %188 = vector.load %arg12[%c45, %c0_108] : memref<104x128xf32, #tpu.memory_space<vmem>>, vector<2x128xf32>
    tpu.vector_store %arg12[%c45, %c0_108], %186 {strides = array<i32>} : memref<104x128xf32, #tpu.memory_space<vmem>>, vector<2x128xf32>,
    %189 = vector.extract_strided_slice %116 {offsets = [26, 0], sizes = [1, 128], strides = [1, 1]} : vector<80x128xf32> to vector<1x128xf32>
    %190 = vector.extract_strided_slice %116 {offsets = [27, 0], sizes = [1, 128], strides = [1, 1]} : vector<80x128xf32> to vector<1x128xf32>
    %191 = arith.maximumf %189, %190 : vector<1x128xf32>
    %192 = vector.extract_strided_slice %116 {offsets = [36, 0], sizes = [1, 128], strides = [1, 1]} : vector<80x128xf32> to vector<1x128xf32>
    %193 = vector.extract_strided_slice %116 {offsets = [37, 0], sizes = [1, 128], strides = [1, 1]} : vector<80x128xf32> to vector<1x128xf32>
    %194 = arith.maximumf %192, %193 : vector<1x128xf32>
    %195 = arith.maximumf %191, %194 : vector<1x128xf32>
    %196 = tpu.concatenate %195, %195 in 0 : vector<1x128xf32>, vector<1x128xf32> -> vector<2x128xf32>
    %c37 = arith.constant 37 : index
    %c0_109 = arith.constant 0 : index
    %197 = vector.load %arg12[%c37, %c0_109] : memref<104x128xf32, #tpu.memory_space<vmem>>, vector<2x128xf32>
    tpu.vector_store %arg12[%c37, %c0_109], %196 {strides = array<i32>} : memref<104x128xf32, #tpu.memory_space<vmem>>, vector<2x128xf32>,
    %c47 = arith.constant 47 : index
    %c0_110 = arith.constant 0 : index
    %198 = vector.load %arg12[%c47, %c0_110] : memref<104x128xf32, #tpu.memory_space<vmem>>, vector<2x128xf32>
    tpu.vector_store %arg12[%c47, %c0_110], %196 {strides = array<i32>} : memref<104x128xf32, #tpu.memory_space<vmem>>, vector<2x128xf32>,
    %199 = vector.extract_strided_slice %116 {offsets = [40, 0], sizes = [1, 128], strides = [1, 1]} : vector<80x128xf32> to vector<1x128xf32>
    %200 = vector.extract_strided_slice %116 {offsets = [41, 0], sizes = [1, 128], strides = [1, 1]} : vector<80x128xf32> to vector<1x128xf32>
    %201 = arith.maximumf %199, %200 : vector<1x128xf32>
    %202 = vector.extract_strided_slice %116 {offsets = [50, 0], sizes = [1, 128], strides = [1, 1]} : vector<80x128xf32> to vector<1x128xf32>
    %203 = vector.extract_strided_slice %116 {offsets = [51, 0], sizes = [1, 128], strides = [1, 1]} : vector<80x128xf32> to vector<1x128xf32>
    %204 = arith.maximumf %202, %203 : vector<1x128xf32>
    %205 = arith.maximumf %201, %204 : vector<1x128xf32>
    %206 = tpu.concatenate %205, %205 in 0 : vector<1x128xf32>, vector<1x128xf32> -> vector<2x128xf32>
    %c51_111 = arith.constant 51 : index
    %c0_112 = arith.constant 0 : index
    %207 = vector.load %arg12[%c51_111, %c0_112] : memref<104x128xf32, #tpu.memory_space<vmem>>, vector<2x128xf32>
    tpu.vector_store %arg12[%c51_111, %c0_112], %206 {strides = array<i32>} : memref<104x128xf32, #tpu.memory_space<vmem>>, vector<2x128xf32>,
    %c61_113 = arith.constant 61 : index
    %c0_114 = arith.constant 0 : index
    %208 = vector.load %arg12[%c61_113, %c0_114] : memref<104x128xf32, #tpu.memory_space<vmem>>, vector<2x128xf32>
    tpu.vector_store %arg12[%c61_113, %c0_114], %206 {strides = array<i32>} : memref<104x128xf32, #tpu.memory_space<vmem>>, vector<2x128xf32>,
    %209 = vector.extract_strided_slice %116 {offsets = [42, 0], sizes = [1, 128], strides = [1, 1]} : vector<80x128xf32> to vector<1x128xf32>
    %210 = vector.extract_strided_slice %116 {offsets = [43, 0], sizes = [1, 128], strides = [1, 1]} : vector<80x128xf32> to vector<1x128xf32>
    %211 = arith.maximumf %209, %210 : vector<1x128xf32>
    %212 = vector.extract_strided_slice %116 {offsets = [52, 0], sizes = [1, 128], strides = [1, 1]} : vector<80x128xf32> to vector<1x128xf32>
    %213 = vector.extract_strided_slice %116 {offsets = [53, 0], sizes = [1, 128], strides = [1, 1]} : vector<80x128xf32> to vector<1x128xf32>
    %214 = arith.maximumf %212, %213 : vector<1x128xf32>
    %215 = arith.maximumf %211, %214 : vector<1x128xf32>
    %216 = tpu.concatenate %215, %215 in 0 : vector<1x128xf32>, vector<1x128xf32> -> vector<2x128xf32>
    %c53 = arith.constant 53 : index
    %c0_115 = arith.constant 0 : index
    %217 = vector.load %arg12[%c53, %c0_115] : memref<104x128xf32, #tpu.memory_space<vmem>>, vector<2x128xf32>
    tpu.vector_store %arg12[%c53, %c0_115], %216 {strides = array<i32>} : memref<104x128xf32, #tpu.memory_space<vmem>>, vector<2x128xf32>,
    %c63 = arith.constant 63 : index
    %c0_116 = arith.constant 0 : index
    %218 = vector.load %arg12[%c63, %c0_116] : memref<104x128xf32, #tpu.memory_space<vmem>>, vector<2x128xf32>
    tpu.vector_store %arg12[%c63, %c0_116], %216 {strides = array<i32>} : memref<104x128xf32, #tpu.memory_space<vmem>>, vector<2x128xf32>,
    %219 = vector.extract_strided_slice %116 {offsets = [44, 0], sizes = [1, 128], strides = [1, 1]} : vector<80x128xf32> to vector<1x128xf32>
    %220 = vector.extract_strided_slice %116 {offsets = [45, 0], sizes = [1, 128], strides = [1, 1]} : vector<80x128xf32> to vector<1x128xf32>
    %221 = arith.maximumf %219, %220 : vector<1x128xf32>
    %222 = vector.extract_strided_slice %116 {offsets = [54, 0], sizes = [1, 128], strides = [1, 1]} : vector<80x128xf32> to vector<1x128xf32>
    %223 = vector.extract_strided_slice %116 {offsets = [55, 0], sizes = [1, 128], strides = [1, 1]} : vector<80x128xf32> to vector<1x128xf32>
    %224 = arith.maximumf %222, %223 : vector<1x128xf32>
    %225 = arith.maximumf %221, %224 : vector<1x128xf32>
    %226 = tpu.concatenate %225, %225 in 0 : vector<1x128xf32>, vector<1x128xf32> -> vector<2x128xf32>
    %c55 = arith.constant 55 : index
    %c0_117 = arith.constant 0 : index
    %227 = vector.load %arg12[%c55, %c0_117] : memref<104x128xf32, #tpu.memory_space<vmem>>, vector<2x128xf32>
    tpu.vector_store %arg12[%c55, %c0_117], %226 {strides = array<i32>} : memref<104x128xf32, #tpu.memory_space<vmem>>, vector<2x128xf32>,
    %c65 = arith.constant 65 : index
    %c0_118 = arith.constant 0 : index
    %228 = vector.load %arg12[%c65, %c0_118] : memref<104x128xf32, #tpu.memory_space<vmem>>, vector<2x128xf32>
    tpu.vector_store %arg12[%c65, %c0_118], %226 {strides = array<i32>} : memref<104x128xf32, #tpu.memory_space<vmem>>, vector<2x128xf32>,
    %229 = vector.extract_strided_slice %116 {offsets = [46, 0], sizes = [1, 128], strides = [1, 1]} : vector<80x128xf32> to vector<1x128xf32>
    %230 = vector.extract_strided_slice %116 {offsets = [47, 0], sizes = [1, 128], strides = [1, 1]} : vector<80x128xf32> to vector<1x128xf32>
    %231 = arith.maximumf %229, %230 : vector<1x128xf32>
    %232 = vector.extract_strided_slice %116 {offsets = [56, 0], sizes = [1, 128], strides = [1, 1]} : vector<80x128xf32> to vector<1x128xf32>
    %233 = vector.extract_strided_slice %116 {offsets = [57, 0], sizes = [1, 128], strides = [1, 1]} : vector<80x128xf32> to vector<1x128xf32>
    %234 = arith.maximumf %232, %233 : vector<1x128xf32>
    %235 = arith.maximumf %231, %234 : vector<1x128xf32>
    %236 = tpu.concatenate %235, %235 in 0 : vector<1x128xf32>, vector<1x128xf32> -> vector<2x128xf32>
    %c57 = arith.constant 57 : index
    %c0_119 = arith.constant 0 : index
    %237 = vector.load %arg12[%c57, %c0_119] : memref<104x128xf32, #tpu.memory_space<vmem>>, vector<2x128xf32>
    tpu.vector_store %arg12[%c57, %c0_119], %236 {strides = array<i32>} : memref<104x128xf32, #tpu.memory_space<vmem>>, vector<2x128xf32>,
    %c67 = arith.constant 67 : index
    %c0_120 = arith.constant 0 : index
    %238 = vector.load %arg12[%c67, %c0_120] : memref<104x128xf32, #tpu.memory_space<vmem>>, vector<2x128xf32>
    tpu.vector_store %arg12[%c67, %c0_120], %236 {strides = array<i32>} : memref<104x128xf32, #tpu.memory_space<vmem>>, vector<2x128xf32>,
    %239 = vector.extract_strided_slice %116 {offsets = [60, 0], sizes = [1, 128], strides = [1, 1]} : vector<80x128xf32> to vector<1x128xf32>
    %240 = vector.extract_strided_slice %116 {offsets = [61, 0], sizes = [1, 128], strides = [1, 1]} : vector<80x128xf32> to vector<1x128xf32>
    %241 = arith.maximumf %239, %240 : vector<1x128xf32>
    %242 = vector.extract_strided_slice %116 {offsets = [70, 0], sizes = [1, 128], strides = [1, 1]} : vector<80x128xf32> to vector<1x128xf32>
    %243 = vector.extract_strided_slice %116 {offsets = [71, 0], sizes = [1, 128], strides = [1, 1]} : vector<80x128xf32> to vector<1x128xf32>
    %244 = arith.maximumf %242, %243 : vector<1x128xf32>
    %245 = arith.maximumf %241, %244 : vector<1x128xf32>
    %246 = tpu.concatenate %245, %245 in 0 : vector<1x128xf32>, vector<1x128xf32> -> vector<2x128xf32>
    %c71_121 = arith.constant 71 : index
    %c0_122 = arith.constant 0 : index
    %247 = vector.load %arg12[%c71_121, %c0_122] : memref<104x128xf32, #tpu.memory_space<vmem>>, vector<2x128xf32>
    tpu.vector_store %arg12[%c71_121, %c0_122], %246 {strides = array<i32>} : memref<104x128xf32, #tpu.memory_space<vmem>>, vector<2x128xf32>,
    %c81_123 = arith.constant 81 : index
    %c0_124 = arith.constant 0 : index
    %248 = vector.load %arg12[%c81_123, %c0_124] : memref<104x128xf32, #tpu.memory_space<vmem>>, vector<2x128xf32>
    tpu.vector_store %arg12[%c81_123, %c0_124], %246 {strides = array<i32>} : memref<104x128xf32, #tpu.memory_space<vmem>>, vector<2x128xf32>,
    %249 = vector.extract_strided_slice %116 {offsets = [62, 0], sizes = [1, 128], strides = [1, 1]} : vector<80x128xf32> to vector<1x128xf32>
    %250 = vector.extract_strided_slice %116 {offsets = [63, 0], sizes = [1, 128], strides = [1, 1]} : vector<80x128xf32> to vector<1x128xf32>
    %251 = arith.maximumf %249, %250 : vector<1x128xf32>
    %252 = vector.extract_strided_slice %116 {offsets = [72, 0], sizes = [1, 128], strides = [1, 1]} : vector<80x128xf32> to vector<1x128xf32>
    %253 = vector.extract_strided_slice %116 {offsets = [73, 0], sizes = [1, 128], strides = [1, 1]} : vector<80x128xf32> to vector<1x128xf32>
    %254 = arith.maximumf %252, %253 : vector<1x128xf32>
    %255 = arith.maximumf %251, %254 : vector<1x128xf32>
    %256 = tpu.concatenate %255, %255 in 0 : vector<1x128xf32>, vector<1x128xf32> -> vector<2x128xf32>
    %c73 = arith.constant 73 : index
    %c0_125 = arith.constant 0 : index
    %257 = vector.load %arg12[%c73, %c0_125] : memref<104x128xf32, #tpu.memory_space<vmem>>, vector<2x128xf32>
    tpu.vector_store %arg12[%c73, %c0_125], %256 {strides = array<i32>} : memref<104x128xf32, #tpu.memory_space<vmem>>, vector<2x128xf32>,
    %c83 = arith.constant 83 : index
    %c0_126 = arith.constant 0 : index
    %258 = vector.load %arg12[%c83, %c0_126] : memref<104x128xf32, #tpu.memory_space<vmem>>, vector<2x128xf32>
    tpu.vector_store %arg12[%c83, %c0_126], %256 {strides = array<i32>} : memref<104x128xf32, #tpu.memory_space<vmem>>, vector<2x128xf32>,
    %259 = vector.extract_strided_slice %116 {offsets = [64, 0], sizes = [1, 128], strides = [1, 1]} : vector<80x128xf32> to vector<1x128xf32>
    %260 = vector.extract_strided_slice %116 {offsets = [65, 0], sizes = [1, 128], strides = [1, 1]} : vector<80x128xf32> to vector<1x128xf32>
    %261 = arith.maximumf %259, %260 : vector<1x128xf32>
    %262 = vector.extract_strided_slice %116 {offsets = [74, 0], sizes = [1, 128], strides = [1, 1]} : vector<80x128xf32> to vector<1x128xf32>
    %263 = vector.extract_strided_slice %116 {offsets = [75, 0], sizes = [1, 128], strides = [1, 1]} : vector<80x128xf32> to vector<1x128xf32>
    %264 = arith.maximumf %262, %263 : vector<1x128xf32>
    %265 = arith.maximumf %261, %264 : vector<1x128xf32>
    %266 = tpu.concatenate %265, %265 in 0 : vector<1x128xf32>, vector<1x128xf32> -> vector<2x128xf32>
    %c75 = arith.constant 75 : index
    %c0_127 = arith.constant 0 : index
    %267 = vector.load %arg12[%c75, %c0_127] : memref<104x128xf32, #tpu.memory_space<vmem>>, vector<2x128xf32>
    tpu.vector_store %arg12[%c75, %c0_127], %266 {strides = array<i32>} : memref<104x128xf32, #tpu.memory_space<vmem>>, vector<2x128xf32>,
    %c85 = arith.constant 85 : index
    %c0_128 = arith.constant 0 : index
    %268 = vector.load %arg12[%c85, %c0_128] : memref<104x128xf32, #tpu.memory_space<vmem>>, vector<2x128xf32>
    tpu.vector_store %arg12[%c85, %c0_128], %266 {strides = array<i32>} : memref<104x128xf32, #tpu.memory_space<vmem>>, vector<2x128xf32>,
    %269 = vector.extract_strided_slice %116 {offsets = [66, 0], sizes = [1, 128], strides = [1, 1]} : vector<80x128xf32> to vector<1x128xf32>
    %270 = vector.extract_strided_slice %116 {offsets = [67, 0], sizes = [1, 128], strides = [1, 1]} : vector<80x128xf32> to vector<1x128xf32>
    %271 = arith.maximumf %269, %270 : vector<1x128xf32>
    %272 = vector.extract_strided_slice %116 {offsets = [76, 0], sizes = [1, 128], strides = [1, 1]} : vector<80x128xf32> to vector<1x128xf32>
    %273 = vector.extract_strided_slice %116 {offsets = [77, 0], sizes = [1, 128], strides = [1, 1]} : vector<80x128xf32> to vector<1x128xf32>
    %274 = arith.maximumf %272, %273 : vector<1x128xf32>
    %275 = arith.maximumf %271, %274 : vector<1x128xf32>
    %276 = tpu.concatenate %275, %275 in 0 : vector<1x128xf32>, vector<1x128xf32> -> vector<2x128xf32>
    %c77 = arith.constant 77 : index
    %c0_129 = arith.constant 0 : index
    %277 = vector.load %arg12[%c77, %c0_129] : memref<104x128xf32, #tpu.memory_space<vmem>>, vector<2x128xf32>
    tpu.vector_store %arg12[%c77, %c0_129], %276 {strides = array<i32>} : memref<104x128xf32, #tpu.memory_space<vmem>>, vector<2x128xf32>,
    %c87 = arith.constant 87 : index
    %c0_130 = arith.constant 0 : index
    %278 = vector.load %arg12[%c87, %c0_130] : memref<104x128xf32, #tpu.memory_space<vmem>>, vector<2x128xf32>
    tpu.vector_store %arg12[%c87, %c0_130], %276 {strides = array<i32>} : memref<104x128xf32, #tpu.memory_space<vmem>>, vector<2x128xf32>,
    %cst_131 = arith.constant 0.000000e+00 : f32
    %279 = vector.broadcast %cst_131 : f32 to vector<80x64xf32>
    %c0_132 = arith.constant 0 : index
    %c0_133 = arith.constant 0 : index
    %280 = vector.load %arg12[%c0_132, %c0_133] : memref<104x128xf32, #tpu.memory_space<vmem>>, vector<80x128xf32>
    %281 = arith.truncf %280 : vector<80x128xf32> to vector<80x128xbf16>
    %c0_134 = arith.constant 0 : index
    %c0_135 = arith.constant 0 : index
    %c0_136 = arith.constant 0 : index
    %282 = vector.load %arg6[%c0_134, %c0_135, %c0_136] : memref<9x128x64xbf16, #tpu.memory_space<vmem>>, vector<1x128x64xbf16>
    %283 = vector.shape_cast %282 : vector<1x128x64xbf16> to vector<128x64xbf16>
    %cst_137 = arith.constant dense<0.000000e+00> : vector<80x64xf32>
    %284 = tpu.matmul %281, %283, %cst_137 {dimension_numbers = #tpu.dot_dimension_numbers<[1], [0], [0], [1], [0, 0, 1, 1], [], []>} : vector<80x128xbf16>, vector<128x64xbf16>, vector<80x64xf32> -> vector<80x64xf32>
    %285 = arith.addf %279, %284 : vector<80x64xf32>
    %c1_138 = arith.constant 1 : index
    %c0_139 = arith.constant 0 : index
    %286 = vector.load %arg12[%c1_138, %c0_139] : memref<104x128xf32, #tpu.memory_space<vmem>>, vector<80x128xf32>
    %287 = arith.truncf %286 : vector<80x128xf32> to vector<80x128xbf16>
    %c1_140 = arith.constant 1 : index
    %c0_141 = arith.constant 0 : index
    %c0_142 = arith.constant 0 : index
    %288 = vector.load %arg6[%c1_140, %c0_141, %c0_142] : memref<9x128x64xbf16, #tpu.memory_space<vmem>>, vector<1x128x64xbf16>
    %289 = vector.shape_cast %288 : vector<1x128x64xbf16> to vector<128x64xbf16>
    %cst_143 = arith.constant dense<0.000000e+00> : vector<80x64xf32>
    %290 = tpu.matmul %287, %289, %cst_143 {dimension_numbers = #tpu.dot_dimension_numbers<[1], [0], [0], [1], [0, 0, 1, 1], [], []>} : vector<80x128xbf16>, vector<128x64xbf16>, vector<80x64xf32> -> vector<80x64xf32>
    %291 = arith.addf %285, %290 : vector<80x64xf32>
    %c2_144 = arith.constant 2 : index
    %c0_145 = arith.constant 0 : index
    %292 = vector.load %arg12[%c2_144, %c0_145] : memref<104x128xf32, #tpu.memory_space<vmem>>, vector<80x128xf32>
    %293 = arith.truncf %292 : vector<80x128xf32> to vector<80x128xbf16>
    %c2_146 = arith.constant 2 : index
    %c0_147 = arith.constant 0 : index
    %c0_148 = arith.constant 0 : index
    %294 = vector.load %arg6[%c2_146, %c0_147, %c0_148] : memref<9x128x64xbf16, #tpu.memory_space<vmem>>, vector<1x128x64xbf16>
    %295 = vector.shape_cast %294 : vector<1x128x64xbf16> to vector<128x64xbf16>
    %cst_149 = arith.constant dense<0.000000e+00> : vector<80x64xf32>
    %296 = tpu.matmul %293, %295, %cst_149 {dimension_numbers = #tpu.dot_dimension_numbers<[1], [0], [0], [1], [0, 0, 1, 1], [], []>} : vector<80x128xbf16>, vector<128x64xbf16>, vector<80x64xf32> -> vector<80x64xf32>
    %297 = arith.addf %291, %296 : vector<80x64xf32>
    %c10_150 = arith.constant 10 : index
    %c0_151 = arith.constant 0 : index
    %298 = vector.load %arg12[%c10_150, %c0_151] : memref<104x128xf32, #tpu.memory_space<vmem>>, vector<80x128xf32>
    %299 = arith.truncf %298 : vector<80x128xf32> to vector<80x128xbf16>
    %c3_152 = arith.constant 3 : index
    %c0_153 = arith.constant 0 : index
    %c0_154 = arith.constant 0 : index
    %300 = vector.load %arg6[%c3_152, %c0_153, %c0_154] : memref<9x128x64xbf16, #tpu.memory_space<vmem>>, vector<1x128x64xbf16>
    %301 = vector.shape_cast %300 : vector<1x128x64xbf16> to vector<128x64xbf16>
    %cst_155 = arith.constant dense<0.000000e+00> : vector<80x64xf32>
    %302 = tpu.matmul %299, %301, %cst_155 {dimension_numbers = #tpu.dot_dimension_numbers<[1], [0], [0], [1], [0, 0, 1, 1], [], []>} : vector<80x128xbf16>, vector<128x64xbf16>, vector<80x64xf32> -> vector<80x64xf32>
    %303 = arith.addf %297, %302 : vector<80x64xf32>
    %c11_156 = arith.constant 11 : index
    %c0_157 = arith.constant 0 : index
    %304 = vector.load %arg12[%c11_156, %c0_157] : memref<104x128xf32, #tpu.memory_space<vmem>>, vector<80x128xf32>
    %305 = arith.truncf %304 : vector<80x128xf32> to vector<80x128xbf16>
    %c4_158 = arith.constant 4 : index
    %c0_159 = arith.constant 0 : index
    %c0_160 = arith.constant 0 : index
    %306 = vector.load %arg6[%c4_158, %c0_159, %c0_160] : memref<9x128x64xbf16, #tpu.memory_space<vmem>>, vector<1x128x64xbf16>
    %307 = vector.shape_cast %306 : vector<1x128x64xbf16> to vector<128x64xbf16>
    %cst_161 = arith.constant dense<0.000000e+00> : vector<80x64xf32>
    %308 = tpu.matmul %305, %307, %cst_161 {dimension_numbers = #tpu.dot_dimension_numbers<[1], [0], [0], [1], [0, 0, 1, 1], [], []>} : vector<80x128xbf16>, vector<128x64xbf16>, vector<80x64xf32> -> vector<80x64xf32>
    %309 = arith.addf %303, %308 : vector<80x64xf32>
    %c12_162 = arith.constant 12 : index
    %c0_163 = arith.constant 0 : index
    %310 = vector.load %arg12[%c12_162, %c0_163] : memref<104x128xf32, #tpu.memory_space<vmem>>, vector<80x128xf32>
    %311 = arith.truncf %310 : vector<80x128xf32> to vector<80x128xbf16>
    %c5_164 = arith.constant 5 : index
    %c0_165 = arith.constant 0 : index
    %c0_166 = arith.constant 0 : index
    %312 = vector.load %arg6[%c5_164, %c0_165, %c0_166] : memref<9x128x64xbf16, #tpu.memory_space<vmem>>, vector<1x128x64xbf16>
    %313 = vector.shape_cast %312 : vector<1x128x64xbf16> to vector<128x64xbf16>
    %cst_167 = arith.constant dense<0.000000e+00> : vector<80x64xf32>
    %314 = tpu.matmul %311, %313, %cst_167 {dimension_numbers = #tpu.dot_dimension_numbers<[1], [0], [0], [1], [0, 0, 1, 1], [], []>} : vector<80x128xbf16>, vector<128x64xbf16>, vector<80x64xf32> -> vector<80x64xf32>
    %315 = arith.addf %309, %314 : vector<80x64xf32>
    %c20_168 = arith.constant 20 : index
    %c0_169 = arith.constant 0 : index
    %316 = vector.load %arg12[%c20_168, %c0_169] : memref<104x128xf32, #tpu.memory_space<vmem>>, vector<80x128xf32>
    %317 = arith.truncf %316 : vector<80x128xf32> to vector<80x128xbf16>
    %c6_170 = arith.constant 6 : index
    %c0_171 = arith.constant 0 : index
    %c0_172 = arith.constant 0 : index
    %318 = vector.load %arg6[%c6_170, %c0_171, %c0_172] : memref<9x128x64xbf16, #tpu.memory_space<vmem>>, vector<1x128x64xbf16>
    %319 = vector.shape_cast %318 : vector<1x128x64xbf16> to vector<128x64xbf16>
    %cst_173 = arith.constant dense<0.000000e+00> : vector<80x64xf32>
    %320 = tpu.matmul %317, %319, %cst_173 {dimension_numbers = #tpu.dot_dimension_numbers<[1], [0], [0], [1], [0, 0, 1, 1], [], []>} : vector<80x128xbf16>, vector<128x64xbf16>, vector<80x64xf32> -> vector<80x64xf32>
    %321 = arith.addf %315, %320 : vector<80x64xf32>
    %c21_174 = arith.constant 21 : index
    %c0_175 = arith.constant 0 : index
    %322 = vector.load %arg12[%c21_174, %c0_175] : memref<104x128xf32, #tpu.memory_space<vmem>>, vector<80x128xf32>
    %323 = arith.truncf %322 : vector<80x128xf32> to vector<80x128xbf16>
    %c7_176 = arith.constant 7 : index
    %c0_177 = arith.constant 0 : index
    %c0_178 = arith.constant 0 : index
    %324 = vector.load %arg6[%c7_176, %c0_177, %c0_178] : memref<9x128x64xbf16, #tpu.memory_space<vmem>>, vector<1x128x64xbf16>
    %325 = vector.shape_cast %324 : vector<1x128x64xbf16> to vector<128x64xbf16>
    %cst_179 = arith.constant dense<0.000000e+00> : vector<80x64xf32>
    %326 = tpu.matmul %323, %325, %cst_179 {dimension_numbers = #tpu.dot_dimension_numbers<[1], [0], [0], [1], [0, 0, 1, 1], [], []>} : vector<80x128xbf16>, vector<128x64xbf16>, vector<80x64xf32> -> vector<80x64xf32>
    %327 = arith.addf %321, %326 : vector<80x64xf32>
    %c22_180 = arith.constant 22 : index
    %c0_181 = arith.constant 0 : index
    %328 = vector.load %arg12[%c22_180, %c0_181] : memref<104x128xf32, #tpu.memory_space<vmem>>, vector<80x128xf32>
    %329 = arith.truncf %328 : vector<80x128xf32> to vector<80x128xbf16>
    %c8_182 = arith.constant 8 : index
    %c0_183 = arith.constant 0 : index
    %c0_184 = arith.constant 0 : index
    %330 = vector.load %arg6[%c8_182, %c0_183, %c0_184] : memref<9x128x64xbf16, #tpu.memory_space<vmem>>, vector<1x128x64xbf16>
    %331 = vector.shape_cast %330 : vector<1x128x64xbf16> to vector<128x64xbf16>
    %cst_185 = arith.constant dense<0.000000e+00> : vector<80x64xf32>
    %332 = tpu.matmul %329, %331, %cst_185 {dimension_numbers = #tpu.dot_dimension_numbers<[1], [0], [0], [1], [0, 0, 1, 1], [], []>} : vector<80x128xbf16>, vector<128x64xbf16>, vector<80x64xf32> -> vector<80x64xf32>
    %333 = arith.addf %327, %332 : vector<80x64xf32>
    %c0_186 = arith.constant 0 : index
    %c0_187 = arith.constant 0 : index
    %334 = vector.load %arg7[%c0_186, %c0_187] : memref<1x64xf32, #tpu.memory_space<vmem>>, vector<1x64xf32>
    %335 = vector.broadcast %334 : vector<1x64xf32> to vector<80x64xf32>
    %336 = arith.addf %333, %335 : vector<80x64xf32>
    %cst_188 = arith.constant 0.000000e+00 : f32
    %337 = vector.broadcast %cst_188 : f32 to vector<80x64xf32>
    %338 = arith.maximumf %336, %337 : vector<80x64xf32>
    %cst_189 = arith.constant 0.000000e+00 : f32
    %339 = vector.broadcast %cst_189 : f32 to vector<328x64xf32>
    %c0_190 = arith.constant 0 : index
    %c0_191 = arith.constant 0 : index
    %340 = vector.load %arg13[%c0_190, %c0_191] : memref<328x64xf32, #tpu.memory_space<vmem>>, vector<328x64xf32>
    tpu.vector_store %arg13[%c0_190, %c0_191], %339 {strides = array<i32>} : memref<328x64xf32, #tpu.memory_space<vmem>>, vector<328x64xf32>,
    %341 = vector.extract_strided_slice %338 {offsets = [0, 0], sizes = [1, 64], strides = [1, 1]} : vector<80x64xf32> to vector<1x64xf32>
    %342 = vector.extract_strided_slice %338 {offsets = [0, 0], sizes = [1, 64], strides = [1, 1]} : vector<80x64xf32> to vector<1x64xf32>
    %343 = vector.extract_strided_slice %338 {offsets = [1, 0], sizes = [1, 64], strides = [1, 1]} : vector<80x64xf32> to vector<1x64xf32>
    %344 = vector.extract_strided_slice %338 {offsets = [1, 0], sizes = [1, 64], strides = [1, 1]} : vector<80x64xf32> to vector<1x64xf32>
    %345 = vector.extract_strided_slice %338 {offsets = [2, 0], sizes = [1, 64], strides = [1, 1]} : vector<80x64xf32> to vector<1x64xf32>
    %346 = vector.extract_strided_slice %338 {offsets = [2, 0], sizes = [1, 64], strides = [1, 1]} : vector<80x64xf32> to vector<1x64xf32>
    %347 = vector.extract_strided_slice %338 {offsets = [3, 0], sizes = [1, 64], strides = [1, 1]} : vector<80x64xf32> to vector<1x64xf32>
    %348 = vector.extract_strided_slice %338 {offsets = [3, 0], sizes = [1, 64], strides = [1, 1]} : vector<80x64xf32> to vector<1x64xf32>
    %349 = vector.extract_strided_slice %338 {offsets = [4, 0], sizes = [1, 64], strides = [1, 1]} : vector<80x64xf32> to vector<1x64xf32>
    %350 = vector.extract_strided_slice %338 {offsets = [4, 0], sizes = [1, 64], strides = [1, 1]} : vector<80x64xf32> to vector<1x64xf32>
    %351 = vector.extract_strided_slice %338 {offsets = [5, 0], sizes = [1, 64], strides = [1, 1]} : vector<80x64xf32> to vector<1x64xf32>
    %352 = vector.extract_strided_slice %338 {offsets = [5, 0], sizes = [1, 64], strides = [1, 1]} : vector<80x64xf32> to vector<1x64xf32>
    %353 = vector.extract_strided_slice %338 {offsets = [6, 0], sizes = [1, 64], strides = [1, 1]} : vector<80x64xf32> to vector<1x64xf32>
    %354 = vector.extract_strided_slice %338 {offsets = [6, 0], sizes = [1, 64], strides = [1, 1]} : vector<80x64xf32> to vector<1x64xf32>
    %355 = vector.extract_strided_slice %338 {offsets = [7, 0], sizes = [1, 64], strides = [1, 1]} : vector<80x64xf32> to vector<1x64xf32>
    %356 = vector.extract_strided_slice %338 {offsets = [7, 0], sizes = [1, 64], strides = [1, 1]} : vector<80x64xf32> to vector<1x64xf32>
    %357 = tpu.concatenate %341, %342, %343, %344, %345, %346, %347, %348, %349, %350, %351, %352, %353, %354, %355, %356 in 0 : vector<1x64xf32>, vector<1x64xf32>, vector<1x64xf32>, vector<1x64xf32>, vector<1x64xf32>, vector<1x64xf32>, vector<1x64xf32>, vector<1x64xf32>, vector<1x64xf32>, vector<1x64xf32>, vector<1x64xf32>, vector<1x64xf32>, vector<1x64xf32>, vector<1x64xf32>, vector<1x64xf32>, vector<1x64xf32> -> vector<16x64xf32>
    %c19 = arith.constant 19 : index
    %c0_192 = arith.constant 0 : index
    %358 = vector.load %arg13[%c19, %c0_192] : memref<328x64xf32, #tpu.memory_space<vmem>>, vector<16x64xf32>
    tpu.vector_store %arg13[%c19, %c0_192], %357 {strides = array<i32>} : memref<328x64xf32, #tpu.memory_space<vmem>>, vector<16x64xf32>,
    %c37_193 = arith.constant 37 : index
    %c0_194 = arith.constant 0 : index
    %359 = vector.load %arg13[%c37_193, %c0_194] : memref<328x64xf32, #tpu.memory_space<vmem>>, vector<16x64xf32>
    tpu.vector_store %arg13[%c37_193, %c0_194], %357 {strides = array<i32>} : memref<328x64xf32, #tpu.memory_space<vmem>>, vector<16x64xf32>,
    %360 = vector.extract_strided_slice %338 {offsets = [10, 0], sizes = [1, 64], strides = [1, 1]} : vector<80x64xf32> to vector<1x64xf32>
    %361 = vector.extract_strided_slice %338 {offsets = [10, 0], sizes = [1, 64], strides = [1, 1]} : vector<80x64xf32> to vector<1x64xf32>
    %362 = vector.extract_strided_slice %338 {offsets = [11, 0], sizes = [1, 64], strides = [1, 1]} : vector<80x64xf32> to vector<1x64xf32>
    %363 = vector.extract_strided_slice %338 {offsets = [11, 0], sizes = [1, 64], strides = [1, 1]} : vector<80x64xf32> to vector<1x64xf32>
    %364 = vector.extract_strided_slice %338 {offsets = [12, 0], sizes = [1, 64], strides = [1, 1]} : vector<80x64xf32> to vector<1x64xf32>
    %365 = vector.extract_strided_slice %338 {offsets = [12, 0], sizes = [1, 64], strides = [1, 1]} : vector<80x64xf32> to vector<1x64xf32>
    %366 = vector.extract_strided_slice %338 {offsets = [13, 0], sizes = [1, 64], strides = [1, 1]} : vector<80x64xf32> to vector<1x64xf32>
    %367 = vector.extract_strided_slice %338 {offsets = [13, 0], sizes = [1, 64], strides = [1, 1]} : vector<80x64xf32> to vector<1x64xf32>
    %368 = vector.extract_strided_slice %338 {offsets = [14, 0], sizes = [1, 64], strides = [1, 1]} : vector<80x64xf32> to vector<1x64xf32>
    %369 = vector.extract_strided_slice %338 {offsets = [14, 0], sizes = [1, 64], strides = [1, 1]} : vector<80x64xf32> to vector<1x64xf32>
    %370 = vector.extract_strided_slice %338 {offsets = [15, 0], sizes = [1, 64], strides = [1, 1]} : vector<80x64xf32> to vector<1x64xf32>
    %371 = vector.extract_strided_slice %338 {offsets = [15, 0], sizes = [1, 64], strides = [1, 1]} : vector<80x64xf32> to vector<1x64xf32>
    %372 = vector.extract_strided_slice %338 {offsets = [16, 0], sizes = [1, 64], strides = [1, 1]} : vector<80x64xf32> to vector<1x64xf32>
    %373 = vector.extract_strided_slice %338 {offsets = [16, 0], sizes = [1, 64], strides = [1, 1]} : vector<80x64xf32> to vector<1x64xf32>
    %374 = vector.extract_strided_slice %338 {offsets = [17, 0], sizes = [1, 64], strides = [1, 1]} : vector<80x64xf32> to vector<1x64xf32>
    %375 = vector.extract_strided_slice %338 {offsets = [17, 0], sizes = [1, 64], strides = [1, 1]} : vector<80x64xf32> to vector<1x64xf32>
    %376 = tpu.concatenate %360, %361, %362, %363, %364, %365, %366, %367, %368, %369, %370, %371, %372, %373, %374, %375 in 0 : vector<1x64xf32>, vector<1x64xf32>, vector<1x64xf32>, vector<1x64xf32>, vector<1x64xf32>, vector<1x64xf32>, vector<1x64xf32>, vector<1x64xf32>, vector<1x64xf32>, vector<1x64xf32>, vector<1x64xf32>, vector<1x64xf32>, vector<1x64xf32>, vector<1x64xf32>, vector<1x64xf32>, vector<1x64xf32> -> vector<16x64xf32>
    %c55_195 = arith.constant 55 : index
    %c0_196 = arith.constant 0 : index
    %377 = vector.load %arg13[%c55_195, %c0_196] : memref<328x64xf32, #tpu.memory_space<vmem>>, vector<16x64xf32>
    tpu.vector_store %arg13[%c55_195, %c0_196], %376 {strides = array<i32>} : memref<328x64xf32, #tpu.memory_space<vmem>>, vector<16x64xf32>,
    %c73_197 = arith.constant 73 : index
    %c0_198 = arith.constant 0 : index
    %378 = vector.load %arg13[%c73_197, %c0_198] : memref<328x64xf32, #tpu.memory_space<vmem>>, vector<16x64xf32>
    tpu.vector_store %arg13[%c73_197, %c0_198], %376 {strides = array<i32>} : memref<328x64xf32, #tpu.memory_space<vmem>>, vector<16x64xf32>,
    %379 = vector.extract_strided_slice %338 {offsets = [20, 0], sizes = [1, 64], strides = [1, 1]} : vector<80x64xf32> to vector<1x64xf32>
    %380 = vector.extract_strided_slice %338 {offsets = [20, 0], sizes = [1, 64], strides = [1, 1]} : vector<80x64xf32> to vector<1x64xf32>
    %381 = vector.extract_strided_slice %338 {offsets = [21, 0], sizes = [1, 64], strides = [1, 1]} : vector<80x64xf32> to vector<1x64xf32>
    %382 = vector.extract_strided_slice %338 {offsets = [21, 0], sizes = [1, 64], strides = [1, 1]} : vector<80x64xf32> to vector<1x64xf32>
    %383 = vector.extract_strided_slice %338 {offsets = [22, 0], sizes = [1, 64], strides = [1, 1]} : vector<80x64xf32> to vector<1x64xf32>
    %384 = vector.extract_strided_slice %338 {offsets = [22, 0], sizes = [1, 64], strides = [1, 1]} : vector<80x64xf32> to vector<1x64xf32>
    %385 = vector.extract_strided_slice %338 {offsets = [23, 0], sizes = [1, 64], strides = [1, 1]} : vector<80x64xf32> to vector<1x64xf32>
    %386 = vector.extract_strided_slice %338 {offsets = [23, 0], sizes = [1, 64], strides = [1, 1]} : vector<80x64xf32> to vector<1x64xf32>
    %387 = vector.extract_strided_slice %338 {offsets = [24, 0], sizes = [1, 64], strides = [1, 1]} : vector<80x64xf32> to vector<1x64xf32>
    %388 = vector.extract_strided_slice %338 {offsets = [24, 0], sizes = [1, 64], strides = [1, 1]} : vector<80x64xf32> to vector<1x64xf32>
    %389 = vector.extract_strided_slice %338 {offsets = [25, 0], sizes = [1, 64], strides = [1, 1]} : vector<80x64xf32> to vector<1x64xf32>
    %390 = vector.extract_strided_slice %338 {offsets = [25, 0], sizes = [1, 64], strides = [1, 1]} : vector<80x64xf32> to vector<1x64xf32>
    %391 = vector.extract_strided_slice %338 {offsets = [26, 0], sizes = [1, 64], strides = [1, 1]} : vector<80x64xf32> to vector<1x64xf32>
    %392 = vector.extract_strided_slice %338 {offsets = [26, 0], sizes = [1, 64], strides = [1, 1]} : vector<80x64xf32> to vector<1x64xf32>
    %393 = vector.extract_strided_slice %338 {offsets = [27, 0], sizes = [1, 64], strides = [1, 1]} : vector<80x64xf32> to vector<1x64xf32>
    %394 = vector.extract_strided_slice %338 {offsets = [27, 0], sizes = [1, 64], strides = [1, 1]} : vector<80x64xf32> to vector<1x64xf32>
    %395 = tpu.concatenate %379, %380, %381, %382, %383, %384, %385, %386, %387, %388, %389, %390, %391, %392, %393, %394 in 0 : vector<1x64xf32>, vector<1x64xf32>, vector<1x64xf32>, vector<1x64xf32>, vector<1x64xf32>, vector<1x64xf32>, vector<1x64xf32>, vector<1x64xf32>, vector<1x64xf32>, vector<1x64xf32>, vector<1x64xf32>, vector<1x64xf32>, vector<1x64xf32>, vector<1x64xf32>, vector<1x64xf32>, vector<1x64xf32> -> vector<16x64xf32>
    %c91 = arith.constant 91 : index
    %c0_199 = arith.constant 0 : index
    %396 = vector.load %arg13[%c91, %c0_199] : memref<328x64xf32, #tpu.memory_space<vmem>>, vector<16x64xf32>
    tpu.vector_store %arg13[%c91, %c0_199], %395 {strides = array<i32>} : memref<328x64xf32, #tpu.memory_space<vmem>>, vector<16x64xf32>,
    %c109 = arith.constant 109 : index
    %c0_200 = arith.constant 0 : index
    %397 = vector.load %arg13[%c109, %c0_200] : memref<328x64xf32, #tpu.memory_space<vmem>>, vector<16x64xf32>
    tpu.vector_store %arg13[%c109, %c0_200], %395 {strides = array<i32>} : memref<328x64xf32, #tpu.memory_space<vmem>>, vector<16x64xf32>,
    %398 = vector.extract_strided_slice %338 {offsets = [30, 0], sizes = [1, 64], strides = [1, 1]} : vector<80x64xf32> to vector<1x64xf32>
    %399 = vector.extract_strided_slice %338 {offsets = [30, 0], sizes = [1, 64], strides = [1, 1]} : vector<80x64xf32> to vector<1x64xf32>
    %400 = vector.extract_strided_slice %338 {offsets = [31, 0], sizes = [1, 64], strides = [1, 1]} : vector<80x64xf32> to vector<1x64xf32>
    %401 = vector.extract_strided_slice %338 {offsets = [31, 0], sizes = [1, 64], strides = [1, 1]} : vector<80x64xf32> to vector<1x64xf32>
    %402 = vector.extract_strided_slice %338 {offsets = [32, 0], sizes = [1, 64], strides = [1, 1]} : vector<80x64xf32> to vector<1x64xf32>
    %403 = vector.extract_strided_slice %338 {offsets = [32, 0], sizes = [1, 64], strides = [1, 1]} : vector<80x64xf32> to vector<1x64xf32>
    %404 = vector.extract_strided_slice %338 {offsets = [33, 0], sizes = [1, 64], strides = [1, 1]} : vector<80x64xf32> to vector<1x64xf32>
    %405 = vector.extract_strided_slice %338 {offsets = [33, 0], sizes = [1, 64], strides = [1, 1]} : vector<80x64xf32> to vector<1x64xf32>
    %406 = vector.extract_strided_slice %338 {offsets = [34, 0], sizes = [1, 64], strides = [1, 1]} : vector<80x64xf32> to vector<1x64xf32>
    %407 = vector.extract_strided_slice %338 {offsets = [34, 0], sizes = [1, 64], strides = [1, 1]} : vector<80x64xf32> to vector<1x64xf32>
    %408 = vector.extract_strided_slice %338 {offsets = [35, 0], sizes = [1, 64], strides = [1, 1]} : vector<80x64xf32> to vector<1x64xf32>
    %409 = vector.extract_strided_slice %338 {offsets = [35, 0], sizes = [1, 64], strides = [1, 1]} : vector<80x64xf32> to vector<1x64xf32>
    %410 = vector.extract_strided_slice %338 {offsets = [36, 0], sizes = [1, 64], strides = [1, 1]} : vector<80x64xf32> to vector<1x64xf32>
    %411 = vector.extract_strided_slice %338 {offsets = [36, 0], sizes = [1, 64], strides = [1, 1]} : vector<80x64xf32> to vector<1x64xf32>
    %412 = vector.extract_strided_slice %338 {offsets = [37, 0], sizes = [1, 64], strides = [1, 1]} : vector<80x64xf32> to vector<1x64xf32>
    %413 = vector.extract_strided_slice %338 {offsets = [37, 0], sizes = [1, 64], strides = [1, 1]} : vector<80x64xf32> to vector<1x64xf32>
    %414 = tpu.concatenate %398, %399, %400, %401, %402, %403, %404, %405, %406, %407, %408, %409, %410, %411, %412, %413 in 0 : vector<1x64xf32>, vector<1x64xf32>, vector<1x64xf32>, vector<1x64xf32>, vector<1x64xf32>, vector<1x64xf32>, vector<1x64xf32>, vector<1x64xf32>, vector<1x64xf32>, vector<1x64xf32>, vector<1x64xf32>, vector<1x64xf32>, vector<1x64xf32>, vector<1x64xf32>, vector<1x64xf32>, vector<1x64xf32> -> vector<16x64xf32>
    %c127 = arith.constant 127 : index
    %c0_201 = arith.constant 0 : index
    %415 = vector.load %arg13[%c127, %c0_201] : memref<328x64xf32, #tpu.memory_space<vmem>>, vector<16x64xf32>
    tpu.vector_store %arg13[%c127, %c0_201], %414 {strides = array<i32>} : memref<328x64xf32, #tpu.memory_space<vmem>>, vector<16x64xf32>,
    %c145 = arith.constant 145 : index
    %c0_202 = arith.constant 0 : index
    %416 = vector.load %arg13[%c145, %c0_202] : memref<328x64xf32, #tpu.memory_space<vmem>>, vector<16x64xf32>
    tpu.vector_store %arg13[%c145, %c0_202], %414 {strides = array<i32>} : memref<328x64xf32, #tpu.memory_space<vmem>>, vector<16x64xf32>,
    %417 = vector.extract_strided_slice %338 {offsets = [40, 0], sizes = [1, 64], strides = [1, 1]} : vector<80x64xf32> to vector<1x64xf32>
    %418 = vector.extract_strided_slice %338 {offsets = [40, 0], sizes = [1, 64], strides = [1, 1]} : vector<80x64xf32> to vector<1x64xf32>
    %419 = vector.extract_strided_slice %338 {offsets = [41, 0], sizes = [1, 64], strides = [1, 1]} : vector<80x64xf32> to vector<1x64xf32>
    %420 = vector.extract_strided_slice %338 {offsets = [41, 0], sizes = [1, 64], strides = [1, 1]} : vector<80x64xf32> to vector<1x64xf32>
    %421 = vector.extract_strided_slice %338 {offsets = [42, 0], sizes = [1, 64], strides = [1, 1]} : vector<80x64xf32> to vector<1x64xf32>
    %422 = vector.extract_strided_slice %338 {offsets = [42, 0], sizes = [1, 64], strides = [1, 1]} : vector<80x64xf32> to vector<1x64xf32>
    %423 = vector.extract_strided_slice %338 {offsets = [43, 0], sizes = [1, 64], strides = [1, 1]} : vector<80x64xf32> to vector<1x64xf32>
    %424 = vector.extract_strided_slice %338 {offsets = [43, 0], sizes = [1, 64], strides = [1, 1]} : vector<80x64xf32> to vector<1x64xf32>
    %425 = vector.extract_strided_slice %338 {offsets = [44, 0], sizes = [1, 64], strides = [1, 1]} : vector<80x64xf32> to vector<1x64xf32>
    %426 = vector.extract_strided_slice %338 {offsets = [44, 0], sizes = [1, 64], strides = [1, 1]} : vector<80x64xf32> to vector<1x64xf32>
    %427 = vector.extract_strided_slice %338 {offsets = [45, 0], sizes = [1, 64], strides = [1, 1]} : vector<80x64xf32> to vector<1x64xf32>
    %428 = vector.extract_strided_slice %338 {offsets = [45, 0], sizes = [1, 64], strides = [1, 1]} : vector<80x64xf32> to vector<1x64xf32>
    %429 = vector.extract_strided_slice %338 {offsets = [46, 0], sizes = [1, 64], strides = [1, 1]} : vector<80x64xf32> to vector<1x64xf32>
    %430 = vector.extract_strided_slice %338 {offsets = [46, 0], sizes = [1, 64], strides = [1, 1]} : vector<80x64xf32> to vector<1x64xf32>
    %431 = vector.extract_strided_slice %338 {offsets = [47, 0], sizes = [1, 64], strides = [1, 1]} : vector<80x64xf32> to vector<1x64xf32>
    %432 = vector.extract_strided_slice %338 {offsets = [47, 0], sizes = [1, 64], strides = [1, 1]} : vector<80x64xf32> to vector<1x64xf32>
    %433 = tpu.concatenate %417, %418, %419, %420, %421, %422, %423, %424, %425, %426, %427, %428, %429, %430, %431, %432 in 0 : vector<1x64xf32>, vector<1x64xf32>, vector<1x64xf32>, vector<1x64xf32>, vector<1x64xf32>, vector<1x64xf32>, vector<1x64xf32>, vector<1x64xf32>, vector<1x64xf32>, vector<1x64xf32>, vector<1x64xf32>, vector<1x64xf32>, vector<1x64xf32>, vector<1x64xf32>, vector<1x64xf32>, vector<1x64xf32> -> vector<16x64xf32>
    %c163 = arith.constant 163 : index
    %c0_203 = arith.constant 0 : index
    %434 = vector.load %arg13[%c163, %c0_203] : memref<328x64xf32, #tpu.memory_space<vmem>>, vector<16x64xf32>
    tpu.vector_store %arg13[%c163, %c0_203], %433 {strides = array<i32>} : memref<328x64xf32, #tpu.memory_space<vmem>>, vector<16x64xf32>,
    %c181 = arith.constant 181 : index
    %c0_204 = arith.constant 0 : index
    %435 = vector.load %arg13[%c181, %c0_204] : memref<328x64xf32, #tpu.memory_space<vmem>>, vector<16x64xf32>
    tpu.vector_store %arg13[%c181, %c0_204], %433 {strides = array<i32>} : memref<328x64xf32, #tpu.memory_space<vmem>>, vector<16x64xf32>,
    %436 = vector.extract_strided_slice %338 {offsets = [50, 0], sizes = [1, 64], strides = [1, 1]} : vector<80x64xf32> to vector<1x64xf32>
    %437 = vector.extract_strided_slice %338 {offsets = [50, 0], sizes = [1, 64], strides = [1, 1]} : vector<80x64xf32> to vector<1x64xf32>
    %438 = vector.extract_strided_slice %338 {offsets = [51, 0], sizes = [1, 64], strides = [1, 1]} : vector<80x64xf32> to vector<1x64xf32>
    %439 = vector.extract_strided_slice %338 {offsets = [51, 0], sizes = [1, 64], strides = [1, 1]} : vector<80x64xf32> to vector<1x64xf32>
    %440 = vector.extract_strided_slice %338 {offsets = [52, 0], sizes = [1, 64], strides = [1, 1]} : vector<80x64xf32> to vector<1x64xf32>
    %441 = vector.extract_strided_slice %338 {offsets = [52, 0], sizes = [1, 64], strides = [1, 1]} : vector<80x64xf32> to vector<1x64xf32>
    %442 = vector.extract_strided_slice %338 {offsets = [53, 0], sizes = [1, 64], strides = [1, 1]} : vector<80x64xf32> to vector<1x64xf32>
    %443 = vector.extract_strided_slice %338 {offsets = [53, 0], sizes = [1, 64], strides = [1, 1]} : vector<80x64xf32> to vector<1x64xf32>
    %444 = vector.extract_strided_slice %338 {offsets = [54, 0], sizes = [1, 64], strides = [1, 1]} : vector<80x64xf32> to vector<1x64xf32>
    %445 = vector.extract_strided_slice %338 {offsets = [54, 0], sizes = [1, 64], strides = [1, 1]} : vector<80x64xf32> to vector<1x64xf32>
    %446 = vector.extract_strided_slice %338 {offsets = [55, 0], sizes = [1, 64], strides = [1, 1]} : vector<80x64xf32> to vector<1x64xf32>
    %447 = vector.extract_strided_slice %338 {offsets = [55, 0], sizes = [1, 64], strides = [1, 1]} : vector<80x64xf32> to vector<1x64xf32>
    %448 = vector.extract_strided_slice %338 {offsets = [56, 0], sizes = [1, 64], strides = [1, 1]} : vector<80x64xf32> to vector<1x64xf32>
    %449 = vector.extract_strided_slice %338 {offsets = [56, 0], sizes = [1, 64], strides = [1, 1]} : vector<80x64xf32> to vector<1x64xf32>
    %450 = vector.extract_strided_slice %338 {offsets = [57, 0], sizes = [1, 64], strides = [1, 1]} : vector<80x64xf32> to vector<1x64xf32>
    %451 = vector.extract_strided_slice %338 {offsets = [57, 0], sizes = [1, 64], strides = [1, 1]} : vector<80x64xf32> to vector<1x64xf32>
    %452 = tpu.concatenate %436, %437, %438, %439, %440, %441, %442, %443, %444, %445, %446, %447, %448, %449, %450, %451 in 0 : vector<1x64xf32>, vector<1x64xf32>, vector<1x64xf32>, vector<1x64xf32>, vector<1x64xf32>, vector<1x64xf32>, vector<1x64xf32>, vector<1x64xf32>, vector<1x64xf32>, vector<1x64xf32>, vector<1x64xf32>, vector<1x64xf32>, vector<1x64xf32>, vector<1x64xf32>, vector<1x64xf32>, vector<1x64xf32> -> vector<16x64xf32>
    %c199 = arith.constant 199 : index
    %c0_205 = arith.constant 0 : index
    %453 = vector.load %arg13[%c199, %c0_205] : memref<328x64xf32, #tpu.memory_space<vmem>>, vector<16x64xf32>
    tpu.vector_store %arg13[%c199, %c0_205], %452 {strides = array<i32>} : memref<328x64xf32, #tpu.memory_space<vmem>>, vector<16x64xf32>,
    %c217 = arith.constant 217 : index
    %c0_206 = arith.constant 0 : index
    %454 = vector.load %arg13[%c217, %c0_206] : memref<328x64xf32, #tpu.memory_space<vmem>>, vector<16x64xf32>
    tpu.vector_store %arg13[%c217, %c0_206], %452 {strides = array<i32>} : memref<328x64xf32, #tpu.memory_space<vmem>>, vector<16x64xf32>,
    %455 = vector.extract_strided_slice %338 {offsets = [60, 0], sizes = [1, 64], strides = [1, 1]} : vector<80x64xf32> to vector<1x64xf32>
    %456 = vector.extract_strided_slice %338 {offsets = [60, 0], sizes = [1, 64], strides = [1, 1]} : vector<80x64xf32> to vector<1x64xf32>
    %457 = vector.extract_strided_slice %338 {offsets = [61, 0], sizes = [1, 64], strides = [1, 1]} : vector<80x64xf32> to vector<1x64xf32>
    %458 = vector.extract_strided_slice %338 {offsets = [61, 0], sizes = [1, 64], strides = [1, 1]} : vector<80x64xf32> to vector<1x64xf32>
    %459 = vector.extract_strided_slice %338 {offsets = [62, 0], sizes = [1, 64], strides = [1, 1]} : vector<80x64xf32> to vector<1x64xf32>
    %460 = vector.extract_strided_slice %338 {offsets = [62, 0], sizes = [1, 64], strides = [1, 1]} : vector<80x64xf32> to vector<1x64xf32>
    %461 = vector.extract_strided_slice %338 {offsets = [63, 0], sizes = [1, 64], strides = [1, 1]} : vector<80x64xf32> to vector<1x64xf32>
    %462 = vector.extract_strided_slice %338 {offsets = [63, 0], sizes = [1, 64], strides = [1, 1]} : vector<80x64xf32> to vector<1x64xf32>
    %463 = vector.extract_strided_slice %338 {offsets = [64, 0], sizes = [1, 64], strides = [1, 1]} : vector<80x64xf32> to vector<1x64xf32>
    %464 = vector.extract_strided_slice %338 {offsets = [64, 0], sizes = [1, 64], strides = [1, 1]} : vector<80x64xf32> to vector<1x64xf32>
    %465 = vector.extract_strided_slice %338 {offsets = [65, 0], sizes = [1, 64], strides = [1, 1]} : vector<80x64xf32> to vector<1x64xf32>
    %466 = vector.extract_strided_slice %338 {offsets = [65, 0], sizes = [1, 64], strides = [1, 1]} : vector<80x64xf32> to vector<1x64xf32>
    %467 = vector.extract_strided_slice %338 {offsets = [66, 0], sizes = [1, 64], strides = [1, 1]} : vector<80x64xf32> to vector<1x64xf32>
    %468 = vector.extract_strided_slice %338 {offsets = [66, 0], sizes = [1, 64], strides = [1, 1]} : vector<80x64xf32> to vector<1x64xf32>
    %469 = vector.extract_strided_slice %338 {offsets = [67, 0], sizes = [1, 64], strides = [1, 1]} : vector<80x64xf32> to vector<1x64xf32>
    %470 = vector.extract_strided_slice %338 {offsets = [67, 0], sizes = [1, 64], strides = [1, 1]} : vector<80x64xf32> to vector<1x64xf32>
    %471 = tpu.concatenate %455, %456, %457, %458, %459, %460, %461, %462, %463, %464, %465, %466, %467, %468, %469, %470 in 0 : vector<1x64xf32>, vector<1x64xf32>, vector<1x64xf32>, vector<1x64xf32>, vector<1x64xf32>, vector<1x64xf32>, vector<1x64xf32>, vector<1x64xf32>, vector<1x64xf32>, vector<1x64xf32>, vector<1x64xf32>, vector<1x64xf32>, vector<1x64xf32>, vector<1x64xf32>, vector<1x64xf32>, vector<1x64xf32> -> vector<16x64xf32>
    %c235 = arith.constant 235 : index
    %c0_207 = arith.constant 0 : index
    %472 = vector.load %arg13[%c235, %c0_207] : memref<328x64xf32, #tpu.memory_space<vmem>>, vector<16x64xf32>
    tpu.vector_store %arg13[%c235, %c0_207], %471 {strides = array<i32>} : memref<328x64xf32, #tpu.memory_space<vmem>>, vector<16x64xf32>,
    %c253 = arith.constant 253 : index
    %c0_208 = arith.constant 0 : index
    %473 = vector.load %arg13[%c253, %c0_208] : memref<328x64xf32, #tpu.memory_space<vmem>>, vector<16x64xf32>
    tpu.vector_store %arg13[%c253, %c0_208], %471 {strides = array<i32>} : memref<328x64xf32, #tpu.memory_space<vmem>>, vector<16x64xf32>,
    %474 = vector.extract_strided_slice %338 {offsets = [70, 0], sizes = [1, 64], strides = [1, 1]} : vector<80x64xf32> to vector<1x64xf32>
    %475 = vector.extract_strided_slice %338 {offsets = [70, 0], sizes = [1, 64], strides = [1, 1]} : vector<80x64xf32> to vector<1x64xf32>
    %476 = vector.extract_strided_slice %338 {offsets = [71, 0], sizes = [1, 64], strides = [1, 1]} : vector<80x64xf32> to vector<1x64xf32>
    %477 = vector.extract_strided_slice %338 {offsets = [71, 0], sizes = [1, 64], strides = [1, 1]} : vector<80x64xf32> to vector<1x64xf32>
    %478 = vector.extract_strided_slice %338 {offsets = [72, 0], sizes = [1, 64], strides = [1, 1]} : vector<80x64xf32> to vector<1x64xf32>
    %479 = vector.extract_strided_slice %338 {offsets = [72, 0], sizes = [1, 64], strides = [1, 1]} : vector<80x64xf32> to vector<1x64xf32>
    %480 = vector.extract_strided_slice %338 {offsets = [73, 0], sizes = [1, 64], strides = [1, 1]} : vector<80x64xf32> to vector<1x64xf32>
    %481 = vector.extract_strided_slice %338 {offsets = [73, 0], sizes = [1, 64], strides = [1, 1]} : vector<80x64xf32> to vector<1x64xf32>
    %482 = vector.extract_strided_slice %338 {offsets = [74, 0], sizes = [1, 64], strides = [1, 1]} : vector<80x64xf32> to vector<1x64xf32>
    %483 = vector.extract_strided_slice %338 {offsets = [74, 0], sizes = [1, 64], strides = [1, 1]} : vector<80x64xf32> to vector<1x64xf32>
    %484 = vector.extract_strided_slice %338 {offsets = [75, 0], sizes = [1, 64], strides = [1, 1]} : vector<80x64xf32> to vector<1x64xf32>
    %485 = vector.extract_strided_slice %338 {offsets = [75, 0], sizes = [1, 64], strides = [1, 1]} : vector<80x64xf32> to vector<1x64xf32>
    %486 = vector.extract_strided_slice %338 {offsets = [76, 0], sizes = [1, 64], strides = [1, 1]} : vector<80x64xf32> to vector<1x64xf32>
    %487 = vector.extract_strided_slice %338 {offsets = [76, 0], sizes = [1, 64], strides = [1, 1]} : vector<80x64xf32> to vector<1x64xf32>
    %488 = vector.extract_strided_slice %338 {offsets = [77, 0], sizes = [1, 64], strides = [1, 1]} : vector<80x64xf32> to vector<1x64xf32>
    %489 = vector.extract_strided_slice %338 {offsets = [77, 0], sizes = [1, 64], strides = [1, 1]} : vector<80x64xf32> to vector<1x64xf32>
    %490 = tpu.concatenate %474, %475, %476, %477, %478, %479, %480, %481, %482, %483, %484, %485, %486, %487, %488, %489 in 0 : vector<1x64xf32>, vector<1x64xf32>, vector<1x64xf32>, vector<1x64xf32>, vector<1x64xf32>, vector<1x64xf32>, vector<1x64xf32>, vector<1x64xf32>, vector<1x64xf32>, vector<1x64xf32>, vector<1x64xf32>, vector<1x64xf32>, vector<1x64xf32>, vector<1x64xf32>, vector<1x64xf32>, vector<1x64xf32> -> vector<16x64xf32>
    %c271 = arith.constant 271 : index
    %c0_209 = arith.constant 0 : index
    %491 = vector.load %arg13[%c271, %c0_209] : memref<328x64xf32, #tpu.memory_space<vmem>>, vector<16x64xf32>
    tpu.vector_store %arg13[%c271, %c0_209], %490 {strides = array<i32>} : memref<328x64xf32, #tpu.memory_space<vmem>>, vector<16x64xf32>,
    %c289 = arith.constant 289 : index
    %c0_210 = arith.constant 0 : index
    %492 = vector.load %arg13[%c289, %c0_210] : memref<328x64xf32, #tpu.memory_space<vmem>>, vector<16x64xf32>
    tpu.vector_store %arg13[%c289, %c0_210], %490 {strides = array<i32>} : memref<328x64xf32, #tpu.memory_space<vmem>>, vector<16x64xf32>,
    %cst_211 = arith.constant 0.000000e+00 : f32
    %493 = vector.broadcast %cst_211 : f32 to vector<72x8xf32>
    %c0_212 = arith.constant 0 : index
    %c0_213 = arith.constant 0 : index
    %494 = vector.load %arg13[%c0_212, %c0_213] : memref<328x64xf32, #tpu.memory_space<vmem>>, vector<72x64xf32>
    %495 = arith.truncf %494 : vector<72x64xf32> to vector<72x64xbf16>
    %c0_214 = arith.constant 0 : index
    %c0_215 = arith.constant 0 : index
    %c0_216 = arith.constant 0 : index
    %496 = vector.load %arg8[%c0_214, %c0_215, %c0_216] : memref<9x64x8xbf16, #tpu.memory_space<vmem>>, vector<1x64x8xbf16>
    %497 = vector.shape_cast %496 : vector<1x64x8xbf16> to vector<64x8xbf16>
    %cst_217 = arith.constant dense<0.000000e+00> : vector<72x8xf32>
    %498 = tpu.matmul %495, %497, %cst_217 {dimension_numbers = #tpu.dot_dimension_numbers<[1], [0], [0], [1], [0, 0, 1, 1], [], []>} : vector<72x64xbf16>, vector<64x8xbf16>, vector<72x8xf32> -> vector<72x8xf32>
    %499 = arith.addf %493, %498 : vector<72x8xf32>
    %c1_218 = arith.constant 1 : index
    %c0_219 = arith.constant 0 : index
    %500 = vector.load %arg13[%c1_218, %c0_219] : memref<328x64xf32, #tpu.memory_space<vmem>>, vector<72x64xf32>
    %501 = arith.truncf %500 : vector<72x64xf32> to vector<72x64xbf16>
    %c1_220 = arith.constant 1 : index
    %c0_221 = arith.constant 0 : index
    %c0_222 = arith.constant 0 : index
    %502 = vector.load %arg8[%c1_220, %c0_221, %c0_222] : memref<9x64x8xbf16, #tpu.memory_space<vmem>>, vector<1x64x8xbf16>
    %503 = vector.shape_cast %502 : vector<1x64x8xbf16> to vector<64x8xbf16>
    %cst_223 = arith.constant dense<0.000000e+00> : vector<72x8xf32>
    %504 = tpu.matmul %501, %503, %cst_223 {dimension_numbers = #tpu.dot_dimension_numbers<[1], [0], [0], [1], [0, 0, 1, 1], [], []>} : vector<72x64xbf16>, vector<64x8xbf16>, vector<72x8xf32> -> vector<72x8xf32>
    %505 = arith.addf %499, %504 : vector<72x8xf32>
    %c2_224 = arith.constant 2 : index
    %c0_225 = arith.constant 0 : index
    %506 = vector.load %arg13[%c2_224, %c0_225] : memref<328x64xf32, #tpu.memory_space<vmem>>, vector<72x64xf32>
    %507 = arith.truncf %506 : vector<72x64xf32> to vector<72x64xbf16>
    %c2_226 = arith.constant 2 : index
    %c0_227 = arith.constant 0 : index
    %c0_228 = arith.constant 0 : index
    %508 = vector.load %arg8[%c2_226, %c0_227, %c0_228] : memref<9x64x8xbf16, #tpu.memory_space<vmem>>, vector<1x64x8xbf16>
    %509 = vector.shape_cast %508 : vector<1x64x8xbf16> to vector<64x8xbf16>
    %cst_229 = arith.constant dense<0.000000e+00> : vector<72x8xf32>
    %510 = tpu.matmul %507, %509, %cst_229 {dimension_numbers = #tpu.dot_dimension_numbers<[1], [0], [0], [1], [0, 0, 1, 1], [], []>} : vector<72x64xbf16>, vector<64x8xbf16>, vector<72x8xf32> -> vector<72x8xf32>
    %511 = arith.addf %505, %510 : vector<72x8xf32>
    %c18 = arith.constant 18 : index
    %c0_230 = arith.constant 0 : index
    %512 = vector.load %arg13[%c18, %c0_230] : memref<328x64xf32, #tpu.memory_space<vmem>>, vector<72x64xf32>
    %513 = arith.truncf %512 : vector<72x64xf32> to vector<72x64xbf16>
    %c3_231 = arith.constant 3 : index
    %c0_232 = arith.constant 0 : index
    %c0_233 = arith.constant 0 : index
    %514 = vector.load %arg8[%c3_231, %c0_232, %c0_233] : memref<9x64x8xbf16, #tpu.memory_space<vmem>>, vector<1x64x8xbf16>
    %515 = vector.shape_cast %514 : vector<1x64x8xbf16> to vector<64x8xbf16>
    %cst_234 = arith.constant dense<0.000000e+00> : vector<72x8xf32>
    %516 = tpu.matmul %513, %515, %cst_234 {dimension_numbers = #tpu.dot_dimension_numbers<[1], [0], [0], [1], [0, 0, 1, 1], [], []>} : vector<72x64xbf16>, vector<64x8xbf16>, vector<72x8xf32> -> vector<72x8xf32>
    %517 = arith.addf %511, %516 : vector<72x8xf32>
    %c19_235 = arith.constant 19 : index
    %c0_236 = arith.constant 0 : index
    %518 = vector.load %arg13[%c19_235, %c0_236] : memref<328x64xf32, #tpu.memory_space<vmem>>, vector<72x64xf32>
    %519 = arith.truncf %518 : vector<72x64xf32> to vector<72x64xbf16>
    %c4_237 = arith.constant 4 : index
    %c0_238 = arith.constant 0 : index
    %c0_239 = arith.constant 0 : index
    %520 = vector.load %arg8[%c4_237, %c0_238, %c0_239] : memref<9x64x8xbf16, #tpu.memory_space<vmem>>, vector<1x64x8xbf16>
    %521 = vector.shape_cast %520 : vector<1x64x8xbf16> to vector<64x8xbf16>
    %cst_240 = arith.constant dense<0.000000e+00> : vector<72x8xf32>
    %522 = tpu.matmul %519, %521, %cst_240 {dimension_numbers = #tpu.dot_dimension_numbers<[1], [0], [0], [1], [0, 0, 1, 1], [], []>} : vector<72x64xbf16>, vector<64x8xbf16>, vector<72x8xf32> -> vector<72x8xf32>
    %523 = arith.addf %517, %522 : vector<72x8xf32>
    %c20_241 = arith.constant 20 : index
    %c0_242 = arith.constant 0 : index
    %524 = vector.load %arg13[%c20_241, %c0_242] : memref<328x64xf32, #tpu.memory_space<vmem>>, vector<72x64xf32>
    %525 = arith.truncf %524 : vector<72x64xf32> to vector<72x64xbf16>
    %c5_243 = arith.constant 5 : index
    %c0_244 = arith.constant 0 : index
    %c0_245 = arith.constant 0 : index
    %526 = vector.load %arg8[%c5_243, %c0_244, %c0_245] : memref<9x64x8xbf16, #tpu.memory_space<vmem>>, vector<1x64x8xbf16>
    %527 = vector.shape_cast %526 : vector<1x64x8xbf16> to vector<64x8xbf16>
    %cst_246 = arith.constant dense<0.000000e+00> : vector<72x8xf32>
    %528 = tpu.matmul %525, %527, %cst_246 {dimension_numbers = #tpu.dot_dimension_numbers<[1], [0], [0], [1], [0, 0, 1, 1], [], []>} : vector<72x64xbf16>, vector<64x8xbf16>, vector<72x8xf32> -> vector<72x8xf32>
    %529 = arith.addf %523, %528 : vector<72x8xf32>
    %c36 = arith.constant 36 : index
    %c0_247 = arith.constant 0 : index
    %530 = vector.load %arg13[%c36, %c0_247] : memref<328x64xf32, #tpu.memory_space<vmem>>, vector<72x64xf32>
    %531 = arith.truncf %530 : vector<72x64xf32> to vector<72x64xbf16>
    %c6_248 = arith.constant 6 : index
    %c0_249 = arith.constant 0 : index
    %c0_250 = arith.constant 0 : index
    %532 = vector.load %arg8[%c6_248, %c0_249, %c0_250] : memref<9x64x8xbf16, #tpu.memory_space<vmem>>, vector<1x64x8xbf16>
    %533 = vector.shape_cast %532 : vector<1x64x8xbf16> to vector<64x8xbf16>
    %cst_251 = arith.constant dense<0.000000e+00> : vector<72x8xf32>
    %534 = tpu.matmul %531, %533, %cst_251 {dimension_numbers = #tpu.dot_dimension_numbers<[1], [0], [0], [1], [0, 0, 1, 1], [], []>} : vector<72x64xbf16>, vector<64x8xbf16>, vector<72x8xf32> -> vector<72x8xf32>
    %535 = arith.addf %529, %534 : vector<72x8xf32>
    %c37_252 = arith.constant 37 : index
    %c0_253 = arith.constant 0 : index
    %536 = vector.load %arg13[%c37_252, %c0_253] : memref<328x64xf32, #tpu.memory_space<vmem>>, vector<72x64xf32>
    %537 = arith.truncf %536 : vector<72x64xf32> to vector<72x64xbf16>
    %c7_254 = arith.constant 7 : index
    %c0_255 = arith.constant 0 : index
    %c0_256 = arith.constant 0 : index
    %538 = vector.load %arg8[%c7_254, %c0_255, %c0_256] : memref<9x64x8xbf16, #tpu.memory_space<vmem>>, vector<1x64x8xbf16>
    %539 = vector.shape_cast %538 : vector<1x64x8xbf16> to vector<64x8xbf16>
    %cst_257 = arith.constant dense<0.000000e+00> : vector<72x8xf32>
    %540 = tpu.matmul %537, %539, %cst_257 {dimension_numbers = #tpu.dot_dimension_numbers<[1], [0], [0], [1], [0, 0, 1, 1], [], []>} : vector<72x64xbf16>, vector<64x8xbf16>, vector<72x8xf32> -> vector<72x8xf32>
    %541 = arith.addf %535, %540 : vector<72x8xf32>
    %c38 = arith.constant 38 : index
    %c0_258 = arith.constant 0 : index
    %542 = vector.load %arg13[%c38, %c0_258] : memref<328x64xf32, #tpu.memory_space<vmem>>, vector<72x64xf32>
    %543 = arith.truncf %542 : vector<72x64xf32> to vector<72x64xbf16>
    %c8_259 = arith.constant 8 : index
    %c0_260 = arith.constant 0 : index
    %c0_261 = arith.constant 0 : index
    %544 = vector.load %arg8[%c8_259, %c0_260, %c0_261] : memref<9x64x8xbf16, #tpu.memory_space<vmem>>, vector<1x64x8xbf16>
    %545 = vector.shape_cast %544 : vector<1x64x8xbf16> to vector<64x8xbf16>
    %cst_262 = arith.constant dense<0.000000e+00> : vector<72x8xf32>
    %546 = tpu.matmul %543, %545, %cst_262 {dimension_numbers = #tpu.dot_dimension_numbers<[1], [0], [0], [1], [0, 0, 1, 1], [], []>} : vector<72x64xbf16>, vector<64x8xbf16>, vector<72x8xf32> -> vector<72x8xf32>
    %547 = arith.addf %541, %546 : vector<72x8xf32>
    %c0_263 = arith.constant 0 : index
    %c0_264 = arith.constant 0 : index
    %548 = vector.load %arg9[%c0_263, %c0_264] : memref<1x8xf32, #tpu.memory_space<vmem>>, vector<1x8xf32>
    %549 = vector.broadcast %548 : vector<1x8xf32> to vector<72x8xf32>
    %550 = arith.addf %547, %549 : vector<72x8xf32>
    %551 = vector.extract_strided_slice %550 {offsets = [0, 0], sizes = [16, 8], strides = [1, 1]} : vector<72x8xf32> to vector<16x8xf32>
    %c0_265 = arith.constant 0 : index
    %c0_266 = arith.constant 0 : index
    %c0_267 = arith.constant 0 : index
    %552 = vector.load %arg10[%c0_265, %c0_266, %c0_267] : memref<1x256x8xf32, #tpu.memory_space<vmem>>, vector<1x16x8xf32>
    %553 = vector.shape_cast %552 : vector<1x16x8xf32> to vector<16x8xf32>
    %554 = vector.shape_cast %551 : vector<16x8xf32> to vector<1x16x8xf32>
    tpu.vector_store %arg10[%c0_265, %c0_266, %c0_267], %554 {strides = array<i32>} : memref<1x256x8xf32, #tpu.memory_space<vmem>>, vector<1x16x8xf32>,
    %555 = vector.extract_strided_slice %550 {offsets = [18, 0], sizes = [16, 8], strides = [1, 1]} : vector<72x8xf32> to vector<16x8xf32>
    %c0_268 = arith.constant 0 : index
    %c16 = arith.constant 16 : index
    %c0_269 = arith.constant 0 : index
    %556 = vector.load %arg10[%c0_268, %c16, %c0_269] : memref<1x256x8xf32, #tpu.memory_space<vmem>>, vector<1x16x8xf32>
    %557 = vector.shape_cast %556 : vector<1x16x8xf32> to vector<16x8xf32>
    %558 = vector.shape_cast %555 : vector<16x8xf32> to vector<1x16x8xf32>
    tpu.vector_store %arg10[%c0_268, %c16, %c0_269], %558 {strides = array<i32>} : memref<1x256x8xf32, #tpu.memory_space<vmem>>, vector<1x16x8xf32>,
    %559 = vector.extract_strided_slice %550 {offsets = [36, 0], sizes = [16, 8], strides = [1, 1]} : vector<72x8xf32> to vector<16x8xf32>
    %c0_270 = arith.constant 0 : index
    %c32 = arith.constant 32 : index
    %c0_271 = arith.constant 0 : index
    %560 = vector.load %arg10[%c0_270, %c32, %c0_271] : memref<1x256x8xf32, #tpu.memory_space<vmem>>, vector<1x16x8xf32>
    %561 = vector.shape_cast %560 : vector<1x16x8xf32> to vector<16x8xf32>
    %562 = vector.shape_cast %559 : vector<16x8xf32> to vector<1x16x8xf32>
    tpu.vector_store %arg10[%c0_270, %c32, %c0_271], %562 {strides = array<i32>} : memref<1x256x8xf32, #tpu.memory_space<vmem>>, vector<1x16x8xf32>,
    %563 = vector.extract_strided_slice %550 {offsets = [54, 0], sizes = [16, 8], strides = [1, 1]} : vector<72x8xf32> to vector<16x8xf32>
    %c0_272 = arith.constant 0 : index
    %c48 = arith.constant 48 : index
    %c0_273 = arith.constant 0 : index
    %564 = vector.load %arg10[%c0_272, %c48, %c0_273] : memref<1x256x8xf32, #tpu.memory_space<vmem>>, vector<1x16x8xf32>
    %565 = vector.shape_cast %564 : vector<1x16x8xf32> to vector<16x8xf32>
    %566 = vector.shape_cast %563 : vector<16x8xf32> to vector<1x16x8xf32>
    tpu.vector_store %arg10[%c0_272, %c48, %c0_273], %566 {strides = array<i32>} : memref<1x256x8xf32, #tpu.memory_space<vmem>>, vector<1x16x8xf32>,
    %cst_274 = arith.constant 0.000000e+00 : f32
    %567 = vector.broadcast %cst_274 : f32 to vector<72x8xf32>
    %c72 = arith.constant 72 : index
    %c0_275 = arith.constant 0 : index
    %568 = vector.load %arg13[%c72, %c0_275] : memref<328x64xf32, #tpu.memory_space<vmem>>, vector<72x64xf32>
    %569 = arith.truncf %568 : vector<72x64xf32> to vector<72x64xbf16>
    %c0_276 = arith.constant 0 : index
    %c0_277 = arith.constant 0 : index
    %c0_278 = arith.constant 0 : index
    %570 = vector.load %arg8[%c0_276, %c0_277, %c0_278] : memref<9x64x8xbf16, #tpu.memory_space<vmem>>, vector<1x64x8xbf16>
    %571 = vector.shape_cast %570 : vector<1x64x8xbf16> to vector<64x8xbf16>
    %cst_279 = arith.constant dense<0.000000e+00> : vector<72x8xf32>
    %572 = tpu.matmul %569, %571, %cst_279 {dimension_numbers = #tpu.dot_dimension_numbers<[1], [0], [0], [1], [0, 0, 1, 1], [], []>} : vector<72x64xbf16>, vector<64x8xbf16>, vector<72x8xf32> -> vector<72x8xf32>
    %573 = arith.addf %567, %572 : vector<72x8xf32>
    %c73_280 = arith.constant 73 : index
    %c0_281 = arith.constant 0 : index
    %574 = vector.load %arg13[%c73_280, %c0_281] : memref<328x64xf32, #tpu.memory_space<vmem>>, vector<72x64xf32>
    %575 = arith.truncf %574 : vector<72x64xf32> to vector<72x64xbf16>
    %c1_282 = arith.constant 1 : index
    %c0_283 = arith.constant 0 : index
    %c0_284 = arith.constant 0 : index
    %576 = vector.load %arg8[%c1_282, %c0_283, %c0_284] : memref<9x64x8xbf16, #tpu.memory_space<vmem>>, vector<1x64x8xbf16>
    %577 = vector.shape_cast %576 : vector<1x64x8xbf16> to vector<64x8xbf16>
    %cst_285 = arith.constant dense<0.000000e+00> : vector<72x8xf32>
    %578 = tpu.matmul %575, %577, %cst_285 {dimension_numbers = #tpu.dot_dimension_numbers<[1], [0], [0], [1], [0, 0, 1, 1], [], []>} : vector<72x64xbf16>, vector<64x8xbf16>, vector<72x8xf32> -> vector<72x8xf32>
    %579 = arith.addf %573, %578 : vector<72x8xf32>
    %c74 = arith.constant 74 : index
    %c0_286 = arith.constant 0 : index
    %580 = vector.load %arg13[%c74, %c0_286] : memref<328x64xf32, #tpu.memory_space<vmem>>, vector<72x64xf32>
    %581 = arith.truncf %580 : vector<72x64xf32> to vector<72x64xbf16>
    %c2_287 = arith.constant 2 : index
    %c0_288 = arith.constant 0 : index
    %c0_289 = arith.constant 0 : index
    %582 = vector.load %arg8[%c2_287, %c0_288, %c0_289] : memref<9x64x8xbf16, #tpu.memory_space<vmem>>, vector<1x64x8xbf16>
    %583 = vector.shape_cast %582 : vector<1x64x8xbf16> to vector<64x8xbf16>
    %cst_290 = arith.constant dense<0.000000e+00> : vector<72x8xf32>
    %584 = tpu.matmul %581, %583, %cst_290 {dimension_numbers = #tpu.dot_dimension_numbers<[1], [0], [0], [1], [0, 0, 1, 1], [], []>} : vector<72x64xbf16>, vector<64x8xbf16>, vector<72x8xf32> -> vector<72x8xf32>
    %585 = arith.addf %579, %584 : vector<72x8xf32>
    %c90 = arith.constant 90 : index
    %c0_291 = arith.constant 0 : index
    %586 = vector.load %arg13[%c90, %c0_291] : memref<328x64xf32, #tpu.memory_space<vmem>>, vector<72x64xf32>
    %587 = arith.truncf %586 : vector<72x64xf32> to vector<72x64xbf16>
    %c3_292 = arith.constant 3 : index
    %c0_293 = arith.constant 0 : index
    %c0_294 = arith.constant 0 : index
    %588 = vector.load %arg8[%c3_292, %c0_293, %c0_294] : memref<9x64x8xbf16, #tpu.memory_space<vmem>>, vector<1x64x8xbf16>
    %589 = vector.shape_cast %588 : vector<1x64x8xbf16> to vector<64x8xbf16>
    %cst_295 = arith.constant dense<0.000000e+00> : vector<72x8xf32>
    %590 = tpu.matmul %587, %589, %cst_295 {dimension_numbers = #tpu.dot_dimension_numbers<[1], [0], [0], [1], [0, 0, 1, 1], [], []>} : vector<72x64xbf16>, vector<64x8xbf16>, vector<72x8xf32> -> vector<72x8xf32>
    %591 = arith.addf %585, %590 : vector<72x8xf32>
    %c91_296 = arith.constant 91 : index
    %c0_297 = arith.constant 0 : index
    %592 = vector.load %arg13[%c91_296, %c0_297] : memref<328x64xf32, #tpu.memory_space<vmem>>, vector<72x64xf32>
    %593 = arith.truncf %592 : vector<72x64xf32> to vector<72x64xbf16>
    %c4_298 = arith.constant 4 : index
    %c0_299 = arith.constant 0 : index
    %c0_300 = arith.constant 0 : index
    %594 = vector.load %arg8[%c4_298, %c0_299, %c0_300] : memref<9x64x8xbf16, #tpu.memory_space<vmem>>, vector<1x64x8xbf16>
    %595 = vector.shape_cast %594 : vector<1x64x8xbf16> to vector<64x8xbf16>
    %cst_301 = arith.constant dense<0.000000e+00> : vector<72x8xf32>
    %596 = tpu.matmul %593, %595, %cst_301 {dimension_numbers = #tpu.dot_dimension_numbers<[1], [0], [0], [1], [0, 0, 1, 1], [], []>} : vector<72x64xbf16>, vector<64x8xbf16>, vector<72x8xf32> -> vector<72x8xf32>
    %597 = arith.addf %591, %596 : vector<72x8xf32>
    %c92 = arith.constant 92 : index
    %c0_302 = arith.constant 0 : index
    %598 = vector.load %arg13[%c92, %c0_302] : memref<328x64xf32, #tpu.memory_space<vmem>>, vector<72x64xf32>
    %599 = arith.truncf %598 : vector<72x64xf32> to vector<72x64xbf16>
    %c5_303 = arith.constant 5 : index
    %c0_304 = arith.constant 0 : index
    %c0_305 = arith.constant 0 : index
    %600 = vector.load %arg8[%c5_303, %c0_304, %c0_305] : memref<9x64x8xbf16, #tpu.memory_space<vmem>>, vector<1x64x8xbf16>
    %601 = vector.shape_cast %600 : vector<1x64x8xbf16> to vector<64x8xbf16>
    %cst_306 = arith.constant dense<0.000000e+00> : vector<72x8xf32>
    %602 = tpu.matmul %599, %601, %cst_306 {dimension_numbers = #tpu.dot_dimension_numbers<[1], [0], [0], [1], [0, 0, 1, 1], [], []>} : vector<72x64xbf16>, vector<64x8xbf16>, vector<72x8xf32> -> vector<72x8xf32>
    %603 = arith.addf %597, %602 : vector<72x8xf32>
    %c108 = arith.constant 108 : index
    %c0_307 = arith.constant 0 : index
    %604 = vector.load %arg13[%c108, %c0_307] : memref<328x64xf32, #tpu.memory_space<vmem>>, vector<72x64xf32>
    %605 = arith.truncf %604 : vector<72x64xf32> to vector<72x64xbf16>
    %c6_308 = arith.constant 6 : index
    %c0_309 = arith.constant 0 : index
    %c0_310 = arith.constant 0 : index
    %606 = vector.load %arg8[%c6_308, %c0_309, %c0_310] : memref<9x64x8xbf16, #tpu.memory_space<vmem>>, vector<1x64x8xbf16>
    %607 = vector.shape_cast %606 : vector<1x64x8xbf16> to vector<64x8xbf16>
    %cst_311 = arith.constant dense<0.000000e+00> : vector<72x8xf32>
    %608 = tpu.matmul %605, %607, %cst_311 {dimension_numbers = #tpu.dot_dimension_numbers<[1], [0], [0], [1], [0, 0, 1, 1], [], []>} : vector<72x64xbf16>, vector<64x8xbf16>, vector<72x8xf32> -> vector<72x8xf32>
    %609 = arith.addf %603, %608 : vector<72x8xf32>
    %c109_312 = arith.constant 109 : index
    %c0_313 = arith.constant 0 : index
    %610 = vector.load %arg13[%c109_312, %c0_313] : memref<328x64xf32, #tpu.memory_space<vmem>>, vector<72x64xf32>
    %611 = arith.truncf %610 : vector<72x64xf32> to vector<72x64xbf16>
    %c7_314 = arith.constant 7 : index
    %c0_315 = arith.constant 0 : index
    %c0_316 = arith.constant 0 : index
    %612 = vector.load %arg8[%c7_314, %c0_315, %c0_316] : memref<9x64x8xbf16, #tpu.memory_space<vmem>>, vector<1x64x8xbf16>
    %613 = vector.shape_cast %612 : vector<1x64x8xbf16> to vector<64x8xbf16>
    %cst_317 = arith.constant dense<0.000000e+00> : vector<72x8xf32>
    %614 = tpu.matmul %611, %613, %cst_317 {dimension_numbers = #tpu.dot_dimension_numbers<[1], [0], [0], [1], [0, 0, 1, 1], [], []>} : vector<72x64xbf16>, vector<64x8xbf16>, vector<72x8xf32> -> vector<72x8xf32>
    %615 = arith.addf %609, %614 : vector<72x8xf32>
    %c110 = arith.constant 110 : index
    %c0_318 = arith.constant 0 : index
    %616 = vector.load %arg13[%c110, %c0_318] : memref<328x64xf32, #tpu.memory_space<vmem>>, vector<72x64xf32>
    %617 = arith.truncf %616 : vector<72x64xf32> to vector<72x64xbf16>
    %c8_319 = arith.constant 8 : index
    %c0_320 = arith.constant 0 : index
    %c0_321 = arith.constant 0 : index
    %618 = vector.load %arg8[%c8_319, %c0_320, %c0_321] : memref<9x64x8xbf16, #tpu.memory_space<vmem>>, vector<1x64x8xbf16>
    %619 = vector.shape_cast %618 : vector<1x64x8xbf16> to vector<64x8xbf16>
    %cst_322 = arith.constant dense<0.000000e+00> : vector<72x8xf32>
    %620 = tpu.matmul %617, %619, %cst_322 {dimension_numbers = #tpu.dot_dimension_numbers<[1], [0], [0], [1], [0, 0, 1, 1], [], []>} : vector<72x64xbf16>, vector<64x8xbf16>, vector<72x8xf32> -> vector<72x8xf32>
    %621 = arith.addf %615, %620 : vector<72x8xf32>
    %c0_323 = arith.constant 0 : index
    %c0_324 = arith.constant 0 : index
    %622 = vector.load %arg9[%c0_323, %c0_324] : memref<1x8xf32, #tpu.memory_space<vmem>>, vector<1x8xf32>
    %623 = vector.broadcast %622 : vector<1x8xf32> to vector<72x8xf32>
    %624 = arith.addf %621, %623 : vector<72x8xf32>
    %625 = vector.extract_strided_slice %624 {offsets = [0, 0], sizes = [16, 8], strides = [1, 1]} : vector<72x8xf32> to vector<16x8xf32>
    %c0_325 = arith.constant 0 : index
    %c64_326 = arith.constant 64 : index
    %c0_327 = arith.constant 0 : index
    %626 = vector.load %arg10[%c0_325, %c64_326, %c0_327] : memref<1x256x8xf32, #tpu.memory_space<vmem>>, vector<1x16x8xf32>
    %627 = vector.shape_cast %626 : vector<1x16x8xf32> to vector<16x8xf32>
    %628 = vector.shape_cast %625 : vector<16x8xf32> to vector<1x16x8xf32>
    tpu.vector_store %arg10[%c0_325, %c64_326, %c0_327], %628 {strides = array<i32>} : memref<1x256x8xf32, #tpu.memory_space<vmem>>, vector<1x16x8xf32>,
    %629 = vector.extract_strided_slice %624 {offsets = [18, 0], sizes = [16, 8], strides = [1, 1]} : vector<72x8xf32> to vector<16x8xf32>
    %c0_328 = arith.constant 0 : index
    %c80 = arith.constant 80 : index
    %c0_329 = arith.constant 0 : index
    %630 = vector.load %arg10[%c0_328, %c80, %c0_329] : memref<1x256x8xf32, #tpu.memory_space<vmem>>, vector<1x16x8xf32>
    %631 = vector.shape_cast %630 : vector<1x16x8xf32> to vector<16x8xf32>
    %632 = vector.shape_cast %629 : vector<16x8xf32> to vector<1x16x8xf32>
    tpu.vector_store %arg10[%c0_328, %c80, %c0_329], %632 {strides = array<i32>} : memref<1x256x8xf32, #tpu.memory_space<vmem>>, vector<1x16x8xf32>,
    %633 = vector.extract_strided_slice %624 {offsets = [36, 0], sizes = [16, 8], strides = [1, 1]} : vector<72x8xf32> to vector<16x8xf32>
    %c0_330 = arith.constant 0 : index
    %c96 = arith.constant 96 : index
    %c0_331 = arith.constant 0 : index
    %634 = vector.load %arg10[%c0_330, %c96, %c0_331] : memref<1x256x8xf32, #tpu.memory_space<vmem>>, vector<1x16x8xf32>
    %635 = vector.shape_cast %634 : vector<1x16x8xf32> to vector<16x8xf32>
    %636 = vector.shape_cast %633 : vector<16x8xf32> to vector<1x16x8xf32>
    tpu.vector_store %arg10[%c0_330, %c96, %c0_331], %636 {strides = array<i32>} : memref<1x256x8xf32, #tpu.memory_space<vmem>>, vector<1x16x8xf32>,
    %637 = vector.extract_strided_slice %624 {offsets = [54, 0], sizes = [16, 8], strides = [1, 1]} : vector<72x8xf32> to vector<16x8xf32>
    %c0_332 = arith.constant 0 : index
    %c112 = arith.constant 112 : index
    %c0_333 = arith.constant 0 : index
    %638 = vector.load %arg10[%c0_332, %c112, %c0_333] : memref<1x256x8xf32, #tpu.memory_space<vmem>>, vector<1x16x8xf32>
    %639 = vector.shape_cast %638 : vector<1x16x8xf32> to vector<16x8xf32>
    %640 = vector.shape_cast %637 : vector<16x8xf32> to vector<1x16x8xf32>
    tpu.vector_store %arg10[%c0_332, %c112, %c0_333], %640 {strides = array<i32>} : memref<1x256x8xf32, #tpu.memory_space<vmem>>, vector<1x16x8xf32>,
    %cst_334 = arith.constant 0.000000e+00 : f32
    %641 = vector.broadcast %cst_334 : f32 to vector<72x8xf32>
    %c144 = arith.constant 144 : index
    %c0_335 = arith.constant 0 : index
    %642 = vector.load %arg13[%c144, %c0_335] : memref<328x64xf32, #tpu.memory_space<vmem>>, vector<72x64xf32>
    %643 = arith.truncf %642 : vector<72x64xf32> to vector<72x64xbf16>
    %c0_336 = arith.constant 0 : index
    %c0_337 = arith.constant 0 : index
    %c0_338 = arith.constant 0 : index
    %644 = vector.load %arg8[%c0_336, %c0_337, %c0_338] : memref<9x64x8xbf16, #tpu.memory_space<vmem>>, vector<1x64x8xbf16>
    %645 = vector.shape_cast %644 : vector<1x64x8xbf16> to vector<64x8xbf16>
    %cst_339 = arith.constant dense<0.000000e+00> : vector<72x8xf32>
    %646 = tpu.matmul %643, %645, %cst_339 {dimension_numbers = #tpu.dot_dimension_numbers<[1], [0], [0], [1], [0, 0, 1, 1], [], []>} : vector<72x64xbf16>, vector<64x8xbf16>, vector<72x8xf32> -> vector<72x8xf32>
    %647 = arith.addf %641, %646 : vector<72x8xf32>
    %c145_340 = arith.constant 145 : index
    %c0_341 = arith.constant 0 : index
    %648 = vector.load %arg13[%c145_340, %c0_341] : memref<328x64xf32, #tpu.memory_space<vmem>>, vector<72x64xf32>
    %649 = arith.truncf %648 : vector<72x64xf32> to vector<72x64xbf16>
    %c1_342 = arith.constant 1 : index
    %c0_343 = arith.constant 0 : index
    %c0_344 = arith.constant 0 : index
    %650 = vector.load %arg8[%c1_342, %c0_343, %c0_344] : memref<9x64x8xbf16, #tpu.memory_space<vmem>>, vector<1x64x8xbf16>
    %651 = vector.shape_cast %650 : vector<1x64x8xbf16> to vector<64x8xbf16>
    %cst_345 = arith.constant dense<0.000000e+00> : vector<72x8xf32>
    %652 = tpu.matmul %649, %651, %cst_345 {dimension_numbers = #tpu.dot_dimension_numbers<[1], [0], [0], [1], [0, 0, 1, 1], [], []>} : vector<72x64xbf16>, vector<64x8xbf16>, vector<72x8xf32> -> vector<72x8xf32>
    %653 = arith.addf %647, %652 : vector<72x8xf32>
    %c146 = arith.constant 146 : index
    %c0_346 = arith.constant 0 : index
    %654 = vector.load %arg13[%c146, %c0_346] : memref<328x64xf32, #tpu.memory_space<vmem>>, vector<72x64xf32>
    %655 = arith.truncf %654 : vector<72x64xf32> to vector<72x64xbf16>
    %c2_347 = arith.constant 2 : index
    %c0_348 = arith.constant 0 : index
    %c0_349 = arith.constant 0 : index
    %656 = vector.load %arg8[%c2_347, %c0_348, %c0_349] : memref<9x64x8xbf16, #tpu.memory_space<vmem>>, vector<1x64x8xbf16>
    %657 = vector.shape_cast %656 : vector<1x64x8xbf16> to vector<64x8xbf16>
    %cst_350 = arith.constant dense<0.000000e+00> : vector<72x8xf32>
    %658 = tpu.matmul %655, %657, %cst_350 {dimension_numbers = #tpu.dot_dimension_numbers<[1], [0], [0], [1], [0, 0, 1, 1], [], []>} : vector<72x64xbf16>, vector<64x8xbf16>, vector<72x8xf32> -> vector<72x8xf32>
    %659 = arith.addf %653, %658 : vector<72x8xf32>
    %c162 = arith.constant 162 : index
    %c0_351 = arith.constant 0 : index
    %660 = vector.load %arg13[%c162, %c0_351] : memref<328x64xf32, #tpu.memory_space<vmem>>, vector<72x64xf32>
    %661 = arith.truncf %660 : vector<72x64xf32> to vector<72x64xbf16>
    %c3_352 = arith.constant 3 : index
    %c0_353 = arith.constant 0 : index
    %c0_354 = arith.constant 0 : index
    %662 = vector.load %arg8[%c3_352, %c0_353, %c0_354] : memref<9x64x8xbf16, #tpu.memory_space<vmem>>, vector<1x64x8xbf16>
    %663 = vector.shape_cast %662 : vector<1x64x8xbf16> to vector<64x8xbf16>
    %cst_355 = arith.constant dense<0.000000e+00> : vector<72x8xf32>
    %664 = tpu.matmul %661, %663, %cst_355 {dimension_numbers = #tpu.dot_dimension_numbers<[1], [0], [0], [1], [0, 0, 1, 1], [], []>} : vector<72x64xbf16>, vector<64x8xbf16>, vector<72x8xf32> -> vector<72x8xf32>
    %665 = arith.addf %659, %664 : vector<72x8xf32>
    %c163_356 = arith.constant 163 : index
    %c0_357 = arith.constant 0 : index
    %666 = vector.load %arg13[%c163_356, %c0_357] : memref<328x64xf32, #tpu.memory_space<vmem>>, vector<72x64xf32>
    %667 = arith.truncf %666 : vector<72x64xf32> to vector<72x64xbf16>
    %c4_358 = arith.constant 4 : index
    %c0_359 = arith.constant 0 : index
    %c0_360 = arith.constant 0 : index
    %668 = vector.load %arg8[%c4_358, %c0_359, %c0_360] : memref<9x64x8xbf16, #tpu.memory_space<vmem>>, vector<1x64x8xbf16>
    %669 = vector.shape_cast %668 : vector<1x64x8xbf16> to vector<64x8xbf16>
    %cst_361 = arith.constant dense<0.000000e+00> : vector<72x8xf32>
    %670 = tpu.matmul %667, %669, %cst_361 {dimension_numbers = #tpu.dot_dimension_numbers<[1], [0], [0], [1], [0, 0, 1, 1], [], []>} : vector<72x64xbf16>, vector<64x8xbf16>, vector<72x8xf32> -> vector<72x8xf32>
    %671 = arith.addf %665, %670 : vector<72x8xf32>
    %c164 = arith.constant 164 : index
    %c0_362 = arith.constant 0 : index
    %672 = vector.load %arg13[%c164, %c0_362] : memref<328x64xf32, #tpu.memory_space<vmem>>, vector<72x64xf32>
    %673 = arith.truncf %672 : vector<72x64xf32> to vector<72x64xbf16>
    %c5_363 = arith.constant 5 : index
    %c0_364 = arith.constant 0 : index
    %c0_365 = arith.constant 0 : index
    %674 = vector.load %arg8[%c5_363, %c0_364, %c0_365] : memref<9x64x8xbf16, #tpu.memory_space<vmem>>, vector<1x64x8xbf16>
    %675 = vector.shape_cast %674 : vector<1x64x8xbf16> to vector<64x8xbf16>
    %cst_366 = arith.constant dense<0.000000e+00> : vector<72x8xf32>
    %676 = tpu.matmul %673, %675, %cst_366 {dimension_numbers = #tpu.dot_dimension_numbers<[1], [0], [0], [1], [0, 0, 1, 1], [], []>} : vector<72x64xbf16>, vector<64x8xbf16>, vector<72x8xf32> -> vector<72x8xf32>
    %677 = arith.addf %671, %676 : vector<72x8xf32>
    %c180 = arith.constant 180 : index
    %c0_367 = arith.constant 0 : index
    %678 = vector.load %arg13[%c180, %c0_367] : memref<328x64xf32, #tpu.memory_space<vmem>>, vector<72x64xf32>
    %679 = arith.truncf %678 : vector<72x64xf32> to vector<72x64xbf16>
    %c6_368 = arith.constant 6 : index
    %c0_369 = arith.constant 0 : index
    %c0_370 = arith.constant 0 : index
    %680 = vector.load %arg8[%c6_368, %c0_369, %c0_370] : memref<9x64x8xbf16, #tpu.memory_space<vmem>>, vector<1x64x8xbf16>
    %681 = vector.shape_cast %680 : vector<1x64x8xbf16> to vector<64x8xbf16>
    %cst_371 = arith.constant dense<0.000000e+00> : vector<72x8xf32>
    %682 = tpu.matmul %679, %681, %cst_371 {dimension_numbers = #tpu.dot_dimension_numbers<[1], [0], [0], [1], [0, 0, 1, 1], [], []>} : vector<72x64xbf16>, vector<64x8xbf16>, vector<72x8xf32> -> vector<72x8xf32>
    %683 = arith.addf %677, %682 : vector<72x8xf32>
    %c181_372 = arith.constant 181 : index
    %c0_373 = arith.constant 0 : index
    %684 = vector.load %arg13[%c181_372, %c0_373] : memref<328x64xf32, #tpu.memory_space<vmem>>, vector<72x64xf32>
    %685 = arith.truncf %684 : vector<72x64xf32> to vector<72x64xbf16>
    %c7_374 = arith.constant 7 : index
    %c0_375 = arith.constant 0 : index
    %c0_376 = arith.constant 0 : index
    %686 = vector.load %arg8[%c7_374, %c0_375, %c0_376] : memref<9x64x8xbf16, #tpu.memory_space<vmem>>, vector<1x64x8xbf16>
    %687 = vector.shape_cast %686 : vector<1x64x8xbf16> to vector<64x8xbf16>
    %cst_377 = arith.constant dense<0.000000e+00> : vector<72x8xf32>
    %688 = tpu.matmul %685, %687, %cst_377 {dimension_numbers = #tpu.dot_dimension_numbers<[1], [0], [0], [1], [0, 0, 1, 1], [], []>} : vector<72x64xbf16>, vector<64x8xbf16>, vector<72x8xf32> -> vector<72x8xf32>
    %689 = arith.addf %683, %688 : vector<72x8xf32>
    %c182 = arith.constant 182 : index
    %c0_378 = arith.constant 0 : index
    %690 = vector.load %arg13[%c182, %c0_378] : memref<328x64xf32, #tpu.memory_space<vmem>>, vector<72x64xf32>
    %691 = arith.truncf %690 : vector<72x64xf32> to vector<72x64xbf16>
    %c8_379 = arith.constant 8 : index
    %c0_380 = arith.constant 0 : index
    %c0_381 = arith.constant 0 : index
    %692 = vector.load %arg8[%c8_379, %c0_380, %c0_381] : memref<9x64x8xbf16, #tpu.memory_space<vmem>>, vector<1x64x8xbf16>
    %693 = vector.shape_cast %692 : vector<1x64x8xbf16> to vector<64x8xbf16>
    %cst_382 = arith.constant dense<0.000000e+00> : vector<72x8xf32>
    %694 = tpu.matmul %691, %693, %cst_382 {dimension_numbers = #tpu.dot_dimension_numbers<[1], [0], [0], [1], [0, 0, 1, 1], [], []>} : vector<72x64xbf16>, vector<64x8xbf16>, vector<72x8xf32> -> vector<72x8xf32>
    %695 = arith.addf %689, %694 : vector<72x8xf32>
    %c0_383 = arith.constant 0 : index
    %c0_384 = arith.constant 0 : index
    %696 = vector.load %arg9[%c0_383, %c0_384] : memref<1x8xf32, #tpu.memory_space<vmem>>, vector<1x8xf32>
    %697 = vector.broadcast %696 : vector<1x8xf32> to vector<72x8xf32>
    %698 = arith.addf %695, %697 : vector<72x8xf32>
    %699 = vector.extract_strided_slice %698 {offsets = [0, 0], sizes = [16, 8], strides = [1, 1]} : vector<72x8xf32> to vector<16x8xf32>
    %c0_385 = arith.constant 0 : index
    %c128_386 = arith.constant 128 : index
    %c0_387 = arith.constant 0 : index
    %700 = vector.load %arg10[%c0_385, %c128_386, %c0_387] : memref<1x256x8xf32, #tpu.memory_space<vmem>>, vector<1x16x8xf32>
    %701 = vector.shape_cast %700 : vector<1x16x8xf32> to vector<16x8xf32>
    %702 = vector.shape_cast %699 : vector<16x8xf32> to vector<1x16x8xf32>
    tpu.vector_store %arg10[%c0_385, %c128_386, %c0_387], %702 {strides = array<i32>} : memref<1x256x8xf32, #tpu.memory_space<vmem>>, vector<1x16x8xf32>,
    %703 = vector.extract_strided_slice %698 {offsets = [18, 0], sizes = [16, 8], strides = [1, 1]} : vector<72x8xf32> to vector<16x8xf32>
    %c0_388 = arith.constant 0 : index
    %c144_389 = arith.constant 144 : index
    %c0_390 = arith.constant 0 : index
    %704 = vector.load %arg10[%c0_388, %c144_389, %c0_390] : memref<1x256x8xf32, #tpu.memory_space<vmem>>, vector<1x16x8xf32>
    %705 = vector.shape_cast %704 : vector<1x16x8xf32> to vector<16x8xf32>
    %706 = vector.shape_cast %703 : vector<16x8xf32> to vector<1x16x8xf32>
    tpu.vector_store %arg10[%c0_388, %c144_389, %c0_390], %706 {strides = array<i32>} : memref<1x256x8xf32, #tpu.memory_space<vmem>>, vector<1x16x8xf32>,
    %707 = vector.extract_strided_slice %698 {offsets = [36, 0], sizes = [16, 8], strides = [1, 1]} : vector<72x8xf32> to vector<16x8xf32>
    %c0_391 = arith.constant 0 : index
    %c160 = arith.constant 160 : index
    %c0_392 = arith.constant 0 : index
    %708 = vector.load %arg10[%c0_391, %c160, %c0_392] : memref<1x256x8xf32, #tpu.memory_space<vmem>>, vector<1x16x8xf32>
    %709 = vector.shape_cast %708 : vector<1x16x8xf32> to vector<16x8xf32>
    %710 = vector.shape_cast %707 : vector<16x8xf32> to vector<1x16x8xf32>
    tpu.vector_store %arg10[%c0_391, %c160, %c0_392], %710 {strides = array<i32>} : memref<1x256x8xf32, #tpu.memory_space<vmem>>, vector<1x16x8xf32>,
    %711 = vector.extract_strided_slice %698 {offsets = [54, 0], sizes = [16, 8], strides = [1, 1]} : vector<72x8xf32> to vector<16x8xf32>
    %c0_393 = arith.constant 0 : index
    %c176 = arith.constant 176 : index
    %c0_394 = arith.constant 0 : index
    %712 = vector.load %arg10[%c0_393, %c176, %c0_394] : memref<1x256x8xf32, #tpu.memory_space<vmem>>, vector<1x16x8xf32>
    %713 = vector.shape_cast %712 : vector<1x16x8xf32> to vector<16x8xf32>
    %714 = vector.shape_cast %711 : vector<16x8xf32> to vector<1x16x8xf32>
    tpu.vector_store %arg10[%c0_393, %c176, %c0_394], %714 {strides = array<i32>} : memref<1x256x8xf32, #tpu.memory_space<vmem>>, vector<1x16x8xf32>,
    %cst_395 = arith.constant 0.000000e+00 : f32
    %715 = vector.broadcast %cst_395 : f32 to vector<72x8xf32>
    %c216 = arith.constant 216 : index
    %c0_396 = arith.constant 0 : index
    %716 = vector.load %arg13[%c216, %c0_396] : memref<328x64xf32, #tpu.memory_space<vmem>>, vector<72x64xf32>
    %717 = arith.truncf %716 : vector<72x64xf32> to vector<72x64xbf16>
    %c0_397 = arith.constant 0 : index
    %c0_398 = arith.constant 0 : index
    %c0_399 = arith.constant 0 : index
    %718 = vector.load %arg8[%c0_397, %c0_398, %c0_399] : memref<9x64x8xbf16, #tpu.memory_space<vmem>>, vector<1x64x8xbf16>
    %719 = vector.shape_cast %718 : vector<1x64x8xbf16> to vector<64x8xbf16>
    %cst_400 = arith.constant dense<0.000000e+00> : vector<72x8xf32>
    %720 = tpu.matmul %717, %719, %cst_400 {dimension_numbers = #tpu.dot_dimension_numbers<[1], [0], [0], [1], [0, 0, 1, 1], [], []>} : vector<72x64xbf16>, vector<64x8xbf16>, vector<72x8xf32> -> vector<72x8xf32>
    %721 = arith.addf %715, %720 : vector<72x8xf32>
    %c217_401 = arith.constant 217 : index
    %c0_402 = arith.constant 0 : index
    %722 = vector.load %arg13[%c217_401, %c0_402] : memref<328x64xf32, #tpu.memory_space<vmem>>, vector<72x64xf32>
    %723 = arith.truncf %722 : vector<72x64xf32> to vector<72x64xbf16>
    %c1_403 = arith.constant 1 : index
    %c0_404 = arith.constant 0 : index
    %c0_405 = arith.constant 0 : index
    %724 = vector.load %arg8[%c1_403, %c0_404, %c0_405] : memref<9x64x8xbf16, #tpu.memory_space<vmem>>, vector<1x64x8xbf16>
    %725 = vector.shape_cast %724 : vector<1x64x8xbf16> to vector<64x8xbf16>
    %cst_406 = arith.constant dense<0.000000e+00> : vector<72x8xf32>
    %726 = tpu.matmul %723, %725, %cst_406 {dimension_numbers = #tpu.dot_dimension_numbers<[1], [0], [0], [1], [0, 0, 1, 1], [], []>} : vector<72x64xbf16>, vector<64x8xbf16>, vector<72x8xf32> -> vector<72x8xf32>
    %727 = arith.addf %721, %726 : vector<72x8xf32>
    %c218 = arith.constant 218 : index
    %c0_407 = arith.constant 0 : index
    %728 = vector.load %arg13[%c218, %c0_407] : memref<328x64xf32, #tpu.memory_space<vmem>>, vector<72x64xf32>
    %729 = arith.truncf %728 : vector<72x64xf32> to vector<72x64xbf16>
    %c2_408 = arith.constant 2 : index
    %c0_409 = arith.constant 0 : index
    %c0_410 = arith.constant 0 : index
    %730 = vector.load %arg8[%c2_408, %c0_409, %c0_410] : memref<9x64x8xbf16, #tpu.memory_space<vmem>>, vector<1x64x8xbf16>
    %731 = vector.shape_cast %730 : vector<1x64x8xbf16> to vector<64x8xbf16>
    %cst_411 = arith.constant dense<0.000000e+00> : vector<72x8xf32>
    %732 = tpu.matmul %729, %731, %cst_411 {dimension_numbers = #tpu.dot_dimension_numbers<[1], [0], [0], [1], [0, 0, 1, 1], [], []>} : vector<72x64xbf16>, vector<64x8xbf16>, vector<72x8xf32> -> vector<72x8xf32>
    %733 = arith.addf %727, %732 : vector<72x8xf32>
    %c234 = arith.constant 234 : index
    %c0_412 = arith.constant 0 : index
    %734 = vector.load %arg13[%c234, %c0_412] : memref<328x64xf32, #tpu.memory_space<vmem>>, vector<72x64xf32>
    %735 = arith.truncf %734 : vector<72x64xf32> to vector<72x64xbf16>
    %c3_413 = arith.constant 3 : index
    %c0_414 = arith.constant 0 : index
    %c0_415 = arith.constant 0 : index
    %736 = vector.load %arg8[%c3_413, %c0_414, %c0_415] : memref<9x64x8xbf16, #tpu.memory_space<vmem>>, vector<1x64x8xbf16>
    %737 = vector.shape_cast %736 : vector<1x64x8xbf16> to vector<64x8xbf16>
    %cst_416 = arith.constant dense<0.000000e+00> : vector<72x8xf32>
    %738 = tpu.matmul %735, %737, %cst_416 {dimension_numbers = #tpu.dot_dimension_numbers<[1], [0], [0], [1], [0, 0, 1, 1], [], []>} : vector<72x64xbf16>, vector<64x8xbf16>, vector<72x8xf32> -> vector<72x8xf32>
    %739 = arith.addf %733, %738 : vector<72x8xf32>
    %c235_417 = arith.constant 235 : index
    %c0_418 = arith.constant 0 : index
    %740 = vector.load %arg13[%c235_417, %c0_418] : memref<328x64xf32, #tpu.memory_space<vmem>>, vector<72x64xf32>
    %741 = arith.truncf %740 : vector<72x64xf32> to vector<72x64xbf16>
    %c4_419 = arith.constant 4 : index
    %c0_420 = arith.constant 0 : index
    %c0_421 = arith.constant 0 : index
    %742 = vector.load %arg8[%c4_419, %c0_420, %c0_421] : memref<9x64x8xbf16, #tpu.memory_space<vmem>>, vector<1x64x8xbf16>
    %743 = vector.shape_cast %742 : vector<1x64x8xbf16> to vector<64x8xbf16>
    %cst_422 = arith.constant dense<0.000000e+00> : vector<72x8xf32>
    %744 = tpu.matmul %741, %743, %cst_422 {dimension_numbers = #tpu.dot_dimension_numbers<[1], [0], [0], [1], [0, 0, 1, 1], [], []>} : vector<72x64xbf16>, vector<64x8xbf16>, vector<72x8xf32> -> vector<72x8xf32>
    %745 = arith.addf %739, %744 : vector<72x8xf32>
    %c236 = arith.constant 236 : index
    %c0_423 = arith.constant 0 : index
    %746 = vector.load %arg13[%c236, %c0_423] : memref<328x64xf32, #tpu.memory_space<vmem>>, vector<72x64xf32>
    %747 = arith.truncf %746 : vector<72x64xf32> to vector<72x64xbf16>
    %c5_424 = arith.constant 5 : index
    %c0_425 = arith.constant 0 : index
    %c0_426 = arith.constant 0 : index
    %748 = vector.load %arg8[%c5_424, %c0_425, %c0_426] : memref<9x64x8xbf16, #tpu.memory_space<vmem>>, vector<1x64x8xbf16>
    %749 = vector.shape_cast %748 : vector<1x64x8xbf16> to vector<64x8xbf16>
    %cst_427 = arith.constant dense<0.000000e+00> : vector<72x8xf32>
    %750 = tpu.matmul %747, %749, %cst_427 {dimension_numbers = #tpu.dot_dimension_numbers<[1], [0], [0], [1], [0, 0, 1, 1], [], []>} : vector<72x64xbf16>, vector<64x8xbf16>, vector<72x8xf32> -> vector<72x8xf32>
    %751 = arith.addf %745, %750 : vector<72x8xf32>
    %c252 = arith.constant 252 : index
    %c0_428 = arith.constant 0 : index
    %752 = vector.load %arg13[%c252, %c0_428] : memref<328x64xf32, #tpu.memory_space<vmem>>, vector<72x64xf32>
    %753 = arith.truncf %752 : vector<72x64xf32> to vector<72x64xbf16>
    %c6_429 = arith.constant 6 : index
    %c0_430 = arith.constant 0 : index
    %c0_431 = arith.constant 0 : index
    %754 = vector.load %arg8[%c6_429, %c0_430, %c0_431] : memref<9x64x8xbf16, #tpu.memory_space<vmem>>, vector<1x64x8xbf16>
    %755 = vector.shape_cast %754 : vector<1x64x8xbf16> to vector<64x8xbf16>
    %cst_432 = arith.constant dense<0.000000e+00> : vector<72x8xf32>
    %756 = tpu.matmul %753, %755, %cst_432 {dimension_numbers = #tpu.dot_dimension_numbers<[1], [0], [0], [1], [0, 0, 1, 1], [], []>} : vector<72x64xbf16>, vector<64x8xbf16>, vector<72x8xf32> -> vector<72x8xf32>
    %757 = arith.addf %751, %756 : vector<72x8xf32>
    %c253_433 = arith.constant 253 : index
    %c0_434 = arith.constant 0 : index
    %758 = vector.load %arg13[%c253_433, %c0_434] : memref<328x64xf32, #tpu.memory_space<vmem>>, vector<72x64xf32>
    %759 = arith.truncf %758 : vector<72x64xf32> to vector<72x64xbf16>
    %c7_435 = arith.constant 7 : index
    %c0_436 = arith.constant 0 : index
    %c0_437 = arith.constant 0 : index
    %760 = vector.load %arg8[%c7_435, %c0_436, %c0_437] : memref<9x64x8xbf16, #tpu.memory_space<vmem>>, vector<1x64x8xbf16>
    %761 = vector.shape_cast %760 : vector<1x64x8xbf16> to vector<64x8xbf16>
    %cst_438 = arith.constant dense<0.000000e+00> : vector<72x8xf32>
    %762 = tpu.matmul %759, %761, %cst_438 {dimension_numbers = #tpu.dot_dimension_numbers<[1], [0], [0], [1], [0, 0, 1, 1], [], []>} : vector<72x64xbf16>, vector<64x8xbf16>, vector<72x8xf32> -> vector<72x8xf32>
    %763 = arith.addf %757, %762 : vector<72x8xf32>
    %c254 = arith.constant 254 : index
    %c0_439 = arith.constant 0 : index
    %764 = vector.load %arg13[%c254, %c0_439] : memref<328x64xf32, #tpu.memory_space<vmem>>, vector<72x64xf32>
    %765 = arith.truncf %764 : vector<72x64xf32> to vector<72x64xbf16>
    %c8_440 = arith.constant 8 : index
    %c0_441 = arith.constant 0 : index
    %c0_442 = arith.constant 0 : index
    %766 = vector.load %arg8[%c8_440, %c0_441, %c0_442] : memref<9x64x8xbf16, #tpu.memory_space<vmem>>, vector<1x64x8xbf16>
    %767 = vector.shape_cast %766 : vector<1x64x8xbf16> to vector<64x8xbf16>
    %cst_443 = arith.constant dense<0.000000e+00> : vector<72x8xf32>
    %768 = tpu.matmul %765, %767, %cst_443 {dimension_numbers = #tpu.dot_dimension_numbers<[1], [0], [0], [1], [0, 0, 1, 1], [], []>} : vector<72x64xbf16>, vector<64x8xbf16>, vector<72x8xf32> -> vector<72x8xf32>
    %769 = arith.addf %763, %768 : vector<72x8xf32>
    %c0_444 = arith.constant 0 : index
    %c0_445 = arith.constant 0 : index
    %770 = vector.load %arg9[%c0_444, %c0_445] : memref<1x8xf32, #tpu.memory_space<vmem>>, vector<1x8xf32>
    %771 = vector.broadcast %770 : vector<1x8xf32> to vector<72x8xf32>
    %772 = arith.addf %769, %771 : vector<72x8xf32>
    %773 = vector.extract_strided_slice %772 {offsets = [0, 0], sizes = [16, 8], strides = [1, 1]} : vector<72x8xf32> to vector<16x8xf32>
    %c0_446 = arith.constant 0 : index
    %c192_447 = arith.constant 192 : index
    %c0_448 = arith.constant 0 : index
    %774 = vector.load %arg10[%c0_446, %c192_447, %c0_448] : memref<1x256x8xf32, #tpu.memory_space<vmem>>, vector<1x16x8xf32>
    %775 = vector.shape_cast %774 : vector<1x16x8xf32> to vector<16x8xf32>
    %776 = vector.shape_cast %773 : vector<16x8xf32> to vector<1x16x8xf32>
    tpu.vector_store %arg10[%c0_446, %c192_447, %c0_448], %776 {strides = array<i32>} : memref<1x256x8xf32, #tpu.memory_space<vmem>>, vector<1x16x8xf32>,
    %777 = vector.extract_strided_slice %772 {offsets = [18, 0], sizes = [16, 8], strides = [1, 1]} : vector<72x8xf32> to vector<16x8xf32>
    %c0_449 = arith.constant 0 : index
    %c208 = arith.constant 208 : index
    %c0_450 = arith.constant 0 : index
    %778 = vector.load %arg10[%c0_449, %c208, %c0_450] : memref<1x256x8xf32, #tpu.memory_space<vmem>>, vector<1x16x8xf32>
    %779 = vector.shape_cast %778 : vector<1x16x8xf32> to vector<16x8xf32>
    %780 = vector.shape_cast %777 : vector<16x8xf32> to vector<1x16x8xf32>
    tpu.vector_store %arg10[%c0_449, %c208, %c0_450], %780 {strides = array<i32>} : memref<1x256x8xf32, #tpu.memory_space<vmem>>, vector<1x16x8xf32>,
    %781 = vector.extract_strided_slice %772 {offsets = [36, 0], sizes = [16, 8], strides = [1, 1]} : vector<72x8xf32> to vector<16x8xf32>
    %c0_451 = arith.constant 0 : index
    %c224 = arith.constant 224 : index
    %c0_452 = arith.constant 0 : index
    %782 = vector.load %arg10[%c0_451, %c224, %c0_452] : memref<1x256x8xf32, #tpu.memory_space<vmem>>, vector<1x16x8xf32>
    %783 = vector.shape_cast %782 : vector<1x16x8xf32> to vector<16x8xf32>
    %784 = vector.shape_cast %781 : vector<16x8xf32> to vector<1x16x8xf32>
    tpu.vector_store %arg10[%c0_451, %c224, %c0_452], %784 {strides = array<i32>} : memref<1x256x8xf32, #tpu.memory_space<vmem>>, vector<1x16x8xf32>,
    %785 = vector.extract_strided_slice %772 {offsets = [54, 0], sizes = [16, 8], strides = [1, 1]} : vector<72x8xf32> to vector<16x8xf32>
    %c0_453 = arith.constant 0 : index
    %c240 = arith.constant 240 : index
    %c0_454 = arith.constant 0 : index
    %786 = vector.load %arg10[%c0_453, %c240, %c0_454] : memref<1x256x8xf32, #tpu.memory_space<vmem>>, vector<1x16x8xf32>
    %787 = vector.shape_cast %786 : vector<1x16x8xf32> to vector<16x8xf32>
    %788 = vector.shape_cast %785 : vector<16x8xf32> to vector<1x16x8xf32>
    tpu.vector_store %arg10[%c0_453, %c240, %c0_454], %788 {strides = array<i32>} : memref<1x256x8xf32, #tpu.memory_space<vmem>>, vector<1x16x8xf32>,
    return
  }
  func.func @transform_0(%arg0: i32) -> (i32, i32, i32) {
    %c0_i32 = arith.constant 0 : i32
    %c0_i32_0 = arith.constant 0 : i32
    %c0_i32_1 = arith.constant 0 : i32
    return %arg0, %c0_i32, %c0_i32_0 : i32, i32, i32
  }
  func.func @transform_1(%arg0: i32) -> (i32, i32) {
    %c0_i32 = arith.constant 0 : i32
    %c0_i32_0 = arith.constant 0 : i32
    %c0_i32_1 = arith.constant 0 : i32
    return %c0_i32, %c0_i32_0 : i32, i32
  }
  func.func @transform_2(%arg0: i32) -> (i32, i32) {
    %c0_i32 = arith.constant 0 : i32
    %c0_i32_0 = arith.constant 0 : i32
    %c0_i32_1 = arith.constant 0 : i32
    return %c0_i32, %c0_i32_0 : i32, i32
  }
  func.func @transform_3(%arg0: i32) -> (i32, i32, i32) {
    %c0_i32 = arith.constant 0 : i32
    %c0_i32_0 = arith.constant 0 : i32
    %c0_i32_1 = arith.constant 0 : i32
    %c0_i32_2 = arith.constant 0 : i32
    return %c0_i32, %c0_i32_0, %c0_i32_1 : i32, i32, i32
  }
  func.func @transform_4(%arg0: i32) -> (i32, i32) {
    %c0_i32 = arith.constant 0 : i32
    %c0_i32_0 = arith.constant 0 : i32
    %c0_i32_1 = arith.constant 0 : i32
    return %c0_i32, %c0_i32_0 : i32, i32
  }
  func.func @transform_5(%arg0: i32) -> (i32, i32, i32) {
    %c0_i32 = arith.constant 0 : i32
    %c0_i32_0 = arith.constant 0 : i32
    %c0_i32_1 = arith.constant 0 : i32
    %c0_i32_2 = arith.constant 0 : i32
    return %c0_i32, %c0_i32_0, %c0_i32_1 : i32, i32, i32
  }
  func.func @transform_6(%arg0: i32) -> (i32, i32) {
    %c0_i32 = arith.constant 0 : i32
    %c0_i32_0 = arith.constant 0 : i32
    %c0_i32_1 = arith.constant 0 : i32
    return %c0_i32, %c0_i32_0 : i32, i32
  }
  func.func @transform_7(%arg0: i32) -> (i32, i32, i32) {
    %c0_i32 = arith.constant 0 : i32
    %c0_i32_0 = arith.constant 0 : i32
    %c0_i32_1 = arith.constant 0 : i32
    %c0_i32_2 = arith.constant 0 : i32
    return %c0_i32, %c0_i32_0, %c0_i32_1 : i32, i32, i32
  }
  func.func @transform_8(%arg0: i32) -> (i32, i32) {
    %c0_i32 = arith.constant 0 : i32
    %c0_i32_0 = arith.constant 0 : i32
    %c0_i32_1 = arith.constant 0 : i32
    return %c0_i32, %c0_i32_0 : i32, i32
  }
  func.func @transform_9(%arg0: i32) -> (i32, i32, i32) {
    %c0_i32 = arith.constant 0 : i32
    %c0_i32_0 = arith.constant 0 : i32
    %c0_i32_1 = arith.constant 0 : i32
    return %arg0, %c0_i32, %c0_i32_0 : i32, i32, i32
  }
}

</mosaic_0001>

<llo_original>
// kernel: squeeze.3
$region0: #{squeeze.3}
  %s0 = inlined_call_operand.vmem [shape: f32[2,256], index: 0, kind: input, shape index: {}]
  %s1 = inlined_call_operand.hbm [shape: f32[2,1,16,16], index: 1, kind: output, shape index: {}]
  $region1: #{squeeze.3} parent=0
    #allocation0 [shape = 'u8[16384]{0}', space=vmem, size = 0x4000, scoped, tag = 'operand span for operand 1']
    #allocation1 [shape = 's32[1]{0}', space=sflag, size = 0x4, scoped, tag = 'scoped memory for squeeze.3']
    #allocation2 [shape = 'u8[8192]{0}', space=vmem, size = 0x2000, scoped, tag = 'scoped mem for input reshape']
    %2 = vsyncpa [#allocation1], 0
    %s4 = sshllo.u32 0, 2
    %s5 = scalar_lea.vmem %s0, 2
    %v6 = vld [vmem:[%s5] sm:%s4]
    %s7 = scalar_lea.vmem [#allocation2], 8
    %8 = vst [vmem:[%s7] sm:%s4] %v6
    %v9 = vld [vmem:[%s0] sm:%s4]
    %10 = vst [vmem:[#allocation2] sm:%s4] %v9
    %v11 = vld [vmem:[#allocation2] sm:$0x3]
    %vm12 = vcmask 130048
    %13 = vst.msk [vmem:[#allocation0] ss:$16 sm:$0x3] %vm12, %v11
    %s14 = scalar_lea.vmem [#allocation2], 8
    %v15 = vld [vmem:[%s14] sm:$0x3]
    %vm16 = vcmask 130048
    %s17 = scalar_lea.vmem [#allocation0], 8
    %18 = vst.msk [vmem:[%s17] ss:$16 sm:$0x3] %vm16, %v15
    %v19 = vld.sshfl [vmem:[#allocation2] sm:$0xff pattern:$0x99999180]
    %20 = vrot.lane.b32.xlu0 %v19, 112
    %v21 = vpop.permute.xlu0 %20
    %vm22 = vcmask 130048
    %s23 = scalar_lea.vmem [#allocation0], 1
    %24 = vst.msk [vmem:[%s23] ss:$8 sm:$0xf] %vm22, %v21
    %v25 = vld.sshfl [vmem:[#allocation2] sm:$0xff pattern:$0x99999180]
    %26 = vrot.lane.b32.xlu0 %v25, 96
    %v27 = vpop.permute.xlu0 %26
    %vm28 = vcmask 130048
    %s29 = scalar_lea.vmem [#allocation0], 2
    %30 = vst.msk [vmem:[%s29] ss:$8 sm:$0xf] %vm28, %v27
    %v31 = vld.sshfl [vmem:[#allocation2] sm:$0xff pattern:$0x99999180]
    %32 = vrot.lane.b32.xlu0 %v31, 80
    %v33 = vpop.permute.xlu0 %32
    %vm34 = vcmask 130048
    %s35 = scalar_lea.vmem [#allocation0], 3
    %36 = vst.msk [vmem:[%s35] ss:$8 sm:$0xf] %vm34, %v33
    %v37 = vld.sshfl [vmem:[#allocation2] sm:$0xff pattern:$0x99999180]
    %38 = vrot.lane.b32.xlu0 %v37, 64
    %v39 = vpop.permute.xlu0 %38
    %vm40 = vcmask 130048
    %s41 = scalar_lea.vmem [#allocation0], 4
    %42 = vst.msk [vmem:[%s41] ss:$8 sm:$0xf] %vm40, %v39
    %v43 = vld.sshfl [vmem:[#allocation2] sm:$0xff pattern:$0x99999180]
    %44 = vrot.lane.b32.xlu0 %v43, 48
    %v45 = vpop.permute.xlu0 %44
    %vm46 = vcmask 130048
    %s47 = scalar_lea.vmem [#allocation0], 5
    %48 = vst.msk [vmem:[%s47] ss:$8 sm:$0xf] %vm46, %v45
    %v49 = vld.sshfl [vmem:[#allocation2] sm:$0xff pattern:$0x99999180]
    %50 = vrot.lane.b32.xlu0 %v49, 32
    %v51 = vpop.permute.xlu0 %50
    %vm52 = vcmask 130048
    %s53 = scalar_lea.vmem [#allocation0], 6
    %54 = vst.msk [vmem:[%s53] ss:$8 sm:$0xf] %vm52, %v51
    %v55 = vld.sshfl [vmem:[#allocation2] sm:$0xff pattern:$0x99999180]
    %56 = vrot.lane.b32.xlu0 %v55, 16
    %v57 = vpop.permute.xlu0 %56
    %vm58 = vcmask 130048
    %s59 = scalar_lea.vmem [#allocation0], 7
    %60 = vst.msk [vmem:[%s59] ss:$8 sm:$0xf] %vm58, %v57
    %s62 = ssub.s32 512, 512
    %63 = vsyncadd [#allocation1], %s62
    %s65 = sshll.u32 [#allocation0], 4
    %s66 = int_to_ptr.vmem [resolvable:$true] %s65
    %68 = dma.vmem_to_hbm [thread:$0]  %s66, 512, %s1, [#allocation1]
    %69 = dma.done [#allocation1], 512
    %70 = vsyncpa [#allocation1], 1

// kernel: autoencoder_forward.1
$region0: #{autoencoder_forward.1}
  #allocation0 [shape = 'u32[]', space=smem, size = 0x4, offset = 0x4, fixed_abs, tag = 'smem constant byte address 0x4 - core index']
  #allocation1 [shape = 'u32[144,128]{1,0:T(1,128)}', space=vmem, size = 0x12000, scoped, tag = 'internal scratch']
  #allocation2 [shape = 'f32[104,64]{1,0:T(8,128)}', space=vmem, size = 0xd000, scoped, tag = 'scratch operand']
  #allocation3 [shape = 'f32[104,128]{1,0:T(8,128)}', space=vmem, size = 0xd000, scoped, tag = 'scratch operand']
  #allocation4 [shape = 'f32[328,64]{1,0:T(8,128)}', space=vmem, size = 0x29000, scoped, tag = 'scratch operand']
  %s0 = inlined_call_operand.vmem [shape: bf16[2,256,16], index: 0, kind: input, shape index: {}]
  %s1 = inlined_call_operand.vmem [shape: bf16[16,64], index: 1, kind: input, shape index: {}]
  %s2 = inlined_call_operand.vmem [shape: f32[1,64], index: 2, kind: input, shape index: {}]
  %s3 = inlined_call_operand.vmem [shape: bf16[9,64,128], index: 3, kind: input, shape index: {}]
  %s4 = inlined_call_operand.vmem [shape: f32[1,128], index: 4, kind: input, shape index: {}]
  %s5 = inlined_call_operand.vmem [shape: bf16[9,128,64], index: 5, kind: input, shape index: {}]
  %s6 = inlined_call_operand.vmem [shape: f32[1,64], index: 6, kind: input, shape index: {}]
  %s7 = inlined_call_operand.vmem [shape: bf16[9,64,8], index: 7, kind: input, shape index: {}]
  %s8 = inlined_call_operand.vmem [shape: f32[1,8], index: 8, kind: input, shape index: {}]
  %s9 = inlined_call_operand.vmem [shape: f32[2,256,8], index: 9, kind: output, shape index: {}]
  %s10 = sld [smem:[#allocation0]]
  $region69: #{autoencoder_forward.1} parent=0
    _
  %s12 = ssub.s32 1, %s10
  %s13 = scalar_select 0, %s12, %s10
  loop: start=0, step=1, limit=4
  $region2: #{autoencoder_forward.1} parent=0 // loop_pre_header
    _
  $region3: #{autoencoder_forward.1} parent=0 // loop_header
    %s15 = sphi 0, %s19
    %p16 = scmp.ge.s32.totalorder %s15, 4
    %s25 = sphi 0, %s27
    %s28 = sphi 0, %s25
    %s29 = sphi 0, %s28
    %s45 = sphi 0, %s29
    %s49 = sphi 0, %s49
    %s51 = sphi 0, %s49
    %s52 = sphi 0, %s51
    %s66 = sphi 0, %s52
    %s70 = sphi 0, %s70
    %s72 = sphi 0, %s70
    %s73 = sphi 0, %s72
    %s87 = sphi 0, %s73
    %s91 = sphi 0, %s91
    %s93 = sphi 0, %s91
    %s94 = sphi 0, %s93
    %s108 = sphi 0, %s94
    %s112 = sphi 0, %s112
    %s114 = sphi 0, %s112
    %s115 = sphi 0, %s114
    %s129 = sphi 0, %s115
    %s133 = sphi 0, %s133
    %s135 = sphi 0, %s133
    %s136 = sphi 0, %s135
    %s150 = sphi 0, %s136
    %s154 = sphi 0, %s154
    %s156 = sphi 0, %s154
    %s157 = sphi 0, %s156
    %s171 = sphi 0, %s157
    %s175 = sphi 0, %s175
    %s177 = sphi 0, %s175
    %s178 = sphi 0, %s177
    %s192 = sphi 0, %s178
    %s196 = sphi 0, %s196
    %s198 = sphi 0, %s196
    %s199 = sphi 0, %s198
    %s213 = sphi 0, %s199
    %s219 = sphi 0, %s221
    %s222 = sphi 0, %s219
    %s223 = sphi 0, %s222
    %s239 = sphi 0, %s223
  $region4: #{autoencoder_forward.1} parent=0 // loop_header_branch
    %18 = sbr.rel (%p16) target = $region8
  $region5: #{autoencoder_forward.1} parent=0 // loop_body
    %s20 = ssub.s32 %s15, 1
    %s21 = ssub.s32 %s15, 2
    %s22 = sadd.s32 %s15, 1
    %s23 = ssub.s32 %s15, %s22
    %p24 = scmp.eq.s32.totalorder %s23, 0
    %s26 = sadd.s32 %s25, 1
    %s27 = scalar_select %p24, %s25, %s26
    %p30 = pneg %p24
    %p31 = scmp.eq.s32.totalorder %s15, 1
    %p32 = por %p30, %p31
    %p33 = scmp.ne.s32.totalorder %s25, %s28
    %p34 = scmp.eq.s32.totalorder %s15, 0
    %p35 = por %p33, %p34
    %p36 = scmp.ne.s32.totalorder %s25, %s28
    %p37 = scmp.eq.s32.totalorder %s20, 1
    %p38 = por %p36, %p37
    %p39 = scmp.ne.s32.totalorder %s28, %s29
    %p40 = scmp.eq.s32.totalorder %s20, 0
    %p41 = por %p39, %p40
    %p42 = scmp.ne.s32.totalorder %s28, %s29
    %p43 = scmp.eq.s32.totalorder %s21, 1
    %p44 = por %p42, %p43
    %p46 = scmp.ne.s32.totalorder %s29, %s45
    %p47 = scmp.eq.s32.totalorder %s21, 0
    %p48 = por %p46, %p47
    %s50 = sadd.s32 %s49, 1
    %p53 = scmp.eq.s32.totalorder %s15, 1
    %p54 = scmp.ne.s32.totalorder %s49, %s51
    %p55 = scmp.eq.s32.totalorder %s15, 0
    %p56 = por %p54, %p55
    %p57 = scmp.ne.s32.totalorder %s49, %s51
    %p58 = scmp.eq.s32.totalorder %s20, 1
    %p59 = por %p57, %p58
    %p60 = scmp.ne.s32.totalorder %s51, %s52
    %p61 = scmp.eq.s32.totalorder %s20, 0
    %p62 = por %p60, %p61
    %p63 = scmp.ne.s32.totalorder %s51, %s52
    %p64 = scmp.eq.s32.totalorder %s21, 1
    %p65 = por %p63, %p64
    %p67 = scmp.ne.s32.totalorder %s52, %s66
    %p68 = scmp.eq.s32.totalorder %s21, 0
    %p69 = por %p67, %p68
    %s71 = sadd.s32 %s70, 1
    %p74 = scmp.eq.s32.totalorder %s15, 1
    %p75 = scmp.ne.s32.totalorder %s70, %s72
    %p76 = scmp.eq.s32.totalorder %s15, 0
    %p77 = por %p75, %p76
    %p78 = scmp.ne.s32.totalorder %s70, %s72
    %p79 = scmp.eq.s32.totalorder %s20, 1
    %p80 = por %p78, %p79
    %p81 = scmp.ne.s32.totalorder %s72, %s73
    %p82 = scmp.eq.s32.totalorder %s20, 0
    %p83 = por %p81, %p82
    %p84 = scmp.ne.s32.totalorder %s72, %s73
    %p85 = scmp.eq.s32.totalorder %s21, 1
    %p86 = por %p84, %p85
    %p88 = scmp.ne.s32.totalorder %s73, %s87
    %p89 = scmp.eq.s32.totalorder %s21, 0
    %p90 = por %p88, %p89
    %s92 = sadd.s32 %s91, 1
    %p95 = scmp.eq.s32.totalorder %s15, 1
    %p96 = scmp.ne.s32.totalorder %s91, %s93
    %p97 = scmp.eq.s32.totalorder %s15, 0
    %p98 = por %p96, %p97
    %p99 = scmp.ne.s32.totalorder %s91, %s93
    %p100 = scmp.eq.s32.totalorder %s20, 1
    %p101 = por %p99, %p100
    %p102 = scmp.ne.s32.totalorder %s93, %s94
    %p103 = scmp.eq.s32.totalorder %s20, 0
    %p104 = por %p102, %p103
    %p105 = scmp.ne.s32.totalorder %s93, %s94
    %p106 = scmp.eq.s32.totalorder %s21, 1
    %p107 = por %p105, %p106
    %p109 = scmp.ne.s32.totalorder %s94, %s108
    %p110 = scmp.eq.s32.totalorder %s21, 0
    %p111 = por %p109, %p110
    %s113 = sadd.s32 %s112, 1
    %p116 = scmp.eq.s32.totalorder %s15, 1
    %p117 = scmp.ne.s32.totalorder %s112, %s114
    %p118 = scmp.eq.s32.totalorder %s15, 0
    %p119 = por %p117, %p118
    %p120 = scmp.ne.s32.totalorder %s112, %s114
    %p121 = scmp.eq.s32.totalorder %s20, 1
    %p122 = por %p120, %p121
    %p123 = scmp.ne.s32.totalorder %s114, %s115
    %p124 = scmp.eq.s32.totalorder %s20, 0
    %p125 = por %p123, %p124
    %p126 = scmp.ne.s32.totalorder %s114, %s115
    %p127 = scmp.eq.s32.totalorder %s21, 1
    %p128 = por %p126, %p127
    %p130 = scmp.ne.s32.totalorder %s115, %s129
    %p131 = scmp.eq.s32.totalorder %s21, 0
    %p132 = por %p130, %p131
    %s134 = sadd.s32 %s133, 1
    %p137 = scmp.eq.s32.totalorder %s15, 1
    %p138 = scmp.ne.s32.totalorder %s133, %s135
    %p139 = scmp.eq.s32.totalorder %s15, 0
    %p140 = por %p138, %p139
    %p141 = scmp.ne.s32.totalorder %s133, %s135
    %p142 = scmp.eq.s32.totalorder %s20, 1
    %p143 = por %p141, %p142
    %p144 = scmp.ne.s32.totalorder %s135, %s136
    %p145 = scmp.eq.s32.totalorder %s20, 0
    %p146 = por %p144, %p145
    %p147 = scmp.ne.s32.totalorder %s135, %s136
    %p148 = scmp.eq.s32.totalorder %s21, 1
    %p149 = por %p147, %p148
    %p151 = scmp.ne.s32.totalorder %s136, %s150
    %p152 = scmp.eq.s32.totalorder %s21, 0
    %p153 = por %p151, %p152
    %s155 = sadd.s32 %s154, 1
    %p158 = scmp.eq.s32.totalorder %s15, 1
    %p159 = scmp.ne.s32.totalorder %s154, %s156
    %p160 = scmp.eq.s32.totalorder %s15, 0
    %p161 = por %p159, %p160
    %p162 = scmp.ne.s32.totalorder %s154, %s156
    %p163 = scmp.eq.s32.totalorder %s20, 1
    %p164 = por %p162, %p163
    %p165 = scmp.ne.s32.totalorder %s156, %s157
    %p166 = scmp.eq.s32.totalorder %s20, 0
    %p167 = por %p165, %p166
    %p168 = scmp.ne.s32.totalorder %s156, %s157
    %p169 = scmp.eq.s32.totalorder %s21, 1
    %p170 = por %p168, %p169
    %p172 = scmp.ne.s32.totalorder %s157, %s171
    %p173 = scmp.eq.s32.totalorder %s21, 0
    %p174 = por %p172, %p173
    %s176 = sadd.s32 %s175, 1
    %p179 = scmp.eq.s32.totalorder %s15, 1
    %p180 = scmp.ne.s32.totalorder %s175, %s177
    %p181 = scmp.eq.s32.totalorder %s15, 0
    %p182 = por %p180, %p181
    %p183 = scmp.ne.s32.totalorder %s175, %s177
    %p184 = scmp.eq.s32.totalorder %s20, 1
    %p185 = por %p183, %p184
    %p186 = scmp.ne.s32.totalorder %s177, %s178
    %p187 = scmp.eq.s32.totalorder %s20, 0
    %p188 = por %p186, %p187
    %p189 = scmp.ne.s32.totalorder %s177, %s178
    %p190 = scmp.eq.s32.totalorder %s21, 1
    %p191 = por %p189, %p190
    %p193 = scmp.ne.s32.totalorder %s178, %s192
    %p194 = scmp.eq.s32.totalorder %s21, 0
    %p195 = por %p193, %p194
    %s197 = sadd.s32 %s196, 1
    %p200 = scmp.eq.s32.totalorder %s15, 1
    %p201 = scmp.ne.s32.totalorder %s196, %s198
    %p202 = scmp.eq.s32.totalorder %s15, 0
    %p203 = por %p201, %p202
    %p204 = scmp.ne.s32.totalorder %s196, %s198
    %p205 = scmp.eq.s32.totalorder %s20, 1
    %p206 = por %p204, %p205
    %p207 = scmp.ne.s32.totalorder %s198, %s199
    %p208 = scmp.eq.s32.totalorder %s20, 0
    %p209 = por %p207, %p208
    %p210 = scmp.ne.s32.totalorder %s198, %s199
    %p211 = scmp.eq.s32.totalorder %s21, 1
    %p212 = por %p210, %p211
    %p214 = scmp.ne.s32.totalorder %s199, %s213
    %p215 = scmp.eq.s32.totalorder %s21, 0
    %p216 = por %p214, %p215
    %s217 = ssub.s32 %s15, %s22
    %p218 = scmp.eq.s32.totalorder %s217, 0
    %s220 = sadd.s32 %s219, 1
    %s221 = scalar_select %p218, %s219, %s220
    %p224 = pneg %p218
    %p225 = scmp.eq.s32.totalorder %s15, 1
    %p226 = por %p224, %p225
    %p227 = scmp.ne.s32.totalorder %s219, %s222
    %p228 = scmp.eq.s32.totalorder %s15, 0
    %p229 = por %p227, %p228
    %p230 = scmp.ne.s32.totalorder %s219, %s222
    %p231 = scmp.eq.s32.totalorder %s20, 1
    %p232 = por %p230, %p231
    %p233 = scmp.ne.s32.totalorder %s222, %s223
    %p234 = scmp.eq.s32.totalorder %s20, 0
    %p235 = por %p233, %p234
    %p236 = scmp.ne.s32.totalorder %s222, %s223
    %p237 = scmp.eq.s32.totalorder %s21, 1
    %p238 = por %p236, %p237
    %p240 = scmp.ne.s32.totalorder %s223, %s239
    %p241 = scmp.eq.s32.totalorder %s21, 0
    %p242 = por %p240, %p241
    %p243 = scmp.le.s32.totalorder 1, %s15
    %p244 = scmp.lt.s32.totalorder %s15, 3
    %p245 = pnand %p243, %p244
    %p246 = pneg %p245
    // Predicated region
    $region9: #{autoencoder_forward.1} parent=5 // pred_check
      _
    $region10: #{autoencoder_forward.1} parent=5 // pred_check_branch
      %248 = sbr.rel (%p245) target = $region12
    $region11: #{autoencoder_forward.1} parent=5 // pred_region
      %s249 = ssub.s32 %s15, 1
      // Predicated region
      $region13: #{autoencoder_forward.1} parent=11 // pred_check
        %p250 = pneg %p62
      $region14: #{autoencoder_forward.1} parent=11 // pred_check_branch
        %252 = sbr.rel (%p250) target = $region16
      $region15: #{autoencoder_forward.1} parent=11 // pred_region
        _
      $region16: #{autoencoder_forward.1} parent=11 // pred_fallthru
        _
      // Predicated region
      $region17: #{autoencoder_forward.1} parent=11 // pred_check
        %p253 = pneg %p83
      $region18: #{autoencoder_forward.1} parent=11 // pred_check_branch
        %255 = sbr.rel (%p253) target = $region20
      $region19: #{autoencoder_forward.1} parent=11 // pred_region
        _
      $region20: #{autoencoder_forward.1} parent=11 // pred_fallthru
        _
      // Predicated region
      $region21: #{autoencoder_forward.1} parent=11 // pred_check
        %p256 = pneg %p104
      $region22: #{autoencoder_forward.1} parent=11 // pred_check_branch
        %258 = sbr.rel (%p256) target = $region24
      $region23: #{autoencoder_forward.1} parent=11 // pred_region
        _
      $region24: #{autoencoder_forward.1} parent=11 // pred_fallthru
        _
      // Predicated region
      $region25: #{autoencoder_forward.1} parent=11 // pred_check
        %p259 = pneg %p125
      $region26: #{autoencoder_forward.1} parent=11 // pred_check_branch
        %261 = sbr.rel (%p259) target = $region28
      $region27: #{autoencoder_forward.1} parent=11 // pred_region
        _
      $region28: #{autoencoder_forward.1} parent=11 // pred_fallthru
        _
      // Predicated region
      $region29: #{autoencoder_forward.1} parent=11 // pred_check
        %p262 = pneg %p146
      $region30: #{autoencoder_forward.1} parent=11 // pred_check_branch
        %264 = sbr.rel (%p262) target = $region32
      $region31: #{autoencoder_forward.1} parent=11 // pred_region
        _
      $region32: #{autoencoder_forward.1} parent=11 // pred_fallthru
        _
      // Predicated region
      $region33: #{autoencoder_forward.1} parent=11 // pred_check
        %p265 = pneg %p167
      $region34: #{autoencoder_forward.1} parent=11 // pred_check_branch
        %267 = sbr.rel (%p265) target = $region36
      $region35: #{autoencoder_forward.1} parent=11 // pred_region
        _
      $region36: #{autoencoder_forward.1} parent=11 // pred_fallthru
        _
      // Predicated region
      $region37: #{autoencoder_forward.1} parent=11 // pred_check
        %p268 = pneg %p188
      $region38: #{autoencoder_forward.1} parent=11 // pred_check_branch
        %270 = sbr.rel (%p268) target = $region40
      $region39: #{autoencoder_forward.1} parent=11 // pred_region
        _
      $region40: #{autoencoder_forward.1} parent=11 // pred_fallthru
        _
      // Predicated region
      $region41: #{autoencoder_forward.1} parent=11 // pred_check
        %p271 = pneg %p209
      $region42: #{autoencoder_forward.1} parent=11 // pred_check_branch
        %273 = sbr.rel (%p271) target = $region44
      $region43: #{autoencoder_forward.1} parent=11 // pred_region
        _
      $region44: #{autoencoder_forward.1} parent=11 // pred_fallthru
        _
    $region12: #{autoencoder_forward.1} parent=5 // pred_fallthru
      _
    %p274 = scmp.lt.s32.totalorder %s15, 2
    // Predicated region
    $region45: #{autoencoder_forward.1} parent=5 // pred_check
      %p275 = pneg %p274
    $region46: #{autoencoder_forward.1} parent=5 // pred_check_branch
      %277 = sbr.rel (%p275) target = $region48
    $region47: #{autoencoder_forward.1} parent=5 // pred_region
      // Predicated region
      $region49: #{autoencoder_forward.1} parent=47 // pred_check
        %p278 = pneg %p35
      $region50: #{autoencoder_forward.1} parent=47 // pred_check_branch
        %280 = sbr.rel (%p278) target = $region52
      $region51: #{autoencoder_forward.1} parent=47 // pred_region
        %p281 = scmp.lt.s32.totalorder %s15, 1
        %s282 = scalar_select %p281, %s15, 1
        %s283 = smul.addr %s282, 32
        %s284 = smul.addr %s283, 4
        %s285 = scalar_lea.vmem %s0, %s284
      $region52: #{autoencoder_forward.1} parent=47 // pred_fallthru
        _
    $region48: #{autoencoder_forward.1} parent=5 // pred_fallthru
      _
    %p286 = scmp.le.s32.totalorder 1, %s15
    %p287 = scmp.lt.s32.totalorder %s15, 3
    %p288 = pnand %p286, %p287
    %p289 = pneg %p288
    // Predicated region
    $region53: #{autoencoder_forward.1} parent=5 // pred_check
      _
    $region54: #{autoencoder_forward.1} parent=5 // pred_check_branch
      %291 = sbr.rel (%p288) target = $region56
    $region55: #{autoencoder_forward.1} parent=5 // pred_region
      %s292 = ssub.s32 %s15, 1
      %p293 = scmp.lt.s32.totalorder %s20, 1
      %s294 = scalar_select %p293, %s20, 1
      %s295 = smul.addr %s294, 32
      %s296 = smul.addr %s295, 4
      %s297 = scalar_lea.vmem %s0, %s296
      %p298 = pneg %p41
      %p299 = pneg %p38
      %p300 = pneg %p62
      %p301 = pneg %p59
      %p302 = pneg %p83
      %p303 = pneg %p80
      %p304 = pneg %p104
      %p305 = pneg %p101
      %p306 = pneg %p125
      %p307 = pneg %p122
      %p308 = pneg %p146
      %p309 = pneg %p143
      %p310 = pneg %p167
      %p311 = pneg %p164
      %p312 = pneg %p188
      %p313 = pneg %p185
      %p314 = pneg %p209
      %p315 = pneg %p206
      %p316 = pneg %p235
      %p317 = pneg %p232
      %p318 = scmp.lt.s32.totalorder %s20, 1
      %s319 = scalar_select %p318, %s20, 1
      %s320 = smul.addr %s319, 32
      %s321 = smul.addr %s320, 8
      %s322 = scalar_lea.vmem %s9, %s321
      %p323 = scmp.lt.s32.totalorder %s20, 1
      %s324 = scalar_select %p323, %s20, 1
      %s325 = smul.addr %s324, 32
      %s326 = smul.addr %s325, 4
      %s327 = scalar_lea.vmem %s0, %s326
      %p328 = scmp.lt.s32.totalorder %s20, 1
      %s329 = scalar_select %p328, %s20, 1
      %s330 = smul.addr %s329, 32
      %s331 = smul.addr %s330, 8
      %s332 = scalar_lea.vmem %s9, %s331
      %v334 = vld [vmem:[%s327] sm:$0xf]
      %v335 = vld [vmem:[%s327 + $0x4] sm:$0xf]
      %v336 = vld [vmem:[%s327 + $0x8] sm:$0xf]
      %v337 = vld [vmem:[%s327 + $0xc] sm:$0xf]
      %v338 = vld [vmem:[%s327 + $0x10] sm:$0xf]
      %v339 = vld [vmem:[%s327 + $0x14] sm:$0xf]
      %v340 = vld [vmem:[%s327 + $0x18] sm:$0xf]
      %v341 = vld [vmem:[%s327 + $0x1c] sm:$0xf]
      %v342 = vld [vmem:[%s1] sm:$0xf]
      %v343 = vld [vmem:[%s1 + $0x4] sm:$0xf]
      %v344 = vld [vmem:[%s2] sm:$0x1]
      %v346 = vlaneseq
      %v347 = vshrl.u32 %v346, 7
      %v348 = vsub.s32 0, %v347
      %v349 = vrot.slane %v344, %v348
      %v359 = vunpack.c.l.b16 %v334
      %v360 = vunpack.c.l.b16 %v335
      %v361 = vunpack.c.l.b16 %v336
      %v362 = vunpack.c.l.b16 %v337
      %v363 = vunpack.c.l.b16 %v338
      %v364 = vunpack.c.l.b16 %v339
      %v365 = vunpack.c.l.b16 %v340
      %v366 = vunpack.c.l.b16 %v341
      %v367 = vpack.c.b16 %v360, %v359
      %v368 = vpack.c.b16 %v362, %v361
      %v369 = vpack.c.b16 %v364, %v363
      %v370 = vpack.c.b16 %v366, %v365
      %v373 = vunpack.c.l.b16 %v342
      %v374 = vunpack.c.l.b16 %v343
      %v375 = vpack.c.b16 %v374, %v373
      %vm377 = vcmask 130048
      %v379 = vsel %vm377, %v367, 0
      %v382 = vsel %vm377, %v368, 0
      %v385 = vsel %vm377, %v369, 0
      %v388 = vsel %vm377, %v370, 0
      %390 = vmatprep.subr.bf16.mxu0 0
      %391 = vmatpush1.bf16.msra.mxu0 %v375
      %392 = vmatprep.subr.bf16.mxu0 0
      %393 = vmatpush1.bf16.msra.mxu0 0
      %394 = vmatprep.subr.bf16.mxu0 0
      %395 = vmatpush1.bf16.msra.mxu0 0
      %396 = vmatprep.subr.bf16.mxu0 0
      %397 = vmatpush1.bf16.msra.mxu0 0
      %398 = vmatprep.subr.bf16.mxu0 0
      %399 = vmatpush1.bf16.msra.mxu0 0
      %400 = vmatprep.subr.bf16.mxu0 0
      %401 = vmatpush1.bf16.msra.mxu0 0
      %402 = vmatprep.subr.bf16.mxu0 0
      %403 = vmatpush1.bf16.msra.mxu0 0
      %404 = vmatprep.subr.bf16.mxu0 0
      %405 = vmatpush1.bf16.msra.mxu0 0
      %406 = vmatprep.subr.bf16.mxu0 0
      %407 = vmatpush1.bf16.msra.mxu0 0
      %408 = vmatprep.subr.bf16.mxu0 0
      %409 = vmatpush1.bf16.msra.mxu0 0
      %410 = vmatprep.subr.bf16.mxu0 0
      %411 = vmatpush1.bf16.msra.mxu0 0
      %412 = vmatprep.subr.bf16.mxu0 0
      %413 = vmatpush1.bf16.msra.mxu0 0
      %414 = vmatprep.subr.bf16.mxu0 0
      %415 = vmatpush1.bf16.msra.mxu0 0
      %416 = vmatprep.subr.bf16.mxu0 0
      %417 = vmatpush1.bf16.msra.mxu0 0
      %418 = vmatprep.subr.bf16.mxu0 0
      %419 = vmatpush1.bf16.msra.mxu0 0
      %420 = vmatprep.subr.bf16.mxu0 0
      %421 = vmatpush1.bf16.msra.mxu0 0
      %422 = vmatprep.mubr.bf16.mxu0 0
      %423 = vmatmul.mubr.bf16.gmra.mrb[0].mxu0 %v379
      %v424 = vpop.f32.mrb[0].mxu0
      %v425 = vadd.f32 %v349, %v424
      %v426 = vpop.f32.mrb[0].mxu0
      %v427 = vpop.f32.mrb[0].mxu0
      %v428 = vadd.f32 %v349, %v427
      %v429 = vpop.f32.mrb[0].mxu0
      %430 = vmatprep.mubr.bf16.mxu0 0
      %431 = vmatmul.mubr.bf16.gmra.mrb[0].mxu0 %v382
      %v432 = vpop.f32.mrb[0].mxu0
      %v433 = vadd.f32 %v349, %v432
      %v434 = vpop.f32.mrb[0].mxu0
      %v435 = vpop.f32.mrb[0].mxu0
      %v436 = vadd.f32 %v349, %v435
      %v437 = vpop.f32.mrb[0].mxu0
      %438 = vmatprep.mubr.bf16.mxu0 0
      %439 = vmatmul.mubr.bf16.gmra.mrb[0].mxu0 %v385
      %v440 = vpop.f32.mrb[0].mxu0
      %v441 = vadd.f32 %v349, %v440
      %v442 = vpop.f32.mrb[0].mxu0
      %v443 = vpop.f32.mrb[0].mxu0
      %v444 = vadd.f32 %v349, %v443
      %v445 = vpop.f32.mrb[0].mxu0
      %446 = vmatprep.mubr.bf16.mxu0 0
      %447 = vmatmul.mubr.bf16.gmra.mrb[0].mxu0 %v388
      %v448 = vpop.f32.mrb[0].mxu0
      %v449 = vadd.f32 %v349, %v448
      %v450 = vpop.f32.mrb[0].mxu0
      %v451 = vpop.f32.mrb[0].mxu0
      %v452 = vadd.f32 %v349, %v451
      %v453 = vpop.f32.mrb[0].mxu0
      %454 = vdwg.mxu0
      %v455 = vmax.f32 %v425, 0.0
      %v456 = vmax.f32 %v428, 0.0
      %v457 = vmax.f32 %v433, 0.0
      %v458 = vmax.f32 %v436, 0.0
      %v459 = vmax.f32 %v441, 0.0
      %v460 = vmax.f32 %v444, 0.0
      %v461 = vmax.f32 %v449, 0.0
      %v462 = vmax.f32 %v452, 0.0
      %v463 = vld [vmem:[%s327 + $0x20] sm:$0xf]
      %v464 = vld [vmem:[%s327 + $0x24] sm:$0xf]
      %v465 = vld [vmem:[%s327 + $0x28] sm:$0xf]
      %v466 = vld [vmem:[%s327 + $0x2c] sm:$0xf]
      %v467 = vld [vmem:[%s327 + $0x30] sm:$0xf]
      %v468 = vld [vmem:[%s327 + $0x34] sm:$0xf]
      %v469 = vld [vmem:[%s327 + $0x38] sm:$0xf]
      %v470 = vld [vmem:[%s327 + $0x3c] sm:$0xf]
      %v479 = vunpack.c.l.b16 %v463
      %v480 = vunpack.c.l.b16 %v464
      %v481 = vunpack.c.l.b16 %v465
      %v482 = vunpack.c.l.b16 %v466
      %v483 = vunpack.c.l.b16 %v467
      %v484 = vunpack.c.l.b16 %v468
      %v485 = vunpack.c.l.b16 %v469
      %v486 = vunpack.c.l.b16 %v470
      %v487 = vpack.c.b16 %v480, %v479
      %v488 = vpack.c.b16 %v482, %v481
      %v489 = vpack.c.b16 %v484, %v483
      %v490 = vpack.c.b16 %v486, %v485
      %v492 = vsel %vm377, %v487, 0
      %v495 = vsel %vm377, %v488, 0
      %v498 = vsel %vm377, %v489, 0
      %v501 = vsel %vm377, %v490, 0
      %503 = vmatprep.subr.bf16.mxu0 0
      %504 = vmatpush1.bf16.msra.mxu0 %v375
      %505 = vmatprep.subr.bf16.mxu0 0
      %506 = vmatpush1.bf16.msra.mxu0 0
      %507 = vmatprep.subr.bf16.mxu0 0
      %508 = vmatpush1.bf16.msra.mxu0 0
      %509 = vmatprep.subr.bf16.mxu0 0
      %510 = vmatpush1.bf16.msra.mxu0 0
      %511 = vmatprep.subr.bf16.mxu0 0
      %512 = vmatpush1.bf16.msra.mxu0 0
      %513 = vmatprep.subr.bf16.mxu0 0
      %514 = vmatpush1.bf16.msra.mxu0 0
      %515 = vmatprep.subr.bf16.mxu0 0
      %516 = vmatpush1.bf16.msra.mxu0 0
      %517 = vmatprep.subr.bf16.mxu0 0
      %518 = vmatpush1.bf16.msra.mxu0 0
      %519 = vmatprep.subr.bf16.mxu0 0
      %520 = vmatpush1.bf16.msra.mxu0 0
      %521 = vmatprep.subr.bf16.mxu0 0
      %522 = vmatpush1.bf16.msra.mxu0 0
      %523 = vmatprep.subr.bf16.mxu0 0
      %524 = vmatpush1.bf16.msra.mxu0 0
      %525 = vmatprep.subr.bf16.mxu0 0
      %526 = vmatpush1.bf16.msra.mxu0 0
      %527 = vmatprep.subr.bf16.mxu0 0
      %528 = vmatpush1.bf16.msra.mxu0 0
      %529 = vmatprep.subr.bf16.mxu0 0
      %530 = vmatpush1.bf16.msra.mxu0 0
      %531 = vmatprep.subr.bf16.mxu0 0
      %532 = vmatpush1.bf16.msra.mxu0 0
      %533 = vmatprep.subr.bf16.mxu0 0
      %534 = vmatpush1.bf16.msra.mxu0 0
      %535 = vmatprep.mubr.bf16.mxu0 0
      %536 = vmatmul.mubr.bf16.gmra.mrb[0].mxu0 %v492
      %v537 = vpop.f32.mrb[0].mxu0
      %v538 = vadd.f32 %v349, %v537
      %v539 = vpop.f32.mrb[0].mxu0
      %v540 = vpop.f32.mrb[0].mxu0
      %v541 = vadd.f32 %v349, %v540
      %v542 = vpop.f32.mrb[0].mxu0
      %543 = vmatprep.mubr.bf16.mxu0 0
      %544 = vmatmul.mubr.bf16.gmra.mrb[0].mxu0 %v495
      %v545 = vpop.f32.mrb[0].mxu0
      %v546 = vadd.f32 %v349, %v545
      %v547 = vpop.f32.mrb[0].mxu0
      %v548 = vpop.f32.mrb[0].mxu0
      %v549 = vadd.f32 %v349, %v548
      %v550 = vpop.f32.mrb[0].mxu0
      %551 = vmatprep.mubr.bf16.mxu0 0
      %552 = vmatmul.mubr.bf16.gmra.mrb[0].mxu0 %v498
      %v553 = vpop.f32.mrb[0].mxu0
      %v554 = vadd.f32 %v349, %v553
      %v555 = vpop.f32.mrb[0].mxu0
      %v556 = vpop.f32.mrb[0].mxu0
      %v557 = vadd.f32 %v349, %v556
      %v558 = vpop.f32.mrb[0].mxu0
      %559 = vmatprep.mubr.bf16.mxu0 0
      %560 = vmatmul.mubr.bf16.gmra.mrb[0].mxu0 %v501
      %v561 = vpop.f32.mrb[0].mxu0
      %v562 = vadd.f32 %v349, %v561
      %v563 = vpop.f32.mrb[0].mxu0
      %v564 = vpop.f32.mrb[0].mxu0
      %v565 = vadd.f32 %v349, %v564
      %v566 = vpop.f32.mrb[0].mxu0
      %567 = vdwg.mxu0
      %v568 = vmax.f32 %v538, 0.0
      %v569 = vmax.f32 %v541, 0.0
      %v570 = vmax.f32 %v546, 0.0
      %v571 = vmax.f32 %v549, 0.0
      %v572 = vmax.f32 %v554, 0.0
      %v573 = vmax.f32 %v557, 0.0
      %v574 = vmax.f32 %v562, 0.0
      %v575 = vmax.f32 %v565, 0.0
      %v576 = vmax.f32 %v455, %v568
      %v577 = vmax.f32 %v456, %v569
      %v578 = vmax.f32 %v457, %v570
      %v579 = vmax.f32 %v458, %v571
      %v580 = vmax.f32 %v459, %v572
      %v581 = vmax.f32 %v460, %v573
      %v582 = vmax.f32 %v461, %v574
      %v583 = vmax.f32 %v462, %v575
      %v584 = vld [vmem:[%s327 + $0x40] sm:$0xf]
      %v585 = vld [vmem:[%s327 + $0x44] sm:$0xf]
      %v586 = vld [vmem:[%s327 + $0x48] sm:$0xf]
      %v587 = vld [vmem:[%s327 + $0x4c] sm:$0xf]
      %v588 = vld [vmem:[%s327 + $0x50] sm:$0xf]
      %v589 = vld [vmem:[%s327 + $0x54] sm:$0xf]
      %v590 = vld [vmem:[%s327 + $0x58] sm:$0xf]
      %v591 = vld [vmem:[%s327 + $0x5c] sm:$0xf]
      %v600 = vunpack.c.l.b16 %v584
      %v601 = vunpack.c.l.b16 %v585
      %v602 = vunpack.c.l.b16 %v586
      %v603 = vunpack.c.l.b16 %v587
      %v604 = vunpack.c.l.b16 %v588
      %v605 = vunpack.c.l.b16 %v589
      %v606 = vunpack.c.l.b16 %v590
      %v607 = vunpack.c.l.b16 %v591
      %v608 = vpack.c.b16 %v601, %v600
      %v609 = vpack.c.b16 %v603, %v602
      %v610 = vpack.c.b16 %v605, %v604
      %v611 = vpack.c.b16 %v607, %v606
      %v613 = vsel %vm377, %v608, 0
      %v616 = vsel %vm377, %v609, 0
      %v619 = vsel %vm377, %v610, 0
      %v622 = vsel %vm377, %v611, 0
      %624 = vmatprep.subr.bf16.mxu0 0
      %625 = vmatpush1.bf16.msra.mxu0 %v375
      %626 = vmatprep.subr.bf16.mxu0 0
      %627 = vmatpush1.bf16.msra.mxu0 0
      %628 = vmatprep.subr.bf16.mxu0 0
      %629 = vmatpush1.bf16.msra.mxu0 0
      %630 = vmatprep.subr.bf16.mxu0 0
      %631 = vmatpush1.bf16.msra.mxu0 0
      %632 = vmatprep.subr.bf16.mxu0 0
      %633 = vmatpush1.bf16.msra.mxu0 0
      %634 = vmatprep.subr.bf16.mxu0 0
      %635 = vmatpush1.bf16.msra.mxu0 0
      %636 = vmatprep.subr.bf16.mxu0 0
      %637 = vmatpush1.bf16.msra.mxu0 0
      %638 = vmatprep.subr.bf16.mxu0 0
      %639 = vmatpush1.bf16.msra.mxu0 0
      %640 = vmatprep.subr.bf16.mxu0 0
      %641 = vmatpush1.bf16.msra.mxu0 0
      %642 = vmatprep.subr.bf16.mxu0 0
      %643 = vmatpush1.bf16.msra.mxu0 0
      %644 = vmatprep.subr.bf16.mxu0 0
      %645 = vmatpush1.bf16.msra.mxu0 0
      %646 = vmatprep.subr.bf16.mxu0 0
      %647 = vmatpush1.bf16.msra.mxu0 0
      %648 = vmatprep.subr.bf16.mxu0 0
      %649 = vmatpush1.bf16.msra.mxu0 0
      %650 = vmatprep.subr.bf16.mxu0 0
      %651 = vmatpush1.bf16.msra.mxu0 0
      %652 = vmatprep.subr.bf16.mxu0 0
      %653 = vmatpush1.bf16.msra.mxu0 0
      %654 = vmatprep.subr.bf16.mxu0 0
      %655 = vmatpush1.bf16.msra.mxu0 0
      %656 = vmatprep.mubr.bf16.mxu0 0
      %657 = vmatmul.mubr.bf16.gmra.mrb[0].mxu0 %v613
      %v658 = vpop.f32.mrb[0].mxu0
      %v659 = vadd.f32 %v349, %v658
      %v660 = vpop.f32.mrb[0].mxu0
      %v661 = vpop.f32.mrb[0].mxu0
      %v662 = vadd.f32 %v349, %v661
      %v663 = vpop.f32.mrb[0].mxu0
      %664 = vmatprep.mubr.bf16.mxu0 0
      %665 = vmatmul.mubr.bf16.gmra.mrb[0].mxu0 %v616
      %v666 = vpop.f32.mrb[0].mxu0
      %v667 = vadd.f32 %v349, %v666
      %v668 = vpop.f32.mrb[0].mxu0
      %v669 = vpop.f32.mrb[0].mxu0
      %v670 = vadd.f32 %v349, %v669
      %v671 = vpop.f32.mrb[0].mxu0
      %672 = vmatprep.mubr.bf16.mxu0 0
      %673 = vmatmul.mubr.bf16.gmra.mrb[0].mxu0 %v619
      %v674 = vpop.f32.mrb[0].mxu0
      %v675 = vadd.f32 %v349, %v674
      %v676 = vpop.f32.mrb[0].mxu0
      %v677 = vpop.f32.mrb[0].mxu0
      %v678 = vadd.f32 %v349, %v677
      %v679 = vpop.f32.mrb[0].mxu0
      %680 = vmatprep.mubr.bf16.mxu0 0
      %681 = vmatmul.mubr.bf16.gmra.mrb[0].mxu0 %v622
      %v682 = vpop.f32.mrb[0].mxu0
      %v683 = vadd.f32 %v349, %v682
      %v684 = vpop.f32.mrb[0].mxu0
      %v685 = vpop.f32.mrb[0].mxu0
      %v686 = vadd.f32 %v349, %v685
      %v687 = vpop.f32.mrb[0].mxu0
      %688 = vdwg.mxu0
      %v689 = vmax.f32 %v659, 0.0
      %v690 = vmax.f32 %v662, 0.0
      %v691 = vmax.f32 %v667, 0.0
      %v692 = vmax.f32 %v670, 0.0
      %v693 = vmax.f32 %v675, 0.0
      %v694 = vmax.f32 %v678, 0.0
      %v695 = vmax.f32 %v683, 0.0
      %v696 = vmax.f32 %v686, 0.0
      %v697 = vmax.f32 %v576, %v689
      %v698 = vmax.f32 %v577, %v690
      %v699 = vmax.f32 %v578, %v691
      %v700 = vmax.f32 %v579, %v692
      %v701 = vmax.f32 %v580, %v693
      %v702 = vmax.f32 %v581, %v694
      %v703 = vmax.f32 %v582, %v695
      %v704 = vmax.f32 %v583, %v696
      %v705 = vld [vmem:[%s327 + $0x60] sm:$0xf]
      %v706 = vld [vmem:[%s327 + $0x64] sm:$0xf]
      %v707 = vld [vmem:[%s327 + $0x68] sm:$0xf]
      %v708 = vld [vmem:[%s327 + $0x6c] sm:$0xf]
      %v709 = vld [vmem:[%s327 + $0x70] sm:$0xf]
      %v710 = vld [vmem:[%s327 + $0x74] sm:$0xf]
      %v711 = vld [vmem:[%s327 + $0x78] sm:$0xf]
      %v712 = vld [vmem:[%s327 + $0x7c] sm:$0xf]
      %v721 = vunpack.c.l.b16 %v705
      %v722 = vunpack.c.l.b16 %v706
      %v723 = vunpack.c.l.b16 %v707
      %v724 = vunpack.c.l.b16 %v708
      %v725 = vunpack.c.l.b16 %v709
      %v726 = vunpack.c.l.b16 %v710
      %v727 = vunpack.c.l.b16 %v711
      %v728 = vunpack.c.l.b16 %v712
      %v729 = vpack.c.b16 %v722, %v721
      %v730 = vpack.c.b16 %v724, %v723
      %v731 = vpack.c.b16 %v726, %v725
      %v732 = vpack.c.b16 %v728, %v727
      %v734 = vsel %vm377, %v729, 0
      %v737 = vsel %vm377, %v730, 0
      %v740 = vsel %vm377, %v731, 0
      %v743 = vsel %vm377, %v732, 0
      %745 = vmatprep.subr.bf16.mxu0 0
      %746 = vmatpush1.bf16.msra.mxu0 %v375
      %747 = vmatprep.subr.bf16.mxu0 0
      %748 = vmatpush1.bf16.msra.mxu0 0
      %749 = vmatprep.subr.bf16.mxu0 0
      %750 = vmatpush1.bf16.msra.mxu0 0
      %751 = vmatprep.subr.bf16.mxu0 0
      %752 = vmatpush1.bf16.msra.mxu0 0
      %753 = vmatprep.subr.bf16.mxu0 0
      %754 = vmatpush1.bf16.msra.mxu0 0
      %755 = vmatprep.subr.bf16.mxu0 0
      %756 = vmatpush1.bf16.msra.mxu0 0
      %757 = vmatprep.subr.bf16.mxu0 0
      %758 = vmatpush1.bf16.msra.mxu0 0
      %759 = vmatprep.subr.bf16.mxu0 0
      %760 = vmatpush1.bf16.msra.mxu0 0
      %761 = vmatprep.subr.bf16.mxu0 0
      %762 = vmatpush1.bf16.msra.mxu0 0
      %763 = vmatprep.subr.bf16.mxu0 0
      %764 = vmatpush1.bf16.msra.mxu0 0
      %765 = vmatprep.subr.bf16.mxu0 0
      %766 = vmatpush1.bf16.msra.mxu0 0
      %767 = vmatprep.subr.bf16.mxu0 0
      %768 = vmatpush1.bf16.msra.mxu0 0
      %769 = vmatprep.subr.bf16.mxu0 0
      %770 = vmatpush1.bf16.msra.mxu0 0
      %771 = vmatprep.subr.bf16.mxu0 0
      %772 = vmatpush1.bf16.msra.mxu0 0
      %773 = vmatprep.subr.bf16.mxu0 0
      %774 = vmatpush1.bf16.msra.mxu0 0
      %775 = vmatprep.subr.bf16.mxu0 0
      %776 = vmatpush1.bf16.msra.mxu0 0
      %777 = vmatprep.mubr.bf16.mxu0 0
      %778 = vmatmul.mubr.bf16.gmra.mrb[0].mxu0 %v734
      %v779 = vpop.f32.mrb[0].mxu0
      %v780 = vadd.f32 %v349, %v779
      %v781 = vpop.f32.mrb[0].mxu0
      %v782 = vpop.f32.mrb[0].mxu0
      %v783 = vadd.f32 %v349, %v782
      %v784 = vpop.f32.mrb[0].mxu0
      %785 = vmatprep.mubr.bf16.mxu0 0
      %786 = vmatmul.mubr.bf16.gmra.mrb[0].mxu0 %v737
      %v787 = vpop.f32.mrb[0].mxu0
      %v788 = vadd.f32 %v349, %v787
      %v789 = vpop.f32.mrb[0].mxu0
      %v790 = vpop.f32.mrb[0].mxu0
      %v791 = vadd.f32 %v349, %v790
      %v792 = vpop.f32.mrb[0].mxu0
      %793 = vmatprep.mubr.bf16.mxu0 0
      %794 = vmatmul.mubr.bf16.gmra.mrb[0].mxu0 %v740
      %v795 = vpop.f32.mrb[0].mxu0
      %v796 = vadd.f32 %v349, %v795
      %v797 = vpop.f32.mrb[0].mxu0
      %v798 = vpop.f32.mrb[0].mxu0
      %v799 = vadd.f32 %v349, %v798
      %v800 = vpop.f32.mrb[0].mxu0
      %801 = vmatprep.mubr.bf16.mxu0 0
      %802 = vmatmul.mubr.bf16.gmra.mrb[0].mxu0 %v743
      %v803 = vpop.f32.mrb[0].mxu0
      %v804 = vadd.f32 %v349, %v803
      %v805 = vpop.f32.mrb[0].mxu0
      %v806 = vpop.f32.mrb[0].mxu0
      %v807 = vadd.f32 %v349, %v806
      %v808 = vpop.f32.mrb[0].mxu0
      %809 = vdwg.mxu0
      %v810 = vmax.f32 %v780, 0.0
      %v811 = vmax.f32 %v783, 0.0
      %v812 = vmax.f32 %v788, 0.0
      %v813 = vmax.f32 %v791, 0.0
      %v814 = vmax.f32 %v796, 0.0
      %v815 = vmax.f32 %v799, 0.0
      %v816 = vmax.f32 %v804, 0.0
      %v817 = vmax.f32 %v807, 0.0
      %v818 = vmax.f32 %v697, %v810
      %v819 = vmax.f32 %v698, %v811
      %v820 = vmax.f32 %v699, %v812
      %v821 = vmax.f32 %v700, %v813
      %v822 = vmax.f32 %v701, %v814
      %v823 = vmax.f32 %v702, %v815
      %v824 = vmax.f32 %v703, %v816
      %v825 = vmax.f32 %v704, %v817
      %vm826 = vcmask 523264
      %827 = vst.msk [vmem:[#allocation2] sm:$0xff] %vm826, 0.0
      %828 = vst.msk [vmem:[#allocation2 + $0x8] sm:$0xff] %vm826, 0.0
      %829 = vst.msk [vmem:[#allocation2 + $0x10] sm:$0xff] %vm826, 0.0
      %830 = vst.msk [vmem:[#allocation2 + $0x18] sm:$0xff] %vm826, 0.0
      %831 = vst.msk [vmem:[#allocation2 + $0x20] sm:$0xff] %vm826, 0.0
      %832 = vst.msk [vmem:[#allocation2 + $0x28] sm:$0xff] %vm826, 0.0
      %833 = vst.msk [vmem:[#allocation2 + $0x30] sm:$0xff] %vm826, 0.0
      %834 = vst.msk [vmem:[#allocation2 + $0x38] sm:$0xff] %vm826, 0.0
      %835 = vst.msk [vmem:[#allocation2 + $0x40] sm:$0xff] %vm826, 0.0
      %836 = vst.msk [vmem:[#allocation2 + $0x48] sm:$0xff] %vm826, 0.0
      %837 = vst.msk [vmem:[#allocation2 + $0x50] sm:$0xff] %vm826, 0.0
      %838 = vst.msk [vmem:[#allocation2 + $0x58] sm:$0xff] %vm826, 0.0
      %839 = vst.msk [vmem:[#allocation2 + $0x60] sm:$0xff] %vm826, 0.0
      %840 = vst.msk [vmem:[#allocation2 + $0xb] sm:$0xff] %vm826, %v818
      %841 = vst.msk [vmem:[#allocation2 + $0x15] sm:$0xff] %vm826, %v819
      %842 = vst.msk [vmem:[#allocation2 + $0x1f] sm:$0xff] %vm826, %v820
      %843 = vst.msk [vmem:[#allocation2 + $0x29] sm:$0xff] %vm826, %v821
      %844 = vst.msk [vmem:[#allocation2 + $0x33] sm:$0xff] %vm826, %v822
      %845 = vst.msk [vmem:[#allocation2 + $0x3d] sm:$0xff] %vm826, %v823
      %846 = vst.msk [vmem:[#allocation2 + $0x47] sm:$0xff] %vm826, %v824
      %847 = vst.msk [vmem:[#allocation2 + $0x51] sm:$0xff] %vm826, %v825
      %v848 = vld [vmem:[#allocation2] sm:$0xff]
      %v849 = vld [vmem:[#allocation2 + $0x8] sm:$0xff]
      %v850 = vld [vmem:[#allocation2 + $0x10] sm:$0xff]
      %v851 = vld [vmem:[#allocation2 + $0x18] sm:$0xff]
      %v852 = vld [vmem:[#allocation2 + $0x20] sm:$0xff]
      %v853 = vld [vmem:[#allocation2 + $0x28] sm:$0xff]
      %v854 = vld [vmem:[#allocation2 + $0x30] sm:$0xff]
      %v855 = vld [vmem:[#allocation2 + $0x38] sm:$0xff]
      %v856 = vld [vmem:[#allocation2 + $0x40] sm:$0xff]
      %v857 = vld [vmem:[#allocation2 + $0x48] sm:$0xff]
      %v858 = vpack.c.bf16 %v849, %v848
      %v859 = vpack.c.bf16 %v851, %v850
      %v860 = vpack.c.bf16 %v853, %v852
      %v861 = vpack.c.bf16 %v855, %v854
      %v862 = vpack.c.bf16 %v857, %v856
      %v863 = vld [vmem:[%s3] sm:$0xf]
      %v864 = vld [vmem:[%s3 + $0x4] sm:$0xf]
      %v865 = vld [vmem:[%s3 + $0x8] sm:$0xf]
      %v866 = vld [vmem:[%s3 + $0xc] sm:$0xf]
      %v867 = vld [vmem:[%s3 + $0x10] sm:$0xf]
      %v868 = vld [vmem:[%s3 + $0x14] sm:$0xf]
      %v869 = vld [vmem:[%s3 + $0x18] sm:$0xf]
      %v870 = vld [vmem:[%s3 + $0x1c] sm:$0xf]
      %v871 = vld [vmem:[#allocation2 + $0x1] sm:$0xff]
      %v872 = vld [vmem:[#allocation2 + $0x9] sm:$0xff]
      %v873 = vld [vmem:[#allocation2 + $0x11] sm:$0xff]
      %v874 = vld [vmem:[#allocation2 + $0x19] sm:$0xff]
      %v875 = vld [vmem:[#allocation2 + $0x21] sm:$0xff]
      %v876 = vld [vmem:[#allocation2 + $0x29] sm:$0xff]
      %v877 = vld [vmem:[#allocation2 + $0x31] sm:$0xff]
      %v878 = vld [vmem:[#allocation2 + $0x39] sm:$0xff]
      %v879 = vld [vmem:[#allocation2 + $0x41] sm:$0xff]
      %v880 = vld [vmem:[#allocation2 + $0x49] sm:$0xff]
      %v881 = vpack.c.bf16 %v872, %v871
      %v882 = vpack.c.bf16 %v874, %v873
      %v883 = vpack.c.bf16 %v876, %v875
      %v884 = vpack.c.bf16 %v878, %v877
      %v885 = vpack.c.bf16 %v880, %v879
      %s886 = scalar_lea.vmem %s3, 32
      %v887 = vld [vmem:[%s886] sm:$0xf]
      %v888 = vld [vmem:[%s886 + $0x4] sm:$0xf]
      %v889 = vld [vmem:[%s886 + $0x8] sm:$0xf]
      %v890 = vld [vmem:[%s886 + $0xc] sm:$0xf]
      %v891 = vld [vmem:[%s886 + $0x10] sm:$0xf]
      %v892 = vld [vmem:[%s886 + $0x14] sm:$0xf]
      %v893 = vld [vmem:[%s886 + $0x18] sm:$0xf]
      %v894 = vld [vmem:[%s886 + $0x1c] sm:$0xf]
      %v903 = vunpack.c.l.b16 %v887
      %v904 = vunpack.c.l.b16 %v888
      %v905 = vunpack.c.l.b16 %v889
      %v906 = vunpack.c.l.b16 %v890
      %v907 = vunpack.c.l.b16 %v891
      %v908 = vunpack.c.l.b16 %v892
      %v909 = vunpack.c.l.b16 %v893
      %v910 = vunpack.c.l.b16 %v894
      %v911 = vpack.c.b16 %v904, %v903
      %v912 = vpack.c.b16 %v906, %v905
      %v913 = vpack.c.b16 %v908, %v907
      %v914 = vpack.c.b16 %v910, %v909
      %v920 = vsel %vm826, %v881, 0
      %v923 = vsel %vm826, %v882, 0
      %v926 = vsel %vm826, %v883, 0
      %v929 = vsel %vm826, %v884, 0
      %v932 = vsel %vm826, %v885, 0
      %934 = vmatprep.subr.bf16.mxu0 0
      %935 = vmatpush1.bf16.msra.mxu0 %v911
      %936 = vmatprep.subr.bf16.mxu0 0
      %937 = vmatpush1.bf16.msra.mxu0 %v912
      %938 = vmatprep.subr.bf16.mxu0 0
      %939 = vmatpush1.bf16.msra.mxu0 %v913
      %940 = vmatprep.subr.bf16.mxu0 0
      %941 = vmatpush1.bf16.msra.mxu0 %v914
      %942 = vmatprep.subr.bf16.mxu0 0
      %943 = vmatpush1.bf16.msra.mxu0 0
      %944 = vmatprep.subr.bf16.mxu0 0
      %945 = vmatpush1.bf16.msra.mxu0 0
      %946 = vmatprep.subr.bf16.mxu0 0
      %947 = vmatpush1.bf16.msra.mxu0 0
      %948 = vmatprep.subr.bf16.mxu0 0
      %949 = vmatpush1.bf16.msra.mxu0 0
      %950 = vmatprep.subr.bf16.mxu0 0
      %951 = vmatpush1.bf16.msra.mxu0 0
      %952 = vmatprep.subr.bf16.mxu0 0
      %953 = vmatpush1.bf16.msra.mxu0 0
      %954 = vmatprep.subr.bf16.mxu0 0
      %955 = vmatpush1.bf16.msra.mxu0 0
      %956 = vmatprep.subr.bf16.mxu0 0
      %957 = vmatpush1.bf16.msra.mxu0 0
      %958 = vmatprep.subr.bf16.mxu0 0
      %959 = vmatpush1.bf16.msra.mxu0 0
      %960 = vmatprep.subr.bf16.mxu0 0
      %961 = vmatpush1.bf16.msra.mxu0 0
      %962 = vmatprep.subr.bf16.mxu0 0
      %963 = vmatpush1.bf16.msra.mxu0 0
      %964 = vmatprep.subr.bf16.mxu0 0
      %965 = vmatpush1.bf16.msra.mxu0 0
      %966 = vmatprep.mubr.bf16.mxu0 0
      %967 = vmatmul.mubr.bf16.gmra.mrb[0].mxu0 %v920
      %v968 = vpop.f32.mrb[0].mxu0
      %v969 = vadd.f32 0.0, %v968
      %v970 = vpop.f32.mrb[0].mxu0
      %v971 = vpop.f32.mrb[0].mxu0
      %v972 = vadd.f32 0.0, %v971
      %v973 = vpop.f32.mrb[0].mxu0
      %974 = vmatprep.mubr.bf16.mxu0 0
      %975 = vmatmul.mubr.bf16.gmra.mrb[0].mxu0 %v923
      %v976 = vpop.f32.mrb[0].mxu0
      %v977 = vadd.f32 0.0, %v976
      %v978 = vpop.f32.mrb[0].mxu0
      %v979 = vpop.f32.mrb[0].mxu0
      %v980 = vadd.f32 0.0, %v979
      %v981 = vpop.f32.mrb[0].mxu0
      %982 = vmatprep.mubr.bf16.mxu0 0
      %983 = vmatmul.mubr.bf16.gmra.mrb[0].mxu0 %v926
      %v984 = vpop.f32.mrb[0].mxu0
      %v985 = vadd.f32 0.0, %v984
      %v986 = vpop.f32.mrb[0].mxu0
      %v987 = vpop.f32.mrb[0].mxu0
      %v988 = vadd.f32 0.0, %v987
      %v989 = vpop.f32.mrb[0].mxu0
      %990 = vmatprep.mubr.bf16.mxu0 0
      %991 = vmatmul.mubr.bf16.gmra.mrb[0].mxu0 %v929
      %v992 = vpop.f32.mrb[0].mxu0
      %v993 = vadd.f32 0.0, %v992
      %v994 = vpop.f32.mrb[0].mxu0
      %v995 = vpop.f32.mrb[0].mxu0
      %v996 = vadd.f32 0.0, %v995
      %v997 = vpop.f32.mrb[0].mxu0
      %998 = vmatprep.mubr.bf16.mxu0 0
      %999 = vmatmul.mubr.bf16.gmra.mrb[0].mxu0 %v932
      %v1000 = vpop.f32.mrb[0].mxu0
      %v1001 = vadd.f32 0.0, %v1000
      %v1002 = vpop.f32.mrb[0].mxu0
      %v1003 = vpop.f32.mrb[0].mxu0
      %v1004 = vadd.f32 0.0, %v1003
      %v1005 = vpop.f32.mrb[0].mxu0
      %1006 = vdwg.mxu0
      %v1015 = vunpack.c.l.b16 %v863
      %v1016 = vunpack.c.l.b16 %v864
      %v1017 = vunpack.c.l.b16 %v865
      %v1018 = vunpack.c.l.b16 %v866
      %v1019 = vunpack.c.l.b16 %v867
      %v1020 = vunpack.c.l.b16 %v868
      %v1021 = vunpack.c.l.b16 %v869
      %v1022 = vunpack.c.l.b16 %v870
      %v1023 = vpack.c.b16 %v1016, %v1015
      %v1024 = vpack.c.b16 %v1018, %v1017
      %v1025 = vpack.c.b16 %v1020, %v1019
      %v1026 = vpack.c.b16 %v1022, %v1021
      %v1032 = vsel %vm826, %v858, 0
      %v1035 = vsel %vm826, %v859, 0
      %v1038 = vsel %vm826, %v860, 0
      %v1041 = vsel %vm826, %v861, 0
      %v1044 = vsel %vm826, %v862, 0
      %1046 = vmatprep.subr.bf16.mxu0 0
      %1047 = vmatpush1.bf16.msra.mxu0 %v1023
      %1048 = vmatprep.subr.bf16.mxu0 0
      %1049 = vmatpush1.bf16.msra.mxu0 %v1024
      %1050 = vmatprep.subr.bf16.mxu0 0
      %1051 = vmatpush1.bf16.msra.mxu0 %v1025
      %1052 = vmatprep.subr.bf16.mxu0 0
      %1053 = vmatpush1.bf16.msra.mxu0 %v1026
      %1054 = vmatprep.subr.bf16.mxu0 0
      %1055 = vmatpush1.bf16.msra.mxu0 0
      %1056 = vmatprep.subr.bf16.mxu0 0
      %1057 = vmatpush1.bf16.msra.mxu0 0
      %1058 = vmatprep.subr.bf16.mxu0 0
      %1059 = vmatpush1.bf16.msra.mxu0 0
      %1060 = vmatprep.subr.bf16.mxu0 0
      %1061 = vmatpush1.bf16.msra.mxu0 0
      %1062 = vmatprep.subr.bf16.mxu0 0
      %1063 = vmatpush1.bf16.msra.mxu0 0
      %1064 = vmatprep.subr.bf16.mxu0 0
      %1065 = vmatpush1.bf16.msra.mxu0 0
      %1066 = vmatprep.subr.bf16.mxu0 0
      %1067 = vmatpush1.bf16.msra.mxu0 0
      %1068 = vmatprep.subr.bf16.mxu0 0
      %1069 = vmatpush1.bf16.msra.mxu0 0
      %1070 = vmatprep.subr.bf16.mxu0 0
      %1071 = vmatpush1.bf16.msra.mxu0 0
      %1072 = vmatprep.subr.bf16.mxu0 0
      %1073 = vmatpush1.bf16.msra.mxu0 0
      %1074 = vmatprep.subr.bf16.mxu0 0
      %1075 = vmatpush1.bf16.msra.mxu0 0
      %1076 = vmatprep.subr.bf16.mxu0 0
      %1077 = vmatpush1.bf16.msra.mxu0 0
      %1078 = vmatprep.mubr.bf16.mxu0 0
      %1079 = vmatmul.mubr.bf16.gmra.mrb[0].mxu0 %v1032
      %v1080 = vpop.f32.mrb[0].mxu0
      %v1081 = vadd.f32 %v969, %v1080
      %v1082 = vpop.f32.mrb[0].mxu0
      %v1083 = vpop.f32.mrb[0].mxu0
      %v1084 = vadd.f32 %v972, %v1083
      %v1085 = vpop.f32.mrb[0].mxu0
      %1086 = vmatprep.mubr.bf16.mxu0 0
      %1087 = vmatmul.mubr.bf16.gmra.mrb[0].mxu0 %v1035
      %v1088 = vpop.f32.mrb[0].mxu0
      %v1089 = vadd.f32 %v977, %v1088
      %v1090 = vpop.f32.mrb[0].mxu0
      %v1091 = vpop.f32.mrb[0].mxu0
      %v1092 = vadd.f32 %v980, %v1091
      %v1093 = vpop.f32.mrb[0].mxu0
      %1094 = vmatprep.mubr.bf16.mxu0 0
      %1095 = vmatmul.mubr.bf16.gmra.mrb[0].mxu0 %v1038
      %v1096 = vpop.f32.mrb[0].mxu0
      %v1097 = vadd.f32 %v985, %v1096
      %v1098 = vpop.f32.mrb[0].mxu0
      %v1099 = vpop.f32.mrb[0].mxu0
      %v1100 = vadd.f32 %v988, %v1099
      %v1101 = vpop.f32.mrb[0].mxu0
      %1102 = vmatprep.mubr.bf16.mxu0 0
      %1103 = vmatmul.mubr.bf16.gmra.mrb[0].mxu0 %v1041
      %v1104 = vpop.f32.mrb[0].mxu0
      %v1105 = vadd.f32 %v993, %v1104
      %v1106 = vpop.f32.mrb[0].mxu0
      %v1107 = vpop.f32.mrb[0].mxu0
      %v1108 = vadd.f32 %v996, %v1107
      %v1109 = vpop.f32.mrb[0].mxu0
      %1110 = vmatprep.mubr.bf16.mxu0 0
      %1111 = vmatmul.mubr.bf16.gmra.mrb[0].mxu0 %v1044
      %v1112 = vpop.f32.mrb[0].mxu0
      %v1113 = vadd.f32 %v1001, %v1112
      %v1114 = vpop.f32.mrb[0].mxu0
      %v1115 = vpop.f32.mrb[0].mxu0
      %v1116 = vadd.f32 %v1004, %v1115
      %v1117 = vpop.f32.mrb[0].mxu0
      %1118 = vdwg.mxu0
      %v1119 = vld [vmem:[#allocation2 + $0x2] sm:$0xff]
      %v1120 = vld [vmem:[#allocation2 + $0xa] sm:$0xff]
      %v1121 = vld [vmem:[#allocation2 + $0x12] sm:$0xff]
      %v1122 = vld [vmem:[#allocation2 + $0x1a] sm:$0xff]
      %v1123 = vld [vmem:[#allocation2 + $0x22] sm:$0xff]
      %v1124 = vld [vmem:[#allocation2 + $0x2a] sm:$0xff]
      %v1125 = vld [vmem:[#allocation2 + $0x32] sm:$0xff]
      %v1126 = vld [vmem:[#allocation2 + $0x3a] sm:$0xff]
      %v1127 = vld [vmem:[#allocation2 + $0x42] sm:$0xff]
      %v1128 = vld [vmem:[#allocation2 + $0x4a] sm:$0xff]
      %v1129 = vpack.c.bf16 %v1120, %v1119
      %v1130 = vpack.c.bf16 %v1122, %v1121
      %v1131 = vpack.c.bf16 %v1124, %v1123
      %v1132 = vpack.c.bf16 %v1126, %v1125
      %v1133 = vpack.c.bf16 %v1128, %v1127
      %s1134 = scalar_lea.vmem %s3, 64
      %v1135 = vld [vmem:[%s1134] sm:$0xf]
      %v1136 = vld [vmem:[%s1134 + $0x4] sm:$0xf]
      %v1137 = vld [vmem:[%s1134 + $0x8] sm:$0xf]
      %v1138 = vld [vmem:[%s1134 + $0xc] sm:$0xf]
      %v1139 = vld [vmem:[%s1134 + $0x10] sm:$0xf]
      %v1140 = vld [vmem:[%s1134 + $0x14] sm:$0xf]
      %v1141 = vld [vmem:[%s1134 + $0x18] sm:$0xf]
      %v1142 = vld [vmem:[%s1134 + $0x1c] sm:$0xf]
      %v1151 = vunpack.c.l.b16 %v1135
      %v1152 = vunpack.c.l.b16 %v1136
      %v1153 = vunpack.c.l.b16 %v1137
      %v1154 = vunpack.c.l.b16 %v1138
      %v1155 = vunpack.c.l.b16 %v1139
      %v1156 = vunpack.c.l.b16 %v1140
      %v1157 = vunpack.c.l.b16 %v1141
      %v1158 = vunpack.c.l.b16 %v1142
      %v1159 = vpack.c.b16 %v1152, %v1151
      %v1160 = vpack.c.b16 %v1154, %v1153
      %v1161 = vpack.c.b16 %v1156, %v1155
      %v1162 = vpack.c.b16 %v1158, %v1157
      %v1168 = vsel %vm826, %v1129, 0
      %v1171 = vsel %vm826, %v1130, 0
      %v1174 = vsel %vm826, %v1131, 0
      %v1177 = vsel %vm826, %v1132, 0
      %v1180 = vsel %vm826, %v1133, 0
      %1182 = vmatprep.subr.bf16.mxu0 0
      %1183 = vmatpush1.bf16.msra.mxu0 %v1159
      %1184 = vmatprep.subr.bf16.mxu0 0
      %1185 = vmatpush1.bf16.msra.mxu0 %v1160
      %1186 = vmatprep.subr.bf16.mxu0 0
      %1187 = vmatpush1.bf16.msra.mxu0 %v1161
      %1188 = vmatprep.subr.bf16.mxu0 0
      %1189 = vmatpush1.bf16.msra.mxu0 %v1162
      %1190 = vmatprep.subr.bf16.mxu0 0
      %1191 = vmatpush1.bf16.msra.mxu0 0
      %1192 = vmatprep.subr.bf16.mxu0 0
      %1193 = vmatpush1.bf16.msra.mxu0 0
      %1194 = vmatprep.subr.bf16.mxu0 0
      %1195 = vmatpush1.bf16.msra.mxu0 0
      %1196 = vmatprep.subr.bf16.mxu0 0
      %1197 = vmatpush1.bf16.msra.mxu0 0
      %1198 = vmatprep.subr.bf16.mxu0 0
      %1199 = vmatpush1.bf16.msra.mxu0 0
      %1200 = vmatprep.subr.bf16.mxu0 0
      %1201 = vmatpush1.bf16.msra.mxu0 0
      %1202 = vmatprep.subr.bf16.mxu0 0
      %1203 = vmatpush1.bf16.msra.mxu0 0
      %1204 = vmatprep.subr.bf16.mxu0 0
      %1205 = vmatpush1.bf16.msra.mxu0 0
      %1206 = vmatprep.subr.bf16.mxu0 0
      %1207 = vmatpush1.bf16.msra.mxu0 0
      %1208 = vmatprep.subr.bf16.mxu0 0
      %1209 = vmatpush1.bf16.msra.mxu0 0
      %1210 = vmatprep.subr.bf16.mxu0 0
      %1211 = vmatpush1.bf16.msra.mxu0 0
      %1212 = vmatprep.subr.bf16.mxu0 0
      %1213 = vmatpush1.bf16.msra.mxu0 0
      %1214 = vmatprep.mubr.bf16.mxu0 0
      %1215 = vmatmul.mubr.bf16.gmra.mrb[0].mxu0 %v1168
      %v1216 = vpop.f32.mrb[0].mxu0
      %v1217 = vadd.f32 0.0, %v1216
      %v1218 = vpop.f32.mrb[0].mxu0
      %v1219 = vpop.f32.mrb[0].mxu0
      %v1220 = vadd.f32 0.0, %v1219
      %v1221 = vpop.f32.mrb[0].mxu0
      %1222 = vmatprep.mubr.bf16.mxu0 0
      %1223 = vmatmul.mubr.bf16.gmra.mrb[0].mxu0 %v1171
      %v1224 = vpop.f32.mrb[0].mxu0
      %v1225 = vadd.f32 0.0, %v1224
      %v1226 = vpop.f32.mrb[0].mxu0
      %v1227 = vpop.f32.mrb[0].mxu0
      %v1228 = vadd.f32 0.0, %v1227
      %v1229 = vpop.f32.mrb[0].mxu0
      %1230 = vmatprep.mubr.bf16.mxu0 0
      %1231 = vmatmul.mubr.bf16.gmra.mrb[0].mxu0 %v1174
      %v1232 = vpop.f32.mrb[0].mxu0
      %v1233 = vadd.f32 0.0, %v1232
      %v1234 = vpop.f32.mrb[0].mxu0
      %v1235 = vpop.f32.mrb[0].mxu0
      %v1236 = vadd.f32 0.0, %v1235
      %v1237 = vpop.f32.mrb[0].mxu0
      %1238 = vmatprep.mubr.bf16.mxu0 0
      %1239 = vmatmul.mubr.bf16.gmra.mrb[0].mxu0 %v1177
      %v1240 = vpop.f32.mrb[0].mxu0
      %v1241 = vadd.f32 0.0, %v1240
      %v1242 = vpop.f32.mrb[0].mxu0
      %v1243 = vpop.f32.mrb[0].mxu0
      %v1244 = vadd.f32 0.0, %v1243
      %v1245 = vpop.f32.mrb[0].mxu0
      %1246 = vmatprep.mubr.bf16.mxu0 0
      %1247 = vmatmul.mubr.bf16.gmra.mrb[0].mxu0 %v1180
      %v1248 = vpop.f32.mrb[0].mxu0
      %v1249 = vadd.f32 0.0, %v1248
      %v1250 = vpop.f32.mrb[0].mxu0
      %v1251 = vpop.f32.mrb[0].mxu0
      %v1252 = vadd.f32 0.0, %v1251
      %v1253 = vpop.f32.mrb[0].mxu0
      %1254 = vdwg.mxu0
      %v1255 = vadd.f32 %v1081, %v1217
      %v1256 = vadd.f32 %v1084, %v1220
      %v1257 = vadd.f32 %v1089, %v1225
      %v1258 = vadd.f32 %v1092, %v1228
      %v1259 = vadd.f32 %v1097, %v1233
      %v1260 = vadd.f32 %v1100, %v1236
      %v1261 = vadd.f32 %v1105, %v1241
      %v1262 = vadd.f32 %v1108, %v1244
      %v1263 = vadd.f32 %v1113, %v1249
      %v1264 = vadd.f32 %v1116, %v1252
      %v1265 = vld [vmem:[#allocation2 + $0xa] sm:$0xff]
      %v1266 = vld [vmem:[#allocation2 + $0x12] sm:$0xff]
      %v1267 = vld [vmem:[#allocation2 + $0x1a] sm:$0xff]
      %v1268 = vld [vmem:[#allocation2 + $0x22] sm:$0xff]
      %v1269 = vld [vmem:[#allocation2 + $0x2a] sm:$0xff]
      %v1270 = vld [vmem:[#allocation2 + $0x32] sm:$0xff]
      %v1271 = vld [vmem:[#allocation2 + $0x3a] sm:$0xff]
      %v1272 = vld [vmem:[#allocation2 + $0x42] sm:$0xff]
      %v1273 = vld [vmem:[#allocation2 + $0x4a] sm:$0xff]
      %v1274 = vld [vmem:[#allocation2 + $0x52] sm:$0xff]
      %v1275 = vpack.c.bf16 %v1266, %v1265
      %v1276 = vpack.c.bf16 %v1268, %v1267
      %v1277 = vpack.c.bf16 %v1270, %v1269
      %v1278 = vpack.c.bf16 %v1272, %v1271
      %v1279 = vpack.c.bf16 %v1274, %v1273
      %s1280 = scalar_lea.vmem %s3, 96
      %v1281 = vld [vmem:[%s1280] sm:$0xf]
      %v1282 = vld [vmem:[%s1280 + $0x4] sm:$0xf]
      %v1283 = vld [vmem:[%s1280 + $0x8] sm:$0xf]
      %v1284 = vld [vmem:[%s1280 + $0xc] sm:$0xf]
      %v1285 = vld [vmem:[%s1280 + $0x10] sm:$0xf]
      %v1286 = vld [vmem:[%s1280 + $0x14] sm:$0xf]
      %v1287 = vld [vmem:[%s1280 + $0x18] sm:$0xf]
      %v1288 = vld [vmem:[%s1280 + $0x1c] sm:$0xf]
      %v1297 = vunpack.c.l.b16 %v1281
      %v1298 = vunpack.c.l.b16 %v1282
      %v1299 = vunpack.c.l.b16 %v1283
      %v1300 = vunpack.c.l.b16 %v1284
      %v1301 = vunpack.c.l.b16 %v1285
      %v1302 = vunpack.c.l.b16 %v1286
      %v1303 = vunpack.c.l.b16 %v1287
      %v1304 = vunpack.c.l.b16 %v1288
      %v1305 = vpack.c.b16 %v1298, %v1297
      %v1306 = vpack.c.b16 %v1300, %v1299
      %v1307 = vpack.c.b16 %v1302, %v1301
      %v1308 = vpack.c.b16 %v1304, %v1303
      %v1314 = vsel %vm826, %v1275, 0
      %v1317 = vsel %vm826, %v1276, 0
      %v1320 = vsel %vm826, %v1277, 0
      %v1323 = vsel %vm826, %v1278, 0
      %v1326 = vsel %vm826, %v1279, 0
      %1328 = vmatprep.subr.bf16.mxu0 0
      %1329 = vmatpush1.bf16.msra.mxu0 %v1305
      %1330 = vmatprep.subr.bf16.mxu0 0
      %1331 = vmatpush1.bf16.msra.mxu0 %v1306
      %1332 = vmatprep.subr.bf16.mxu0 0
      %1333 = vmatpush1.bf16.msra.mxu0 %v1307
      %1334 = vmatprep.subr.bf16.mxu0 0
      %1335 = vmatpush1.bf16.msra.mxu0 %v1308
      %1336 = vmatprep.subr.bf16.mxu0 0
      %1337 = vmatpush1.bf16.msra.mxu0 0
      %1338 = vmatprep.subr.bf16.mxu0 0
      %1339 = vmatpush1.bf16.msra.mxu0 0
      %1340 = vmatprep.subr.bf16.mxu0 0
      %1341 = vmatpush1.bf16.msra.mxu0 0
      %1342 = vmatprep.subr.bf16.mxu0 0
      %1343 = vmatpush1.bf16.msra.mxu0 0
      %1344 = vmatprep.subr.bf16.mxu0 0
      %1345 = vmatpush1.bf16.msra.mxu0 0
      %1346 = vmatprep.subr.bf16.mxu0 0
      %1347 = vmatpush1.bf16.msra.mxu0 0
      %1348 = vmatprep.subr.bf16.mxu0 0
      %1349 = vmatpush1.bf16.msra.mxu0 0
      %1350 = vmatprep.subr.bf16.mxu0 0
      %1351 = vmatpush1.bf16.msra.mxu0 0
      %1352 = vmatprep.subr.bf16.mxu0 0
      %1353 = vmatpush1.bf16.msra.mxu0 0
      %1354 = vmatprep.subr.bf16.mxu0 0
      %1355 = vmatpush1.bf16.msra.mxu0 0
      %1356 = vmatprep.subr.bf16.mxu0 0
      %1357 = vmatpush1.bf16.msra.mxu0 0
      %1358 = vmatprep.subr.bf16.mxu0 0
      %1359 = vmatpush1.bf16.msra.mxu0 0
      %1360 = vmatprep.mubr.bf16.mxu0 0
      %1361 = vmatmul.mubr.bf16.gmra.mrb[0].mxu0 %v1314
      %v1362 = vpop.f32.mrb[0].mxu0
      %v1363 = vadd.f32 0.0, %v1362
      %v1364 = vpop.f32.mrb[0].mxu0
      %v1365 = vpop.f32.mrb[0].mxu0
      %v1366 = vadd.f32 0.0, %v1365
      %v1367 = vpop.f32.mrb[0].mxu0
      %1368 = vmatprep.mubr.bf16.mxu0 0
      %1369 = vmatmul.mubr.bf16.gmra.mrb[0].mxu0 %v1317
      %v1370 = vpop.f32.mrb[0].mxu0
      %v1371 = vadd.f32 0.0, %v1370
      %v1372 = vpop.f32.mrb[0].mxu0
      %v1373 = vpop.f32.mrb[0].mxu0
      %v1374 = vadd.f32 0.0, %v1373
      %v1375 = vpop.f32.mrb[0].mxu0
      %1376 = vmatprep.mubr.bf16.mxu0 0
      %1377 = vmatmul.mubr.bf16.gmra.mrb[0].mxu0 %v1320
      %v1378 = vpop.f32.mrb[0].mxu0
      %v1379 = vadd.f32 0.0, %v1378
      %v1380 = vpop.f32.mrb[0].mxu0
      %v1381 = vpop.f32.mrb[0].mxu0
      %v1382 = vadd.f32 0.0, %v1381
      %v1383 = vpop.f32.mrb[0].mxu0
      %1384 = vmatprep.mubr.bf16.mxu0 0
      %1385 = vmatmul.mubr.bf16.gmra.mrb[0].mxu0 %v1323
      %v1386 = vpop.f32.mrb[0].mxu0
      %v1387 = vadd.f32 0.0, %v1386
      %v1388 = vpop.f32.mrb[0].mxu0
      %v1389 = vpop.f32.mrb[0].mxu0
      %v1390 = vadd.f32 0.0, %v1389
      %v1391 = vpop.f32.mrb[0].mxu0
      %1392 = vmatprep.mubr.bf16.mxu0 0
      %1393 = vmatmul.mubr.bf16.gmra.mrb[0].mxu0 %v1326
      %v1394 = vpop.f32.mrb[0].mxu0
      %v1395 = vadd.f32 0.0, %v1394
      %v1396 = vpop.f32.mrb[0].mxu0
      %v1397 = vpop.f32.mrb[0].mxu0
      %v1398 = vadd.f32 0.0, %v1397
      %v1399 = vpop.f32.mrb[0].mxu0
      %1400 = vdwg.mxu0
      %v1401 = vadd.f32 %v1255, %v1363
      %v1402 = vadd.f32 %v1256, %v1366
      %v1403 = vadd.f32 %v1257, %v1371
      %v1404 = vadd.f32 %v1258, %v1374
      %v1405 = vadd.f32 %v1259, %v1379
      %v1406 = vadd.f32 %v1260, %v1382
      %v1407 = vadd.f32 %v1261, %v1387
      %v1408 = vadd.f32 %v1262, %v1390
      %v1409 = vadd.f32 %v1263, %v1395
      %v1410 = vadd.f32 %v1264, %v1398
      %v1411 = vld [vmem:[#allocation2 + $0xb] sm:$0xff]
      %v1412 = vld [vmem:[#allocation2 + $0x13] sm:$0xff]
      %v1413 = vld [vmem:[#allocation2 + $0x1b] sm:$0xff]
      %v1414 = vld [vmem:[#allocation2 + $0x23] sm:$0xff]
      %v1415 = vld [vmem:[#allocation2 + $0x2b] sm:$0xff]
      %v1416 = vld [vmem:[#allocation2 + $0x33] sm:$0xff]
      %v1417 = vld [vmem:[#allocation2 + $0x3b] sm:$0xff]
      %v1418 = vld [vmem:[#allocation2 + $0x43] sm:$0xff]
      %v1419 = vld [vmem:[#allocation2 + $0x4b] sm:$0xff]
      %v1420 = vld [vmem:[#allocation2 + $0x53] sm:$0xff]
      %v1421 = vpack.c.bf16 %v1412, %v1411
      %v1422 = vpack.c.bf16 %v1414, %v1413
      %v1423 = vpack.c.bf16 %v1416, %v1415
      %v1424 = vpack.c.bf16 %v1418, %v1417
      %v1425 = vpack.c.bf16 %v1420, %v1419
      %s1426 = scalar_lea.vmem %s3, 128
      %v1427 = vld [vmem:[%s1426] sm:$0xf]
      %v1428 = vld [vmem:[%s1426 + $0x4] sm:$0xf]
      %v1429 = vld [vmem:[%s1426 + $0x8] sm:$0xf]
      %v1430 = vld [vmem:[%s1426 + $0xc] sm:$0xf]
      %v1431 = vld [vmem:[%s1426 + $0x10] sm:$0xf]
      %v1432 = vld [vmem:[%s1426 + $0x14] sm:$0xf]
      %v1433 = vld [vmem:[%s1426 + $0x18] sm:$0xf]
      %v1434 = vld [vmem:[%s1426 + $0x1c] sm:$0xf]
      %v1443 = vunpack.c.l.b16 %v1427
      %v1444 = vunpack.c.l.b16 %v1428
      %v1445 = vunpack.c.l.b16 %v1429
      %v1446 = vunpack.c.l.b16 %v1430
      %v1447 = vunpack.c.l.b16 %v1431
      %v1448 = vunpack.c.l.b16 %v1432
      %v1449 = vunpack.c.l.b16 %v1433
      %v1450 = vunpack.c.l.b16 %v1434
      %v1451 = vpack.c.b16 %v1444, %v1443
      %v1452 = vpack.c.b16 %v1446, %v1445
      %v1453 = vpack.c.b16 %v1448, %v1447
      %v1454 = vpack.c.b16 %v1450, %v1449
      %v1460 = vsel %vm826, %v1421, 0
      %v1463 = vsel %vm826, %v1422, 0
      %v1466 = vsel %vm826, %v1423, 0
      %v1469 = vsel %vm826, %v1424, 0
      %v1472 = vsel %vm826, %v1425, 0
      %1474 = vmatprep.subr.bf16.mxu0 0
      %1475 = vmatpush1.bf16.msra.mxu0 %v1451
      %1476 = vmatprep.subr.bf16.mxu0 0
      %1477 = vmatpush1.bf16.msra.mxu0 %v1452
      %1478 = vmatprep.subr.bf16.mxu0 0
      %1479 = vmatpush1.bf16.msra.mxu0 %v1453
      %1480 = vmatprep.subr.bf16.mxu0 0
      %1481 = vmatpush1.bf16.msra.mxu0 %v1454
      %1482 = vmatprep.subr.bf16.mxu0 0
      %1483 = vmatpush1.bf16.msra.mxu0 0
      %1484 = vmatprep.subr.bf16.mxu0 0
      %1485 = vmatpush1.bf16.msra.mxu0 0
      %1486 = vmatprep.subr.bf16.mxu0 0
      %1487 = vmatpush1.bf16.msra.mxu0 0
      %1488 = vmatprep.subr.bf16.mxu0 0
      %1489 = vmatpush1.bf16.msra.mxu0 0
      %1490 = vmatprep.subr.bf16.mxu0 0
      %1491 = vmatpush1.bf16.msra.mxu0 0
      %1492 = vmatprep.subr.bf16.mxu0 0
      %1493 = vmatpush1.bf16.msra.mxu0 0
      %1494 = vmatprep.subr.bf16.mxu0 0
      %1495 = vmatpush1.bf16.msra.mxu0 0
      %1496 = vmatprep.subr.bf16.mxu0 0
      %1497 = vmatpush1.bf16.msra.mxu0 0
      %1498 = vmatprep.subr.bf16.mxu0 0
      %1499 = vmatpush1.bf16.msra.mxu0 0
      %1500 = vmatprep.subr.bf16.mxu0 0
      %1501 = vmatpush1.bf16.msra.mxu0 0
      %1502 = vmatprep.subr.bf16.mxu0 0
      %1503 = vmatpush1.bf16.msra.mxu0 0
      %1504 = vmatprep.subr.bf16.mxu0 0
      %1505 = vmatpush1.bf16.msra.mxu0 0
      %1506 = vmatprep.mubr.bf16.mxu0 0
      %1507 = vmatmul.mubr.bf16.gmra.mrb[0].mxu0 %v1460
      %v1508 = vpop.f32.mrb[0].mxu0
      %v1509 = vadd.f32 0.0, %v1508
      %v1510 = vpop.f32.mrb[0].mxu0
      %v1511 = vpop.f32.mrb[0].mxu0
      %v1512 = vadd.f32 0.0, %v1511
      %v1513 = vpop.f32.mrb[0].mxu0
      %1514 = vmatprep.mubr.bf16.mxu0 0
      %1515 = vmatmul.mubr.bf16.gmra.mrb[0].mxu0 %v1463
      %v1516 = vpop.f32.mrb[0].mxu0
      %v1517 = vadd.f32 0.0, %v1516
      %v1518 = vpop.f32.mrb[0].mxu0
      %v1519 = vpop.f32.mrb[0].mxu0
      %v1520 = vadd.f32 0.0, %v1519
      %v1521 = vpop.f32.mrb[0].mxu0
      %1522 = vmatprep.mubr.bf16.mxu0 0
      %1523 = vmatmul.mubr.bf16.gmra.mrb[0].mxu0 %v1466
      %v1524 = vpop.f32.mrb[0].mxu0
      %v1525 = vadd.f32 0.0, %v1524
      %v1526 = vpop.f32.mrb[0].mxu0
      %v1527 = vpop.f32.mrb[0].mxu0
      %v1528 = vadd.f32 0.0, %v1527
      %v1529 = vpop.f32.mrb[0].mxu0
      %1530 = vmatprep.mubr.bf16.mxu0 0
      %1531 = vmatmul.mubr.bf16.gmra.mrb[0].mxu0 %v1469
      %v1532 = vpop.f32.mrb[0].mxu0
      %v1533 = vadd.f32 0.0, %v1532
      %v1534 = vpop.f32.mrb[0].mxu0
      %v1535 = vpop.f32.mrb[0].mxu0
      %v1536 = vadd.f32 0.0, %v1535
      %v1537 = vpop.f32.mrb[0].mxu0
      %1538 = vmatprep.mubr.bf16.mxu0 0
      %1539 = vmatmul.mubr.bf16.gmra.mrb[0].mxu0 %v1472
      %v1540 = vpop.f32.mrb[0].mxu0
      %v1541 = vadd.f32 0.0, %v1540
      %v1542 = vpop.f32.mrb[0].mxu0
      %v1543 = vpop.f32.mrb[0].mxu0
      %v1544 = vadd.f32 0.0, %v1543
      %v1545 = vpop.f32.mrb[0].mxu0
      %1546 = vdwg.mxu0
      %v1547 = vadd.f32 %v1401, %v1509
      %v1548 = vadd.f32 %v1402, %v1512
      %v1549 = vadd.f32 %v1403, %v1517
      %v1550 = vadd.f32 %v1404, %v1520
      %v1551 = vadd.f32 %v1405, %v1525
      %v1552 = vadd.f32 %v1406, %v1528
      %v1553 = vadd.f32 %v1407, %v1533
      %v1554 = vadd.f32 %v1408, %v1536
      %v1555 = vadd.f32 %v1409, %v1541
      %v1556 = vadd.f32 %v1410, %v1544
      %v1557 = vld [vmem:[#allocation2 + $0xc] sm:$0xff]
      %v1558 = vld [vmem:[#allocation2 + $0x14] sm:$0xff]
      %v1559 = vld [vmem:[#allocation2 + $0x1c] sm:$0xff]
      %v1560 = vld [vmem:[#allocation2 + $0x24] sm:$0xff]
      %v1561 = vld [vmem:[#allocation2 + $0x2c] sm:$0xff]
      %v1562 = vld [vmem:[#allocation2 + $0x34] sm:$0xff]
      %v1563 = vld [vmem:[#allocation2 + $0x3c] sm:$0xff]
      %v1564 = vld [vmem:[#allocation2 + $0x44] sm:$0xff]
      %v1565 = vld [vmem:[#allocation2 + $0x4c] sm:$0xff]
      %v1566 = vld [vmem:[#allocation2 + $0x54] sm:$0xff]
      %v1567 = vpack.c.bf16 %v1558, %v1557
      %v1568 = vpack.c.bf16 %v1560, %v1559
      %v1569 = vpack.c.bf16 %v1562, %v1561
      %v1570 = vpack.c.bf16 %v1564, %v1563
      %v1571 = vpack.c.bf16 %v1566, %v1565
      %s1572 = scalar_lea.vmem %s3, 160
      %v1573 = vld [vmem:[%s1572] sm:$0xf]
      %v1574 = vld [vmem:[%s1572 + $0x4] sm:$0xf]
      %v1575 = vld [vmem:[%s1572 + $0x8] sm:$0xf]
      %v1576 = vld [vmem:[%s1572 + $0xc] sm:$0xf]
      %v1577 = vld [vmem:[%s1572 + $0x10] sm:$0xf]
      %v1578 = vld [vmem:[%s1572 + $0x14] sm:$0xf]
      %v1579 = vld [vmem:[%s1572 + $0x18] sm:$0xf]
      %v1580 = vld [vmem:[%s1572 + $0x1c] sm:$0xf]
      %v1589 = vunpack.c.l.b16 %v1573
      %v1590 = vunpack.c.l.b16 %v1574
      %v1591 = vunpack.c.l.b16 %v1575
      %v1592 = vunpack.c.l.b16 %v1576
      %v1593 = vunpack.c.l.b16 %v1577
      %v1594 = vunpack.c.l.b16 %v1578
      %v1595 = vunpack.c.l.b16 %v1579
      %v1596 = vunpack.c.l.b16 %v1580
      %v1597 = vpack.c.b16 %v1590, %v1589
      %v1598 = vpack.c.b16 %v1592, %v1591
      %v1599 = vpack.c.b16 %v1594, %v1593
      %v1600 = vpack.c.b16 %v1596, %v1595
      %v1606 = vsel %vm826, %v1567, 0
      %v1609 = vsel %vm826, %v1568, 0
      %v1612 = vsel %vm826, %v1569, 0
      %v1615 = vsel %vm826, %v1570, 0
      %v1618 = vsel %vm826, %v1571, 0
      %1620 = vmatprep.subr.bf16.mxu0 0
      %1621 = vmatpush1.bf16.msra.mxu0 %v1597
      %1622 = vmatprep.subr.bf16.mxu0 0
      %1623 = vmatpush1.bf16.msra.mxu0 %v1598
      %1624 = vmatprep.subr.bf16.mxu0 0
      %1625 = vmatpush1.bf16.msra.mxu0 %v1599
      %1626 = vmatprep.subr.bf16.mxu0 0
      %1627 = vmatpush1.bf16.msra.mxu0 %v1600
      %1628 = vmatprep.subr.bf16.mxu0 0
      %1629 = vmatpush1.bf16.msra.mxu0 0
      %1630 = vmatprep.subr.bf16.mxu0 0
      %1631 = vmatpush1.bf16.msra.mxu0 0
      %1632 = vmatprep.subr.bf16.mxu0 0
      %1633 = vmatpush1.bf16.msra.mxu0 0
      %1634 = vmatprep.subr.bf16.mxu0 0
      %1635 = vmatpush1.bf16.msra.mxu0 0
      %1636 = vmatprep.subr.bf16.mxu0 0
      %1637 = vmatpush1.bf16.msra.mxu0 0
      %1638 = vmatprep.subr.bf16.mxu0 0
      %1639 = vmatpush1.bf16.msra.mxu0 0
      %1640 = vmatprep.subr.bf16.mxu0 0
      %1641 = vmatpush1.bf16.msra.mxu0 0
      %1642 = vmatprep.subr.bf16.mxu0 0
      %1643 = vmatpush1.bf16.msra.mxu0 0
      %1644 = vmatprep.subr.bf16.mxu0 0
      %1645 = vmatpush1.bf16.msra.mxu0 0
      %1646 = vmatprep.subr.bf16.mxu0 0
      %1647 = vmatpush1.bf16.msra.mxu0 0
      %1648 = vmatprep.subr.bf16.mxu0 0
      %1649 = vmatpush1.bf16.msra.mxu0 0
      %1650 = vmatprep.subr.bf16.mxu0 0
      %1651 = vmatpush1.bf16.msra.mxu0 0
      %1652 = vmatprep.mubr.bf16.mxu0 0
      %1653 = vmatmul.mubr.bf16.gmra.mrb[0].mxu0 %v1606
      %v1654 = vpop.f32.mrb[0].mxu0
      %v1655 = vadd.f32 0.0, %v1654
      %v1656 = vpop.f32.mrb[0].mxu0
      %v1657 = vpop.f32.mrb[0].mxu0
      %v1658 = vadd.f32 0.0, %v1657
      %v1659 = vpop.f32.mrb[0].mxu0
      %1660 = vmatprep.mubr.bf16.mxu0 0
      %1661 = vmatmul.mubr.bf16.gmra.mrb[0].mxu0 %v1609
      %v1662 = vpop.f32.mrb[0].mxu0
      %v1663 = vadd.f32 0.0, %v1662
      %v1664 = vpop.f32.mrb[0].mxu0
      %v1665 = vpop.f32.mrb[0].mxu0
      %v1666 = vadd.f32 0.0, %v1665
      %v1667 = vpop.f32.mrb[0].mxu0
      %1668 = vmatprep.mubr.bf16.mxu0 0
      %1669 = vmatmul.mubr.bf16.gmra.mrb[0].mxu0 %v1612
      %v1670 = vpop.f32.mrb[0].mxu0
      %v1671 = vadd.f32 0.0, %v1670
      %v1672 = vpop.f32.mrb[0].mxu0
      %v1673 = vpop.f32.mrb[0].mxu0
      %v1674 = vadd.f32 0.0, %v1673
      %v1675 = vpop.f32.mrb[0].mxu0
      %1676 = vmatprep.mubr.bf16.mxu0 0
      %1677 = vmatmul.mubr.bf16.gmra.mrb[0].mxu0 %v1615
      %v1678 = vpop.f32.mrb[0].mxu0
      %v1679 = vadd.f32 0.0, %v1678
      %v1680 = vpop.f32.mrb[0].mxu0
      %v1681 = vpop.f32.mrb[0].mxu0
      %v1682 = vadd.f32 0.0, %v1681
      %v1683 = vpop.f32.mrb[0].mxu0
      %1684 = vmatprep.mubr.bf16.mxu0 0
      %1685 = vmatmul.mubr.bf16.gmra.mrb[0].mxu0 %v1618
      %v1686 = vpop.f32.mrb[0].mxu0
      %v1687 = vadd.f32 0.0, %v1686
      %v1688 = vpop.f32.mrb[0].mxu0
      %v1689 = vpop.f32.mrb[0].mxu0
      %v1690 = vadd.f32 0.0, %v1689
      %v1691 = vpop.f32.mrb[0].mxu0
      %1692 = vdwg.mxu0
      %v1693 = vadd.f32 %v1547, %v1655
      %v1694 = vadd.f32 %v1548, %v1658
      %v1695 = vadd.f32 %v1549, %v1663
      %v1696 = vadd.f32 %v1550, %v1666
      %v1697 = vadd.f32 %v1551, %v1671
      %v1698 = vadd.f32 %v1552, %v1674
      %v1699 = vadd.f32 %v1553, %v1679
      %v1700 = vadd.f32 %v1554, %v1682
      %v1701 = vadd.f32 %v1555, %v1687
      %v1702 = vadd.f32 %v1556, %v1690
      %v1703 = vld [vmem:[#allocation2 + $0x14] sm:$0xff]
      %v1704 = vld [vmem:[#allocation2 + $0x1c] sm:$0xff]
      %v1705 = vld [vmem:[#allocation2 + $0x24] sm:$0xff]
      %v1706 = vld [vmem:[#allocation2 + $0x2c] sm:$0xff]
      %v1707 = vld [vmem:[#allocation2 + $0x34] sm:$0xff]
      %v1708 = vld [vmem:[#allocation2 + $0x3c] sm:$0xff]
      %v1709 = vld [vmem:[#allocation2 + $0x44] sm:$0xff]
      %v1710 = vld [vmem:[#allocation2 + $0x4c] sm:$0xff]
      %v1711 = vld [vmem:[#allocation2 + $0x54] sm:$0xff]
      %v1712 = vld [vmem:[#allocation2 + $0x5c] sm:$0xff]
      %v1713 = vpack.c.bf16 %v1704, %v1703
      %v1714 = vpack.c.bf16 %v1706, %v1705
      %v1715 = vpack.c.bf16 %v1708, %v1707
      %v1716 = vpack.c.bf16 %v1710, %v1709
      %v1717 = vpack.c.bf16 %v1712, %v1711
      %s1718 = scalar_lea.vmem %s3, 192
      %v1719 = vld [vmem:[%s1718] sm:$0xf]
      %v1720 = vld [vmem:[%s1718 + $0x4] sm:$0xf]
      %v1721 = vld [vmem:[%s1718 + $0x8] sm:$0xf]
      %v1722 = vld [vmem:[%s1718 + $0xc] sm:$0xf]
      %v1723 = vld [vmem:[%s1718 + $0x10] sm:$0xf]
      %v1724 = vld [vmem:[%s1718 + $0x14] sm:$0xf]
      %v1725 = vld [vmem:[%s1718 + $0x18] sm:$0xf]
      %v1726 = vld [vmem:[%s1718 + $0x1c] sm:$0xf]
      %v1735 = vunpack.c.l.b16 %v1719
      %v1736 = vunpack.c.l.b16 %v1720
      %v1737 = vunpack.c.l.b16 %v1721
      %v1738 = vunpack.c.l.b16 %v1722
      %v1739 = vunpack.c.l.b16 %v1723
      %v1740 = vunpack.c.l.b16 %v1724
      %v1741 = vunpack.c.l.b16 %v1725
      %v1742 = vunpack.c.l.b16 %v1726
      %v1743 = vpack.c.b16 %v1736, %v1735
      %v1744 = vpack.c.b16 %v1738, %v1737
      %v1745 = vpack.c.b16 %v1740, %v1739
      %v1746 = vpack.c.b16 %v1742, %v1741
      %v1752 = vsel %vm826, %v1713, 0
      %v1755 = vsel %vm826, %v1714, 0
      %v1758 = vsel %vm826, %v1715, 0
      %v1761 = vsel %vm826, %v1716, 0
      %v1764 = vsel %vm826, %v1717, 0
      %1766 = vmatprep.subr.bf16.mxu0 0
      %1767 = vmatpush1.bf16.msra.mxu0 %v1743
      %1768 = vmatprep.subr.bf16.mxu0 0
      %1769 = vmatpush1.bf16.msra.mxu0 %v1744
      %1770 = vmatprep.subr.bf16.mxu0 0
      %1771 = vmatpush1.bf16.msra.mxu0 %v1745
      %1772 = vmatprep.subr.bf16.mxu0 0
      %1773 = vmatpush1.bf16.msra.mxu0 %v1746
      %1774 = vmatprep.subr.bf16.mxu0 0
      %1775 = vmatpush1.bf16.msra.mxu0 0
      %1776 = vmatprep.subr.bf16.mxu0 0
      %1777 = vmatpush1.bf16.msra.mxu0 0
      %1778 = vmatprep.subr.bf16.mxu0 0
      %1779 = vmatpush1.bf16.msra.mxu0 0
      %1780 = vmatprep.subr.bf16.mxu0 0
      %1781 = vmatpush1.bf16.msra.mxu0 0
      %1782 = vmatprep.subr.bf16.mxu0 0
      %1783 = vmatpush1.bf16.msra.mxu0 0
      %1784 = vmatprep.subr.bf16.mxu0 0
      %1785 = vmatpush1.bf16.msra.mxu0 0
      %1786 = vmatprep.subr.bf16.mxu0 0
      %1787 = vmatpush1.bf16.msra.mxu0 0
      %1788 = vmatprep.subr.bf16.mxu0 0
      %1789 = vmatpush1.bf16.msra.mxu0 0
      %1790 = vmatprep.subr.bf16.mxu0 0
      %1791 = vmatpush1.bf16.msra.mxu0 0
      %1792 = vmatprep.subr.bf16.mxu0 0
      %1793 = vmatpush1.bf16.msra.mxu0 0
      %1794 = vmatprep.subr.bf16.mxu0 0
      %1795 = vmatpush1.bf16.msra.mxu0 0
      %1796 = vmatprep.subr.bf16.mxu0 0
      %1797 = vmatpush1.bf16.msra.mxu0 0
      %1798 = vmatprep.mubr.bf16.mxu0 0
      %1799 = vmatmul.mubr.bf16.gmra.mrb[0].mxu0 %v1752
      %v1800 = vpop.f32.mrb[0].mxu0
      %v1801 = vadd.f32 0.0, %v1800
      %v1802 = vpop.f32.mrb[0].mxu0
      %v1803 = vpop.f32.mrb[0].mxu0
      %v1804 = vadd.f32 0.0, %v1803
      %v1805 = vpop.f32.mrb[0].mxu0
      %1806 = vmatprep.mubr.bf16.mxu0 0
      %1807 = vmatmul.mubr.bf16.gmra.mrb[0].mxu0 %v1755
      %v1808 = vpop.f32.mrb[0].mxu0
      %v1809 = vadd.f32 0.0, %v1808
      %v1810 = vpop.f32.mrb[0].mxu0
      %v1811 = vpop.f32.mrb[0].mxu0
      %v1812 = vadd.f32 0.0, %v1811
      %v1813 = vpop.f32.mrb[0].mxu0
      %1814 = vmatprep.mubr.bf16.mxu0 0
      %1815 = vmatmul.mubr.bf16.gmra.mrb[0].mxu0 %v1758
      %v1816 = vpop.f32.mrb[0].mxu0
      %v1817 = vadd.f32 0.0, %v1816
      %v1818 = vpop.f32.mrb[0].mxu0
      %v1819 = vpop.f32.mrb[0].mxu0
      %v1820 = vadd.f32 0.0, %v1819
      %v1821 = vpop.f32.mrb[0].mxu0
      %1822 = vmatprep.mubr.bf16.mxu0 0
      %1823 = vmatmul.mubr.bf16.gmra.mrb[0].mxu0 %v1761
      %v1824 = vpop.f32.mrb[0].mxu0
      %v1825 = vadd.f32 0.0, %v1824
      %v1826 = vpop.f32.mrb[0].mxu0
      %v1827 = vpop.f32.mrb[0].mxu0
      %v1828 = vadd.f32 0.0, %v1827
      %v1829 = vpop.f32.mrb[0].mxu0
      %1830 = vmatprep.mubr.bf16.mxu0 0
      %1831 = vmatmul.mubr.bf16.gmra.mrb[0].mxu0 %v1764
      %v1832 = vpop.f32.mrb[0].mxu0
      %v1833 = vadd.f32 0.0, %v1832
      %v1834 = vpop.f32.mrb[0].mxu0
      %v1835 = vpop.f32.mrb[0].mxu0
      %v1836 = vadd.f32 0.0, %v1835
      %v1837 = vpop.f32.mrb[0].mxu0
      %1838 = vdwg.mxu0
      %v1839 = vadd.f32 %v1693, %v1801
      %v1840 = vadd.f32 %v1694, %v1804
      %v1841 = vadd.f32 %v1695, %v1809
      %v1842 = vadd.f32 %v1696, %v1812
      %v1843 = vadd.f32 %v1697, %v1817
      %v1844 = vadd.f32 %v1698, %v1820
      %v1845 = vadd.f32 %v1699, %v1825
      %v1846 = vadd.f32 %v1700, %v1828
      %v1847 = vadd.f32 %v1701, %v1833
      %v1848 = vadd.f32 %v1702, %v1836
      %v1849 = vld [vmem:[#allocation2 + $0x15] sm:$0xff]
      %v1850 = vld [vmem:[#allocation2 + $0x1d] sm:$0xff]
      %v1851 = vld [vmem:[#allocation2 + $0x25] sm:$0xff]
      %v1852 = vld [vmem:[#allocation2 + $0x2d] sm:$0xff]
      %v1853 = vld [vmem:[#allocation2 + $0x35] sm:$0xff]
      %v1854 = vld [vmem:[#allocation2 + $0x3d] sm:$0xff]
      %v1855 = vld [vmem:[#allocation2 + $0x45] sm:$0xff]
      %v1856 = vld [vmem:[#allocation2 + $0x4d] sm:$0xff]
      %v1857 = vld [vmem:[#allocation2 + $0x55] sm:$0xff]
      %v1858 = vld [vmem:[#allocation2 + $0x5d] sm:$0xff]
      %v1859 = vpack.c.bf16 %v1850, %v1849
      %v1860 = vpack.c.bf16 %v1852, %v1851
      %v1861 = vpack.c.bf16 %v1854, %v1853
      %v1862 = vpack.c.bf16 %v1856, %v1855
      %v1863 = vpack.c.bf16 %v1858, %v1857
      %s1864 = scalar_lea.vmem %s3, 224
      %v1865 = vld [vmem:[%s1864] sm:$0xf]
      %v1866 = vld [vmem:[%s1864 + $0x4] sm:$0xf]
      %v1867 = vld [vmem:[%s1864 + $0x8] sm:$0xf]
      %v1868 = vld [vmem:[%s1864 + $0xc] sm:$0xf]
      %v1869 = vld [vmem:[%s1864 + $0x10] sm:$0xf]
      %v1870 = vld [vmem:[%s1864 + $0x14] sm:$0xf]
      %v1871 = vld [vmem:[%s1864 + $0x18] sm:$0xf]
      %v1872 = vld [vmem:[%s1864 + $0x1c] sm:$0xf]
      %v1881 = vunpack.c.l.b16 %v1865
      %v1882 = vunpack.c.l.b16 %v1866
      %v1883 = vunpack.c.l.b16 %v1867
      %v1884 = vunpack.c.l.b16 %v1868
      %v1885 = vunpack.c.l.b16 %v1869
      %v1886 = vunpack.c.l.b16 %v1870
      %v1887 = vunpack.c.l.b16 %v1871
      %v1888 = vunpack.c.l.b16 %v1872
      %v1889 = vpack.c.b16 %v1882, %v1881
      %v1890 = vpack.c.b16 %v1884, %v1883
      %v1891 = vpack.c.b16 %v1886, %v1885
      %v1892 = vpack.c.b16 %v1888, %v1887
      %v1898 = vsel %vm826, %v1859, 0
      %v1901 = vsel %vm826, %v1860, 0
      %v1904 = vsel %vm826, %v1861, 0
      %v1907 = vsel %vm826, %v1862, 0
      %v1910 = vsel %vm826, %v1863, 0
      %1912 = vmatprep.subr.bf16.mxu0 0
      %1913 = vmatpush1.bf16.msra.mxu0 %v1889
      %1914 = vmatprep.subr.bf16.mxu0 0
      %1915 = vmatpush1.bf16.msra.mxu0 %v1890
      %1916 = vmatprep.subr.bf16.mxu0 0
      %1917 = vmatpush1.bf16.msra.mxu0 %v1891
      %1918 = vmatprep.subr.bf16.mxu0 0
      %1919 = vmatpush1.bf16.msra.mxu0 %v1892
      %1920 = vmatprep.subr.bf16.mxu0 0
      %1921 = vmatpush1.bf16.msra.mxu0 0
      %1922 = vmatprep.subr.bf16.mxu0 0
      %1923 = vmatpush1.bf16.msra.mxu0 0
      %1924 = vmatprep.subr.bf16.mxu0 0
      %1925 = vmatpush1.bf16.msra.mxu0 0
      %1926 = vmatprep.subr.bf16.mxu0 0
      %1927 = vmatpush1.bf16.msra.mxu0 0
      %1928 = vmatprep.subr.bf16.mxu0 0
      %1929 = vmatpush1.bf16.msra.mxu0 0
      %1930 = vmatprep.subr.bf16.mxu0 0
      %1931 = vmatpush1.bf16.msra.mxu0 0
      %1932 = vmatprep.subr.bf16.mxu0 0
      %1933 = vmatpush1.bf16.msra.mxu0 0
      %1934 = vmatprep.subr.bf16.mxu0 0
      %1935 = vmatpush1.bf16.msra.mxu0 0
      %1936 = vmatprep.subr.bf16.mxu0 0
      %1937 = vmatpush1.bf16.msra.mxu0 0
      %1938 = vmatprep.subr.bf16.mxu0 0
      %1939 = vmatpush1.bf16.msra.mxu0 0
      %1940 = vmatprep.subr.bf16.mxu0 0
      %1941 = vmatpush1.bf16.msra.mxu0 0
      %1942 = vmatprep.subr.bf16.mxu0 0
      %1943 = vmatpush1.bf16.msra.mxu0 0
      %1944 = vmatprep.mubr.bf16.mxu0 0
      %1945 = vmatmul.mubr.bf16.gmra.mrb[0].mxu0 %v1898
      %v1946 = vpop.f32.mrb[0].mxu0
      %v1947 = vadd.f32 0.0, %v1946
      %v1948 = vpop.f32.mrb[0].mxu0
      %v1949 = vpop.f32.mrb[0].mxu0
      %v1950 = vadd.f32 0.0, %v1949
      %v1951 = vpop.f32.mrb[0].mxu0
      %1952 = vmatprep.mubr.bf16.mxu0 0
      %1953 = vmatmul.mubr.bf16.gmra.mrb[0].mxu0 %v1901
      %v1954 = vpop.f32.mrb[0].mxu0
      %v1955 = vadd.f32 0.0, %v1954
      %v1956 = vpop.f32.mrb[0].mxu0
      %v1957 = vpop.f32.mrb[0].mxu0
      %v1958 = vadd.f32 0.0, %v1957
      %v1959 = vpop.f32.mrb[0].mxu0
      %1960 = vmatprep.mubr.bf16.mxu0 0
      %1961 = vmatmul.mubr.bf16.gmra.mrb[0].mxu0 %v1904
      %v1962 = vpop.f32.mrb[0].mxu0
      %v1963 = vadd.f32 0.0, %v1962
      %v1964 = vpop.f32.mrb[0].mxu0
      %v1965 = vpop.f32.mrb[0].mxu0
      %v1966 = vadd.f32 0.0, %v1965
      %v1967 = vpop.f32.mrb[0].mxu0
      %1968 = vmatprep.mubr.bf16.mxu0 0
      %1969 = vmatmul.mubr.bf16.gmra.mrb[0].mxu0 %v1907
      %v1970 = vpop.f32.mrb[0].mxu0
      %v1971 = vadd.f32 0.0, %v1970
      %v1972 = vpop.f32.mrb[0].mxu0
      %v1973 = vpop.f32.mrb[0].mxu0
      %v1974 = vadd.f32 0.0, %v1973
      %v1975 = vpop.f32.mrb[0].mxu0
      %1976 = vmatprep.mubr.bf16.mxu0 0
      %1977 = vmatmul.mubr.bf16.gmra.mrb[0].mxu0 %v1910
      %v1978 = vpop.f32.mrb[0].mxu0
      %v1979 = vadd.f32 0.0, %v1978
      %v1980 = vpop.f32.mrb[0].mxu0
      %v1981 = vpop.f32.mrb[0].mxu0
      %v1982 = vadd.f32 0.0, %v1981
      %v1983 = vpop.f32.mrb[0].mxu0
      %1984 = vdwg.mxu0
      %v1985 = vadd.f32 %v1839, %v1947
      %v1986 = vadd.f32 %v1840, %v1950
      %v1987 = vadd.f32 %v1841, %v1955
      %v1988 = vadd.f32 %v1842, %v1958
      %v1989 = vadd.f32 %v1843, %v1963
      %v1990 = vadd.f32 %v1844, %v1966
      %v1991 = vadd.f32 %v1845, %v1971
      %v1992 = vadd.f32 %v1846, %v1974
      %v1993 = vadd.f32 %v1847, %v1979
      %v1994 = vadd.f32 %v1848, %v1982
      %v1995 = vld [vmem:[#allocation2 + $0x16] sm:$0xff]
      %v1996 = vld [vmem:[#allocation2 + $0x1e] sm:$0xff]
      %v1997 = vld [vmem:[#allocation2 + $0x26] sm:$0xff]
      %v1998 = vld [vmem:[#allocation2 + $0x2e] sm:$0xff]
      %v1999 = vld [vmem:[#allocation2 + $0x36] sm:$0xff]
      %v2000 = vld [vmem:[#allocation2 + $0x3e] sm:$0xff]
      %v2001 = vld [vmem:[#allocation2 + $0x46] sm:$0xff]
      %v2002 = vld [vmem:[#allocation2 + $0x4e] sm:$0xff]
      %v2003 = vld [vmem:[#allocation2 + $0x56] sm:$0xff]
      %v2004 = vld [vmem:[#allocation2 + $0x5e] sm:$0xff]
      %v2005 = vpack.c.bf16 %v1996, %v1995
      %v2006 = vpack.c.bf16 %v1998, %v1997
      %v2007 = vpack.c.bf16 %v2000, %v1999
      %v2008 = vpack.c.bf16 %v2002, %v2001
      %v2009 = vpack.c.bf16 %v2004, %v2003
      %s2010 = scalar_lea.vmem %s3, 256
      %v2011 = vld [vmem:[%s2010] sm:$0xf]
      %v2012 = vld [vmem:[%s2010 + $0x4] sm:$0xf]
      %v2013 = vld [vmem:[%s2010 + $0x8] sm:$0xf]
      %v2014 = vld [vmem:[%s2010 + $0xc] sm:$0xf]
      %v2015 = vld [vmem:[%s2010 + $0x10] sm:$0xf]
      %v2016 = vld [vmem:[%s2010 + $0x14] sm:$0xf]
      %v2017 = vld [vmem:[%s2010 + $0x18] sm:$0xf]
      %v2018 = vld [vmem:[%s2010 + $0x1c] sm:$0xf]
      %v2027 = vunpack.c.l.b16 %v2011
      %v2028 = vunpack.c.l.b16 %v2012
      %v2029 = vunpack.c.l.b16 %v2013
      %v2030 = vunpack.c.l.b16 %v2014
      %v2031 = vunpack.c.l.b16 %v2015
      %v2032 = vunpack.c.l.b16 %v2016
      %v2033 = vunpack.c.l.b16 %v2017
      %v2034 = vunpack.c.l.b16 %v2018
      %v2035 = vpack.c.b16 %v2028, %v2027
      %v2036 = vpack.c.b16 %v2030, %v2029
      %v2037 = vpack.c.b16 %v2032, %v2031
      %v2038 = vpack.c.b16 %v2034, %v2033
      %v2044 = vsel %vm826, %v2005, 0
      %v2047 = vsel %vm826, %v2006, 0
      %v2050 = vsel %vm826, %v2007, 0
      %v2053 = vsel %vm826, %v2008, 0
      %v2056 = vsel %vm826, %v2009, 0
      %2058 = vmatprep.subr.bf16.mxu0 0
      %2059 = vmatpush1.bf16.msra.mxu0 %v2035
      %2060 = vmatprep.subr.bf16.mxu0 0
      %2061 = vmatpush1.bf16.msra.mxu0 %v2036
      %2062 = vmatprep.subr.bf16.mxu0 0
      %2063 = vmatpush1.bf16.msra.mxu0 %v2037
      %2064 = vmatprep.subr.bf16.mxu0 0
      %2065 = vmatpush1.bf16.msra.mxu0 %v2038
      %2066 = vmatprep.subr.bf16.mxu0 0
      %2067 = vmatpush1.bf16.msra.mxu0 0
      %2068 = vmatprep.subr.bf16.mxu0 0
      %2069 = vmatpush1.bf16.msra.mxu0 0
      %2070 = vmatprep.subr.bf16.mxu0 0
      %2071 = vmatpush1.bf16.msra.mxu0 0
      %2072 = vmatprep.subr.bf16.mxu0 0
      %2073 = vmatpush1.bf16.msra.mxu0 0
      %2074 = vmatprep.subr.bf16.mxu0 0
      %2075 = vmatpush1.bf16.msra.mxu0 0
      %2076 = vmatprep.subr.bf16.mxu0 0
      %2077 = vmatpush1.bf16.msra.mxu0 0
      %2078 = vmatprep.subr.bf16.mxu0 0
      %2079 = vmatpush1.bf16.msra.mxu0 0
      %2080 = vmatprep.subr.bf16.mxu0 0
      %2081 = vmatpush1.bf16.msra.mxu0 0
      %2082 = vmatprep.subr.bf16.mxu0 0
      %2083 = vmatpush1.bf16.msra.mxu0 0
      %2084 = vmatprep.subr.bf16.mxu0 0
      %2085 = vmatpush1.bf16.msra.mxu0 0
      %2086 = vmatprep.subr.bf16.mxu0 0
      %2087 = vmatpush1.bf16.msra.mxu0 0
      %2088 = vmatprep.subr.bf16.mxu0 0
      %2089 = vmatpush1.bf16.msra.mxu0 0
      %2090 = vmatprep.mubr.bf16.mxu0 0
      %2091 = vmatmul.mubr.bf16.gmra.mrb[0].mxu0 %v2044
      %v2092 = vpop.f32.mrb[0].mxu0
      %v2093 = vadd.f32 0.0, %v2092
      %v2094 = vpop.f32.mrb[0].mxu0
      %v2095 = vpop.f32.mrb[0].mxu0
      %v2096 = vadd.f32 0.0, %v2095
      %v2097 = vpop.f32.mrb[0].mxu0
      %2098 = vmatprep.mubr.bf16.mxu0 0
      %2099 = vmatmul.mubr.bf16.gmra.mrb[0].mxu0 %v2047
      %v2100 = vpop.f32.mrb[0].mxu0
      %v2101 = vadd.f32 0.0, %v2100
      %v2102 = vpop.f32.mrb[0].mxu0
      %v2103 = vpop.f32.mrb[0].mxu0
      %v2104 = vadd.f32 0.0, %v2103
      %v2105 = vpop.f32.mrb[0].mxu0
      %2106 = vmatprep.mubr.bf16.mxu0 0
      %2107 = vmatmul.mubr.bf16.gmra.mrb[0].mxu0 %v2050
      %v2108 = vpop.f32.mrb[0].mxu0
      %v2109 = vadd.f32 0.0, %v2108
      %v2110 = vpop.f32.mrb[0].mxu0
      %v2111 = vpop.f32.mrb[0].mxu0
      %v2112 = vadd.f32 0.0, %v2111
      %v2113 = vpop.f32.mrb[0].mxu0
      %2114 = vmatprep.mubr.bf16.mxu0 0
      %2115 = vmatmul.mubr.bf16.gmra.mrb[0].mxu0 %v2053
      %v2116 = vpop.f32.mrb[0].mxu0
      %v2117 = vadd.f32 0.0, %v2116
      %v2118 = vpop.f32.mrb[0].mxu0
      %v2119 = vpop.f32.mrb[0].mxu0
      %v2120 = vadd.f32 0.0, %v2119
      %v2121 = vpop.f32.mrb[0].mxu0
      %2122 = vmatprep.mubr.bf16.mxu0 0
      %2123 = vmatmul.mubr.bf16.gmra.mrb[0].mxu0 %v2056
      %v2124 = vpop.f32.mrb[0].mxu0
      %v2125 = vadd.f32 0.0, %v2124
      %v2126 = vpop.f32.mrb[0].mxu0
      %v2127 = vpop.f32.mrb[0].mxu0
      %v2128 = vadd.f32 0.0, %v2127
      %v2129 = vpop.f32.mrb[0].mxu0
      %2130 = vdwg.mxu0
      %v2131 = vadd.f32 %v1985, %v2093
      %v2132 = vadd.f32 %v1986, %v2096
      %v2133 = vadd.f32 %v1987, %v2101
      %v2134 = vadd.f32 %v1988, %v2104
      %v2135 = vadd.f32 %v1989, %v2109
      %v2136 = vadd.f32 %v1990, %v2112
      %v2137 = vadd.f32 %v1991, %v2117
      %v2138 = vadd.f32 %v1992, %v2120
      %v2139 = vadd.f32 %v1993, %v2125
      %v2140 = vadd.f32 %v1994, %v2128
      %v2141 = vld [vmem:[%s4] sm:$0x1]
      %v2143 = vlaneseq
      %v2144 = vshrl.u32 %v2143, 7
      %v2145 = vsub.s32 0, %v2144
      %v2146 = vrot.slane %v2141, %v2145
      %v2148 = vadd.f32 %v2131, %v2146
      %v2149 = vadd.f32 %v2132, %v2146
      %v2150 = vadd.f32 %v2133, %v2146
      %v2151 = vadd.f32 %v2134, %v2146
      %v2152 = vadd.f32 %v2135, %v2146
      %v2153 = vadd.f32 %v2136, %v2146
      %v2154 = vadd.f32 %v2137, %v2146
      %v2155 = vadd.f32 %v2138, %v2146
      %v2156 = vadd.f32 %v2139, %v2146
      %v2157 = vadd.f32 %v2140, %v2146
      %v2158 = vmax.f32 %v2148, 0.0
      %v2159 = vmax.f32 %v2149, 0.0
      %v2160 = vmax.f32 %v2150, 0.0
      %v2161 = vmax.f32 %v2151, 0.0
      %v2162 = vmax.f32 %v2152, 0.0
      %v2163 = vmax.f32 %v2153, 0.0
      %v2164 = vmax.f32 %v2154, 0.0
      %v2165 = vmax.f32 %v2155, 0.0
      %v2166 = vmax.f32 %v2156, 0.0
      %v2167 = vmax.f32 %v2157, 0.0
      %2168 = vst [vmem:[#allocation3] sm:$0xff] 0.0
      %2169 = vst [vmem:[#allocation3 + $0x8] sm:$0xff] 0.0
      %2170 = vst [vmem:[#allocation3 + $0x10] sm:$0xff] 0.0
      %2171 = vst [vmem:[#allocation3 + $0x18] sm:$0xff] 0.0
      %2172 = vst [vmem:[#allocation3 + $0x20] sm:$0xff] 0.0
      %2173 = vst [vmem:[#allocation3 + $0x28] sm:$0xff] 0.0
      %2174 = vst [vmem:[#allocation3 + $0x30] sm:$0xff] 0.0
      %2175 = vst [vmem:[#allocation3 + $0x38] sm:$0xff] 0.0
      %2176 = vst [vmem:[#allocation3 + $0x40] sm:$0xff] 0.0
      %2177 = vst [vmem:[#allocation3 + $0x48] sm:$0xff] 0.0
      %2178 = vst [vmem:[#allocation3 + $0x50] sm:$0xff] 0.0
      %2179 = vst [vmem:[#allocation3 + $0x58] sm:$0xff] 0.0
      %2180 = vst [vmem:[#allocation3 + $0x60] sm:$0xff] 0.0
      %v2182 = vrot.slane %v2158, 1
      %v2184 = vmax.f32 %v2158, %v2182
      %v2186 = vrot.slane %v2159, 1
      %v2188 = vmax.f32 %v2159, %v2186
      %v2190 = vrot.slane %v2188, 2
      %v2192 = vmax.f32 %v2184, %v2190
      %v2194 = vrot.slane %v2192, 7
      %vm2196 = vcmask 1040384
      %v2197 = vsel %vm2196, %v2192, %v2194
      %2198 = vst [vmem:[#allocation3 + $0xb] sm:$0x3] %v2197
      %2199 = vst [vmem:[#allocation3 + $0x15] sm:$0x3] %v2197
      %v2200 = vrot.slane %v2192, 2
      %v2202 = vrot.slane %v2192, 1
      %v2204 = vsel %vm2196, %v2200, %v2202
      %2205 = vst [vmem:[#allocation3 + $0xd] sm:$0x3] %v2204
      %2206 = vst [vmem:[#allocation3 + $0x17] sm:$0x3] %v2204
      %v2207 = vrot.slane %v2192, 4
      %v2209 = vrot.slane %v2192, 3
      %v2211 = vsel %vm2196, %v2207, %v2209
      %2212 = vst [vmem:[#allocation3 + $0xf] sm:$0x3] %v2211
      %2213 = vst [vmem:[#allocation3 + $0x19] sm:$0x3] %v2211
      %v2215 = vrot.slane %v2160, 1
      %v2217 = vmax.f32 %v2160, %v2215
      %v2219 = vrot.slane %v2217, 2
      %v2221 = vmax.f32 %v2184, %v2219
      %v2223 = vrot.slane %v2221, 6
      %v2225 = vrot.slane %v2221, 5
      %v2227 = vsel %vm2196, %v2223, %v2225
      %2228 = vst [vmem:[#allocation3 + $0x11] sm:$0x3] %v2227
      %2229 = vst [vmem:[#allocation3 + $0x1b] sm:$0x3] %v2227
      %v2231 = vrot.slane %v2161, 1
      %v2233 = vmax.f32 %v2161, %v2231
      %v2235 = vrot.slane %v2233, 2
      %v2237 = vmax.f32 %v2217, %v2235
      %v2239 = vrot.slane %v2237, 4
      %v2241 = vrot.slane %v2237, 3
      %v2243 = vsel %vm2196, %v2239, %v2241
      %2244 = vst [vmem:[#allocation3 + $0x1f] sm:$0x3] %v2243
      %2245 = vst [vmem:[#allocation3 + $0x29] sm:$0x3] %v2243
      %v2247 = vrot.slane %v2162, 1
      %v2249 = vmax.f32 %v2162, %v2247
      %v2251 = vrot.slane %v2249, 2
      %v2253 = vmax.f32 %v2217, %v2251
      %v2255 = vrot.slane %v2253, 6
      %v2257 = vrot.slane %v2253, 5
      %v2259 = vsel %vm2196, %v2255, %v2257
      %2260 = vst [vmem:[#allocation3 + $0x21] sm:$0x3] %v2259
      %2261 = vst [vmem:[#allocation3 + $0x2b] sm:$0x3] %v2259
      %v2262 = vmax.f32 %v2233, %v2251
      %v2264 = vrot.slane %v2262, 7
      %v2266 = vsel %vm2196, %v2262, %v2264
      %2267 = vst [vmem:[#allocation3 + $0x23] sm:$0x3] %v2266
      %2268 = vst [vmem:[#allocation3 + $0x2d] sm:$0x3] %v2266
      %v2269 = vrot.slane %v2262, 2
      %v2271 = vrot.slane %v2262, 1
      %v2273 = vsel %vm2196, %v2269, %v2271
      %2274 = vst [vmem:[#allocation3 + $0x25] sm:$0x3] %v2273
      %2275 = vst [vmem:[#allocation3 + $0x2f] sm:$0x3] %v2273
      %v2277 = vrot.slane %v2163, 1
      %v2279 = vmax.f32 %v2163, %v2277
      %v2281 = vrot.slane %v2164, 1
      %v2283 = vmax.f32 %v2164, %v2281
      %v2285 = vrot.slane %v2283, 2
      %v2287 = vmax.f32 %v2279, %v2285
      %v2289 = vrot.slane %v2287, 7
      %v2291 = vsel %vm2196, %v2287, %v2289
      %2292 = vst [vmem:[#allocation3 + $0x33] sm:$0x3] %v2291
      %2293 = vst [vmem:[#allocation3 + $0x3d] sm:$0x3] %v2291
      %v2294 = vrot.slane %v2287, 2
      %v2296 = vrot.slane %v2287, 1
      %v2298 = vsel %vm2196, %v2294, %v2296
      %2299 = vst [vmem:[#allocation3 + $0x35] sm:$0x3] %v2298
      %2300 = vst [vmem:[#allocation3 + $0x3f] sm:$0x3] %v2298
      %v2301 = vrot.slane %v2287, 4
      %v2303 = vrot.slane %v2287, 3
      %v2305 = vsel %vm2196, %v2301, %v2303
      %2306 = vst [vmem:[#allocation3 + $0x37] sm:$0x3] %v2305
      %2307 = vst [vmem:[#allocation3 + $0x41] sm:$0x3] %v2305
      %v2309 = vrot.slane %v2165, 1
      %v2311 = vmax.f32 %v2165, %v2309
      %v2313 = vrot.slane %v2311, 2
      %v2315 = vmax.f32 %v2279, %v2313
      %v2317 = vrot.slane %v2315, 6
      %v2319 = vrot.slane %v2315, 5
      %v2321 = vsel %vm2196, %v2317, %v2319
      %2322 = vst [vmem:[#allocation3 + $0x39] sm:$0x3] %v2321
      %2323 = vst [vmem:[#allocation3 + $0x43] sm:$0x3] %v2321
      %v2325 = vrot.slane %v2166, 1
      %v2327 = vmax.f32 %v2166, %v2325
      %v2329 = vrot.slane %v2327, 2
      %v2331 = vmax.f32 %v2311, %v2329
      %v2333 = vrot.slane %v2331, 4
      %v2335 = vrot.slane %v2331, 3
      %v2337 = vsel %vm2196, %v2333, %v2335
      %2338 = vst [vmem:[#allocation3 + $0x47] sm:$0x3] %v2337
      %2339 = vst [vmem:[#allocation3 + $0x51] sm:$0x3] %v2337
      %v2341 = vrot.slane %v2167, 1
      %v2343 = vmax.f32 %v2167, %v2341
      %v2345 = vrot.slane %v2343, 2
      %v2347 = vmax.f32 %v2311, %v2345
      %v2349 = vrot.slane %v2347, 6
      %v2351 = vrot.slane %v2347, 5
      %v2353 = vsel %vm2196, %v2349, %v2351
      %2354 = vst [vmem:[#allocation3 + $0x49] sm:$0x3] %v2353
      %2355 = vst [vmem:[#allocation3 + $0x53] sm:$0x3] %v2353
      %v2356 = vmax.f32 %v2327, %v2345
      %v2358 = vrot.slane %v2356, 7
      %v2360 = vsel %vm2196, %v2356, %v2358
      %2361 = vst [vmem:[#allocation3 + $0x4b] sm:$0x3] %v2360
      %2362 = vst [vmem:[#allocation3 + $0x55] sm:$0x3] %v2360
      %v2363 = vrot.slane %v2356, 2
      %v2365 = vrot.slane %v2356, 1
      %v2367 = vsel %vm2196, %v2363, %v2365
      %2368 = vst [vmem:[#allocation3 + $0x4d] sm:$0x3] %v2367
      %2369 = vst [vmem:[#allocation3 + $0x57] sm:$0x3] %v2367
      %v2370 = vld [vmem:[#allocation3] sm:$0xff]
      %v2371 = vld [vmem:[#allocation3 + $0x8] sm:$0xff]
      %v2372 = vld [vmem:[#allocation3 + $0x10] sm:$0xff]
      %v2373 = vld [vmem:[#allocation3 + $0x18] sm:$0xff]
      %v2374 = vld [vmem:[#allocation3 + $0x20] sm:$0xff]
      %v2375 = vld [vmem:[#allocation3 + $0x28] sm:$0xff]
      %v2376 = vld [vmem:[#allocation3 + $0x30] sm:$0xff]
      %v2377 = vld [vmem:[#allocation3 + $0x38] sm:$0xff]
      %v2378 = vld [vmem:[#allocation3 + $0x40] sm:$0xff]
      %v2379 = vld [vmem:[#allocation3 + $0x48] sm:$0xff]
      %v2380 = vpack.c.bf16 %v2371, %v2370
      %v2381 = vpack.c.bf16 %v2373, %v2372
      %v2382 = vpack.c.bf16 %v2375, %v2374
      %v2383 = vpack.c.bf16 %v2377, %v2376
      %v2384 = vpack.c.bf16 %v2379, %v2378
      %v2385 = vld [vmem:[%s5] sm:$0xf]
      %v2386 = vld [vmem:[%s5 + $0x4] sm:$0xf]
      %v2387 = vld [vmem:[%s5 + $0x8] sm:$0xf]
      %v2388 = vld [vmem:[%s5 + $0xc] sm:$0xf]
      %v2389 = vld [vmem:[%s5 + $0x10] sm:$0xf]
      %v2390 = vld [vmem:[%s5 + $0x14] sm:$0xf]
      %v2391 = vld [vmem:[%s5 + $0x18] sm:$0xf]
      %v2392 = vld [vmem:[%s5 + $0x1c] sm:$0xf]
      %v2393 = vld [vmem:[%s5 + $0x20] sm:$0xf]
      %v2394 = vld [vmem:[%s5 + $0x24] sm:$0xf]
      %v2395 = vld [vmem:[%s5 + $0x28] sm:$0xf]
      %v2396 = vld [vmem:[%s5 + $0x2c] sm:$0xf]
      %v2397 = vld [vmem:[%s5 + $0x30] sm:$0xf]
      %v2398 = vld [vmem:[%s5 + $0x34] sm:$0xf]
      %v2399 = vld [vmem:[%s5 + $0x38] sm:$0xf]
      %v2400 = vld [vmem:[%s5 + $0x3c] sm:$0xf]
      %v2401 = vld [vmem:[#allocation3 + $0x1] sm:$0xff]
      %v2402 = vld [vmem:[#allocation3 + $0x9] sm:$0xff]
      %v2403 = vld [vmem:[#allocation3 + $0x11] sm:$0xff]
      %v2404 = vld [vmem:[#allocation3 + $0x19] sm:$0xff]
      %v2405 = vld [vmem:[#allocation3 + $0x21] sm:$0xff]
      %v2406 = vld [vmem:[#allocation3 + $0x29] sm:$0xff]
      %v2407 = vld [vmem:[#allocation3 + $0x31] sm:$0xff]
      %v2408 = vld [vmem:[#allocation3 + $0x39] sm:$0xff]
      %v2409 = vld [vmem:[#allocation3 + $0x41] sm:$0xff]
      %v2410 = vld [vmem:[#allocation3 + $0x49] sm:$0xff]
      %v2411 = vpack.c.bf16 %v2402, %v2401
      %v2412 = vpack.c.bf16 %v2404, %v2403
      %v2413 = vpack.c.bf16 %v2406, %v2405
      %v2414 = vpack.c.bf16 %v2408, %v2407
      %v2415 = vpack.c.bf16 %v2410, %v2409
      %s2416 = scalar_lea.vmem %s5, 64
      %v2417 = vld [vmem:[%s2416] sm:$0xf]
      %v2418 = vld [vmem:[%s2416 + $0x4] sm:$0xf]
      %v2419 = vld [vmem:[%s2416 + $0x8] sm:$0xf]
      %v2420 = vld [vmem:[%s2416 + $0xc] sm:$0xf]
      %v2421 = vld [vmem:[%s2416 + $0x10] sm:$0xf]
      %v2422 = vld [vmem:[%s2416 + $0x14] sm:$0xf]
      %v2423 = vld [vmem:[%s2416 + $0x18] sm:$0xf]
      %v2424 = vld [vmem:[%s2416 + $0x1c] sm:$0xf]
      %v2425 = vld [vmem:[%s2416 + $0x20] sm:$0xf]
      %v2426 = vld [vmem:[%s2416 + $0x24] sm:$0xf]
      %v2427 = vld [vmem:[%s2416 + $0x28] sm:$0xf]
      %v2428 = vld [vmem:[%s2416 + $0x2c] sm:$0xf]
      %v2429 = vld [vmem:[%s2416 + $0x30] sm:$0xf]
      %v2430 = vld [vmem:[%s2416 + $0x34] sm:$0xf]
      %v2431 = vld [vmem:[%s2416 + $0x38] sm:$0xf]
      %v2432 = vld [vmem:[%s2416 + $0x3c] sm:$0xf]
      %v2449 = vunpack.c.l.b16 %v2417
      %v2450 = vunpack.c.l.b16 %v2418
      %v2451 = vunpack.c.l.b16 %v2419
      %v2452 = vunpack.c.l.b16 %v2420
      %v2453 = vunpack.c.l.b16 %v2421
      %v2454 = vunpack.c.l.b16 %v2422
      %v2455 = vunpack.c.l.b16 %v2423
      %v2456 = vunpack.c.l.b16 %v2424
      %v2457 = vunpack.c.l.b16 %v2425
      %v2458 = vunpack.c.l.b16 %v2426
      %v2459 = vunpack.c.l.b16 %v2427
      %v2460 = vunpack.c.l.b16 %v2428
      %v2461 = vunpack.c.l.b16 %v2429
      %v2462 = vunpack.c.l.b16 %v2430
      %v2463 = vunpack.c.l.b16 %v2431
      %v2464 = vunpack.c.l.b16 %v2432
      %v2465 = vpack.c.b16 %v2450, %v2449
      %v2466 = vpack.c.b16 %v2452, %v2451
      %v2467 = vpack.c.b16 %v2454, %v2453
      %v2468 = vpack.c.b16 %v2456, %v2455
      %v2469 = vpack.c.b16 %v2458, %v2457
      %v2470 = vpack.c.b16 %v2460, %v2459
      %v2471 = vpack.c.b16 %v2462, %v2461
      %v2472 = vpack.c.b16 %v2464, %v2463
      %2481 = vmatprep.subr.bf16.mxu0 0
      %2482 = vmatpush1.bf16.msra.mxu0 %v2465
      %2483 = vmatprep.subr.bf16.mxu0 0
      %2484 = vmatpush1.bf16.msra.mxu0 %v2466
      %2485 = vmatprep.subr.bf16.mxu0 0
      %2486 = vmatpush1.bf16.msra.mxu0 %v2467
      %2487 = vmatprep.subr.bf16.mxu0 0
      %2488 = vmatpush1.bf16.msra.mxu0 %v2468
      %2489 = vmatprep.subr.bf16.mxu0 0
      %2490 = vmatpush1.bf16.msra.mxu0 %v2469
      %2491 = vmatprep.subr.bf16.mxu0 0
      %2492 = vmatpush1.bf16.msra.mxu0 %v2470
      %2493 = vmatprep.subr.bf16.mxu0 0
      %2494 = vmatpush1.bf16.msra.mxu0 %v2471
      %2495 = vmatprep.subr.bf16.mxu0 0
      %2496 = vmatpush1.bf16.msra.mxu0 %v2472
      %2497 = vmatprep.subr.bf16.mxu0 0
      %2498 = vmatpush1.bf16.msra.mxu0 0
      %2499 = vmatprep.subr.bf16.mxu0 0
      %2500 = vmatpush1.bf16.msra.mxu0 0
      %2501 = vmatprep.subr.bf16.mxu0 0
      %2502 = vmatpush1.bf16.msra.mxu0 0
      %2503 = vmatprep.subr.bf16.mxu0 0
      %2504 = vmatpush1.bf16.msra.mxu0 0
      %2505 = vmatprep.subr.bf16.mxu0 0
      %2506 = vmatpush1.bf16.msra.mxu0 0
      %2507 = vmatprep.subr.bf16.mxu0 0
      %2508 = vmatpush1.bf16.msra.mxu0 0
      %2509 = vmatprep.subr.bf16.mxu0 0
      %2510 = vmatpush1.bf16.msra.mxu0 0
      %2511 = vmatprep.subr.bf16.mxu0 0
      %2512 = vmatpush1.bf16.msra.mxu0 0
      %2513 = vmatprep.mubr.bf16.mxu0 0
      %2514 = vmatmul.mubr.bf16.gmra.mrb[0].mxu0 %v2411
      %v2515 = vpop.f32.mrb[0].mxu0
      %v2516 = vadd.f32 0.0, %v2515
      %v2517 = vpop.f32.mrb[0].mxu0
      %v2518 = vpop.f32.mrb[0].mxu0
      %v2519 = vadd.f32 0.0, %v2518
      %v2520 = vpop.f32.mrb[0].mxu0
      %2521 = vmatprep.mubr.bf16.mxu0 0
      %2522 = vmatmul.mubr.bf16.gmra.mrb[0].mxu0 %v2412
      %v2523 = vpop.f32.mrb[0].mxu0
      %v2524 = vadd.f32 0.0, %v2523
      %v2525 = vpop.f32.mrb[0].mxu0
      %v2526 = vpop.f32.mrb[0].mxu0
      %v2527 = vadd.f32 0.0, %v2526
      %v2528 = vpop.f32.mrb[0].mxu0
      %2529 = vmatprep.mubr.bf16.mxu0 0
      %2530 = vmatmul.mubr.bf16.gmra.mrb[0].mxu0 %v2413
      %v2531 = vpop.f32.mrb[0].mxu0
      %v2532 = vadd.f32 0.0, %v2531
      %v2533 = vpop.f32.mrb[0].mxu0
      %v2534 = vpop.f32.mrb[0].mxu0
      %v2535 = vadd.f32 0.0, %v2534
      %v2536 = vpop.f32.mrb[0].mxu0
      %2537 = vmatprep.mubr.bf16.mxu0 0
      %2538 = vmatmul.mubr.bf16.gmra.mrb[0].mxu0 %v2414
      %v2539 = vpop.f32.mrb[0].mxu0
      %v2540 = vadd.f32 0.0, %v2539
      %v2541 = vpop.f32.mrb[0].mxu0
      %v2542 = vpop.f32.mrb[0].mxu0
      %v2543 = vadd.f32 0.0, %v2542
      %v2544 = vpop.f32.mrb[0].mxu0
      %2545 = vmatprep.mubr.bf16.mxu0 0
      %2546 = vmatmul.mubr.bf16.gmra.mrb[0].mxu0 %v2415
      %v2547 = vpop.f32.mrb[0].mxu0
      %v2548 = vadd.f32 0.0, %v2547
      %v2549 = vpop.f32.mrb[0].mxu0
      %v2550 = vpop.f32.mrb[0].mxu0
      %v2551 = vadd.f32 0.0, %v2550
      %v2552 = vpop.f32.mrb[0].mxu0
      %2553 = vdwg.mxu0
      %v2570 = vunpack.c.l.b16 %v2385
      %v2571 = vunpack.c.l.b16 %v2386
      %v2572 = vunpack.c.l.b16 %v2387
      %v2573 = vunpack.c.l.b16 %v2388
      %v2574 = vunpack.c.l.b16 %v2389
      %v2575 = vunpack.c.l.b16 %v2390
      %v2576 = vunpack.c.l.b16 %v2391
      %v2577 = vunpack.c.l.b16 %v2392
      %v2578 = vunpack.c.l.b16 %v2393
      %v2579 = vunpack.c.l.b16 %v2394
      %v2580 = vunpack.c.l.b16 %v2395
      %v2581 = vunpack.c.l.b16 %v2396
      %v2582 = vunpack.c.l.b16 %v2397
      %v2583 = vunpack.c.l.b16 %v2398
      %v2584 = vunpack.c.l.b16 %v2399
      %v2585 = vunpack.c.l.b16 %v2400
      %v2586 = vpack.c.b16 %v2571, %v2570
      %v2587 = vpack.c.b16 %v2573, %v2572
      %v2588 = vpack.c.b16 %v2575, %v2574
      %v2589 = vpack.c.b16 %v2577, %v2576
      %v2590 = vpack.c.b16 %v2579, %v2578
      %v2591 = vpack.c.b16 %v2581, %v2580
      %v2592 = vpack.c.b16 %v2583, %v2582
      %v2593 = vpack.c.b16 %v2585, %v2584
      %2602 = vmatprep.subr.bf16.mxu0 0
      %2603 = vmatpush1.bf16.msra.mxu0 %v2586
      %2604 = vmatprep.subr.bf16.mxu0 0
      %2605 = vmatpush1.bf16.msra.mxu0 %v2587
      %2606 = vmatprep.subr.bf16.mxu0 0
      %2607 = vmatpush1.bf16.msra.mxu0 %v2588
      %2608 = vmatprep.subr.bf16.mxu0 0
      %2609 = vmatpush1.bf16.msra.mxu0 %v2589
      %2610 = vmatprep.subr.bf16.mxu0 0
      %2611 = vmatpush1.bf16.msra.mxu0 %v2590
      %2612 = vmatprep.subr.bf16.mxu0 0
      %2613 = vmatpush1.bf16.msra.mxu0 %v2591
      %2614 = vmatprep.subr.bf16.mxu0 0
      %2615 = vmatpush1.bf16.msra.mxu0 %v2592
      %2616 = vmatprep.subr.bf16.mxu0 0
      %2617 = vmatpush1.bf16.msra.mxu0 %v2593
      %2618 = vmatprep.subr.bf16.mxu0 0
      %2619 = vmatpush1.bf16.msra.mxu0 0
      %2620 = vmatprep.subr.bf16.mxu0 0
      %2621 = vmatpush1.bf16.msra.mxu0 0
      %2622 = vmatprep.subr.bf16.mxu0 0
      %2623 = vmatpush1.bf16.msra.mxu0 0
      %2624 = vmatprep.subr.bf16.mxu0 0
      %2625 = vmatpush1.bf16.msra.mxu0 0
      %2626 = vmatprep.subr.bf16.mxu0 0
      %2627 = vmatpush1.bf16.msra.mxu0 0
      %2628 = vmatprep.subr.bf16.mxu0 0
      %2629 = vmatpush1.bf16.msra.mxu0 0
      %2630 = vmatprep.subr.bf16.mxu0 0
      %2631 = vmatpush1.bf16.msra.mxu0 0
      %2632 = vmatprep.subr.bf16.mxu0 0
      %2633 = vmatpush1.bf16.msra.mxu0 0
      %2634 = vmatprep.mubr.bf16.mxu0 0
      %2635 = vmatmul.mubr.bf16.gmra.mrb[0].mxu0 %v2380
      %v2636 = vpop.f32.mrb[0].mxu0
      %v2637 = vadd.f32 %v2516, %v2636
      %v2638 = vpop.f32.mrb[0].mxu0
      %v2639 = vpop.f32.mrb[0].mxu0
      %v2640 = vadd.f32 %v2519, %v2639
      %v2641 = vpop.f32.mrb[0].mxu0
      %2642 = vmatprep.mubr.bf16.mxu0 0
      %2643 = vmatmul.mubr.bf16.gmra.mrb[0].mxu0 %v2381
      %v2644 = vpop.f32.mrb[0].mxu0
      %v2645 = vadd.f32 %v2524, %v2644
      %v2646 = vpop.f32.mrb[0].mxu0
      %v2647 = vpop.f32.mrb[0].mxu0
      %v2648 = vadd.f32 %v2527, %v2647
      %v2649 = vpop.f32.mrb[0].mxu0
      %2650 = vmatprep.mubr.bf16.mxu0 0
      %2651 = vmatmul.mubr.bf16.gmra.mrb[0].mxu0 %v2382
      %v2652 = vpop.f32.mrb[0].mxu0
      %v2653 = vadd.f32 %v2532, %v2652
      %v2654 = vpop.f32.mrb[0].mxu0
      %v2655 = vpop.f32.mrb[0].mxu0
      %v2656 = vadd.f32 %v2535, %v2655
      %v2657 = vpop.f32.mrb[0].mxu0
      %2658 = vmatprep.mubr.bf16.mxu0 0
      %2659 = vmatmul.mubr.bf16.gmra.mrb[0].mxu0 %v2383
      %v2660 = vpop.f32.mrb[0].mxu0
      %v2661 = vadd.f32 %v2540, %v2660
      %v2662 = vpop.f32.mrb[0].mxu0
      %v2663 = vpop.f32.mrb[0].mxu0
      %v2664 = vadd.f32 %v2543, %v2663
      %v2665 = vpop.f32.mrb[0].mxu0
      %2666 = vmatprep.mubr.bf16.mxu0 0
      %2667 = vmatmul.mubr.bf16.gmra.mrb[0].mxu0 %v2384
      %v2668 = vpop.f32.mrb[0].mxu0
      %v2669 = vadd.f32 %v2548, %v2668
      %v2670 = vpop.f32.mrb[0].mxu0
      %v2671 = vpop.f32.mrb[0].mxu0
      %v2672 = vadd.f32 %v2551, %v2671
      %v2673 = vpop.f32.mrb[0].mxu0
      %2674 = vdwg.mxu0
      %v2675 = vld [vmem:[#allocation3 + $0x2] sm:$0xff]
      %v2676 = vld [vmem:[#allocation3 + $0xa] sm:$0xff]
      %v2677 = vld [vmem:[#allocation3 + $0x12] sm:$0xff]
      %v2678 = vld [vmem:[#allocation3 + $0x1a] sm:$0xff]
      %v2679 = vld [vmem:[#allocation3 + $0x22] sm:$0xff]
      %v2680 = vld [vmem:[#allocation3 + $0x2a] sm:$0xff]
      %v2681 = vld [vmem:[#allocation3 + $0x32] sm:$0xff]
      %v2682 = vld [vmem:[#allocation3 + $0x3a] sm:$0xff]
      %v2683 = vld [vmem:[#allocation3 + $0x42] sm:$0xff]
      %v2684 = vld [vmem:[#allocation3 + $0x4a] sm:$0xff]
      %v2685 = vpack.c.bf16 %v2676, %v2675
      %v2686 = vpack.c.bf16 %v2678, %v2677
      %v2687 = vpack.c.bf16 %v2680, %v2679
      %v2688 = vpack.c.bf16 %v2682, %v2681
      %v2689 = vpack.c.bf16 %v2684, %v2683
      %s2690 = scalar_lea.vmem %s5, 128
      %v2691 = vld [vmem:[%s2690] sm:$0xf]
      %v2692 = vld [vmem:[%s2690 + $0x4] sm:$0xf]
      %v2693 = vld [vmem:[%s2690 + $0x8] sm:$0xf]
      %v2694 = vld [vmem:[%s2690 + $0xc] sm:$0xf]
      %v2695 = vld [vmem:[%s2690 + $0x10] sm:$0xf]
      %v2696 = vld [vmem:[%s2690 + $0x14] sm:$0xf]
      %v2697 = vld [vmem:[%s2690 + $0x18] sm:$0xf]
      %v2698 = vld [vmem:[%s2690 + $0x1c] sm:$0xf]
      %v2699 = vld [vmem:[%s2690 + $0x20] sm:$0xf]
      %v2700 = vld [vmem:[%s2690 + $0x24] sm:$0xf]
      %v2701 = vld [vmem:[%s2690 + $0x28] sm:$0xf]
      %v2702 = vld [vmem:[%s2690 + $0x2c] sm:$0xf]
      %v2703 = vld [vmem:[%s2690 + $0x30] sm:$0xf]
      %v2704 = vld [vmem:[%s2690 + $0x34] sm:$0xf]
      %v2705 = vld [vmem:[%s2690 + $0x38] sm:$0xf]
      %v2706 = vld [vmem:[%s2690 + $0x3c] sm:$0xf]
      %v2723 = vunpack.c.l.b16 %v2691
      %v2724 = vunpack.c.l.b16 %v2692
      %v2725 = vunpack.c.l.b16 %v2693
      %v2726 = vunpack.c.l.b16 %v2694
      %v2727 = vunpack.c.l.b16 %v2695
      %v2728 = vunpack.c.l.b16 %v2696
      %v2729 = vunpack.c.l.b16 %v2697
      %v2730 = vunpack.c.l.b16 %v2698
      %v2731 = vunpack.c.l.b16 %v2699
      %v2732 = vunpack.c.l.b16 %v2700
      %v2733 = vunpack.c.l.b16 %v2701
      %v2734 = vunpack.c.l.b16 %v2702
      %v2735 = vunpack.c.l.b16 %v2703
      %v2736 = vunpack.c.l.b16 %v2704
      %v2737 = vunpack.c.l.b16 %v2705
      %v2738 = vunpack.c.l.b16 %v2706
      %v2739 = vpack.c.b16 %v2724, %v2723
      %v2740 = vpack.c.b16 %v2726, %v2725
      %v2741 = vpack.c.b16 %v2728, %v2727
      %v2742 = vpack.c.b16 %v2730, %v2729
      %v2743 = vpack.c.b16 %v2732, %v2731
      %v2744 = vpack.c.b16 %v2734, %v2733
      %v2745 = vpack.c.b16 %v2736, %v2735
      %v2746 = vpack.c.b16 %v2738, %v2737
      %2755 = vmatprep.subr.bf16.mxu0 0
      %2756 = vmatpush1.bf16.msra.mxu0 %v2739
      %2757 = vmatprep.subr.bf16.mxu0 0
      %2758 = vmatpush1.bf16.msra.mxu0 %v2740
      %2759 = vmatprep.subr.bf16.mxu0 0
      %2760 = vmatpush1.bf16.msra.mxu0 %v2741
      %2761 = vmatprep.subr.bf16.mxu0 0
      %2762 = vmatpush1.bf16.msra.mxu0 %v2742
      %2763 = vmatprep.subr.bf16.mxu0 0
      %2764 = vmatpush1.bf16.msra.mxu0 %v2743
      %2765 = vmatprep.subr.bf16.mxu0 0
      %2766 = vmatpush1.bf16.msra.mxu0 %v2744
      %2767 = vmatprep.subr.bf16.mxu0 0
      %2768 = vmatpush1.bf16.msra.mxu0 %v2745
      %2769 = vmatprep.subr.bf16.mxu0 0
      %2770 = vmatpush1.bf16.msra.mxu0 %v2746
      %2771 = vmatprep.subr.bf16.mxu0 0
      %2772 = vmatpush1.bf16.msra.mxu0 0
      %2773 = vmatprep.subr.bf16.mxu0 0
      %2774 = vmatpush1.bf16.msra.mxu0 0
      %2775 = vmatprep.subr.bf16.mxu0 0
      %2776 = vmatpush1.bf16.msra.mxu0 0
      %2777 = vmatprep.subr.bf16.mxu0 0
      %2778 = vmatpush1.bf16.msra.mxu0 0
      %2779 = vmatprep.subr.bf16.mxu0 0
      %2780 = vmatpush1.bf16.msra.mxu0 0
      %2781 = vmatprep.subr.bf16.mxu0 0
      %2782 = vmatpush1.bf16.msra.mxu0 0
      %2783 = vmatprep.subr.bf16.mxu0 0
      %2784 = vmatpush1.bf16.msra.mxu0 0
      %2785 = vmatprep.subr.bf16.mxu0 0
      %2786 = vmatpush1.bf16.msra.mxu0 0
      %2787 = vmatprep.mubr.bf16.mxu0 0
      %2788 = vmatmul.mubr.bf16.gmra.mrb[0].mxu0 %v2685
      %v2789 = vpop.f32.mrb[0].mxu0
      %v2790 = vadd.f32 0.0, %v2789
      %v2791 = vpop.f32.mrb[0].mxu0
      %v2792 = vpop.f32.mrb[0].mxu0
      %v2793 = vadd.f32 0.0, %v2792
      %v2794 = vpop.f32.mrb[0].mxu0
      %2795 = vmatprep.mubr.bf16.mxu0 0
      %2796 = vmatmul.mubr.bf16.gmra.mrb[0].mxu0 %v2686
      %v2797 = vpop.f32.mrb[0].mxu0
      %v2798 = vadd.f32 0.0, %v2797
      %v2799 = vpop.f32.mrb[0].mxu0
      %v2800 = vpop.f32.mrb[0].mxu0
      %v2801 = vadd.f32 0.0, %v2800
      %v2802 = vpop.f32.mrb[0].mxu0
      %2803 = vmatprep.mubr.bf16.mxu0 0
      %2804 = vmatmul.mubr.bf16.gmra.mrb[0].mxu0 %v2687
      %v2805 = vpop.f32.mrb[0].mxu0
      %v2806 = vadd.f32 0.0, %v2805
      %v2807 = vpop.f32.mrb[0].mxu0
      %v2808 = vpop.f32.mrb[0].mxu0
      %v2809 = vadd.f32 0.0, %v2808
      %v2810 = vpop.f32.mrb[0].mxu0
      %2811 = vmatprep.mubr.bf16.mxu0 0
      %2812 = vmatmul.mubr.bf16.gmra.mrb[0].mxu0 %v2688
      %v2813 = vpop.f32.mrb[0].mxu0
      %v2814 = vadd.f32 0.0, %v2813
      %v2815 = vpop.f32.mrb[0].mxu0
      %v2816 = vpop.f32.mrb[0].mxu0
      %v2817 = vadd.f32 0.0, %v2816
      %v2818 = vpop.f32.mrb[0].mxu0
      %2819 = vmatprep.mubr.bf16.mxu0 0
      %2820 = vmatmul.mubr.bf16.gmra.mrb[0].mxu0 %v2689
      %v2821 = vpop.f32.mrb[0].mxu0
      %v2822 = vadd.f32 0.0, %v2821
      %v2823 = vpop.f32.mrb[0].mxu0
      %v2824 = vpop.f32.mrb[0].mxu0
      %v2825 = vadd.f32 0.0, %v2824
      %v2826 = vpop.f32.mrb[0].mxu0
      %2827 = vdwg.mxu0
      %v2828 = vadd.f32 %v2637, %v2790
      %v2829 = vadd.f32 %v2640, %v2793
      %v2830 = vadd.f32 %v2645, %v2798
      %v2831 = vadd.f32 %v2648, %v2801
      %v2832 = vadd.f32 %v2653, %v2806
      %v2833 = vadd.f32 %v2656, %v2809
      %v2834 = vadd.f32 %v2661, %v2814
      %v2835 = vadd.f32 %v2664, %v2817
      %v2836 = vadd.f32 %v2669, %v2822
      %v2837 = vadd.f32 %v2672, %v2825
      %v2838 = vld [vmem:[#allocation3 + $0xa] sm:$0xff]
      %v2839 = vld [vmem:[#allocation3 + $0x12] sm:$0xff]
      %v2840 = vld [vmem:[#allocation3 + $0x1a] sm:$0xff]
      %v2841 = vld [vmem:[#allocation3 + $0x22] sm:$0xff]
      %v2842 = vld [vmem:[#allocation3 + $0x2a] sm:$0xff]
      %v2843 = vld [vmem:[#allocation3 + $0x32] sm:$0xff]
      %v2844 = vld [vmem:[#allocation3 + $0x3a] sm:$0xff]
      %v2845 = vld [vmem:[#allocation3 + $0x42] sm:$0xff]
      %v2846 = vld [vmem:[#allocation3 + $0x4a] sm:$0xff]
      %v2847 = vld [vmem:[#allocation3 + $0x52] sm:$0xff]
      %v2848 = vpack.c.bf16 %v2839, %v2838
      %v2849 = vpack.c.bf16 %v2841, %v2840
      %v2850 = vpack.c.bf16 %v2843, %v2842
      %v2851 = vpack.c.bf16 %v2845, %v2844
      %v2852 = vpack.c.bf16 %v2847, %v2846
      %s2853 = scalar_lea.vmem %s5, 192
      %v2854 = vld [vmem:[%s2853] sm:$0xf]
      %v2855 = vld [vmem:[%s2853 + $0x4] sm:$0xf]
      %v2856 = vld [vmem:[%s2853 + $0x8] sm:$0xf]
      %v2857 = vld [vmem:[%s2853 + $0xc] sm:$0xf]
      %v2858 = vld [vmem:[%s2853 + $0x10] sm:$0xf]
      %v2859 = vld [vmem:[%s2853 + $0x14] sm:$0xf]
      %v2860 = vld [vmem:[%s2853 + $0x18] sm:$0xf]
      %v2861 = vld [vmem:[%s2853 + $0x1c] sm:$0xf]
      %v2862 = vld [vmem:[%s2853 + $0x20] sm:$0xf]
      %v2863 = vld [vmem:[%s2853 + $0x24] sm:$0xf]
      %v2864 = vld [vmem:[%s2853 + $0x28] sm:$0xf]
      %v2865 = vld [vmem:[%s2853 + $0x2c] sm:$0xf]
      %v2866 = vld [vmem:[%s2853 + $0x30] sm:$0xf]
      %v2867 = vld [vmem:[%s2853 + $0x34] sm:$0xf]
      %v2868 = vld [vmem:[%s2853 + $0x38] sm:$0xf]
      %v2869 = vld [vmem:[%s2853 + $0x3c] sm:$0xf]
      %v2886 = vunpack.c.l.b16 %v2854
      %v2887 = vunpack.c.l.b16 %v2855
      %v2888 = vunpack.c.l.b16 %v2856
      %v2889 = vunpack.c.l.b16 %v2857
      %v2890 = vunpack.c.l.b16 %v2858
      %v2891 = vunpack.c.l.b16 %v2859
      %v2892 = vunpack.c.l.b16 %v2860
      %v2893 = vunpack.c.l.b16 %v2861
      %v2894 = vunpack.c.l.b16 %v2862
      %v2895 = vunpack.c.l.b16 %v2863
      %v2896 = vunpack.c.l.b16 %v2864
      %v2897 = vunpack.c.l.b16 %v2865
      %v2898 = vunpack.c.l.b16 %v2866
      %v2899 = vunpack.c.l.b16 %v2867
      %v2900 = vunpack.c.l.b16 %v2868
      %v2901 = vunpack.c.l.b16 %v2869
      %v2902 = vpack.c.b16 %v2887, %v2886
      %v2903 = vpack.c.b16 %v2889, %v2888
      %v2904 = vpack.c.b16 %v2891, %v2890
      %v2905 = vpack.c.b16 %v2893, %v2892
      %v2906 = vpack.c.b16 %v2895, %v2894
      %v2907 = vpack.c.b16 %v2897, %v2896
      %v2908 = vpack.c.b16 %v2899, %v2898
      %v2909 = vpack.c.b16 %v2901, %v2900
      %2918 = vmatprep.subr.bf16.mxu0 0
      %2919 = vmatpush1.bf16.msra.mxu0 %v2902
      %2920 = vmatprep.subr.bf16.mxu0 0
      %2921 = vmatpush1.bf16.msra.mxu0 %v2903
      %2922 = vmatprep.subr.bf16.mxu0 0
      %2923 = vmatpush1.bf16.msra.mxu0 %v2904
      %2924 = vmatprep.subr.bf16.mxu0 0
      %2925 = vmatpush1.bf16.msra.mxu0 %v2905
      %2926 = vmatprep.subr.bf16.mxu0 0
      %2927 = vmatpush1.bf16.msra.mxu0 %v2906
      %2928 = vmatprep.subr.bf16.mxu0 0
      %2929 = vmatpush1.bf16.msra.mxu0 %v2907
      %2930 = vmatprep.subr.bf16.mxu0 0
      %2931 = vmatpush1.bf16.msra.mxu0 %v2908
      %2932 = vmatprep.subr.bf16.mxu0 0
      %2933 = vmatpush1.bf16.msra.mxu0 %v2909
      %2934 = vmatprep.subr.bf16.mxu0 0
      %2935 = vmatpush1.bf16.msra.mxu0 0
      %2936 = vmatprep.subr.bf16.mxu0 0
      %2937 = vmatpush1.bf16.msra.mxu0 0
      %2938 = vmatprep.subr.bf16.mxu0 0
      %2939 = vmatpush1.bf16.msra.mxu0 0
      %2940 = vmatprep.subr.bf16.mxu0 0
      %2941 = vmatpush1.bf16.msra.mxu0 0
      %2942 = vmatprep.subr.bf16.mxu0 0
      %2943 = vmatpush1.bf16.msra.mxu0 0
      %2944 = vmatprep.subr.bf16.mxu0 0
      %2945 = vmatpush1.bf16.msra.mxu0 0
      %2946 = vmatprep.subr.bf16.mxu0 0
      %2947 = vmatpush1.bf16.msra.mxu0 0
      %2948 = vmatprep.subr.bf16.mxu0 0
      %2949 = vmatpush1.bf16.msra.mxu0 0
      %2950 = vmatprep.mubr.bf16.mxu0 0
      %2951 = vmatmul.mubr.bf16.gmra.mrb[0].mxu0 %v2848
      %v2952 = vpop.f32.mrb[0].mxu0
      %v2953 = vadd.f32 0.0, %v2952
      %v2954 = vpop.f32.mrb[0].mxu0
      %v2955 = vpop.f32.mrb[0].mxu0
      %v2956 = vadd.f32 0.0, %v2955
      %v2957 = vpop.f32.mrb[0].mxu0
      %2958 = vmatprep.mubr.bf16.mxu0 0
      %2959 = vmatmul.mubr.bf16.gmra.mrb[0].mxu0 %v2849
      %v2960 = vpop.f32.mrb[0].mxu0
      %v2961 = vadd.f32 0.0, %v2960
      %v2962 = vpop.f32.mrb[0].mxu0
      %v2963 = vpop.f32.mrb[0].mxu0
      %v2964 = vadd.f32 0.0, %v2963
      %v2965 = vpop.f32.mrb[0].mxu0
      %2966 = vmatprep.mubr.bf16.mxu0 0
      %2967 = vmatmul.mubr.bf16.gmra.mrb[0].mxu0 %v2850
      %v2968 = vpop.f32.mrb[0].mxu0
      %v2969 = vadd.f32 0.0, %v2968
      %v2970 = vpop.f32.mrb[0].mxu0
      %v2971 = vpop.f32.mrb[0].mxu0
      %v2972 = vadd.f32 0.0, %v2971
      %v2973 = vpop.f32.mrb[0].mxu0
      %2974 = vmatprep.mubr.bf16.mxu0 0
      %2975 = vmatmul.mubr.bf16.gmra.mrb[0].mxu0 %v2851
      %v2976 = vpop.f32.mrb[0].mxu0
      %v2977 = vadd.f32 0.0, %v2976
      %v2978 = vpop.f32.mrb[0].mxu0
      %v2979 = vpop.f32.mrb[0].mxu0
      %v2980 = vadd.f32 0.0, %v2979
      %v2981 = vpop.f32.mrb[0].mxu0
      %2982 = vmatprep.mubr.bf16.mxu0 0
      %2983 = vmatmul.mubr.bf16.gmra.mrb[0].mxu0 %v2852
      %v2984 = vpop.f32.mrb[0].mxu0
      %v2985 = vadd.f32 0.0, %v2984
      %v2986 = vpop.f32.mrb[0].mxu0
      %v2987 = vpop.f32.mrb[0].mxu0
      %v2988 = vadd.f32 0.0, %v2987
      %v2989 = vpop.f32.mrb[0].mxu0
      %2990 = vdwg.mxu0
      %v2991 = vadd.f32 %v2828, %v2953
      %v2992 = vadd.f32 %v2829, %v2956
      %v2993 = vadd.f32 %v2830, %v2961
      %v2994 = vadd.f32 %v2831, %v2964
      %v2995 = vadd.f32 %v2832, %v2969
      %v2996 = vadd.f32 %v2833, %v2972
      %v2997 = vadd.f32 %v2834, %v2977
      %v2998 = vadd.f32 %v2835, %v2980
      %v2999 = vadd.f32 %v2836, %v2985
      %v3000 = vadd.f32 %v2837, %v2988
      %v3001 = vld [vmem:[#allocation3 + $0xb] sm:$0xff]
      %v3002 = vld [vmem:[#allocation3 + $0x13] sm:$0xff]
      %v3003 = vld [vmem:[#allocation3 + $0x1b] sm:$0xff]
      %v3004 = vld [vmem:[#allocation3 + $0x23] sm:$0xff]
      %v3005 = vld [vmem:[#allocation3 + $0x2b] sm:$0xff]
      %v3006 = vld [vmem:[#allocation3 + $0x33] sm:$0xff]
      %v3007 = vld [vmem:[#allocation3 + $0x3b] sm:$0xff]
      %v3008 = vld [vmem:[#allocation3 + $0x43] sm:$0xff]
      %v3009 = vld [vmem:[#allocation3 + $0x4b] sm:$0xff]
      %v3010 = vld [vmem:[#allocation3 + $0x53] sm:$0xff]
      %v3011 = vpack.c.bf16 %v3002, %v3001
      %v3012 = vpack.c.bf16 %v3004, %v3003
      %v3013 = vpack.c.bf16 %v3006, %v3005
      %v3014 = vpack.c.bf16 %v3008, %v3007
      %v3015 = vpack.c.bf16 %v3010, %v3009
      %s3016 = scalar_lea.vmem %s5, 256
      %v3017 = vld [vmem:[%s3016] sm:$0xf]
      %v3018 = vld [vmem:[%s3016 + $0x4] sm:$0xf]
      %v3019 = vld [vmem:[%s3016 + $0x8] sm:$0xf]
      %v3020 = vld [vmem:[%s3016 + $0xc] sm:$0xf]
      %v3021 = vld [vmem:[%s3016 + $0x10] sm:$0xf]
      %v3022 = vld [vmem:[%s3016 + $0x14] sm:$0xf]
      %v3023 = vld [vmem:[%s3016 + $0x18] sm:$0xf]
      %v3024 = vld [vmem:[%s3016 + $0x1c] sm:$0xf]
      %v3025 = vld [vmem:[%s3016 + $0x20] sm:$0xf]
      %v3026 = vld [vmem:[%s3016 + $0x24] sm:$0xf]
      %v3027 = vld [vmem:[%s3016 + $0x28] sm:$0xf]
      %v3028 = vld [vmem:[%s3016 + $0x2c] sm:$0xf]
      %v3029 = vld [vmem:[%s3016 + $0x30] sm:$0xf]
      %v3030 = vld [vmem:[%s3016 + $0x34] sm:$0xf]
      %v3031 = vld [vmem:[%s3016 + $0x38] sm:$0xf]
      %v3032 = vld [vmem:[%s3016 + $0x3c] sm:$0xf]
      %v3049 = vunpack.c.l.b16 %v3017
      %v3050 = vunpack.c.l.b16 %v3018
      %v3051 = vunpack.c.l.b16 %v3019
      %v3052 = vunpack.c.l.b16 %v3020
      %v3053 = vunpack.c.l.b16 %v3021
      %v3054 = vunpack.c.l.b16 %v3022
      %v3055 = vunpack.c.l.b16 %v3023
      %v3056 = vunpack.c.l.b16 %v3024
      %v3057 = vunpack.c.l.b16 %v3025
      %v3058 = vunpack.c.l.b16 %v3026
      %v3059 = vunpack.c.l.b16 %v3027
      %v3060 = vunpack.c.l.b16 %v3028
      %v3061 = vunpack.c.l.b16 %v3029
      %v3062 = vunpack.c.l.b16 %v3030
      %v3063 = vunpack.c.l.b16 %v3031
      %v3064 = vunpack.c.l.b16 %v3032
      %v3065 = vpack.c.b16 %v3050, %v3049
      %v3066 = vpack.c.b16 %v3052, %v3051
      %v3067 = vpack.c.b16 %v3054, %v3053
      %v3068 = vpack.c.b16 %v3056, %v3055
      %v3069 = vpack.c.b16 %v3058, %v3057
      %v3070 = vpack.c.b16 %v3060, %v3059
      %v3071 = vpack.c.b16 %v3062, %v3061
      %v3072 = vpack.c.b16 %v3064, %v3063
      %3081 = vmatprep.subr.bf16.mxu0 0
      %3082 = vmatpush1.bf16.msra.mxu0 %v3065
      %3083 = vmatprep.subr.bf16.mxu0 0
      %3084 = vmatpush1.bf16.msra.mxu0 %v3066
      %3085 = vmatprep.subr.bf16.mxu0 0
      %3086 = vmatpush1.bf16.msra.mxu0 %v3067
      %3087 = vmatprep.subr.bf16.mxu0 0
      %3088 = vmatpush1.bf16.msra.mxu0 %v3068
      %3089 = vmatprep.subr.bf16.mxu0 0
      %3090 = vmatpush1.bf16.msra.mxu0 %v3069
      %3091 = vmatprep.subr.bf16.mxu0 0
      %3092 = vmatpush1.bf16.msra.mxu0 %v3070
      %3093 = vmatprep.subr.bf16.mxu0 0
      %3094 = vmatpush1.bf16.msra.mxu0 %v3071
      %3095 = vmatprep.subr.bf16.mxu0 0
      %3096 = vmatpush1.bf16.msra.mxu0 %v3072
      %3097 = vmatprep.subr.bf16.mxu0 0
      %3098 = vmatpush1.bf16.msra.mxu0 0
      %3099 = vmatprep.subr.bf16.mxu0 0
      %3100 = vmatpush1.bf16.msra.mxu0 0
      %3101 = vmatprep.subr.bf16.mxu0 0
      %3102 = vmatpush1.bf16.msra.mxu0 0
      %3103 = vmatprep.subr.bf16.mxu0 0
      %3104 = vmatpush1.bf16.msra.mxu0 0
      %3105 = vmatprep.subr.bf16.mxu0 0
      %3106 = vmatpush1.bf16.msra.mxu0 0
      %3107 = vmatprep.subr.bf16.mxu0 0
      %3108 = vmatpush1.bf16.msra.mxu0 0
      %3109 = vmatprep.subr.bf16.mxu0 0
      %3110 = vmatpush1.bf16.msra.mxu0 0
      %3111 = vmatprep.subr.bf16.mxu0 0
      %3112 = vmatpush1.bf16.msra.mxu0 0
      %3113 = vmatprep.mubr.bf16.mxu0 0
      %3114 = vmatmul.mubr.bf16.gmra.mrb[0].mxu0 %v3011
      %v3115 = vpop.f32.mrb[0].mxu0
      %v3116 = vadd.f32 0.0, %v3115
      %v3117 = vpop.f32.mrb[0].mxu0
      %v3118 = vpop.f32.mrb[0].mxu0
      %v3119 = vadd.f32 0.0, %v3118
      %v3120 = vpop.f32.mrb[0].mxu0
      %3121 = vmatprep.mubr.bf16.mxu0 0
      %3122 = vmatmul.mubr.bf16.gmra.mrb[0].mxu0 %v3012
      %v3123 = vpop.f32.mrb[0].mxu0
      %v3124 = vadd.f32 0.0, %v3123
      %v3125 = vpop.f32.mrb[0].mxu0
      %v3126 = vpop.f32.mrb[0].mxu0
      %v3127 = vadd.f32 0.0, %v3126
      %v3128 = vpop.f32.mrb[0].mxu0
      %3129 = vmatprep.mubr.bf16.mxu0 0
      %3130 = vmatmul.mubr.bf16.gmra.mrb[0].mxu0 %v3013
      %v3131 = vpop.f32.mrb[0].mxu0
      %v3132 = vadd.f32 0.0, %v3131
      %v3133 = vpop.f32.mrb[0].mxu0
      %v3134 = vpop.f32.mrb[0].mxu0
      %v3135 = vadd.f32 0.0, %v3134
      %v3136 = vpop.f32.mrb[0].mxu0
      %3137 = vmatprep.mubr.bf16.mxu0 0
      %3138 = vmatmul.mubr.bf16.gmra.mrb[0].mxu0 %v3014
      %v3139 = vpop.f32.mrb[0].mxu0
      %v3140 = vadd.f32 0.0, %v3139
      %v3141 = vpop.f32.mrb[0].mxu0
      %v3142 = vpop.f32.mrb[0].mxu0
      %v3143 = vadd.f32 0.0, %v3142
      %v3144 = vpop.f32.mrb[0].mxu0
      %3145 = vmatprep.mubr.bf16.mxu0 0
      %3146 = vmatmul.mubr.bf16.gmra.mrb[0].mxu0 %v3015
      %v3147 = vpop.f32.mrb[0].mxu0
      %v3148 = vadd.f32 0.0, %v3147
      %v3149 = vpop.f32.mrb[0].mxu0
      %v3150 = vpop.f32.mrb[0].mxu0
      %v3151 = vadd.f32 0.0, %v3150
      %v3152 = vpop.f32.mrb[0].mxu0
      %3153 = vdwg.mxu0
      %v3154 = vadd.f32 %v2991, %v3116
      %v3155 = vadd.f32 %v2992, %v3119
      %v3156 = vadd.f32 %v2993, %v3124
      %v3157 = vadd.f32 %v2994, %v3127
      %v3158 = vadd.f32 %v2995, %v3132
      %v3159 = vadd.f32 %v2996, %v3135
      %v3160 = vadd.f32 %v2997, %v3140
      %v3161 = vadd.f32 %v2998, %v3143
      %v3162 = vadd.f32 %v2999, %v3148
      %v3163 = vadd.f32 %v3000, %v3151
      %v3164 = vld [vmem:[#allocation3 + $0xc] sm:$0xff]
      %v3165 = vld [vmem:[#allocation3 + $0x14] sm:$0xff]
      %v3166 = vld [vmem:[#allocation3 + $0x1c] sm:$0xff]
      %v3167 = vld [vmem:[#allocation3 + $0x24] sm:$0xff]
      %v3168 = vld [vmem:[#allocation3 + $0x2c] sm:$0xff]
      %v3169 = vld [vmem:[#allocation3 + $0x34] sm:$0xff]
      %v3170 = vld [vmem:[#allocation3 + $0x3c] sm:$0xff]
      %v3171 = vld [vmem:[#allocation3 + $0x44] sm:$0xff]
      %v3172 = vld [vmem:[#allocation3 + $0x4c] sm:$0xff]
      %v3173 = vld [vmem:[#allocation3 + $0x54] sm:$0xff]
      %v3174 = vpack.c.bf16 %v3165, %v3164
      %v3175 = vpack.c.bf16 %v3167, %v3166
      %v3176 = vpack.c.bf16 %v3169, %v3168
      %v3177 = vpack.c.bf16 %v3171, %v3170
      %v3178 = vpack.c.bf16 %v3173, %v3172
      %s3179 = scalar_lea.vmem %s5, 320
      %v3180 = vld [vmem:[%s3179] sm:$0xf]
      %v3181 = vld [vmem:[%s3179 + $0x4] sm:$0xf]
      %v3182 = vld [vmem:[%s3179 + $0x8] sm:$0xf]
      %v3183 = vld [vmem:[%s3179 + $0xc] sm:$0xf]
      %v3184 = vld [vmem:[%s3179 + $0x10] sm:$0xf]
      %v3185 = vld [vmem:[%s3179 + $0x14] sm:$0xf]
      %v3186 = vld [vmem:[%s3179 + $0x18] sm:$0xf]
      %v3187 = vld [vmem:[%s3179 + $0x1c] sm:$0xf]
      %v3188 = vld [vmem:[%s3179 + $0x20] sm:$0xf]
      %v3189 = vld [vmem:[%s3179 + $0x24] sm:$0xf]
      %v3190 = vld [vmem:[%s3179 + $0x28] sm:$0xf]
      %v3191 = vld [vmem:[%s3179 + $0x2c] sm:$0xf]
      %v3192 = vld [vmem:[%s3179 + $0x30] sm:$0xf]
      %v3193 = vld [vmem:[%s3179 + $0x34] sm:$0xf]
      %v3194 = vld [vmem:[%s3179 + $0x38] sm:$0xf]
      %v3195 = vld [vmem:[%s3179 + $0x3c] sm:$0xf]
      %v3212 = vunpack.c.l.b16 %v3180
      %v3213 = vunpack.c.l.b16 %v3181
      %v3214 = vunpack.c.l.b16 %v3182
      %v3215 = vunpack.c.l.b16 %v3183
      %v3216 = vunpack.c.l.b16 %v3184
      %v3217 = vunpack.c.l.b16 %v3185
      %v3218 = vunpack.c.l.b16 %v3186
      %v3219 = vunpack.c.l.b16 %v3187
      %v3220 = vunpack.c.l.b16 %v3188
      %v3221 = vunpack.c.l.b16 %v3189
      %v3222 = vunpack.c.l.b16 %v3190
      %v3223 = vunpack.c.l.b16 %v3191
      %v3224 = vunpack.c.l.b16 %v3192
      %v3225 = vunpack.c.l.b16 %v3193
      %v3226 = vunpack.c.l.b16 %v3194
      %v3227 = vunpack.c.l.b16 %v3195
      %v3228 = vpack.c.b16 %v3213, %v3212
      %v3229 = vpack.c.b16 %v3215, %v3214
      %v3230 = vpack.c.b16 %v3217, %v3216
      %v3231 = vpack.c.b16 %v3219, %v3218
      %v3232 = vpack.c.b16 %v3221, %v3220
      %v3233 = vpack.c.b16 %v3223, %v3222
      %v3234 = vpack.c.b16 %v3225, %v3224
      %v3235 = vpack.c.b16 %v3227, %v3226
      %3244 = vmatprep.subr.bf16.mxu0 0
      %3245 = vmatpush1.bf16.msra.mxu0 %v3228
      %3246 = vmatprep.subr.bf16.mxu0 0
      %3247 = vmatpush1.bf16.msra.mxu0 %v3229
      %3248 = vmatprep.subr.bf16.mxu0 0
      %3249 = vmatpush1.bf16.msra.mxu0 %v3230
      %3250 = vmatprep.subr.bf16.mxu0 0
      %3251 = vmatpush1.bf16.msra.mxu0 %v3231
      %3252 = vmatprep.subr.bf16.mxu0 0
      %3253 = vmatpush1.bf16.msra.mxu0 %v3232
      %3254 = vmatprep.subr.bf16.mxu0 0
      %3255 = vmatpush1.bf16.msra.mxu0 %v3233
      %3256 = vmatprep.subr.bf16.mxu0 0
      %3257 = vmatpush1.bf16.msra.mxu0 %v3234
      %3258 = vmatprep.subr.bf16.mxu0 0
      %3259 = vmatpush1.bf16.msra.mxu0 %v3235
      %3260 = vmatprep.subr.bf16.mxu0 0
      %3261 = vmatpush1.bf16.msra.mxu0 0
      %3262 = vmatprep.subr.bf16.mxu0 0
      %3263 = vmatpush1.bf16.msra.mxu0 0
      %3264 = vmatprep.subr.bf16.mxu0 0
      %3265 = vmatpush1.bf16.msra.mxu0 0
      %3266 = vmatprep.subr.bf16.mxu0 0
      %3267 = vmatpush1.bf16.msra.mxu0 0
      %3268 = vmatprep.subr.bf16.mxu0 0
      %3269 = vmatpush1.bf16.msra.mxu0 0
      %3270 = vmatprep.subr.bf16.mxu0 0
      %3271 = vmatpush1.bf16.msra.mxu0 0
      %3272 = vmatprep.subr.bf16.mxu0 0
      %3273 = vmatpush1.bf16.msra.mxu0 0
      %3274 = vmatprep.subr.bf16.mxu0 0
      %3275 = vmatpush1.bf16.msra.mxu0 0
      %3276 = vmatprep.mubr.bf16.mxu0 0
      %3277 = vmatmul.mubr.bf16.gmra.mrb[0].mxu0 %v3174
      %v3278 = vpop.f32.mrb[0].mxu0
      %v3279 = vadd.f32 0.0, %v3278
      %v3280 = vpop.f32.mrb[0].mxu0
      %v3281 = vpop.f32.mrb[0].mxu0
      %v3282 = vadd.f32 0.0, %v3281
      %v3283 = vpop.f32.mrb[0].mxu0
      %3284 = vmatprep.mubr.bf16.mxu0 0
      %3285 = vmatmul.mubr.bf16.gmra.mrb[0].mxu0 %v3175
      %v3286 = vpop.f32.mrb[0].mxu0
      %v3287 = vadd.f32 0.0, %v3286
      %v3288 = vpop.f32.mrb[0].mxu0
      %v3289 = vpop.f32.mrb[0].mxu0
      %v3290 = vadd.f32 0.0, %v3289
      %v3291 = vpop.f32.mrb[0].mxu0
      %3292 = vmatprep.mubr.bf16.mxu0 0
      %3293 = vmatmul.mubr.bf16.gmra.mrb[0].mxu0 %v3176
      %v3294 = vpop.f32.mrb[0].mxu0
      %v3295 = vadd.f32 0.0, %v3294
      %v3296 = vpop.f32.mrb[0].mxu0
      %v3297 = vpop.f32.mrb[0].mxu0
      %v3298 = vadd.f32 0.0, %v3297
      %v3299 = vpop.f32.mrb[0].mxu0
      %3300 = vmatprep.mubr.bf16.mxu0 0
      %3301 = vmatmul.mubr.bf16.gmra.mrb[0].mxu0 %v3177
      %v3302 = vpop.f32.mrb[0].mxu0
      %v3303 = vadd.f32 0.0, %v3302
      %v3304 = vpop.f32.mrb[0].mxu0
      %v3305 = vpop.f32.mrb[0].mxu0
      %v3306 = vadd.f32 0.0, %v3305
      %v3307 = vpop.f32.mrb[0].mxu0
      %3308 = vmatprep.mubr.bf16.mxu0 0
      %3309 = vmatmul.mubr.bf16.gmra.mrb[0].mxu0 %v3178
      %v3310 = vpop.f32.mrb[0].mxu0
      %v3311 = vadd.f32 0.0, %v3310
      %v3312 = vpop.f32.mrb[0].mxu0
      %v3313 = vpop.f32.mrb[0].mxu0
      %v3314 = vadd.f32 0.0, %v3313
      %v3315 = vpop.f32.mrb[0].mxu0
      %3316 = vdwg.mxu0
      %v3317 = vadd.f32 %v3154, %v3279
      %v3318 = vadd.f32 %v3155, %v3282
      %v3319 = vadd.f32 %v3156, %v3287
      %v3320 = vadd.f32 %v3157, %v3290
      %v3321 = vadd.f32 %v3158, %v3295
      %v3322 = vadd.f32 %v3159, %v3298
      %v3323 = vadd.f32 %v3160, %v3303
      %v3324 = vadd.f32 %v3161, %v3306
      %v3325 = vadd.f32 %v3162, %v3311
      %v3326 = vadd.f32 %v3163, %v3314
      %v3327 = vld [vmem:[#allocation3 + $0x14] sm:$0xff]
      %v3328 = vld [vmem:[#allocation3 + $0x1c] sm:$0xff]
      %v3329 = vld [vmem:[#allocation3 + $0x24] sm:$0xff]
      %v3330 = vld [vmem:[#allocation3 + $0x2c] sm:$0xff]
      %v3331 = vld [vmem:[#allocation3 + $0x34] sm:$0xff]
      %v3332 = vld [vmem:[#allocation3 + $0x3c] sm:$0xff]
      %v3333 = vld [vmem:[#allocation3 + $0x44] sm:$0xff]
      %v3334 = vld [vmem:[#allocation3 + $0x4c] sm:$0xff]
      %v3335 = vld [vmem:[#allocation3 + $0x54] sm:$0xff]
      %v3336 = vld [vmem:[#allocation3 + $0x5c] sm:$0xff]
      %v3337 = vpack.c.bf16 %v3328, %v3327
      %v3338 = vpack.c.bf16 %v3330, %v3329
      %v3339 = vpack.c.bf16 %v3332, %v3331
      %v3340 = vpack.c.bf16 %v3334, %v3333
      %v3341 = vpack.c.bf16 %v3336, %v3335
      %s3342 = scalar_lea.vmem %s5, 384
      %v3343 = vld [vmem:[%s3342] sm:$0xf]
      %v3344 = vld [vmem:[%s3342 + $0x4] sm:$0xf]
      %v3345 = vld [vmem:[%s3342 + $0x8] sm:$0xf]
      %v3346 = vld [vmem:[%s3342 + $0xc] sm:$0xf]
      %v3347 = vld [vmem:[%s3342 + $0x10] sm:$0xf]
      %v3348 = vld [vmem:[%s3342 + $0x14] sm:$0xf]
      %v3349 = vld [vmem:[%s3342 + $0x18] sm:$0xf]
      %v3350 = vld [vmem:[%s3342 + $0x1c] sm:$0xf]
      %v3351 = vld [vmem:[%s3342 + $0x20] sm:$0xf]
      %v3352 = vld [vmem:[%s3342 + $0x24] sm:$0xf]
      %v3353 = vld [vmem:[%s3342 + $0x28] sm:$0xf]
      %v3354 = vld [vmem:[%s3342 + $0x2c] sm:$0xf]
      %v3355 = vld [vmem:[%s3342 + $0x30] sm:$0xf]
      %v3356 = vld [vmem:[%s3342 + $0x34] sm:$0xf]
      %v3357 = vld [vmem:[%s3342 + $0x38] sm:$0xf]
      %v3358 = vld [vmem:[%s3342 + $0x3c] sm:$0xf]
      %v3375 = vunpack.c.l.b16 %v3343
      %v3376 = vunpack.c.l.b16 %v3344
      %v3377 = vunpack.c.l.b16 %v3345
      %v3378 = vunpack.c.l.b16 %v3346
      %v3379 = vunpack.c.l.b16 %v3347
      %v3380 = vunpack.c.l.b16 %v3348
      %v3381 = vunpack.c.l.b16 %v3349
      %v3382 = vunpack.c.l.b16 %v3350
      %v3383 = vunpack.c.l.b16 %v3351
      %v3384 = vunpack.c.l.b16 %v3352
      %v3385 = vunpack.c.l.b16 %v3353
      %v3386 = vunpack.c.l.b16 %v3354
      %v3387 = vunpack.c.l.b16 %v3355
      %v3388 = vunpack.c.l.b16 %v3356
      %v3389 = vunpack.c.l.b16 %v3357
      %v3390 = vunpack.c.l.b16 %v3358
      %v3391 = vpack.c.b16 %v3376, %v3375
      %v3392 = vpack.c.b16 %v3378, %v3377
      %v3393 = vpack.c.b16 %v3380, %v3379
      %v3394 = vpack.c.b16 %v3382, %v3381
      %v3395 = vpack.c.b16 %v3384, %v3383
      %v3396 = vpack.c.b16 %v3386, %v3385
      %v3397 = vpack.c.b16 %v3388, %v3387
      %v3398 = vpack.c.b16 %v3390, %v3389
      %3407 = vmatprep.subr.bf16.mxu0 0
      %3408 = vmatpush1.bf16.msra.mxu0 %v3391
      %3409 = vmatprep.subr.bf16.mxu0 0
      %3410 = vmatpush1.bf16.msra.mxu0 %v3392
      %3411 = vmatprep.subr.bf16.mxu0 0
      %3412 = vmatpush1.bf16.msra.mxu0 %v3393
      %3413 = vmatprep.subr.bf16.mxu0 0
      %3414 = vmatpush1.bf16.msra.mxu0 %v3394
      %3415 = vmatprep.subr.bf16.mxu0 0
      %3416 = vmatpush1.bf16.msra.mxu0 %v3395
      %3417 = vmatprep.subr.bf16.mxu0 0
      %3418 = vmatpush1.bf16.msra.mxu0 %v3396
      %3419 = vmatprep.subr.bf16.mxu0 0
      %3420 = vmatpush1.bf16.msra.mxu0 %v3397
      %3421 = vmatprep.subr.bf16.mxu0 0
      %3422 = vmatpush1.bf16.msra.mxu0 %v3398
      %3423 = vmatprep.subr.bf16.mxu0 0
      %3424 = vmatpush1.bf16.msra.mxu0 0
      %3425 = vmatprep.subr.bf16.mxu0 0
      %3426 = vmatpush1.bf16.msra.mxu0 0
      %3427 = vmatprep.subr.bf16.mxu0 0
      %3428 = vmatpush1.bf16.msra.mxu0 0
      %3429 = vmatprep.subr.bf16.mxu0 0
      %3430 = vmatpush1.bf16.msra.mxu0 0
      %3431 = vmatprep.subr.bf16.mxu0 0
      %3432 = vmatpush1.bf16.msra.mxu0 0
      %3433 = vmatprep.subr.bf16.mxu0 0
      %3434 = vmatpush1.bf16.msra.mxu0 0
      %3435 = vmatprep.subr.bf16.mxu0 0
      %3436 = vmatpush1.bf16.msra.mxu0 0
      %3437 = vmatprep.subr.bf16.mxu0 0
      %3438 = vmatpush1.bf16.msra.mxu0 0
      %3439 = vmatprep.mubr.bf16.mxu0 0
      %3440 = vmatmul.mubr.bf16.gmra.mrb[0].mxu0 %v3337
      %v3441 = vpop.f32.mrb[0].mxu0
      %v3442 = vadd.f32 0.0, %v3441
      %v3443 = vpop.f32.mrb[0].mxu0
      %v3444 = vpop.f32.mrb[0].mxu0
      %v3445 = vadd.f32 0.0, %v3444
      %v3446 = vpop.f32.mrb[0].mxu0
      %3447 = vmatprep.mubr.bf16.mxu0 0
      %3448 = vmatmul.mubr.bf16.gmra.mrb[0].mxu0 %v3338
      %v3449 = vpop.f32.mrb[0].mxu0
      %v3450 = vadd.f32 0.0, %v3449
      %v3451 = vpop.f32.mrb[0].mxu0
      %v3452 = vpop.f32.mrb[0].mxu0
      %v3453 = vadd.f32 0.0, %v3452
      %v3454 = vpop.f32.mrb[0].mxu0
      %3455 = vmatprep.mubr.bf16.mxu0 0
      %3456 = vmatmul.mubr.bf16.gmra.mrb[0].mxu0 %v3339
      %v3457 = vpop.f32.mrb[0].mxu0
      %v3458 = vadd.f32 0.0, %v3457
      %v3459 = vpop.f32.mrb[0].mxu0
      %v3460 = vpop.f32.mrb[0].mxu0
      %v3461 = vadd.f32 0.0, %v3460
      %v3462 = vpop.f32.mrb[0].mxu0
      %3463 = vmatprep.mubr.bf16.mxu0 0
      %3464 = vmatmul.mubr.bf16.gmra.mrb[0].mxu0 %v3340
      %v3465 = vpop.f32.mrb[0].mxu0
      %v3466 = vadd.f32 0.0, %v3465
      %v3467 = vpop.f32.mrb[0].mxu0
      %v3468 = vpop.f32.mrb[0].mxu0
      %v3469 = vadd.f32 0.0, %v3468
      %v3470 = vpop.f32.mrb[0].mxu0
      %3471 = vmatprep.mubr.bf16.mxu0 0
      %3472 = vmatmul.mubr.bf16.gmra.mrb[0].mxu0 %v3341
      %v3473 = vpop.f32.mrb[0].mxu0
      %v3474 = vadd.f32 0.0, %v3473
      %v3475 = vpop.f32.mrb[0].mxu0
      %v3476 = vpop.f32.mrb[0].mxu0
      %v3477 = vadd.f32 0.0, %v3476
      %v3478 = vpop.f32.mrb[0].mxu0
      %3479 = vdwg.mxu0
      %v3480 = vadd.f32 %v3317, %v3442
      %v3481 = vadd.f32 %v3318, %v3445
      %v3482 = vadd.f32 %v3319, %v3450
      %v3483 = vadd.f32 %v3320, %v3453
      %v3484 = vadd.f32 %v3321, %v3458
      %v3485 = vadd.f32 %v3322, %v3461
      %v3486 = vadd.f32 %v3323, %v3466
      %v3487 = vadd.f32 %v3324, %v3469
      %v3488 = vadd.f32 %v3325, %v3474
      %v3489 = vadd.f32 %v3326, %v3477
      %v3490 = vld [vmem:[#allocation3 + $0x15] sm:$0xff]
      %v3491 = vld [vmem:[#allocation3 + $0x1d] sm:$0xff]
      %v3492 = vld [vmem:[#allocation3 + $0x25] sm:$0xff]
      %v3493 = vld [vmem:[#allocation3 + $0x2d] sm:$0xff]
      %v3494 = vld [vmem:[#allocation3 + $0x35] sm:$0xff]
      %v3495 = vld [vmem:[#allocation3 + $0x3d] sm:$0xff]
      %v3496 = vld [vmem:[#allocation3 + $0x45] sm:$0xff]
      %v3497 = vld [vmem:[#allocation3 + $0x4d] sm:$0xff]
      %v3498 = vld [vmem:[#allocation3 + $0x55] sm:$0xff]
      %v3499 = vld [vmem:[#allocation3 + $0x5d] sm:$0xff]
      %v3500 = vpack.c.bf16 %v3491, %v3490
      %v3501 = vpack.c.bf16 %v3493, %v3492
      %v3502 = vpack.c.bf16 %v3495, %v3494
      %v3503 = vpack.c.bf16 %v3497, %v3496
      %v3504 = vpack.c.bf16 %v3499, %v3498
      %s3505 = scalar_lea.vmem %s5, 448
      %v3506 = vld [vmem:[%s3505] sm:$0xf]
      %v3507 = vld [vmem:[%s3505 + $0x4] sm:$0xf]
      %v3508 = vld [vmem:[%s3505 + $0x8] sm:$0xf]
      %v3509 = vld [vmem:[%s3505 + $0xc] sm:$0xf]
      %v3510 = vld [vmem:[%s3505 + $0x10] sm:$0xf]
      %v3511 = vld [vmem:[%s3505 + $0x14] sm:$0xf]
      %v3512 = vld [vmem:[%s3505 + $0x18] sm:$0xf]
      %v3513 = vld [vmem:[%s3505 + $0x1c] sm:$0xf]
      %v3514 = vld [vmem:[%s3505 + $0x20] sm:$0xf]
      %v3515 = vld [vmem:[%s3505 + $0x24] sm:$0xf]
      %v3516 = vld [vmem:[%s3505 + $0x28] sm:$0xf]
      %v3517 = vld [vmem:[%s3505 + $0x2c] sm:$0xf]
      %v3518 = vld [vmem:[%s3505 + $0x30] sm:$0xf]
      %v3519 = vld [vmem:[%s3505 + $0x34] sm:$0xf]
      %v3520 = vld [vmem:[%s3505 + $0x38] sm:$0xf]
      %v3521 = vld [vmem:[%s3505 + $0x3c] sm:$0xf]
      %v3538 = vunpack.c.l.b16 %v3506
      %v3539 = vunpack.c.l.b16 %v3507
      %v3540 = vunpack.c.l.b16 %v3508
      %v3541 = vunpack.c.l.b16 %v3509
      %v3542 = vunpack.c.l.b16 %v3510
      %v3543 = vunpack.c.l.b16 %v3511
      %v3544 = vunpack.c.l.b16 %v3512
      %v3545 = vunpack.c.l.b16 %v3513
      %v3546 = vunpack.c.l.b16 %v3514
      %v3547 = vunpack.c.l.b16 %v3515
      %v3548 = vunpack.c.l.b16 %v3516
      %v3549 = vunpack.c.l.b16 %v3517
      %v3550 = vunpack.c.l.b16 %v3518
      %v3551 = vunpack.c.l.b16 %v3519
      %v3552 = vunpack.c.l.b16 %v3520
      %v3553 = vunpack.c.l.b16 %v3521
      %v3554 = vpack.c.b16 %v3539, %v3538
      %v3555 = vpack.c.b16 %v3541, %v3540
      %v3556 = vpack.c.b16 %v3543, %v3542
      %v3557 = vpack.c.b16 %v3545, %v3544
      %v3558 = vpack.c.b16 %v3547, %v3546
      %v3559 = vpack.c.b16 %v3549, %v3548
      %v3560 = vpack.c.b16 %v3551, %v3550
      %v3561 = vpack.c.b16 %v3553, %v3552
      %3570 = vmatprep.subr.bf16.mxu0 0
      %3571 = vmatpush1.bf16.msra.mxu0 %v3554
      %3572 = vmatprep.subr.bf16.mxu0 0
      %3573 = vmatpush1.bf16.msra.mxu0 %v3555
      %3574 = vmatprep.subr.bf16.mxu0 0
      %3575 = vmatpush1.bf16.msra.mxu0 %v3556
      %3576 = vmatprep.subr.bf16.mxu0 0
      %3577 = vmatpush1.bf16.msra.mxu0 %v3557
      %3578 = vmatprep.subr.bf16.mxu0 0
      %3579 = vmatpush1.bf16.msra.mxu0 %v3558
      %3580 = vmatprep.subr.bf16.mxu0 0
      %3581 = vmatpush1.bf16.msra.mxu0 %v3559
      %3582 = vmatprep.subr.bf16.mxu0 0
      %3583 = vmatpush1.bf16.msra.mxu0 %v3560
      %3584 = vmatprep.subr.bf16.mxu0 0
      %3585 = vmatpush1.bf16.msra.mxu0 %v3561
      %3586 = vmatprep.subr.bf16.mxu0 0
      %3587 = vmatpush1.bf16.msra.mxu0 0
      %3588 = vmatprep.subr.bf16.mxu0 0
      %3589 = vmatpush1.bf16.msra.mxu0 0
      %3590 = vmatprep.subr.bf16.mxu0 0
      %3591 = vmatpush1.bf16.msra.mxu0 0
      %3592 = vmatprep.subr.bf16.mxu0 0
      %3593 = vmatpush1.bf16.msra.mxu0 0
      %3594 = vmatprep.subr.bf16.mxu0 0
      %3595 = vmatpush1.bf16.msra.mxu0 0
      %3596 = vmatprep.subr.bf16.mxu0 0
      %3597 = vmatpush1.bf16.msra.mxu0 0
      %3598 = vmatprep.subr.bf16.mxu0 0
      %3599 = vmatpush1.bf16.msra.mxu0 0
      %3600 = vmatprep.subr.bf16.mxu0 0
      %3601 = vmatpush1.bf16.msra.mxu0 0
      %3602 = vmatprep.mubr.bf16.mxu0 0
      %3603 = vmatmul.mubr.bf16.gmra.mrb[0].mxu0 %v3500
      %v3604 = vpop.f32.mrb[0].mxu0
      %v3605 = vadd.f32 0.0, %v3604
      %v3606 = vpop.f32.mrb[0].mxu0
      %v3607 = vpop.f32.mrb[0].mxu0
      %v3608 = vadd.f32 0.0, %v3607
      %v3609 = vpop.f32.mrb[0].mxu0
      %3610 = vmatprep.mubr.bf16.mxu0 0
      %3611 = vmatmul.mubr.bf16.gmra.mrb[0].mxu0 %v3501
      %v3612 = vpop.f32.mrb[0].mxu0
      %v3613 = vadd.f32 0.0, %v3612
      %v3614 = vpop.f32.mrb[0].mxu0
      %v3615 = vpop.f32.mrb[0].mxu0
      %v3616 = vadd.f32 0.0, %v3615
      %v3617 = vpop.f32.mrb[0].mxu0
      %3618 = vmatprep.mubr.bf16.mxu0 0
      %3619 = vmatmul.mubr.bf16.gmra.mrb[0].mxu0 %v3502
      %v3620 = vpop.f32.mrb[0].mxu0
      %v3621 = vadd.f32 0.0, %v3620
      %v3622 = vpop.f32.mrb[0].mxu0
      %v3623 = vpop.f32.mrb[0].mxu0
      %v3624 = vadd.f32 0.0, %v3623
      %v3625 = vpop.f32.mrb[0].mxu0
      %3626 = vmatprep.mubr.bf16.mxu0 0
      %3627 = vmatmul.mubr.bf16.gmra.mrb[0].mxu0 %v3503
      %v3628 = vpop.f32.mrb[0].mxu0
      %v3629 = vadd.f32 0.0, %v3628
      %v3630 = vpop.f32.mrb[0].mxu0
      %v3631 = vpop.f32.mrb[0].mxu0
      %v3632 = vadd.f32 0.0, %v3631
      %v3633 = vpop.f32.mrb[0].mxu0
      %3634 = vmatprep.mubr.bf16.mxu0 0
      %3635 = vmatmul.mubr.bf16.gmra.mrb[0].mxu0 %v3504
      %v3636 = vpop.f32.mrb[0].mxu0
      %v3637 = vadd.f32 0.0, %v3636
      %v3638 = vpop.f32.mrb[0].mxu0
      %v3639 = vpop.f32.mrb[0].mxu0
      %v3640 = vadd.f32 0.0, %v3639
      %v3641 = vpop.f32.mrb[0].mxu0
      %3642 = vdwg.mxu0
      %v3643 = vadd.f32 %v3480, %v3605
      %v3644 = vadd.f32 %v3481, %v3608
      %v3645 = vadd.f32 %v3482, %v3613
      %v3646 = vadd.f32 %v3483, %v3616
      %v3647 = vadd.f32 %v3484, %v3621
      %v3648 = vadd.f32 %v3485, %v3624
      %v3649 = vadd.f32 %v3486, %v3629
      %v3650 = vadd.f32 %v3487, %v3632
      %v3651 = vadd.f32 %v3488, %v3637
      %v3652 = vadd.f32 %v3489, %v3640
      %v3653 = vld [vmem:[#allocation3 + $0x16] sm:$0xff]
      %v3654 = vld [vmem:[#allocation3 + $0x1e] sm:$0xff]
      %v3655 = vld [vmem:[#allocation3 + $0x26] sm:$0xff]
      %v3656 = vld [vmem:[#allocation3 + $0x2e] sm:$0xff]
      %v3657 = vld [vmem:[#allocation3 + $0x36] sm:$0xff]
      %v3658 = vld [vmem:[#allocation3 + $0x3e] sm:$0xff]
      %v3659 = vld [vmem:[#allocation3 + $0x46] sm:$0xff]
      %v3660 = vld [vmem:[#allocation3 + $0x4e] sm:$0xff]
      %v3661 = vld [vmem:[#allocation3 + $0x56] sm:$0xff]
      %v3662 = vld [vmem:[#allocation3 + $0x5e] sm:$0xff]
      %v3663 = vpack.c.bf16 %v3654, %v3653
      %v3664 = vpack.c.bf16 %v3656, %v3655
      %v3665 = vpack.c.bf16 %v3658, %v3657
      %v3666 = vpack.c.bf16 %v3660, %v3659
      %v3667 = vpack.c.bf16 %v3662, %v3661
      %s3668 = scalar_lea.vmem %s5, 512
      %v3669 = vld [vmem:[%s3668] sm:$0xf]
      %v3670 = vld [vmem:[%s3668 + $0x4] sm:$0xf]
      %v3671 = vld [vmem:[%s3668 + $0x8] sm:$0xf]
      %v3672 = vld [vmem:[%s3668 + $0xc] sm:$0xf]
      %v3673 = vld [vmem:[%s3668 + $0x10] sm:$0xf]
      %v3674 = vld [vmem:[%s3668 + $0x14] sm:$0xf]
      %v3675 = vld [vmem:[%s3668 + $0x18] sm:$0xf]
      %v3676 = vld [vmem:[%s3668 + $0x1c] sm:$0xf]
      %v3677 = vld [vmem:[%s3668 + $0x20] sm:$0xf]
      %v3678 = vld [vmem:[%s3668 + $0x24] sm:$0xf]
      %v3679 = vld [vmem:[%s3668 + $0x28] sm:$0xf]
      %v3680 = vld [vmem:[%s3668 + $0x2c] sm:$0xf]
      %v3681 = vld [vmem:[%s3668 + $0x30] sm:$0xf]
      %v3682 = vld [vmem:[%s3668 + $0x34] sm:$0xf]
      %v3683 = vld [vmem:[%s3668 + $0x38] sm:$0xf]
      %v3684 = vld [vmem:[%s3668 + $0x3c] sm:$0xf]
      %v3701 = vunpack.c.l.b16 %v3669
      %v3702 = vunpack.c.l.b16 %v3670
      %v3703 = vunpack.c.l.b16 %v3671
      %v3704 = vunpack.c.l.b16 %v3672
      %v3705 = vunpack.c.l.b16 %v3673
      %v3706 = vunpack.c.l.b16 %v3674
      %v3707 = vunpack.c.l.b16 %v3675
      %v3708 = vunpack.c.l.b16 %v3676
      %v3709 = vunpack.c.l.b16 %v3677
      %v3710 = vunpack.c.l.b16 %v3678
      %v3711 = vunpack.c.l.b16 %v3679
      %v3712 = vunpack.c.l.b16 %v3680
      %v3713 = vunpack.c.l.b16 %v3681
      %v3714 = vunpack.c.l.b16 %v3682
      %v3715 = vunpack.c.l.b16 %v3683
      %v3716 = vunpack.c.l.b16 %v3684
      %v3717 = vpack.c.b16 %v3702, %v3701
      %v3718 = vpack.c.b16 %v3704, %v3703
      %v3719 = vpack.c.b16 %v3706, %v3705
      %v3720 = vpack.c.b16 %v3708, %v3707
      %v3721 = vpack.c.b16 %v3710, %v3709
      %v3722 = vpack.c.b16 %v3712, %v3711
      %v3723 = vpack.c.b16 %v3714, %v3713
      %v3724 = vpack.c.b16 %v3716, %v3715
      %3733 = vmatprep.subr.bf16.mxu0 0
      %3734 = vmatpush1.bf16.msra.mxu0 %v3717
      %3735 = vmatprep.subr.bf16.mxu0 0
      %3736 = vmatpush1.bf16.msra.mxu0 %v3718
      %3737 = vmatprep.subr.bf16.mxu0 0
      %3738 = vmatpush1.bf16.msra.mxu0 %v3719
      %3739 = vmatprep.subr.bf16.mxu0 0
      %3740 = vmatpush1.bf16.msra.mxu0 %v3720
      %3741 = vmatprep.subr.bf16.mxu0 0
      %3742 = vmatpush1.bf16.msra.mxu0 %v3721
      %3743 = vmatprep.subr.bf16.mxu0 0
      %3744 = vmatpush1.bf16.msra.mxu0 %v3722
      %3745 = vmatprep.subr.bf16.mxu0 0
      %3746 = vmatpush1.bf16.msra.mxu0 %v3723
      %3747 = vmatprep.subr.bf16.mxu0 0
      %3748 = vmatpush1.bf16.msra.mxu0 %v3724
      %3749 = vmatprep.subr.bf16.mxu0 0
      %3750 = vmatpush1.bf16.msra.mxu0 0
      %3751 = vmatprep.subr.bf16.mxu0 0
      %3752 = vmatpush1.bf16.msra.mxu0 0
      %3753 = vmatprep.subr.bf16.mxu0 0
      %3754 = vmatpush1.bf16.msra.mxu0 0
      %3755 = vmatprep.subr.bf16.mxu0 0
      %3756 = vmatpush1.bf16.msra.mxu0 0
      %3757 = vmatprep.subr.bf16.mxu0 0
      %3758 = vmatpush1.bf16.msra.mxu0 0
      %3759 = vmatprep.subr.bf16.mxu0 0
      %3760 = vmatpush1.bf16.msra.mxu0 0
      %3761 = vmatprep.subr.bf16.mxu0 0
      %3762 = vmatpush1.bf16.msra.mxu0 0
      %3763 = vmatprep.subr.bf16.mxu0 0
      %3764 = vmatpush1.bf16.msra.mxu0 0
      %3765 = vmatprep.mubr.bf16.mxu0 0
      %3766 = vmatmul.mubr.bf16.gmra.mrb[0].mxu0 %v3663
      %v3767 = vpop.f32.mrb[0].mxu0
      %v3768 = vadd.f32 0.0, %v3767
      %v3769 = vpop.f32.mrb[0].mxu0
      %v3770 = vpop.f32.mrb[0].mxu0
      %v3771 = vadd.f32 0.0, %v3770
      %v3772 = vpop.f32.mrb[0].mxu0
      %3773 = vmatprep.mubr.bf16.mxu0 0
      %3774 = vmatmul.mubr.bf16.gmra.mrb[0].mxu0 %v3664
      %v3775 = vpop.f32.mrb[0].mxu0
      %v3776 = vadd.f32 0.0, %v3775
      %v3777 = vpop.f32.mrb[0].mxu0
      %v3778 = vpop.f32.mrb[0].mxu0
      %v3779 = vadd.f32 0.0, %v3778
      %v3780 = vpop.f32.mrb[0].mxu0
      %3781 = vmatprep.mubr.bf16.mxu0 0
      %3782 = vmatmul.mubr.bf16.gmra.mrb[0].mxu0 %v3665
      %v3783 = vpop.f32.mrb[0].mxu0
      %v3784 = vadd.f32 0.0, %v3783
      %v3785 = vpop.f32.mrb[0].mxu0
      %v3786 = vpop.f32.mrb[0].mxu0
      %v3787 = vadd.f32 0.0, %v3786
      %v3788 = vpop.f32.mrb[0].mxu0
      %3789 = vmatprep.mubr.bf16.mxu0 0
      %3790 = vmatmul.mubr.bf16.gmra.mrb[0].mxu0 %v3666
      %v3791 = vpop.f32.mrb[0].mxu0
      %v3792 = vadd.f32 0.0, %v3791
      %v3793 = vpop.f32.mrb[0].mxu0
      %v3794 = vpop.f32.mrb[0].mxu0
      %v3795 = vadd.f32 0.0, %v3794
      %v3796 = vpop.f32.mrb[0].mxu0
      %3797 = vmatprep.mubr.bf16.mxu0 0
      %3798 = vmatmul.mubr.bf16.gmra.mrb[0].mxu0 %v3667
      %v3799 = vpop.f32.mrb[0].mxu0
      %v3800 = vadd.f32 0.0, %v3799
      %v3801 = vpop.f32.mrb[0].mxu0
      %v3802 = vpop.f32.mrb[0].mxu0
      %v3803 = vadd.f32 0.0, %v3802
      %v3804 = vpop.f32.mrb[0].mxu0
      %3805 = vdwg.mxu0
      %v3806 = vadd.f32 %v3643, %v3768
      %v3807 = vadd.f32 %v3644, %v3771
      %v3808 = vadd.f32 %v3645, %v3776
      %v3809 = vadd.f32 %v3646, %v3779
      %v3810 = vadd.f32 %v3647, %v3784
      %v3811 = vadd.f32 %v3648, %v3787
      %v3812 = vadd.f32 %v3649, %v3792
      %v3813 = vadd.f32 %v3650, %v3795
      %v3814 = vadd.f32 %v3651, %v3800
      %v3815 = vadd.f32 %v3652, %v3803
      %v3816 = vld [vmem:[%s6] sm:$0x1]
      %v3818 = vlaneseq
      %v3819 = vshrl.u32 %v3818, 7
      %v3820 = vsub.s32 0, %v3819
      %v3821 = vrot.slane %v3816, %v3820
      %v3823 = vadd.f32 %v3806, %v3821
      %v3824 = vadd.f32 %v3807, %v3821
      %v3825 = vadd.f32 %v3808, %v3821
      %v3826 = vadd.f32 %v3809, %v3821
      %v3827 = vadd.f32 %v3810, %v3821
      %v3828 = vadd.f32 %v3811, %v3821
      %v3829 = vadd.f32 %v3812, %v3821
      %v3830 = vadd.f32 %v3813, %v3821
      %v3831 = vadd.f32 %v3814, %v3821
      %v3832 = vadd.f32 %v3815, %v3821
      %v3833 = vmax.f32 %v3823, 0.0
      %v3834 = vmax.f32 %v3824, 0.0
      %v3835 = vmax.f32 %v3825, 0.0
      %v3836 = vmax.f32 %v3826, 0.0
      %v3837 = vmax.f32 %v3827, 0.0
      %v3838 = vmax.f32 %v3828, 0.0
      %v3839 = vmax.f32 %v3829, 0.0
      %v3840 = vmax.f32 %v3830, 0.0
      %v3841 = vmax.f32 %v3831, 0.0
      %v3842 = vmax.f32 %v3832, 0.0
      %3843 = vst.msk [vmem:[#allocation4] sm:$0xff] %vm826, 0.0
      %3844 = vst.msk [vmem:[#allocation4 + $0x8] sm:$0xff] %vm826, 0.0
      %3845 = vst.msk [vmem:[#allocation4 + $0x10] sm:$0xff] %vm826, 0.0
      %3846 = vst.msk [vmem:[#allocation4 + $0x18] sm:$0xff] %vm826, 0.0
      %3847 = vst.msk [vmem:[#allocation4 + $0x20] sm:$0xff] %vm826, 0.0
      %3848 = vst.msk [vmem:[#allocation4 + $0x28] sm:$0xff] %vm826, 0.0
      %3849 = vst.msk [vmem:[#allocation4 + $0x30] sm:$0xff] %vm826, 0.0
      %3850 = vst.msk [vmem:[#allocation4 + $0x38] sm:$0xff] %vm826, 0.0
      %3851 = vst.msk [vmem:[#allocation4 + $0x40] sm:$0xff] %vm826, 0.0
      %3852 = vst.msk [vmem:[#allocation4 + $0x48] sm:$0xff] %vm826, 0.0
      %3853 = vst.msk [vmem:[#allocation4 + $0x50] sm:$0xff] %vm826, 0.0
      %3854 = vst.msk [vmem:[#allocation4 + $0x58] sm:$0xff] %vm826, 0.0
      %3855 = vst.msk [vmem:[#allocation4 + $0x60] sm:$0xff] %vm826, 0.0
      %3856 = vst.msk [vmem:[#allocation4 + $0x68] sm:$0xff] %vm826, 0.0
      %3857 = vst.msk [vmem:[#allocation4 + $0x70] sm:$0xff] %vm826, 0.0
      %3858 = vst.msk [vmem:[#allocation4 + $0x78] sm:$0xff] %vm826, 0.0
      %3859 = vst.msk [vmem:[#allocation4 + $0x80] sm:$0xff] %vm826, 0.0
      %3860 = vst.msk [vmem:[#allocation4 + $0x88] sm:$0xff] %vm826, 0.0
      %3861 = vst.msk [vmem:[#allocation4 + $0x90] sm:$0xff] %vm826, 0.0
      %3862 = vst.msk [vmem:[#allocation4 + $0x98] sm:$0xff] %vm826, 0.0
      %3863 = vst.msk [vmem:[#allocation4 + $0xa0] sm:$0xff] %vm826, 0.0
      %3864 = vst.msk [vmem:[#allocation4 + $0xa8] sm:$0xff] %vm826, 0.0
      %3865 = vst.msk [vmem:[#allocation4 + $0xb0] sm:$0xff] %vm826, 0.0
      %3866 = vst.msk [vmem:[#allocation4 + $0xb8] sm:$0xff] %vm826, 0.0
      %3867 = vst.msk [vmem:[#allocation4 + $0xc0] sm:$0xff] %vm826, 0.0
      %3868 = vst.msk [vmem:[#allocation4 + $0xc8] sm:$0xff] %vm826, 0.0
      %3869 = vst.msk [vmem:[#allocation4 + $0xd0] sm:$0xff] %vm826, 0.0
      %3870 = vst.msk [vmem:[#allocation4 + $0xd8] sm:$0xff] %vm826, 0.0
      %3871 = vst.msk [vmem:[#allocation4 + $0xe0] sm:$0xff] %vm826, 0.0
      %3872 = vst.msk [vmem:[#allocation4 + $0xe8] sm:$0xff] %vm826, 0.0
      %3873 = vst.msk [vmem:[#allocation4 + $0xf0] sm:$0xff] %vm826, 0.0
      %3874 = vst.msk [vmem:[#allocation4 + $0xf8] sm:$0xff] %vm826, 0.0
      %3875 = vst.msk [vmem:[#allocation4 + $0x100] sm:$0xff] %vm826, 0.0
      %3876 = vst.msk [vmem:[#allocation4 + $0x108] sm:$0xff] %vm826, 0.0
      %3877 = vst.msk [vmem:[#allocation4 + $0x110] sm:$0xff] %vm826, 0.0
      %3878 = vst.msk [vmem:[#allocation4 + $0x118] sm:$0xff] %vm826, 0.0
      %3879 = vst.msk [vmem:[#allocation4 + $0x120] sm:$0xff] %vm826, 0.0
      %3880 = vst.msk [vmem:[#allocation4 + $0x128] sm:$0xff] %vm826, 0.0
      %3881 = vst.msk [vmem:[#allocation4 + $0x130] sm:$0xff] %vm826, 0.0
      %3882 = vst.msk [vmem:[#allocation4 + $0x138] sm:$0xff] %vm826, 0.0
      %3883 = vst.msk [vmem:[#allocation4 + $0x140] sm:$0xff] %vm826, 0.0
      %v3885 = vrot.slane %v3833, 7
      %v3887 = vrot.slane %v3833, 6
      %v3889 = vrot.slane %v3833, 5
      %v3891 = vrot.slane %v3833, 4
      %v3893 = vrot.slane %v3833, 3
      %v3895 = vrot.slane %v3833, 2
      %v3897 = vrot.slane %v3833, 1
      %v3899 = vsel %vm2196, %v3833, %v3885
      %vm3900 = vcmask 1041408
      %v3901 = vsel %vm3900, %v3899, %v3885
      %vm3902 = vcmask 1042432
      %v3903 = vsel %vm3902, %v3901, %v3887
      %vm3904 = vcmask 1043456
      %v3905 = vsel %vm3904, %v3903, %v3887
      %vm3906 = vcmask 1044480
      %v3907 = vsel %vm3906, %v3905, %v3889
      %vm3908 = vcmask 1045504
      %v3909 = vsel %vm3908, %v3907, %v3889
      %vm3910 = vcmask 1046528
      %v3911 = vsel %vm3910, %v3909, %v3891
      %v3912 = vsel %vm2196, %v3891, %v3893
      %v3913 = vsel %vm3900, %v3912, %v3893
      %v3914 = vsel %vm3902, %v3913, %v3895
      %v3915 = vsel %vm3904, %v3914, %v3895
      %v3916 = vsel %vm3906, %v3915, %v3897
      %v3917 = vsel %vm3908, %v3916, %v3897
      %v3918 = vsel %vm3910, %v3917, %v3833
      %3919 = vst.msk [vmem:[#allocation4 + $0x13] sm:$0xff] %vm826, %v3911
      %3920 = vst.msk [vmem:[#allocation4 + $0x1b] sm:$0xff] %vm826, %v3918
      %3921 = vst.msk [vmem:[#allocation4 + $0x25] sm:$0xff] %vm826, %v3911
      %3922 = vst.msk [vmem:[#allocation4 + $0x2d] sm:$0xff] %vm826, %v3918
      %v3924 = vrot.slane %v3834, 2
      %v3926 = vrot.slane %v3834, 1
      %v3928 = vrot.slane %v3834, 7
      %v3930 = vrot.slane %v3834, 6
      %v3932 = vrot.slane %v3834, 5
      %v3934 = vrot.slane %v3834, 4
      %v3937 = vrot.slane %v3835, 4
      %v3939 = vrot.slane %v3835, 3
      %v3941 = vrot.slane %v3835, 2
      %v3943 = vsel %vm2196, %v3924, %v3926
      %v3944 = vsel %vm3900, %v3943, %v3926
      %v3945 = vsel %vm3902, %v3944, %v3834
      %v3946 = vsel %vm3904, %v3945, %v3834
      %v3947 = vsel %vm3906, %v3946, %v3928
      %v3948 = vsel %vm3908, %v3947, %v3928
      %v3949 = vsel %vm3910, %v3948, %v3930
      %v3950 = vsel %vm2196, %v3930, %v3932
      %v3951 = vsel %vm3900, %v3950, %v3932
      %v3952 = vsel %vm3902, %v3951, %v3934
      %v3953 = vsel %vm3904, %v3952, %v3937
      %v3954 = vsel %vm3906, %v3953, %v3939
      %v3955 = vsel %vm3908, %v3954, %v3939
      %v3956 = vsel %vm3910, %v3955, %v3941
      %3957 = vst.msk [vmem:[#allocation4 + $0x37] sm:$0xff] %vm826, %v3949
      %3958 = vst.msk [vmem:[#allocation4 + $0x3f] sm:$0xff] %vm826, %v3956
      %3959 = vst.msk [vmem:[#allocation4 + $0x49] sm:$0xff] %vm826, %v3949
      %3960 = vst.msk [vmem:[#allocation4 + $0x51] sm:$0xff] %vm826, %v3956
      %v3961 = vrot.slane %v3835, 1
      %v3964 = vrot.slane %v3836, 7
      %v3966 = vrot.slane %v3836, 6
      %v3968 = vrot.slane %v3836, 5
      %v3970 = vrot.slane %v3836, 4
      %v3972 = vsel %vm2196, %v3937, %v3939
      %v3973 = vsel %vm3900, %v3972, %v3939
      %v3974 = vsel %vm3902, %v3973, %v3941
      %v3975 = vsel %vm3904, %v3974, %v3941
      %v3976 = vsel %vm3906, %v3975, %v3961
      %v3977 = vsel %vm3908, %v3976, %v3961
      %v3978 = vsel %vm3910, %v3977, %v3835
      %v3979 = vsel %vm2196, %v3836, %v3964
      %v3980 = vsel %vm3900, %v3979, %v3964
      %v3981 = vsel %vm3902, %v3980, %v3966
      %v3982 = vsel %vm3904, %v3981, %v3966
      %v3983 = vsel %vm3906, %v3982, %v3968
      %v3984 = vsel %vm3908, %v3983, %v3968
      %v3985 = vsel %vm3910, %v3984, %v3970
      %3986 = vst.msk [vmem:[#allocation4 + $0x5b] sm:$0xff] %vm826, %v3978
      %3987 = vst.msk [vmem:[#allocation4 + $0x63] sm:$0xff] %vm826, %v3985
      %3988 = vst.msk [vmem:[#allocation4 + $0x6d] sm:$0xff] %vm826, %v3978
      %3989 = vst.msk [vmem:[#allocation4 + $0x75] sm:$0xff] %vm826, %v3985
      %v3991 = vrot.slane %v3837, 4
      %v3993 = vrot.slane %v3837, 3
      %v3995 = vrot.slane %v3837, 2
      %v3997 = vrot.slane %v3837, 1
      %v3999 = vrot.slane %v3837, 7
      %v4001 = vrot.slane %v3837, 6
      %v4003 = vsel %vm2196, %v3966, %v3968
      %v4004 = vsel %vm3900, %v4003, %v3968
      %v4005 = vsel %vm3902, %v4004, %v3970
      %v4006 = vsel %vm3904, %v4005, %v3991
      %v4007 = vsel %vm3906, %v4006, %v3993
      %v4008 = vsel %vm3908, %v4007, %v3993
      %v4009 = vsel %vm3910, %v4008, %v3995
      %v4010 = vsel %vm2196, %v3995, %v3997
      %v4011 = vsel %vm3900, %v4010, %v3997
      %v4012 = vsel %vm3902, %v4011, %v3837
      %v4013 = vsel %vm3904, %v4012, %v3837
      %v4014 = vsel %vm3906, %v4013, %v3999
      %v4015 = vsel %vm3908, %v4014, %v3999
      %v4016 = vsel %vm3910, %v4015, %v4001
      %4017 = vst.msk [vmem:[#allocation4 + $0x7f] sm:$0xff] %vm826, %v4009
      %4018 = vst.msk [vmem:[#allocation4 + $0x87] sm:$0xff] %vm826, %v4016
      %4019 = vst.msk [vmem:[#allocation4 + $0x91] sm:$0xff] %vm826, %v4009
      %4020 = vst.msk [vmem:[#allocation4 + $0x99] sm:$0xff] %vm826, %v4016
      %v4022 = vrot.slane %v3838, 7
      %v4024 = vrot.slane %v3838, 6
      %v4026 = vrot.slane %v3838, 5
      %v4028 = vrot.slane %v3838, 4
      %v4030 = vrot.slane %v3838, 3
      %v4032 = vrot.slane %v3838, 2
      %v4034 = vrot.slane %v3838, 1
      %v4036 = vsel %vm2196, %v3838, %v4022
      %v4037 = vsel %vm3900, %v4036, %v4022
      %v4038 = vsel %vm3902, %v4037, %v4024
      %v4039 = vsel %vm3904, %v4038, %v4024
      %v4040 = vsel %vm3906, %v4039, %v4026
      %v4041 = vsel %vm3908, %v4040, %v4026
      %v4042 = vsel %vm3910, %v4041, %v4028
      %v4043 = vsel %vm2196, %v4028, %v4030
      %v4044 = vsel %vm3900, %v4043, %v4030
      %v4045 = vsel %vm3902, %v4044, %v4032
      %v4046 = vsel %vm3904, %v4045, %v4032
      %v4047 = vsel %vm3906, %v4046, %v4034
      %v4048 = vsel %vm3908, %v4047, %v4034
      %v4049 = vsel %vm3910, %v4048, %v3838
      %4050 = vst.msk [vmem:[#allocation4 + $0xa3] sm:$0xff] %vm826, %v4042
      %4051 = vst.msk [vmem:[#allocation4 + $0xab] sm:$0xff] %vm826, %v4049
      %4052 = vst.msk [vmem:[#allocation4 + $0xb5] sm:$0xff] %vm826, %v4042
      %4053 = vst.msk [vmem:[#allocation4 + $0xbd] sm:$0xff] %vm826, %v4049
      %v4055 = vrot.slane %v3839, 2
      %v4057 = vrot.slane %v3839, 1
      %v4059 = vrot.slane %v3839, 7
      %v4061 = vrot.slane %v3839, 6
      %v4063 = vrot.slane %v3839, 5
      %v4065 = vrot.slane %v3839, 4
      %v4068 = vrot.slane %v3840, 4
      %v4070 = vrot.slane %v3840, 3
      %v4072 = vrot.slane %v3840, 2
      %v4074 = vsel %vm2196, %v4055, %v4057
      %v4075 = vsel %vm3900, %v4074, %v4057
      %v4076 = vsel %vm3902, %v4075, %v3839
      %v4077 = vsel %vm3904, %v4076, %v3839
      %v4078 = vsel %vm3906, %v4077, %v4059
      %v4079 = vsel %vm3908, %v4078, %v4059
      %v4080 = vsel %vm3910, %v4079, %v4061
      %v4081 = vsel %vm2196, %v4061, %v4063
      %v4082 = vsel %vm3900, %v4081, %v4063
      %v4083 = vsel %vm3902, %v4082, %v4065
      %v4084 = vsel %vm3904, %v4083, %v4068
      %v4085 = vsel %vm3906, %v4084, %v4070
      %v4086 = vsel %vm3908, %v4085, %v4070
      %v4087 = vsel %vm3910, %v4086, %v4072
      %4088 = vst.msk [vmem:[#allocation4 + $0xc7] sm:$0xff] %vm826, %v4080
      %4089 = vst.msk [vmem:[#allocation4 + $0xcf] sm:$0xff] %vm826, %v4087
      %4090 = vst.msk [vmem:[#allocation4 + $0xd9] sm:$0xff] %vm826, %v4080
      %4091 = vst.msk [vmem:[#allocation4 + $0xe1] sm:$0xff] %vm826, %v4087
      %v4092 = vrot.slane %v3840, 1
      %v4095 = vrot.slane %v3841, 7
      %v4097 = vrot.slane %v3841, 6
      %v4099 = vrot.slane %v3841, 5
      %v4101 = vrot.slane %v3841, 4
      %v4103 = vsel %vm2196, %v4068, %v4070
      %v4104 = vsel %vm3900, %v4103, %v4070
      %v4105 = vsel %vm3902, %v4104, %v4072
      %v4106 = vsel %vm3904, %v4105, %v4072
      %v4107 = vsel %vm3906, %v4106, %v4092
      %v4108 = vsel %vm3908, %v4107, %v4092
      %v4109 = vsel %vm3910, %v4108, %v3840
      %v4110 = vsel %vm2196, %v3841, %v4095
      %v4111 = vsel %vm3900, %v4110, %v4095
      %v4112 = vsel %vm3902, %v4111, %v4097
      %v4113 = vsel %vm3904, %v4112, %v4097
      %v4114 = vsel %vm3906, %v4113, %v4099
      %v4115 = vsel %vm3908, %v4114, %v4099
      %v4116 = vsel %vm3910, %v4115, %v4101
      %4117 = vst.msk [vmem:[#allocation4 + $0xeb] sm:$0xff] %vm826, %v4109
      %4118 = vst.msk [vmem:[#allocation4 + $0xf3] sm:$0xff] %vm826, %v4116
      %4119 = vst.msk [vmem:[#allocation4 + $0xfd] sm:$0xff] %vm826, %v4109
      %4120 = vst.msk [vmem:[#allocation4 + $0x105] sm:$0xff] %vm826, %v4116
      %v4122 = vrot.slane %v3842, 4
      %v4124 = vrot.slane %v3842, 3
      %v4126 = vrot.slane %v3842, 2
      %v4128 = vrot.slane %v3842, 1
      %v4130 = vrot.slane %v3842, 7
      %v4132 = vrot.slane %v3842, 6
      %v4134 = vsel %vm2196, %v4097, %v4099
      %v4135 = vsel %vm3900, %v4134, %v4099
      %v4136 = vsel %vm3902, %v4135, %v4101
      %v4137 = vsel %vm3904, %v4136, %v4122
      %v4138 = vsel %vm3906, %v4137, %v4124
      %v4139 = vsel %vm3908, %v4138, %v4124
      %v4140 = vsel %vm3910, %v4139, %v4126
      %v4141 = vsel %vm2196, %v4126, %v4128
      %v4142 = vsel %vm3900, %v4141, %v4128
      %v4143 = vsel %vm3902, %v4142, %v3842
      %v4144 = vsel %vm3904, %v4143, %v3842
      %v4145 = vsel %vm3906, %v4144, %v4130
      %v4146 = vsel %vm3908, %v4145, %v4130
      %v4147 = vsel %vm3910, %v4146, %v4132
      %4148 = vst.msk [vmem:[#allocation4 + $0x10f] sm:$0xff] %vm826, %v4140
      %4149 = vst.msk [vmem:[#allocation4 + $0x117] sm:$0xff] %vm826, %v4147
      %4150 = vst.msk [vmem:[#allocation4 + $0x121] sm:$0xff] %vm826, %v4140
      %4151 = vst.msk [vmem:[#allocation4 + $0x129] sm:$0xff] %vm826, %v4147
      %v4152 = vld [vmem:[#allocation4] sm:$0xff]
      %v4153 = vld [vmem:[#allocation4 + $0x8] sm:$0xff]
      %v4154 = vld [vmem:[#allocation4 + $0x10] sm:$0xff]
      %v4155 = vld [vmem:[#allocation4 + $0x18] sm:$0xff]
      %v4156 = vld [vmem:[#allocation4 + $0x20] sm:$0xff]
      %v4157 = vld [vmem:[#allocation4 + $0x28] sm:$0xff]
      %v4158 = vld [vmem:[#allocation4 + $0x30] sm:$0xff]
      %v4159 = vld [vmem:[#allocation4 + $0x38] sm:$0xff]
      %v4160 = vld [vmem:[#allocation4 + $0x40] sm:$0xff]
      %v4161 = vpack.c.bf16 %v4153, %v4152
      %v4162 = vpack.c.bf16 %v4155, %v4154
      %v4163 = vpack.c.bf16 %v4157, %v4156
      %v4164 = vpack.c.bf16 %v4159, %v4158
      %v4165 = vpack.c.bf16 %v4160, %v4160
      %v4166 = vld [vmem:[%s7] sm:$0xf]
      %v4167 = vld [vmem:[%s7 + $0x4] sm:$0xf]
      %v4168 = vld [vmem:[%s7 + $0x8] sm:$0xf]
      %v4169 = vld [vmem:[%s7 + $0xc] sm:$0xf]
      %v4170 = vld [vmem:[%s7 + $0x10] sm:$0xf]
      %v4171 = vld [vmem:[%s7 + $0x14] sm:$0xf]
      %v4172 = vld [vmem:[%s7 + $0x18] sm:$0xf]
      %v4173 = vld [vmem:[%s7 + $0x1c] sm:$0xf]
      %v4174 = vld [vmem:[#allocation4 + $0x1] sm:$0xff]
      %v4175 = vld [vmem:[#allocation4 + $0x9] sm:$0xff]
      %v4176 = vld [vmem:[#allocation4 + $0x11] sm:$0xff]
      %v4177 = vld [vmem:[#allocation4 + $0x19] sm:$0xff]
      %v4178 = vld [vmem:[#allocation4 + $0x21] sm:$0xff]
      %v4179 = vld [vmem:[#allocation4 + $0x29] sm:$0xff]
      %v4180 = vld [vmem:[#allocation4 + $0x31] sm:$0xff]
      %v4181 = vld [vmem:[#allocation4 + $0x39] sm:$0xff]
      %v4182 = vld [vmem:[#allocation4 + $0x41] sm:$0xff]
      %v4183 = vpack.c.bf16 %v4175, %v4174
      %v4184 = vpack.c.bf16 %v4177, %v4176
      %v4185 = vpack.c.bf16 %v4179, %v4178
      %v4186 = vpack.c.bf16 %v4181, %v4180
      %v4187 = vpack.c.bf16 %v4182, %v4182
      %s4188 = scalar_lea.vmem %s7, 32
      %v4189 = vld [vmem:[%s4188] sm:$0xf]
      %v4190 = vld [vmem:[%s4188 + $0x4] sm:$0xf]
      %v4191 = vld [vmem:[%s4188 + $0x8] sm:$0xf]
      %v4192 = vld [vmem:[%s4188 + $0xc] sm:$0xf]
      %v4193 = vld [vmem:[%s4188 + $0x10] sm:$0xf]
      %v4194 = vld [vmem:[%s4188 + $0x14] sm:$0xf]
      %v4195 = vld [vmem:[%s4188 + $0x18] sm:$0xf]
      %v4196 = vld [vmem:[%s4188 + $0x1c] sm:$0xf]
      %v4205 = vunpack.c.l.b16 %v4189
      %v4206 = vunpack.c.l.b16 %v4190
      %v4207 = vunpack.c.l.b16 %v4191
      %v4208 = vunpack.c.l.b16 %v4192
      %v4209 = vunpack.c.l.b16 %v4193
      %v4210 = vunpack.c.l.b16 %v4194
      %v4211 = vunpack.c.l.b16 %v4195
      %v4212 = vunpack.c.l.b16 %v4196
      %v4213 = vpack.c.b16 %v4206, %v4205
      %v4214 = vpack.c.b16 %v4208, %v4207
      %v4215 = vpack.c.b16 %v4210, %v4209
      %v4216 = vpack.c.b16 %v4212, %v4211
      %v4222 = vsel %vm826, %v4183, 0
      %v4225 = vsel %vm826, %v4184, 0
      %v4228 = vsel %vm826, %v4185, 0
      %v4231 = vsel %vm826, %v4186, 0
      %v4234 = vsel %vm826, %v4187, 0
      %4236 = vmatprep.subr.bf16.mxu0 0
      %4237 = vmatpush1.bf16.msra.mxu0 %v4213
      %4238 = vmatprep.subr.bf16.mxu0 0
      %4239 = vmatpush1.bf16.msra.mxu0 %v4214
      %4240 = vmatprep.subr.bf16.mxu0 0
      %4241 = vmatpush1.bf16.msra.mxu0 %v4215
      %4242 = vmatprep.subr.bf16.mxu0 0
      %4243 = vmatpush1.bf16.msra.mxu0 %v4216
      %4244 = vmatprep.subr.bf16.mxu0 0
      %4245 = vmatpush1.bf16.msra.mxu0 0
      %4246 = vmatprep.subr.bf16.mxu0 0
      %4247 = vmatpush1.bf16.msra.mxu0 0
      %4248 = vmatprep.subr.bf16.mxu0 0
      %4249 = vmatpush1.bf16.msra.mxu0 0
      %4250 = vmatprep.subr.bf16.mxu0 0
      %4251 = vmatpush1.bf16.msra.mxu0 0
      %4252 = vmatprep.subr.bf16.mxu0 0
      %4253 = vmatpush1.bf16.msra.mxu0 0
      %4254 = vmatprep.subr.bf16.mxu0 0
      %4255 = vmatpush1.bf16.msra.mxu0 0
      %4256 = vmatprep.subr.bf16.mxu0 0
      %4257 = vmatpush1.bf16.msra.mxu0 0
      %4258 = vmatprep.subr.bf16.mxu0 0
      %4259 = vmatpush1.bf16.msra.mxu0 0
      %4260 = vmatprep.subr.bf16.mxu0 0
      %4261 = vmatpush1.bf16.msra.mxu0 0
      %4262 = vmatprep.subr.bf16.mxu0 0
      %4263 = vmatpush1.bf16.msra.mxu0 0
      %4264 = vmatprep.subr.bf16.mxu0 0
      %4265 = vmatpush1.bf16.msra.mxu0 0
      %4266 = vmatprep.subr.bf16.mxu0 0
      %4267 = vmatpush1.bf16.msra.mxu0 0
      %4268 = vmatprep.mubr.bf16.mxu0 0
      %4269 = vmatmul.mubr.bf16.gmra.mrb[0].mxu0 %v4222
      %v4270 = vpop.f32.mrb[0].mxu0
      %v4271 = vadd.f32 0.0, %v4270
      %v4272 = vpop.f32.mrb[0].mxu0
      %v4273 = vpop.f32.mrb[0].mxu0
      %v4274 = vadd.f32 0.0, %v4273
      %v4275 = vpop.f32.mrb[0].mxu0
      %4276 = vmatprep.mubr.bf16.mxu0 0
      %4277 = vmatmul.mubr.bf16.gmra.mrb[0].mxu0 %v4225
      %v4278 = vpop.f32.mrb[0].mxu0
      %v4279 = vadd.f32 0.0, %v4278
      %v4280 = vpop.f32.mrb[0].mxu0
      %v4281 = vpop.f32.mrb[0].mxu0
      %v4282 = vadd.f32 0.0, %v4281
      %v4283 = vpop.f32.mrb[0].mxu0
      %4284 = vmatprep.mubr.bf16.mxu0 0
      %4285 = vmatmul.mubr.bf16.gmra.mrb[0].mxu0 %v4228
      %v4286 = vpop.f32.mrb[0].mxu0
      %v4287 = vadd.f32 0.0, %v4286
      %v4288 = vpop.f32.mrb[0].mxu0
      %v4289 = vpop.f32.mrb[0].mxu0
      %v4290 = vadd.f32 0.0, %v4289
      %v4291 = vpop.f32.mrb[0].mxu0
      %4292 = vmatprep.mubr.bf16.mxu0 0
      %4293 = vmatmul.mubr.bf16.gmra.mrb[0].mxu0 %v4231
      %v4294 = vpop.f32.mrb[0].mxu0
      %v4295 = vadd.f32 0.0, %v4294
      %v4296 = vpop.f32.mrb[0].mxu0
      %v4297 = vpop.f32.mrb[0].mxu0
      %v4298 = vadd.f32 0.0, %v4297
      %v4299 = vpop.f32.mrb[0].mxu0
      %4300 = vmatprep.mubr.bf16.mxu0 0
      %4301 = vmatmul.mubr.bf16.gmra.mrb[0].mxu0 %v4234
      %v4302 = vpop.f32.mrb[0].mxu0
      %v4303 = vadd.f32 0.0, %v4302
      %v4304 = vpop.f32.mrb[0].mxu0
      %v4305 = vpop.f32.mrb[0].mxu0
      %v4306 = vpop.f32.mrb[0].mxu0
      %4307 = vdwg.mxu0
      %v4316 = vunpack.c.l.b16 %v4166
      %v4317 = vunpack.c.l.b16 %v4167
      %v4318 = vunpack.c.l.b16 %v4168
      %v4319 = vunpack.c.l.b16 %v4169
      %v4320 = vunpack.c.l.b16 %v4170
      %v4321 = vunpack.c.l.b16 %v4171
      %v4322 = vunpack.c.l.b16 %v4172
      %v4323 = vunpack.c.l.b16 %v4173
      %v4324 = vpack.c.b16 %v4317, %v4316
      %v4325 = vpack.c.b16 %v4319, %v4318
      %v4326 = vpack.c.b16 %v4321, %v4320
      %v4327 = vpack.c.b16 %v4323, %v4322
      %v4333 = vsel %vm826, %v4161, 0
      %v4336 = vsel %vm826, %v4162, 0
      %v4339 = vsel %vm826, %v4163, 0
      %v4342 = vsel %vm826, %v4164, 0
      %v4345 = vsel %vm826, %v4165, 0
      %4347 = vmatprep.subr.bf16.mxu0 0
      %4348 = vmatpush1.bf16.msra.mxu0 %v4324
      %4349 = vmatprep.subr.bf16.mxu0 0
      %4350 = vmatpush1.bf16.msra.mxu0 %v4325
      %4351 = vmatprep.subr.bf16.mxu0 0
      %4352 = vmatpush1.bf16.msra.mxu0 %v4326
      %4353 = vmatprep.subr.bf16.mxu0 0
      %4354 = vmatpush1.bf16.msra.mxu0 %v4327
      %4355 = vmatprep.subr.bf16.mxu0 0
      %4356 = vmatpush1.bf16.msra.mxu0 0
      %4357 = vmatprep.subr.bf16.mxu0 0
      %4358 = vmatpush1.bf16.msra.mxu0 0
      %4359 = vmatprep.subr.bf16.mxu0 0
      %4360 = vmatpush1.bf16.msra.mxu0 0
      %4361 = vmatprep.subr.bf16.mxu0 0
      %4362 = vmatpush1.bf16.msra.mxu0 0
      %4363 = vmatprep.subr.bf16.mxu0 0
      %4364 = vmatpush1.bf16.msra.mxu0 0
      %4365 = vmatprep.subr.bf16.mxu0 0
      %4366 = vmatpush1.bf16.msra.mxu0 0
      %4367 = vmatprep.subr.bf16.mxu0 0
      %4368 = vmatpush1.bf16.msra.mxu0 0
      %4369 = vmatprep.subr.bf16.mxu0 0
      %4370 = vmatpush1.bf16.msra.mxu0 0
      %4371 = vmatprep.subr.bf16.mxu0 0
      %4372 = vmatpush1.bf16.msra.mxu0 0
      %4373 = vmatprep.subr.bf16.mxu0 0
      %4374 = vmatpush1.bf16.msra.mxu0 0
      %4375 = vmatprep.subr.bf16.mxu0 0
      %4376 = vmatpush1.bf16.msra.mxu0 0
      %4377 = vmatprep.subr.bf16.mxu0 0
      %4378 = vmatpush1.bf16.msra.mxu0 0
      %4379 = vmatprep.mubr.bf16.mxu0 0
      %4380 = vmatmul.mubr.bf16.gmra.mrb[0].mxu0 %v4333
      %v4381 = vpop.f32.mrb[0].mxu0
      %v4382 = vadd.f32 %v4271, %v4381
      %v4383 = vpop.f32.mrb[0].mxu0
      %v4384 = vpop.f32.mrb[0].mxu0
      %v4385 = vadd.f32 %v4274, %v4384
      %v4386 = vpop.f32.mrb[0].mxu0
      %4387 = vmatprep.mubr.bf16.mxu0 0
      %4388 = vmatmul.mubr.bf16.gmra.mrb[0].mxu0 %v4336
      %v4389 = vpop.f32.mrb[0].mxu0
      %v4390 = vadd.f32 %v4279, %v4389
      %v4391 = vpop.f32.mrb[0].mxu0
      %v4392 = vpop.f32.mrb[0].mxu0
      %v4393 = vadd.f32 %v4282, %v4392
      %v4394 = vpop.f32.mrb[0].mxu0
      %4395 = vmatprep.mubr.bf16.mxu0 0
      %4396 = vmatmul.mubr.bf16.gmra.mrb[0].mxu0 %v4339
      %v4397 = vpop.f32.mrb[0].mxu0
      %v4398 = vadd.f32 %v4287, %v4397
      %v4399 = vpop.f32.mrb[0].mxu0
      %v4400 = vpop.f32.mrb[0].mxu0
      %v4401 = vadd.f32 %v4290, %v4400
      %v4402 = vpop.f32.mrb[0].mxu0
      %4403 = vmatprep.mubr.bf16.mxu0 0
      %4404 = vmatmul.mubr.bf16.gmra.mrb[0].mxu0 %v4342
      %v4405 = vpop.f32.mrb[0].mxu0
      %v4406 = vadd.f32 %v4295, %v4405
      %v4407 = vpop.f32.mrb[0].mxu0
      %v4408 = vpop.f32.mrb[0].mxu0
      %v4409 = vadd.f32 %v4298, %v4408
      %v4410 = vpop.f32.mrb[0].mxu0
      %4411 = vmatprep.mubr.bf16.mxu0 0
      %4412 = vmatmul.mubr.bf16.gmra.mrb[0].mxu0 %v4345
      %v4413 = vpop.f32.mrb[0].mxu0
      %v4414 = vadd.f32 %v4303, %v4413
      %v4415 = vpop.f32.mrb[0].mxu0
      %v4416 = vpop.f32.mrb[0].mxu0
      %v4417 = vpop.f32.mrb[0].mxu0
      %4418 = vdwg.mxu0
      %v4419 = vld [vmem:[#allocation4 + $0x2] sm:$0xff]
      %v4420 = vld [vmem:[#allocation4 + $0xa] sm:$0xff]
      %v4421 = vld [vmem:[#allocation4 + $0x12] sm:$0xff]
      %v4422 = vld [vmem:[#allocation4 + $0x1a] sm:$0xff]
      %v4423 = vld [vmem:[#allocation4 + $0x22] sm:$0xff]
      %v4424 = vld [vmem:[#allocation4 + $0x2a] sm:$0xff]
      %v4425 = vld [vmem:[#allocation4 + $0x32] sm:$0xff]
      %v4426 = vld [vmem:[#allocation4 + $0x3a] sm:$0xff]
      %v4427 = vld [vmem:[#allocation4 + $0x42] sm:$0xff]
      %v4428 = vpack.c.bf16 %v4420, %v4419
      %v4429 = vpack.c.bf16 %v4422, %v4421
      %v4430 = vpack.c.bf16 %v4424, %v4423
      %v4431 = vpack.c.bf16 %v4426, %v4425
      %v4432 = vpack.c.bf16 %v4427, %v4427
      %s4433 = scalar_lea.vmem %s7, 64
      %v4434 = vld [vmem:[%s4433] sm:$0xf]
      %v4435 = vld [vmem:[%s4433 + $0x4] sm:$0xf]
      %v4436 = vld [vmem:[%s4433 + $0x8] sm:$0xf]
      %v4437 = vld [vmem:[%s4433 + $0xc] sm:$0xf]
      %v4438 = vld [vmem:[%s4433 + $0x10] sm:$0xf]
      %v4439 = vld [vmem:[%s4433 + $0x14] sm:$0xf]
      %v4440 = vld [vmem:[%s4433 + $0x18] sm:$0xf]
      %v4441 = vld [vmem:[%s4433 + $0x1c] sm:$0xf]
      %v4450 = vunpack.c.l.b16 %v4434
      %v4451 = vunpack.c.l.b16 %v4435
      %v4452 = vunpack.c.l.b16 %v4436
      %v4453 = vunpack.c.l.b16 %v4437
      %v4454 = vunpack.c.l.b16 %v4438
      %v4455 = vunpack.c.l.b16 %v4439
      %v4456 = vunpack.c.l.b16 %v4440
      %v4457 = vunpack.c.l.b16 %v4441
      %v4458 = vpack.c.b16 %v4451, %v4450
      %v4459 = vpack.c.b16 %v4453, %v4452
      %v4460 = vpack.c.b16 %v4455, %v4454
      %v4461 = vpack.c.b16 %v4457, %v4456
      %v4467 = vsel %vm826, %v4428, 0
      %v4470 = vsel %vm826, %v4429, 0
      %v4473 = vsel %vm826, %v4430, 0
      %v4476 = vsel %vm826, %v4431, 0
      %v4479 = vsel %vm826, %v4432, 0
      %4481 = vmatprep.subr.bf16.mxu0 0
      %4482 = vmatpush1.bf16.msra.mxu0 %v4458
      %4483 = vmatprep.subr.bf16.mxu0 0
      %4484 = vmatpush1.bf16.msra.mxu0 %v4459
      %4485 = vmatprep.subr.bf16.mxu0 0
      %4486 = vmatpush1.bf16.msra.mxu0 %v4460
      %4487 = vmatprep.subr.bf16.mxu0 0
      %4488 = vmatpush1.bf16.msra.mxu0 %v4461
      %4489 = vmatprep.subr.bf16.mxu0 0
      %4490 = vmatpush1.bf16.msra.mxu0 0
      %4491 = vmatprep.subr.bf16.mxu0 0
      %4492 = vmatpush1.bf16.msra.mxu0 0
      %4493 = vmatprep.subr.bf16.mxu0 0
      %4494 = vmatpush1.bf16.msra.mxu0 0
      %4495 = vmatprep.subr.bf16.mxu0 0
      %4496 = vmatpush1.bf16.msra.mxu0 0
      %4497 = vmatprep.subr.bf16.mxu0 0
      %4498 = vmatpush1.bf16.msra.mxu0 0
      %4499 = vmatprep.subr.bf16.mxu0 0
      %4500 = vmatpush1.bf16.msra.mxu0 0
      %4501 = vmatprep.subr.bf16.mxu0 0
      %4502 = vmatpush1.bf16.msra.mxu0 0
      %4503 = vmatprep.subr.bf16.mxu0 0
      %4504 = vmatpush1.bf16.msra.mxu0 0
      %4505 = vmatprep.subr.bf16.mxu0 0
      %4506 = vmatpush1.bf16.msra.mxu0 0
      %4507 = vmatprep.subr.bf16.mxu0 0
      %4508 = vmatpush1.bf16.msra.mxu0 0
      %4509 = vmatprep.subr.bf16.mxu0 0
      %4510 = vmatpush1.bf16.msra.mxu0 0
      %4511 = vmatprep.subr.bf16.mxu0 0
      %4512 = vmatpush1.bf16.msra.mxu0 0
      %4513 = vmatprep.mubr.bf16.mxu0 0
      %4514 = vmatmul.mubr.bf16.gmra.mrb[0].mxu0 %v4467
      %v4515 = vpop.f32.mrb[0].mxu0
      %v4516 = vadd.f32 0.0, %v4515
      %v4517 = vpop.f32.mrb[0].mxu0
      %v4518 = vpop.f32.mrb[0].mxu0
      %v4519 = vadd.f32 0.0, %v4518
      %v4520 = vpop.f32.mrb[0].mxu0
      %4521 = vmatprep.mubr.bf16.mxu0 0
      %4522 = vmatmul.mubr.bf16.gmra.mrb[0].mxu0 %v4470
      %v4523 = vpop.f32.mrb[0].mxu0
      %v4524 = vadd.f32 0.0, %v4523
      %v4525 = vpop.f32.mrb[0].mxu0
      %v4526 = vpop.f32.mrb[0].mxu0
      %v4527 = vadd.f32 0.0, %v4526
      %v4528 = vpop.f32.mrb[0].mxu0
      %4529 = vmatprep.mubr.bf16.mxu0 0
      %4530 = vmatmul.mubr.bf16.gmra.mrb[0].mxu0 %v4473
      %v4531 = vpop.f32.mrb[0].mxu0
      %v4532 = vadd.f32 0.0, %v4531
      %v4533 = vpop.f32.mrb[0].mxu0
      %v4534 = vpop.f32.mrb[0].mxu0
      %v4535 = vadd.f32 0.0, %v4534
      %v4536 = vpop.f32.mrb[0].mxu0
      %4537 = vmatprep.mubr.bf16.mxu0 0
      %4538 = vmatmul.mubr.bf16.gmra.mrb[0].mxu0 %v4476
      %v4539 = vpop.f32.mrb[0].mxu0
      %v4540 = vadd.f32 0.0, %v4539
      %v4541 = vpop.f32.mrb[0].mxu0
      %v4542 = vpop.f32.mrb[0].mxu0
      %v4543 = vadd.f32 0.0, %v4542
      %v4544 = vpop.f32.mrb[0].mxu0
      %4545 = vmatprep.mubr.bf16.mxu0 0
      %4546 = vmatmul.mubr.bf16.gmra.mrb[0].mxu0 %v4479
      %v4547 = vpop.f32.mrb[0].mxu0
      %v4548 = vadd.f32 0.0, %v4547
      %v4549 = vpop.f32.mrb[0].mxu0
      %v4550 = vpop.f32.mrb[0].mxu0
      %v4551 = vpop.f32.mrb[0].mxu0
      %4552 = vdwg.mxu0
      %v4553 = vadd.f32 %v4382, %v4516
      %v4554 = vadd.f32 %v4385, %v4519
      %v4555 = vadd.f32 %v4390, %v4524
      %v4556 = vadd.f32 %v4393, %v4527
      %v4557 = vadd.f32 %v4398, %v4532
      %v4558 = vadd.f32 %v4401, %v4535
      %v4559 = vadd.f32 %v4406, %v4540
      %v4560 = vadd.f32 %v4409, %v4543
      %v4561 = vadd.f32 %v4414, %v4548
      %v4562 = vld [vmem:[#allocation4 + $0x12] sm:$0xff]
      %v4563 = vld [vmem:[#allocation4 + $0x1a] sm:$0xff]
      %v4564 = vld [vmem:[#allocation4 + $0x22] sm:$0xff]
      %v4565 = vld [vmem:[#allocation4 + $0x2a] sm:$0xff]
      %v4566 = vld [vmem:[#allocation4 + $0x32] sm:$0xff]
      %v4567 = vld [vmem:[#allocation4 + $0x3a] sm:$0xff]
      %v4568 = vld [vmem:[#allocation4 + $0x42] sm:$0xff]
      %v4569 = vld [vmem:[#allocation4 + $0x4a] sm:$0xff]
      %v4570 = vld [vmem:[#allocation4 + $0x52] sm:$0xff]
      %v4571 = vpack.c.bf16 %v4563, %v4562
      %v4572 = vpack.c.bf16 %v4565, %v4564
      %v4573 = vpack.c.bf16 %v4567, %v4566
      %v4574 = vpack.c.bf16 %v4569, %v4568
      %v4575 = vpack.c.bf16 %v4570, %v4570
      %s4576 = scalar_lea.vmem %s7, 96
      %v4577 = vld [vmem:[%s4576] sm:$0xf]
      %v4578 = vld [vmem:[%s4576 + $0x4] sm:$0xf]
      %v4579 = vld [vmem:[%s4576 + $0x8] sm:$0xf]
      %v4580 = vld [vmem:[%s4576 + $0xc] sm:$0xf]
      %v4581 = vld [vmem:[%s4576 + $0x10] sm:$0xf]
      %v4582 = vld [vmem:[%s4576 + $0x14] sm:$0xf]
      %v4583 = vld [vmem:[%s4576 + $0x18] sm:$0xf]
      %v4584 = vld [vmem:[%s4576 + $0x1c] sm:$0xf]
      %v4593 = vunpack.c.l.b16 %v4577
      %v4594 = vunpack.c.l.b16 %v4578
      %v4595 = vunpack.c.l.b16 %v4579
      %v4596 = vunpack.c.l.b16 %v4580
      %v4597 = vunpack.c.l.b16 %v4581
      %v4598 = vunpack.c.l.b16 %v4582
      %v4599 = vunpack.c.l.b16 %v4583
      %v4600 = vunpack.c.l.b16 %v4584
      %v4601 = vpack.c.b16 %v4594, %v4593
      %v4602 = vpack.c.b16 %v4596, %v4595
      %v4603 = vpack.c.b16 %v4598, %v4597
      %v4604 = vpack.c.b16 %v4600, %v4599
      %v4610 = vsel %vm826, %v4571, 0
      %v4613 = vsel %vm826, %v4572, 0
      %v4616 = vsel %vm826, %v4573, 0
      %v4619 = vsel %vm826, %v4574, 0
      %v4622 = vsel %vm826, %v4575, 0
      %4624 = vmatprep.subr.bf16.mxu0 0
      %4625 = vmatpush1.bf16.msra.mxu0 %v4601
      %4626 = vmatprep.subr.bf16.mxu0 0
      %4627 = vmatpush1.bf16.msra.mxu0 %v4602
      %4628 = vmatprep.subr.bf16.mxu0 0
      %4629 = vmatpush1.bf16.msra.mxu0 %v4603
      %4630 = vmatprep.subr.bf16.mxu0 0
      %4631 = vmatpush1.bf16.msra.mxu0 %v4604
      %4632 = vmatprep.subr.bf16.mxu0 0
      %4633 = vmatpush1.bf16.msra.mxu0 0
      %4634 = vmatprep.subr.bf16.mxu0 0
      %4635 = vmatpush1.bf16.msra.mxu0 0
      %4636 = vmatprep.subr.bf16.mxu0 0
      %4637 = vmatpush1.bf16.msra.mxu0 0
      %4638 = vmatprep.subr.bf16.mxu0 0
      %4639 = vmatpush1.bf16.msra.mxu0 0
      %4640 = vmatprep.subr.bf16.mxu0 0
      %4641 = vmatpush1.bf16.msra.mxu0 0
      %4642 = vmatprep.subr.bf16.mxu0 0
      %4643 = vmatpush1.bf16.msra.mxu0 0
      %4644 = vmatprep.subr.bf16.mxu0 0
      %4645 = vmatpush1.bf16.msra.mxu0 0
      %4646 = vmatprep.subr.bf16.mxu0 0
      %4647 = vmatpush1.bf16.msra.mxu0 0
      %4648 = vmatprep.subr.bf16.mxu0 0
      %4649 = vmatpush1.bf16.msra.mxu0 0
      %4650 = vmatprep.subr.bf16.mxu0 0
      %4651 = vmatpush1.bf16.msra.mxu0 0
      %4652 = vmatprep.subr.bf16.mxu0 0
      %4653 = vmatpush1.bf16.msra.mxu0 0
      %4654 = vmatprep.subr.bf16.mxu0 0
      %4655 = vmatpush1.bf16.msra.mxu0 0
      %4656 = vmatprep.mubr.bf16.mxu0 0
      %4657 = vmatmul.mubr.bf16.gmra.mrb[0].mxu0 %v4610
      %v4658 = vpop.f32.mrb[0].mxu0
      %v4659 = vadd.f32 0.0, %v4658
      %v4660 = vpop.f32.mrb[0].mxu0
      %v4661 = vpop.f32.mrb[0].mxu0
      %v4662 = vadd.f32 0.0, %v4661
      %v4663 = vpop.f32.mrb[0].mxu0
      %4664 = vmatprep.mubr.bf16.mxu0 0
      %4665 = vmatmul.mubr.bf16.gmra.mrb[0].mxu0 %v4613
      %v4666 = vpop.f32.mrb[0].mxu0
      %v4667 = vadd.f32 0.0, %v4666
      %v4668 = vpop.f32.mrb[0].mxu0
      %v4669 = vpop.f32.mrb[0].mxu0
      %v4670 = vadd.f32 0.0, %v4669
      %v4671 = vpop.f32.mrb[0].mxu0
      %4672 = vmatprep.mubr.bf16.mxu0 0
      %4673 = vmatmul.mubr.bf16.gmra.mrb[0].mxu0 %v4616
      %v4674 = vpop.f32.mrb[0].mxu0
      %v4675 = vadd.f32 0.0, %v4674
      %v4676 = vpop.f32.mrb[0].mxu0
      %v4677 = vpop.f32.mrb[0].mxu0
      %v4678 = vadd.f32 0.0, %v4677
      %v4679 = vpop.f32.mrb[0].mxu0
      %4680 = vmatprep.mubr.bf16.mxu0 0
      %4681 = vmatmul.mubr.bf16.gmra.mrb[0].mxu0 %v4619
      %v4682 = vpop.f32.mrb[0].mxu0
      %v4683 = vadd.f32 0.0, %v4682
      %v4684 = vpop.f32.mrb[0].mxu0
      %v4685 = vpop.f32.mrb[0].mxu0
      %v4686 = vadd.f32 0.0, %v4685
      %v4687 = vpop.f32.mrb[0].mxu0
      %4688 = vmatprep.mubr.bf16.mxu0 0
      %4689 = vmatmul.mubr.bf16.gmra.mrb[0].mxu0 %v4622
      %v4690 = vpop.f32.mrb[0].mxu0
      %v4691 = vadd.f32 0.0, %v4690
      %v4692 = vpop.f32.mrb[0].mxu0
      %v4693 = vpop.f32.mrb[0].mxu0
      %v4694 = vpop.f32.mrb[0].mxu0
      %4695 = vdwg.mxu0
      %v4696 = vadd.f32 %v4553, %v4659
      %v4697 = vadd.f32 %v4554, %v4662
      %v4698 = vadd.f32 %v4555, %v4667
      %v4699 = vadd.f32 %v4556, %v4670
      %v4700 = vadd.f32 %v4557, %v4675
      %v4701 = vadd.f32 %v4558, %v4678
      %v4702 = vadd.f32 %v4559, %v4683
      %v4703 = vadd.f32 %v4560, %v4686
      %v4704 = vadd.f32 %v4561, %v4691
      %v4705 = vld [vmem:[#allocation4 + $0x13] sm:$0xff]
      %v4706 = vld [vmem:[#allocation4 + $0x1b] sm:$0xff]
      %v4707 = vld [vmem:[#allocation4 + $0x23] sm:$0xff]
      %v4708 = vld [vmem:[#allocation4 + $0x2b] sm:$0xff]
      %v4709 = vld [vmem:[#allocation4 + $0x33] sm:$0xff]
      %v4710 = vld [vmem:[#allocation4 + $0x3b] sm:$0xff]
      %v4711 = vld [vmem:[#allocation4 + $0x43] sm:$0xff]
      %v4712 = vld [vmem:[#allocation4 + $0x4b] sm:$0xff]
      %v4713 = vld [vmem:[#allocation4 + $0x53] sm:$0xff]
      %v4714 = vpack.c.bf16 %v4706, %v4705
      %v4715 = vpack.c.bf16 %v4708, %v4707
      %v4716 = vpack.c.bf16 %v4710, %v4709
      %v4717 = vpack.c.bf16 %v4712, %v4711
      %v4718 = vpack.c.bf16 %v4713, %v4713
      %s4719 = scalar_lea.vmem %s7, 128
      %v4720 = vld [vmem:[%s4719] sm:$0xf]
      %v4721 = vld [vmem:[%s4719 + $0x4] sm:$0xf]
      %v4722 = vld [vmem:[%s4719 + $0x8] sm:$0xf]
      %v4723 = vld [vmem:[%s4719 + $0xc] sm:$0xf]
      %v4724 = vld [vmem:[%s4719 + $0x10] sm:$0xf]
      %v4725 = vld [vmem:[%s4719 + $0x14] sm:$0xf]
      %v4726 = vld [vmem:[%s4719 + $0x18] sm:$0xf]
      %v4727 = vld [vmem:[%s4719 + $0x1c] sm:$0xf]
      %v4736 = vunpack.c.l.b16 %v4720
      %v4737 = vunpack.c.l.b16 %v4721
      %v4738 = vunpack.c.l.b16 %v4722
      %v4739 = vunpack.c.l.b16 %v4723
      %v4740 = vunpack.c.l.b16 %v4724
      %v4741 = vunpack.c.l.b16 %v4725
      %v4742 = vunpack.c.l.b16 %v4726
      %v4743 = vunpack.c.l.b16 %v4727
      %v4744 = vpack.c.b16 %v4737, %v4736
      %v4745 = vpack.c.b16 %v4739, %v4738
      %v4746 = vpack.c.b16 %v4741, %v4740
      %v4747 = vpack.c.b16 %v4743, %v4742
      %v4753 = vsel %vm826, %v4714, 0
      %v4756 = vsel %vm826, %v4715, 0
      %v4759 = vsel %vm826, %v4716, 0
      %v4762 = vsel %vm826, %v4717, 0
      %v4765 = vsel %vm826, %v4718, 0
      %4767 = vmatprep.subr.bf16.mxu0 0
      %4768 = vmatpush1.bf16.msra.mxu0 %v4744
      %4769 = vmatprep.subr.bf16.mxu0 0
      %4770 = vmatpush1.bf16.msra.mxu0 %v4745
      %4771 = vmatprep.subr.bf16.mxu0 0
      %4772 = vmatpush1.bf16.msra.mxu0 %v4746
      %4773 = vmatprep.subr.bf16.mxu0 0
      %4774 = vmatpush1.bf16.msra.mxu0 %v4747
      %4775 = vmatprep.subr.bf16.mxu0 0
      %4776 = vmatpush1.bf16.msra.mxu0 0
      %4777 = vmatprep.subr.bf16.mxu0 0
      %4778 = vmatpush1.bf16.msra.mxu0 0
      %4779 = vmatprep.subr.bf16.mxu0 0
      %4780 = vmatpush1.bf16.msra.mxu0 0
      %4781 = vmatprep.subr.bf16.mxu0 0
      %4782 = vmatpush1.bf16.msra.mxu0 0
      %4783 = vmatprep.subr.bf16.mxu0 0
      %4784 = vmatpush1.bf16.msra.mxu0 0
      %4785 = vmatprep.subr.bf16.mxu0 0
      %4786 = vmatpush1.bf16.msra.mxu0 0
      %4787 = vmatprep.subr.bf16.mxu0 0
      %4788 = vmatpush1.bf16.msra.mxu0 0
      %4789 = vmatprep.subr.bf16.mxu0 0
      %4790 = vmatpush1.bf16.msra.mxu0 0
      %4791 = vmatprep.subr.bf16.mxu0 0
      %4792 = vmatpush1.bf16.msra.mxu0 0
      %4793 = vmatprep.subr.bf16.mxu0 0
      %4794 = vmatpush1.bf16.msra.mxu0 0
      %4795 = vmatprep.subr.bf16.mxu0 0
      %4796 = vmatpush1.bf16.msra.mxu0 0
      %4797 = vmatprep.subr.bf16.mxu0 0
      %4798 = vmatpush1.bf16.msra.mxu0 0
      %4799 = vmatprep.mubr.bf16.mxu0 0
      %4800 = vmatmul.mubr.bf16.gmra.mrb[0].mxu0 %v4753
      %v4801 = vpop.f32.mrb[0].mxu0
      %v4802 = vadd.f32 0.0, %v4801
      %v4803 = vpop.f32.mrb[0].mxu0
      %v4804 = vpop.f32.mrb[0].mxu0
      %v4805 = vadd.f32 0.0, %v4804
      %v4806 = vpop.f32.mrb[0].mxu0
      %4807 = vmatprep.mubr.bf16.mxu0 0
      %4808 = vmatmul.mubr.bf16.gmra.mrb[0].mxu0 %v4756
      %v4809 = vpop.f32.mrb[0].mxu0
      %v4810 = vadd.f32 0.0, %v4809
      %v4811 = vpop.f32.mrb[0].mxu0
      %v4812 = vpop.f32.mrb[0].mxu0
      %v4813 = vadd.f32 0.0, %v4812
      %v4814 = vpop.f32.mrb[0].mxu0
      %4815 = vmatprep.mubr.bf16.mxu0 0
      %4816 = vmatmul.mubr.bf16.gmra.mrb[0].mxu0 %v4759
      %v4817 = vpop.f32.mrb[0].mxu0
      %v4818 = vadd.f32 0.0, %v4817
      %v4819 = vpop.f32.mrb[0].mxu0
      %v4820 = vpop.f32.mrb[0].mxu0
      %v4821 = vadd.f32 0.0, %v4820
      %v4822 = vpop.f32.mrb[0].mxu0
      %4823 = vmatprep.mubr.bf16.mxu0 0
      %4824 = vmatmul.mubr.bf16.gmra.mrb[0].mxu0 %v4762
      %v4825 = vpop.f32.mrb[0].mxu0
      %v4826 = vadd.f32 0.0, %v4825
      %v4827 = vpop.f32.mrb[0].mxu0
      %v4828 = vpop.f32.mrb[0].mxu0
      %v4829 = vadd.f32 0.0, %v4828
      %v4830 = vpop.f32.mrb[0].mxu0
      %4831 = vmatprep.mubr.bf16.mxu0 0
      %4832 = vmatmul.mubr.bf16.gmra.mrb[0].mxu0 %v4765
      %v4833 = vpop.f32.mrb[0].mxu0
      %v4834 = vadd.f32 0.0, %v4833
      %v4835 = vpop.f32.mrb[0].mxu0
      %v4836 = vpop.f32.mrb[0].mxu0
      %v4837 = vpop.f32.mrb[0].mxu0
      %4838 = vdwg.mxu0
      %v4839 = vadd.f32 %v4696, %v4802
      %v4840 = vadd.f32 %v4697, %v4805
      %v4841 = vadd.f32 %v4698, %v4810
      %v4842 = vadd.f32 %v4699, %v4813
      %v4843 = vadd.f32 %v4700, %v4818
      %v4844 = vadd.f32 %v4701, %v4821
      %v4845 = vadd.f32 %v4702, %v4826
      %v4846 = vadd.f32 %v4703, %v4829
      %v4847 = vadd.f32 %v4704, %v4834
      %v4848 = vld [vmem:[#allocation4 + $0x14] sm:$0xff]
      %v4849 = vld [vmem:[#allocation4 + $0x1c] sm:$0xff]
      %v4850 = vld [vmem:[#allocation4 + $0x24] sm:$0xff]
      %v4851 = vld [vmem:[#allocation4 + $0x2c] sm:$0xff]
      %v4852 = vld [vmem:[#allocation4 + $0x34] sm:$0xff]
      %v4853 = vld [vmem:[#allocation4 + $0x3c] sm:$0xff]
      %v4854 = vld [vmem:[#allocation4 + $0x44] sm:$0xff]
      %v4855 = vld [vmem:[#allocation4 + $0x4c] sm:$0xff]
      %v4856 = vld [vmem:[#allocation4 + $0x54] sm:$0xff]
      %v4857 = vpack.c.bf16 %v4849, %v4848
      %v4858 = vpack.c.bf16 %v4851, %v4850
      %v4859 = vpack.c.bf16 %v4853, %v4852
      %v4860 = vpack.c.bf16 %v4855, %v4854
      %v4861 = vpack.c.bf16 %v4856, %v4856
      %s4862 = scalar_lea.vmem %s7, 160
      %v4863 = vld [vmem:[%s4862] sm:$0xf]
      %v4864 = vld [vmem:[%s4862 + $0x4] sm:$0xf]
      %v4865 = vld [vmem:[%s4862 + $0x8] sm:$0xf]
      %v4866 = vld [vmem:[%s4862 + $0xc] sm:$0xf]
      %v4867 = vld [vmem:[%s4862 + $0x10] sm:$0xf]
      %v4868 = vld [vmem:[%s4862 + $0x14] sm:$0xf]
      %v4869 = vld [vmem:[%s4862 + $0x18] sm:$0xf]
      %v4870 = vld [vmem:[%s4862 + $0x1c] sm:$0xf]
      %v4879 = vunpack.c.l.b16 %v4863
      %v4880 = vunpack.c.l.b16 %v4864
      %v4881 = vunpack.c.l.b16 %v4865
      %v4882 = vunpack.c.l.b16 %v4866
      %v4883 = vunpack.c.l.b16 %v4867
      %v4884 = vunpack.c.l.b16 %v4868
      %v4885 = vunpack.c.l.b16 %v4869
      %v4886 = vunpack.c.l.b16 %v4870
      %v4887 = vpack.c.b16 %v4880, %v4879
      %v4888 = vpack.c.b16 %v4882, %v4881
      %v4889 = vpack.c.b16 %v4884, %v4883
      %v4890 = vpack.c.b16 %v4886, %v4885
      %v4896 = vsel %vm826, %v4857, 0
      %v4899 = vsel %vm826, %v4858, 0
      %v4902 = vsel %vm826, %v4859, 0
      %v4905 = vsel %vm826, %v4860, 0
      %v4908 = vsel %vm826, %v4861, 0
      %4910 = vmatprep.subr.bf16.mxu0 0
      %4911 = vmatpush1.bf16.msra.mxu0 %v4887
      %4912 = vmatprep.subr.bf16.mxu0 0
      %4913 = vmatpush1.bf16.msra.mxu0 %v4888
      %4914 = vmatprep.subr.bf16.mxu0 0
      %4915 = vmatpush1.bf16.msra.mxu0 %v4889
      %4916 = vmatprep.subr.bf16.mxu0 0
      %4917 = vmatpush1.bf16.msra.mxu0 %v4890
      %4918 = vmatprep.subr.bf16.mxu0 0
      %4919 = vmatpush1.bf16.msra.mxu0 0
      %4920 = vmatprep.subr.bf16.mxu0 0
      %4921 = vmatpush1.bf16.msra.mxu0 0
      %4922 = vmatprep.subr.bf16.mxu0 0
      %4923 = vmatpush1.bf16.msra.mxu0 0
      %4924 = vmatprep.subr.bf16.mxu0 0
      %4925 = vmatpush1.bf16.msra.mxu0 0
      %4926 = vmatprep.subr.bf16.mxu0 0
      %4927 = vmatpush1.bf16.msra.mxu0 0
      %4928 = vmatprep.subr.bf16.mxu0 0
      %4929 = vmatpush1.bf16.msra.mxu0 0
      %4930 = vmatprep.subr.bf16.mxu0 0
      %4931 = vmatpush1.bf16.msra.mxu0 0
      %4932 = vmatprep.subr.bf16.mxu0 0
      %4933 = vmatpush1.bf16.msra.mxu0 0
      %4934 = vmatprep.subr.bf16.mxu0 0
      %4935 = vmatpush1.bf16.msra.mxu0 0
      %4936 = vmatprep.subr.bf16.mxu0 0
      %4937 = vmatpush1.bf16.msra.mxu0 0
      %4938 = vmatprep.subr.bf16.mxu0 0
      %4939 = vmatpush1.bf16.msra.mxu0 0
      %4940 = vmatprep.subr.bf16.mxu0 0
      %4941 = vmatpush1.bf16.msra.mxu0 0
      %4942 = vmatprep.mubr.bf16.mxu0 0
      %4943 = vmatmul.mubr.bf16.gmra.mrb[0].mxu0 %v4896
      %v4944 = vpop.f32.mrb[0].mxu0
      %v4945 = vadd.f32 0.0, %v4944
      %v4946 = vpop.f32.mrb[0].mxu0
      %v4947 = vpop.f32.mrb[0].mxu0
      %v4948 = vadd.f32 0.0, %v4947
      %v4949 = vpop.f32.mrb[0].mxu0
      %4950 = vmatprep.mubr.bf16.mxu0 0
      %4951 = vmatmul.mubr.bf16.gmra.mrb[0].mxu0 %v4899
      %v4952 = vpop.f32.mrb[0].mxu0
      %v4953 = vadd.f32 0.0, %v4952
      %v4954 = vpop.f32.mrb[0].mxu0
      %v4955 = vpop.f32.mrb[0].mxu0
      %v4956 = vadd.f32 0.0, %v4955
      %v4957 = vpop.f32.mrb[0].mxu0
      %4958 = vmatprep.mubr.bf16.mxu0 0
      %4959 = vmatmul.mubr.bf16.gmra.mrb[0].mxu0 %v4902
      %v4960 = vpop.f32.mrb[0].mxu0
      %v4961 = vadd.f32 0.0, %v4960
      %v4962 = vpop.f32.mrb[0].mxu0
      %v4963 = vpop.f32.mrb[0].mxu0
      %v4964 = vadd.f32 0.0, %v4963
      %v4965 = vpop.f32.mrb[0].mxu0
      %4966 = vmatprep.mubr.bf16.mxu0 0
      %4967 = vmatmul.mubr.bf16.gmra.mrb[0].mxu0 %v4905
      %v4968 = vpop.f32.mrb[0].mxu0
      %v4969 = vadd.f32 0.0, %v4968
      %v4970 = vpop.f32.mrb[0].mxu0
      %v4971 = vpop.f32.mrb[0].mxu0
      %v4972 = vadd.f32 0.0, %v4971
      %v4973 = vpop.f32.mrb[0].mxu0
      %4974 = vmatprep.mubr.bf16.mxu0 0
      %4975 = vmatmul.mubr.bf16.gmra.mrb[0].mxu0 %v4908
      %v4976 = vpop.f32.mrb[0].mxu0
      %v4977 = vadd.f32 0.0, %v4976
      %v4978 = vpop.f32.mrb[0].mxu0
      %v4979 = vpop.f32.mrb[0].mxu0
      %v4980 = vpop.f32.mrb[0].mxu0
      %4981 = vdwg.mxu0
      %v4982 = vadd.f32 %v4839, %v4945
      %v4983 = vadd.f32 %v4840, %v4948
      %v4984 = vadd.f32 %v4841, %v4953
      %v4985 = vadd.f32 %v4842, %v4956
      %v4986 = vadd.f32 %v4843, %v4961
      %v4987 = vadd.f32 %v4844, %v4964
      %v4988 = vadd.f32 %v4845, %v4969
      %v4989 = vadd.f32 %v4846, %v4972
      %v4990 = vadd.f32 %v4847, %v4977
      %v4991 = vld [vmem:[#allocation4 + $0x24] sm:$0xff]
      %v4992 = vld [vmem:[#allocation4 + $0x2c] sm:$0xff]
      %v4993 = vld [vmem:[#allocation4 + $0x34] sm:$0xff]
      %v4994 = vld [vmem:[#allocation4 + $0x3c] sm:$0xff]
      %v4995 = vld [vmem:[#allocation4 + $0x44] sm:$0xff]
      %v4996 = vld [vmem:[#allocation4 + $0x4c] sm:$0xff]
      %v4997 = vld [vmem:[#allocation4 + $0x54] sm:$0xff]
      %v4998 = vld [vmem:[#allocation4 + $0x5c] sm:$0xff]
      %v4999 = vld [vmem:[#allocation4 + $0x64] sm:$0xff]
      %v5000 = vpack.c.bf16 %v4992, %v4991
      %v5001 = vpack.c.bf16 %v4994, %v4993
      %v5002 = vpack.c.bf16 %v4996, %v4995
      %v5003 = vpack.c.bf16 %v4998, %v4997
      %v5004 = vpack.c.bf16 %v4999, %v4999
      %s5005 = scalar_lea.vmem %s7, 192
      %v5006 = vld [vmem:[%s5005] sm:$0xf]
      %v5007 = vld [vmem:[%s5005 + $0x4] sm:$0xf]
      %v5008 = vld [vmem:[%s5005 + $0x8] sm:$0xf]
      %v5009 = vld [vmem:[%s5005 + $0xc] sm:$0xf]
      %v5010 = vld [vmem:[%s5005 + $0x10] sm:$0xf]
      %v5011 = vld [vmem:[%s5005 + $0x14] sm:$0xf]
      %v5012 = vld [vmem:[%s5005 + $0x18] sm:$0xf]
      %v5013 = vld [vmem:[%s5005 + $0x1c] sm:$0xf]
      %v5022 = vunpack.c.l.b16 %v5006
      %v5023 = vunpack.c.l.b16 %v5007
      %v5024 = vunpack.c.l.b16 %v5008
      %v5025 = vunpack.c.l.b16 %v5009
      %v5026 = vunpack.c.l.b16 %v5010
      %v5027 = vunpack.c.l.b16 %v5011
      %v5028 = vunpack.c.l.b16 %v5012
      %v5029 = vunpack.c.l.b16 %v5013
      %v5030 = vpack.c.b16 %v5023, %v5022
      %v5031 = vpack.c.b16 %v5025, %v5024
      %v5032 = vpack.c.b16 %v5027, %v5026
      %v5033 = vpack.c.b16 %v5029, %v5028
      %v5039 = vsel %vm826, %v5000, 0
      %v5042 = vsel %vm826, %v5001, 0
      %v5045 = vsel %vm826, %v5002, 0
      %v5048 = vsel %vm826, %v5003, 0
      %v5051 = vsel %vm826, %v5004, 0
      %5053 = vmatprep.subr.bf16.mxu0 0
      %5054 = vmatpush1.bf16.msra.mxu0 %v5030
      %5055 = vmatprep.subr.bf16.mxu0 0
      %5056 = vmatpush1.bf16.msra.mxu0 %v5031
      %5057 = vmatprep.subr.bf16.mxu0 0
      %5058 = vmatpush1.bf16.msra.mxu0 %v5032
      %5059 = vmatprep.subr.bf16.mxu0 0
      %5060 = vmatpush1.bf16.msra.mxu0 %v5033
      %5061 = vmatprep.subr.bf16.mxu0 0
      %5062 = vmatpush1.bf16.msra.mxu0 0
      %5063 = vmatprep.subr.bf16.mxu0 0
      %5064 = vmatpush1.bf16.msra.mxu0 0
      %5065 = vmatprep.subr.bf16.mxu0 0
      %5066 = vmatpush1.bf16.msra.mxu0 0
      %5067 = vmatprep.subr.bf16.mxu0 0
      %5068 = vmatpush1.bf16.msra.mxu0 0
      %5069 = vmatprep.subr.bf16.mxu0 0
      %5070 = vmatpush1.bf16.msra.mxu0 0
      %5071 = vmatprep.subr.bf16.mxu0 0
      %5072 = vmatpush1.bf16.msra.mxu0 0
      %5073 = vmatprep.subr.bf16.mxu0 0
      %5074 = vmatpush1.bf16.msra.mxu0 0
      %5075 = vmatprep.subr.bf16.mxu0 0
      %5076 = vmatpush1.bf16.msra.mxu0 0
      %5077 = vmatprep.subr.bf16.mxu0 0
      %5078 = vmatpush1.bf16.msra.mxu0 0
      %5079 = vmatprep.subr.bf16.mxu0 0
      %5080 = vmatpush1.bf16.msra.mxu0 0
      %5081 = vmatprep.subr.bf16.mxu0 0
      %5082 = vmatpush1.bf16.msra.mxu0 0
      %5083 = vmatprep.subr.bf16.mxu0 0
      %5084 = vmatpush1.bf16.msra.mxu0 0
      %5085 = vmatprep.mubr.bf16.mxu0 0
      %5086 = vmatmul.mubr.bf16.gmra.mrb[0].mxu0 %v5039
      %v5087 = vpop.f32.mrb[0].mxu0
      %v5088 = vadd.f32 0.0, %v5087
      %v5089 = vpop.f32.mrb[0].mxu0
      %v5090 = vpop.f32.mrb[0].mxu0
      %v5091 = vadd.f32 0.0, %v5090
      %v5092 = vpop.f32.mrb[0].mxu0
      %5093 = vmatprep.mubr.bf16.mxu0 0
      %5094 = vmatmul.mubr.bf16.gmra.mrb[0].mxu0 %v5042
      %v5095 = vpop.f32.mrb[0].mxu0
      %v5096 = vadd.f32 0.0, %v5095
      %v5097 = vpop.f32.mrb[0].mxu0
      %v5098 = vpop.f32.mrb[0].mxu0
      %v5099 = vadd.f32 0.0, %v5098
      %v5100 = vpop.f32.mrb[0].mxu0
      %5101 = vmatprep.mubr.bf16.mxu0 0
      %5102 = vmatmul.mubr.bf16.gmra.mrb[0].mxu0 %v5045
      %v5103 = vpop.f32.mrb[0].mxu0
      %v5104 = vadd.f32 0.0, %v5103
      %v5105 = vpop.f32.mrb[0].mxu0
      %v5106 = vpop.f32.mrb[0].mxu0
      %v5107 = vadd.f32 0.0, %v5106
      %v5108 = vpop.f32.mrb[0].mxu0
      %5109 = vmatprep.mubr.bf16.mxu0 0
      %5110 = vmatmul.mubr.bf16.gmra.mrb[0].mxu0 %v5048
      %v5111 = vpop.f32.mrb[0].mxu0
      %v5112 = vadd.f32 0.0, %v5111
      %v5113 = vpop.f32.mrb[0].mxu0
      %v5114 = vpop.f32.mrb[0].mxu0
      %v5115 = vadd.f32 0.0, %v5114
      %v5116 = vpop.f32.mrb[0].mxu0
      %5117 = vmatprep.mubr.bf16.mxu0 0
      %5118 = vmatmul.mubr.bf16.gmra.mrb[0].mxu0 %v5051
      %v5119 = vpop.f32.mrb[0].mxu0
      %v5120 = vadd.f32 0.0, %v5119
      %v5121 = vpop.f32.mrb[0].mxu0
      %v5122 = vpop.f32.mrb[0].mxu0
      %v5123 = vpop.f32.mrb[0].mxu0
      %5124 = vdwg.mxu0
      %v5125 = vadd.f32 %v4982, %v5088
      %v5126 = vadd.f32 %v4983, %v5091
      %v5127 = vadd.f32 %v4984, %v5096
      %v5128 = vadd.f32 %v4985, %v5099
      %v5129 = vadd.f32 %v4986, %v5104
      %v5130 = vadd.f32 %v4987, %v5107
      %v5131 = vadd.f32 %v4988, %v5112
      %v5132 = vadd.f32 %v4989, %v5115
      %v5133 = vadd.f32 %v4990, %v5120
      %v5134 = vld [vmem:[#allocation4 + $0x25] sm:$0xff]
      %v5135 = vld [vmem:[#allocation4 + $0x2d] sm:$0xff]
      %v5136 = vld [vmem:[#allocation4 + $0x35] sm:$0xff]
      %v5137 = vld [vmem:[#allocation4 + $0x3d] sm:$0xff]
      %v5138 = vld [vmem:[#allocation4 + $0x45] sm:$0xff]
      %v5139 = vld [vmem:[#allocation4 + $0x4d] sm:$0xff]
      %v5140 = vld [vmem:[#allocation4 + $0x55] sm:$0xff]
      %v5141 = vld [vmem:[#allocation4 + $0x5d] sm:$0xff]
      %v5142 = vld [vmem:[#allocation4 + $0x65] sm:$0xff]
      %v5143 = vpack.c.bf16 %v5135, %v5134
      %v5144 = vpack.c.bf16 %v5137, %v5136
      %v5145 = vpack.c.bf16 %v5139, %v5138
      %v5146 = vpack.c.bf16 %v5141, %v5140
      %v5147 = vpack.c.bf16 %v5142, %v5142
      %s5148 = scalar_lea.vmem %s7, 224
      %v5149 = vld [vmem:[%s5148] sm:$0xf]
      %v5150 = vld [vmem:[%s5148 + $0x4] sm:$0xf]
      %v5151 = vld [vmem:[%s5148 + $0x8] sm:$0xf]
      %v5152 = vld [vmem:[%s5148 + $0xc] sm:$0xf]
      %v5153 = vld [vmem:[%s5148 + $0x10] sm:$0xf]
      %v5154 = vld [vmem:[%s5148 + $0x14] sm:$0xf]
      %v5155 = vld [vmem:[%s5148 + $0x18] sm:$0xf]
      %v5156 = vld [vmem:[%s5148 + $0x1c] sm:$0xf]
      %v5165 = vunpack.c.l.b16 %v5149
      %v5166 = vunpack.c.l.b16 %v5150
      %v5167 = vunpack.c.l.b16 %v5151
      %v5168 = vunpack.c.l.b16 %v5152
      %v5169 = vunpack.c.l.b16 %v5153
      %v5170 = vunpack.c.l.b16 %v5154
      %v5171 = vunpack.c.l.b16 %v5155
      %v5172 = vunpack.c.l.b16 %v5156
      %v5173 = vpack.c.b16 %v5166, %v5165
      %v5174 = vpack.c.b16 %v5168, %v5167
      %v5175 = vpack.c.b16 %v5170, %v5169
      %v5176 = vpack.c.b16 %v5172, %v5171
      %v5182 = vsel %vm826, %v5143, 0
      %v5185 = vsel %vm826, %v5144, 0
      %v5188 = vsel %vm826, %v5145, 0
      %v5191 = vsel %vm826, %v5146, 0
      %v5194 = vsel %vm826, %v5147, 0
      %5196 = vmatprep.subr.bf16.mxu0 0
      %5197 = vmatpush1.bf16.msra.mxu0 %v5173
      %5198 = vmatprep.subr.bf16.mxu0 0
      %5199 = vmatpush1.bf16.msra.mxu0 %v5174
      %5200 = vmatprep.subr.bf16.mxu0 0
      %5201 = vmatpush1.bf16.msra.mxu0 %v5175
      %5202 = vmatprep.subr.bf16.mxu0 0
      %5203 = vmatpush1.bf16.msra.mxu0 %v5176
      %5204 = vmatprep.subr.bf16.mxu0 0
      %5205 = vmatpush1.bf16.msra.mxu0 0
      %5206 = vmatprep.subr.bf16.mxu0 0
      %5207 = vmatpush1.bf16.msra.mxu0 0
      %5208 = vmatprep.subr.bf16.mxu0 0
      %5209 = vmatpush1.bf16.msra.mxu0 0
      %5210 = vmatprep.subr.bf16.mxu0 0
      %5211 = vmatpush1.bf16.msra.mxu0 0
      %5212 = vmatprep.subr.bf16.mxu0 0
      %5213 = vmatpush1.bf16.msra.mxu0 0
      %5214 = vmatprep.subr.bf16.mxu0 0
      %5215 = vmatpush1.bf16.msra.mxu0 0
      %5216 = vmatprep.subr.bf16.mxu0 0
      %5217 = vmatpush1.bf16.msra.mxu0 0
      %5218 = vmatprep.subr.bf16.mxu0 0
      %5219 = vmatpush1.bf16.msra.mxu0 0
      %5220 = vmatprep.subr.bf16.mxu0 0
      %5221 = vmatpush1.bf16.msra.mxu0 0
      %5222 = vmatprep.subr.bf16.mxu0 0
      %5223 = vmatpush1.bf16.msra.mxu0 0
      %5224 = vmatprep.subr.bf16.mxu0 0
      %5225 = vmatpush1.bf16.msra.mxu0 0
      %5226 = vmatprep.subr.bf16.mxu0 0
      %5227 = vmatpush1.bf16.msra.mxu0 0
      %5228 = vmatprep.mubr.bf16.mxu0 0
      %5229 = vmatmul.mubr.bf16.gmra.mrb[0].mxu0 %v5182
      %v5230 = vpop.f32.mrb[0].mxu0
      %v5231 = vadd.f32 0.0, %v5230
      %v5232 = vpop.f32.mrb[0].mxu0
      %v5233 = vpop.f32.mrb[0].mxu0
      %v5234 = vadd.f32 0.0, %v5233
      %v5235 = vpop.f32.mrb[0].mxu0
      %5236 = vmatprep.mubr.bf16.mxu0 0
      %5237 = vmatmul.mubr.bf16.gmra.mrb[0].mxu0 %v5185
      %v5238 = vpop.f32.mrb[0].mxu0
      %v5239 = vadd.f32 0.0, %v5238
      %v5240 = vpop.f32.mrb[0].mxu0
      %v5241 = vpop.f32.mrb[0].mxu0
      %v5242 = vadd.f32 0.0, %v5241
      %v5243 = vpop.f32.mrb[0].mxu0
      %5244 = vmatprep.mubr.bf16.mxu0 0
      %5245 = vmatmul.mubr.bf16.gmra.mrb[0].mxu0 %v5188
      %v5246 = vpop.f32.mrb[0].mxu0
      %v5247 = vadd.f32 0.0, %v5246
      %v5248 = vpop.f32.mrb[0].mxu0
      %v5249 = vpop.f32.mrb[0].mxu0
      %v5250 = vadd.f32 0.0, %v5249
      %v5251 = vpop.f32.mrb[0].mxu0
      %5252 = vmatprep.mubr.bf16.mxu0 0
      %5253 = vmatmul.mubr.bf16.gmra.mrb[0].mxu0 %v5191
      %v5254 = vpop.f32.mrb[0].mxu0
      %v5255 = vadd.f32 0.0, %v5254
      %v5256 = vpop.f32.mrb[0].mxu0
      %v5257 = vpop.f32.mrb[0].mxu0
      %v5258 = vadd.f32 0.0, %v5257
      %v5259 = vpop.f32.mrb[0].mxu0
      %5260 = vmatprep.mubr.bf16.mxu0 0
      %5261 = vmatmul.mubr.bf16.gmra.mrb[0].mxu0 %v5194
      %v5262 = vpop.f32.mrb[0].mxu0
      %v5263 = vadd.f32 0.0, %v5262
      %v5264 = vpop.f32.mrb[0].mxu0
      %v5265 = vpop.f32.mrb[0].mxu0
      %v5266 = vpop.f32.mrb[0].mxu0
      %5267 = vdwg.mxu0
      %v5268 = vadd.f32 %v5125, %v5231
      %v5269 = vadd.f32 %v5126, %v5234
      %v5270 = vadd.f32 %v5127, %v5239
      %v5271 = vadd.f32 %v5128, %v5242
      %v5272 = vadd.f32 %v5129, %v5247
      %v5273 = vadd.f32 %v5130, %v5250
      %v5274 = vadd.f32 %v5131, %v5255
      %v5275 = vadd.f32 %v5132, %v5258
      %v5276 = vadd.f32 %v5133, %v5263
      %v5277 = vld [vmem:[#allocation4 + $0x26] sm:$0xff]
      %v5278 = vld [vmem:[#allocation4 + $0x2e] sm:$0xff]
      %v5279 = vld [vmem:[#allocation4 + $0x36] sm:$0xff]
      %v5280 = vld [vmem:[#allocation4 + $0x3e] sm:$0xff]
      %v5281 = vld [vmem:[#allocation4 + $0x46] sm:$0xff]
      %v5282 = vld [vmem:[#allocation4 + $0x4e] sm:$0xff]
      %v5283 = vld [vmem:[#allocation4 + $0x56] sm:$0xff]
      %v5284 = vld [vmem:[#allocation4 + $0x5e] sm:$0xff]
      %v5285 = vld [vmem:[#allocation4 + $0x66] sm:$0xff]
      %v5286 = vpack.c.bf16 %v5278, %v5277
      %v5287 = vpack.c.bf16 %v5280, %v5279
      %v5288 = vpack.c.bf16 %v5282, %v5281
      %v5289 = vpack.c.bf16 %v5284, %v5283
      %v5290 = vpack.c.bf16 %v5285, %v5285
      %s5291 = scalar_lea.vmem %s7, 256
      %v5292 = vld [vmem:[%s5291] sm:$0xf]
      %v5293 = vld [vmem:[%s5291 + $0x4] sm:$0xf]
      %v5294 = vld [vmem:[%s5291 + $0x8] sm:$0xf]
      %v5295 = vld [vmem:[%s5291 + $0xc] sm:$0xf]
      %v5296 = vld [vmem:[%s5291 + $0x10] sm:$0xf]
      %v5297 = vld [vmem:[%s5291 + $0x14] sm:$0xf]
      %v5298 = vld [vmem:[%s5291 + $0x18] sm:$0xf]
      %v5299 = vld [vmem:[%s5291 + $0x1c] sm:$0xf]
      %v5308 = vunpack.c.l.b16 %v5292
      %v5309 = vunpack.c.l.b16 %v5293
      %v5310 = vunpack.c.l.b16 %v5294
      %v5311 = vunpack.c.l.b16 %v5295
      %v5312 = vunpack.c.l.b16 %v5296
      %v5313 = vunpack.c.l.b16 %v5297
      %v5314 = vunpack.c.l.b16 %v5298
      %v5315 = vunpack.c.l.b16 %v5299
      %v5316 = vpack.c.b16 %v5309, %v5308
      %v5317 = vpack.c.b16 %v5311, %v5310
      %v5318 = vpack.c.b16 %v5313, %v5312
      %v5319 = vpack.c.b16 %v5315, %v5314
      %v5325 = vsel %vm826, %v5286, 0
      %v5328 = vsel %vm826, %v5287, 0
      %v5331 = vsel %vm826, %v5288, 0
      %v5334 = vsel %vm826, %v5289, 0
      %v5337 = vsel %vm826, %v5290, 0
      %5339 = vmatprep.subr.bf16.mxu0 0
      %5340 = vmatpush1.bf16.msra.mxu0 %v5316
      %5341 = vmatprep.subr.bf16.mxu0 0
      %5342 = vmatpush1.bf16.msra.mxu0 %v5317
      %5343 = vmatprep.subr.bf16.mxu0 0
      %5344 = vmatpush1.bf16.msra.mxu0 %v5318
      %5345 = vmatprep.subr.bf16.mxu0 0
      %5346 = vmatpush1.bf16.msra.mxu0 %v5319
      %5347 = vmatprep.subr.bf16.mxu0 0
      %5348 = vmatpush1.bf16.msra.mxu0 0
      %5349 = vmatprep.subr.bf16.mxu0 0
      %5350 = vmatpush1.bf16.msra.mxu0 0
      %5351 = vmatprep.subr.bf16.mxu0 0
      %5352 = vmatpush1.bf16.msra.mxu0 0
      %5353 = vmatprep.subr.bf16.mxu0 0
      %5354 = vmatpush1.bf16.msra.mxu0 0
      %5355 = vmatprep.subr.bf16.mxu0 0
      %5356 = vmatpush1.bf16.msra.mxu0 0
      %5357 = vmatprep.subr.bf16.mxu0 0
      %5358 = vmatpush1.bf16.msra.mxu0 0
      %5359 = vmatprep.subr.bf16.mxu0 0
      %5360 = vmatpush1.bf16.msra.mxu0 0
      %5361 = vmatprep.subr.bf16.mxu0 0
      %5362 = vmatpush1.bf16.msra.mxu0 0
      %5363 = vmatprep.subr.bf16.mxu0 0
      %5364 = vmatpush1.bf16.msra.mxu0 0
      %5365 = vmatprep.subr.bf16.mxu0 0
      %5366 = vmatpush1.bf16.msra.mxu0 0
      %5367 = vmatprep.subr.bf16.mxu0 0
      %5368 = vmatpush1.bf16.msra.mxu0 0
      %5369 = vmatprep.subr.bf16.mxu0 0
      %5370 = vmatpush1.bf16.msra.mxu0 0
      %5371 = vmatprep.mubr.bf16.mxu0 0
      %5372 = vmatmul.mubr.bf16.gmra.mrb[0].mxu0 %v5325
      %v5373 = vpop.f32.mrb[0].mxu0
      %v5374 = vadd.f32 0.0, %v5373
      %v5375 = vpop.f32.mrb[0].mxu0
      %v5376 = vpop.f32.mrb[0].mxu0
      %v5377 = vadd.f32 0.0, %v5376
      %v5378 = vpop.f32.mrb[0].mxu0
      %5379 = vmatprep.mubr.bf16.mxu0 0
      %5380 = vmatmul.mubr.bf16.gmra.mrb[0].mxu0 %v5328
      %v5381 = vpop.f32.mrb[0].mxu0
      %v5382 = vadd.f32 0.0, %v5381
      %v5383 = vpop.f32.mrb[0].mxu0
      %v5384 = vpop.f32.mrb[0].mxu0
      %v5385 = vadd.f32 0.0, %v5384
      %v5386 = vpop.f32.mrb[0].mxu0
      %5387 = vmatprep.mubr.bf16.mxu0 0
      %5388 = vmatmul.mubr.bf16.gmra.mrb[0].mxu0 %v5331
      %v5389 = vpop.f32.mrb[0].mxu0
      %v5390 = vadd.f32 0.0, %v5389
      %v5391 = vpop.f32.mrb[0].mxu0
      %v5392 = vpop.f32.mrb[0].mxu0
      %v5393 = vadd.f32 0.0, %v5392
      %v5394 = vpop.f32.mrb[0].mxu0
      %5395 = vmatprep.mubr.bf16.mxu0 0
      %5396 = vmatmul.mubr.bf16.gmra.mrb[0].mxu0 %v5334
      %v5397 = vpop.f32.mrb[0].mxu0
      %v5398 = vadd.f32 0.0, %v5397
      %v5399 = vpop.f32.mrb[0].mxu0
      %v5400 = vpop.f32.mrb[0].mxu0
      %v5401 = vadd.f32 0.0, %v5400
      %v5402 = vpop.f32.mrb[0].mxu0
      %5403 = vmatprep.mubr.bf16.mxu0 0
      %5404 = vmatmul.mubr.bf16.gmra.mrb[0].mxu0 %v5337
      %v5405 = vpop.f32.mrb[0].mxu0
      %v5406 = vadd.f32 0.0, %v5405
      %v5407 = vpop.f32.mrb[0].mxu0
      %v5408 = vpop.f32.mrb[0].mxu0
      %v5409 = vpop.f32.mrb[0].mxu0
      %5410 = vdwg.mxu0
      %v5411 = vadd.f32 %v5268, %v5374
      %v5412 = vadd.f32 %v5269, %v5377
      %v5413 = vadd.f32 %v5270, %v5382
      %v5414 = vadd.f32 %v5271, %v5385
      %v5415 = vadd.f32 %v5272, %v5390
      %v5416 = vadd.f32 %v5273, %v5393
      %v5417 = vadd.f32 %v5274, %v5398
      %v5418 = vadd.f32 %v5275, %v5401
      %v5419 = vadd.f32 %v5276, %v5406
      %v5420 = vld [vmem:[%s8] sm:$0x1]
      %v5422 = vlaneseq
      %v5423 = vshrl.u32 %v5422, 7
      %v5424 = vsub.s32 0, %v5423
      %v5425 = vrot.slane %v5420, %v5424
      %v5427 = vadd.f32 %v5411, %v5425
      %v5428 = vadd.f32 %v5412, %v5425
      %v5429 = vadd.f32 %v5413, %v5425
      %v5430 = vadd.f32 %v5414, %v5425
      %v5431 = vadd.f32 %v5415, %v5425
      %v5432 = vadd.f32 %v5416, %v5425
      %v5433 = vadd.f32 %v5417, %v5425
      %v5434 = vadd.f32 %v5418, %v5425
      %v5435 = vadd.f32 %v5419, %v5425
      %vm5436 = vcmask 64512
      %5437 = vst.msk [vmem:[%s332] sm:$0xff] %vm5436, %v5427
      %5438 = vst.msk [vmem:[%s332 + $0x8] sm:$0xff] %vm5436, %v5428
      %vm5439 = vcmask 64514
      %5440 = vst.msk [vmem:[%s332 + $0xe] sm:$0xfc] %vm5439, %v5429
      %5441 = vst.msk [vmem:[%s332 + $0x16] sm:$0xff] %vm5436, %v5430
      %vm5442 = vcmask 58368
      %5443 = vst.msk [vmem:[%s332 + $0x1e] sm:$0x3] %vm5442, %v5431
      %vm5444 = vcmask 64516
      %5445 = vst.msk [vmem:[%s332 + $0x1c] sm:$0xf0] %vm5444, %v5431
      %5446 = vst.msk [vmem:[%s332 + $0x24] sm:$0xff] %vm5436, %v5432
      %vm5447 = vcmask 60416
      %5448 = vst.msk [vmem:[%s332 + $0x2c] sm:$0xf] %vm5447, %v5433
      %vm5449 = vcmask 64518
      %5450 = vst.msk [vmem:[%s332 + $0x2a] sm:$0xc0] %vm5449, %v5433
      %5451 = vst.msk [vmem:[%s332 + $0x32] sm:$0xff] %vm5436, %v5434
      %vm5452 = vcmask 62464
      %5453 = vst.msk [vmem:[%s332 + $0x3a] sm:$0x3f] %vm5452, %v5435
      %v5454 = vld [vmem:[#allocation4 + $0x48] sm:$0xff]
      %v5455 = vld [vmem:[#allocation4 + $0x50] sm:$0xff]
      %v5456 = vld [vmem:[#allocation4 + $0x58] sm:$0xff]
      %v5457 = vld [vmem:[#allocation4 + $0x60] sm:$0xff]
      %v5458 = vld [vmem:[#allocation4 + $0x68] sm:$0xff]
      %v5459 = vld [vmem:[#allocation4 + $0x70] sm:$0xff]
      %v5460 = vld [vmem:[#allocation4 + $0x78] sm:$0xff]
      %v5461 = vld [vmem:[#allocation4 + $0x80] sm:$0xff]
      %v5462 = vld [vmem:[#allocation4 + $0x88] sm:$0xff]
      %v5463 = vpack.c.bf16 %v5455, %v5454
      %v5464 = vpack.c.bf16 %v5457, %v5456
      %v5465 = vpack.c.bf16 %v5459, %v5458
      %v5466 = vpack.c.bf16 %v5461, %v5460
      %v5467 = vpack.c.bf16 %v5462, %v5462
      %v5468 = vld [vmem:[%s7] sm:$0xf]
      %v5469 = vld [vmem:[%s7 + $0x4] sm:$0xf]
      %v5470 = vld [vmem:[%s7 + $0x8] sm:$0xf]
      %v5471 = vld [vmem:[%s7 + $0xc] sm:$0xf]
      %v5472 = vld [vmem:[%s7 + $0x10] sm:$0xf]
      %v5473 = vld [vmem:[%s7 + $0x14] sm:$0xf]
      %v5474 = vld [vmem:[%s7 + $0x18] sm:$0xf]
      %v5475 = vld [vmem:[%s7 + $0x1c] sm:$0xf]
      %v5476 = vld [vmem:[#allocation4 + $0x49] sm:$0xff]
      %v5477 = vld [vmem:[#allocation4 + $0x51] sm:$0xff]
      %v5478 = vld [vmem:[#allocation4 + $0x59] sm:$0xff]
      %v5479 = vld [vmem:[#allocation4 + $0x61] sm:$0xff]
      %v5480 = vld [vmem:[#allocation4 + $0x69] sm:$0xff]
      %v5481 = vld [vmem:[#allocation4 + $0x71] sm:$0xff]
      %v5482 = vld [vmem:[#allocation4 + $0x79] sm:$0xff]
      %v5483 = vld [vmem:[#allocation4 + $0x81] sm:$0xff]
      %v5484 = vld [vmem:[#allocation4 + $0x89] sm:$0xff]
      %v5485 = vpack.c.bf16 %v5477, %v5476
      %v5486 = vpack.c.bf16 %v5479, %v5478
      %v5487 = vpack.c.bf16 %v5481, %v5480
      %v5488 = vpack.c.bf16 %v5483, %v5482
      %v5489 = vpack.c.bf16 %v5484, %v5484
      %v5490 = vld [vmem:[%s4188] sm:$0xf]
      %v5491 = vld [vmem:[%s4188 + $0x4] sm:$0xf]
      %v5492 = vld [vmem:[%s4188 + $0x8] sm:$0xf]
      %v5493 = vld [vmem:[%s4188 + $0xc] sm:$0xf]
      %v5494 = vld [vmem:[%s4188 + $0x10] sm:$0xf]
      %v5495 = vld [vmem:[%s4188 + $0x14] sm:$0xf]
      %v5496 = vld [vmem:[%s4188 + $0x18] sm:$0xf]
      %v5497 = vld [vmem:[%s4188 + $0x1c] sm:$0xf]
      %v5506 = vunpack.c.l.b16 %v5490
      %v5507 = vunpack.c.l.b16 %v5491
      %v5508 = vunpack.c.l.b16 %v5492
      %v5509 = vunpack.c.l.b16 %v5493
      %v5510 = vunpack.c.l.b16 %v5494
      %v5511 = vunpack.c.l.b16 %v5495
      %v5512 = vunpack.c.l.b16 %v5496
      %v5513 = vunpack.c.l.b16 %v5497
      %v5514 = vpack.c.b16 %v5507, %v5506
      %v5515 = vpack.c.b16 %v5509, %v5508
      %v5516 = vpack.c.b16 %v5511, %v5510
      %v5517 = vpack.c.b16 %v5513, %v5512
      %v5523 = vsel %vm826, %v5485, 0
      %v5526 = vsel %vm826, %v5486, 0
      %v5529 = vsel %vm826, %v5487, 0
      %v5532 = vsel %vm826, %v5488, 0
      %v5535 = vsel %vm826, %v5489, 0
      %5537 = vmatprep.subr.bf16.mxu0 0
      %5538 = vmatpush1.bf16.msra.mxu0 %v5514
      %5539 = vmatprep.subr.bf16.mxu0 0
      %5540 = vmatpush1.bf16.msra.mxu0 %v5515
      %5541 = vmatprep.subr.bf16.mxu0 0
      %5542 = vmatpush1.bf16.msra.mxu0 %v5516
      %5543 = vmatprep.subr.bf16.mxu0 0
      %5544 = vmatpush1.bf16.msra.mxu0 %v5517
      %5545 = vmatprep.subr.bf16.mxu0 0
      %5546 = vmatpush1.bf16.msra.mxu0 0
      %5547 = vmatprep.subr.bf16.mxu0 0
      %5548 = vmatpush1.bf16.msra.mxu0 0
      %5549 = vmatprep.subr.bf16.mxu0 0
      %5550 = vmatpush1.bf16.msra.mxu0 0
      %5551 = vmatprep.subr.bf16.mxu0 0
      %5552 = vmatpush1.bf16.msra.mxu0 0
      %5553 = vmatprep.subr.bf16.mxu0 0
      %5554 = vmatpush1.bf16.msra.mxu0 0
      %5555 = vmatprep.subr.bf16.mxu0 0
      %5556 = vmatpush1.bf16.msra.mxu0 0
      %5557 = vmatprep.subr.bf16.mxu0 0
      %5558 = vmatpush1.bf16.msra.mxu0 0
      %5559 = vmatprep.subr.bf16.mxu0 0
      %5560 = vmatpush1.bf16.msra.mxu0 0
      %5561 = vmatprep.subr.bf16.mxu0 0
      %5562 = vmatpush1.bf16.msra.mxu0 0
      %5563 = vmatprep.subr.bf16.mxu0 0
      %5564 = vmatpush1.bf16.msra.mxu0 0
      %5565 = vmatprep.subr.bf16.mxu0 0
      %5566 = vmatpush1.bf16.msra.mxu0 0
      %5567 = vmatprep.subr.bf16.mxu0 0
      %5568 = vmatpush1.bf16.msra.mxu0 0
      %5569 = vmatprep.mubr.bf16.mxu0 0
      %5570 = vmatmul.mubr.bf16.gmra.mrb[0].mxu0 %v5523
      %v5571 = vpop.f32.mrb[0].mxu0
      %v5572 = vadd.f32 0.0, %v5571
      %v5573 = vpop.f32.mrb[0].mxu0
      %v5574 = vpop.f32.mrb[0].mxu0
      %v5575 = vadd.f32 0.0, %v5574
      %v5576 = vpop.f32.mrb[0].mxu0
      %5577 = vmatprep.mubr.bf16.mxu0 0
      %5578 = vmatmul.mubr.bf16.gmra.mrb[0].mxu0 %v5526
      %v5579 = vpop.f32.mrb[0].mxu0
      %v5580 = vadd.f32 0.0, %v5579
      %v5581 = vpop.f32.mrb[0].mxu0
      %v5582 = vpop.f32.mrb[0].mxu0
      %v5583 = vadd.f32 0.0, %v5582
      %v5584 = vpop.f32.mrb[0].mxu0
      %5585 = vmatprep.mubr.bf16.mxu0 0
      %5586 = vmatmul.mubr.bf16.gmra.mrb[0].mxu0 %v5529
      %v5587 = vpop.f32.mrb[0].mxu0
      %v5588 = vadd.f32 0.0, %v5587
      %v5589 = vpop.f32.mrb[0].mxu0
      %v5590 = vpop.f32.mrb[0].mxu0
      %v5591 = vadd.f32 0.0, %v5590
      %v5592 = vpop.f32.mrb[0].mxu0
      %5593 = vmatprep.mubr.bf16.mxu0 0
      %5594 = vmatmul.mubr.bf16.gmra.mrb[0].mxu0 %v5532
      %v5595 = vpop.f32.mrb[0].mxu0
      %v5596 = vadd.f32 0.0, %v5595
      %v5597 = vpop.f32.mrb[0].mxu0
      %v5598 = vpop.f32.mrb[0].mxu0
      %v5599 = vadd.f32 0.0, %v5598
      %v5600 = vpop.f32.mrb[0].mxu0
      %5601 = vmatprep.mubr.bf16.mxu0 0
      %5602 = vmatmul.mubr.bf16.gmra.mrb[0].mxu0 %v5535
      %v5603 = vpop.f32.mrb[0].mxu0
      %v5604 = vadd.f32 0.0, %v5603
      %v5605 = vpop.f32.mrb[0].mxu0
      %v5606 = vpop.f32.mrb[0].mxu0
      %v5607 = vpop.f32.mrb[0].mxu0
      %5608 = vdwg.mxu0
      %v5617 = vunpack.c.l.b16 %v5468
      %v5618 = vunpack.c.l.b16 %v5469
      %v5619 = vunpack.c.l.b16 %v5470
      %v5620 = vunpack.c.l.b16 %v5471
      %v5621 = vunpack.c.l.b16 %v5472
      %v5622 = vunpack.c.l.b16 %v5473
      %v5623 = vunpack.c.l.b16 %v5474
      %v5624 = vunpack.c.l.b16 %v5475
      %v5625 = vpack.c.b16 %v5618, %v5617
      %v5626 = vpack.c.b16 %v5620, %v5619
      %v5627 = vpack.c.b16 %v5622, %v5621
      %v5628 = vpack.c.b16 %v5624, %v5623
      %v5634 = vsel %vm826, %v5463, 0
      %v5637 = vsel %vm826, %v5464, 0
      %v5640 = vsel %vm826, %v5465, 0
      %v5643 = vsel %vm826, %v5466, 0
      %v5646 = vsel %vm826, %v5467, 0
      %5648 = vmatprep.subr.bf16.mxu0 0
      %5649 = vmatpush1.bf16.msra.mxu0 %v5625
      %5650 = vmatprep.subr.bf16.mxu0 0
      %5651 = vmatpush1.bf16.msra.mxu0 %v5626
      %5652 = vmatprep.subr.bf16.mxu0 0
      %5653 = vmatpush1.bf16.msra.mxu0 %v5627
      %5654 = vmatprep.subr.bf16.mxu0 0
      %5655 = vmatpush1.bf16.msra.mxu0 %v5628
      %5656 = vmatprep.subr.bf16.mxu0 0
      %5657 = vmatpush1.bf16.msra.mxu0 0
      %5658 = vmatprep.subr.bf16.mxu0 0
      %5659 = vmatpush1.bf16.msra.mxu0 0
      %5660 = vmatprep.subr.bf16.mxu0 0
      %5661 = vmatpush1.bf16.msra.mxu0 0
      %5662 = vmatprep.subr.bf16.mxu0 0
      %5663 = vmatpush1.bf16.msra.mxu0 0
      %5664 = vmatprep.subr.bf16.mxu0 0
      %5665 = vmatpush1.bf16.msra.mxu0 0
      %5666 = vmatprep.subr.bf16.mxu0 0
      %5667 = vmatpush1.bf16.msra.mxu0 0
      %5668 = vmatprep.subr.bf16.mxu0 0
      %5669 = vmatpush1.bf16.msra.mxu0 0
      %5670 = vmatprep.subr.bf16.mxu0 0
      %5671 = vmatpush1.bf16.msra.mxu0 0
      %5672 = vmatprep.subr.bf16.mxu0 0
      %5673 = vmatpush1.bf16.msra.mxu0 0
      %5674 = vmatprep.subr.bf16.mxu0 0
      %5675 = vmatpush1.bf16.msra.mxu0 0
      %5676 = vmatprep.subr.bf16.mxu0 0
      %5677 = vmatpush1.bf16.msra.mxu0 0
      %5678 = vmatprep.subr.bf16.mxu0 0
      %5679 = vmatpush1.bf16.msra.mxu0 0
      %5680 = vmatprep.mubr.bf16.mxu0 0
      %5681 = vmatmul.mubr.bf16.gmra.mrb[0].mxu0 %v5634
      %v5682 = vpop.f32.mrb[0].mxu0
      %v5683 = vadd.f32 %v5572, %v5682
      %v5684 = vpop.f32.mrb[0].mxu0
      %v5685 = vpop.f32.mrb[0].mxu0
      %v5686 = vadd.f32 %v5575, %v5685
      %v5687 = vpop.f32.mrb[0].mxu0
      %5688 = vmatprep.mubr.bf16.mxu0 0
      %5689 = vmatmul.mubr.bf16.gmra.mrb[0].mxu0 %v5637
      %v5690 = vpop.f32.mrb[0].mxu0
      %v5691 = vadd.f32 %v5580, %v5690
      %v5692 = vpop.f32.mrb[0].mxu0
      %v5693 = vpop.f32.mrb[0].mxu0
      %v5694 = vadd.f32 %v5583, %v5693
      %v5695 = vpop.f32.mrb[0].mxu0
      %5696 = vmatprep.mubr.bf16.mxu0 0
      %5697 = vmatmul.mubr.bf16.gmra.mrb[0].mxu0 %v5640
      %v5698 = vpop.f32.mrb[0].mxu0
      %v5699 = vadd.f32 %v5588, %v5698
      %v5700 = vpop.f32.mrb[0].mxu0
      %v5701 = vpop.f32.mrb[0].mxu0
      %v5702 = vadd.f32 %v5591, %v5701
      %v5703 = vpop.f32.mrb[0].mxu0
      %5704 = vmatprep.mubr.bf16.mxu0 0
      %5705 = vmatmul.mubr.bf16.gmra.mrb[0].mxu0 %v5643
      %v5706 = vpop.f32.mrb[0].mxu0
      %v5707 = vadd.f32 %v5596, %v5706
      %v5708 = vpop.f32.mrb[0].mxu0
      %v5709 = vpop.f32.mrb[0].mxu0
      %v5710 = vadd.f32 %v5599, %v5709
      %v5711 = vpop.f32.mrb[0].mxu0
      %5712 = vmatprep.mubr.bf16.mxu0 0
      %5713 = vmatmul.mubr.bf16.gmra.mrb[0].mxu0 %v5646
      %v5714 = vpop.f32.mrb[0].mxu0
      %v5715 = vadd.f32 %v5604, %v5714
      %v5716 = vpop.f32.mrb[0].mxu0
      %v5717 = vpop.f32.mrb[0].mxu0
      %v5718 = vpop.f32.mrb[0].mxu0
      %5719 = vdwg.mxu0
      %v5720 = vld [vmem:[#allocation4 + $0x4a] sm:$0xff]
      %v5721 = vld [vmem:[#allocation4 + $0x52] sm:$0xff]
      %v5722 = vld [vmem:[#allocation4 + $0x5a] sm:$0xff]
      %v5723 = vld [vmem:[#allocation4 + $0x62] sm:$0xff]
      %v5724 = vld [vmem:[#allocation4 + $0x6a] sm:$0xff]
      %v5725 = vld [vmem:[#allocation4 + $0x72] sm:$0xff]
      %v5726 = vld [vmem:[#allocation4 + $0x7a] sm:$0xff]
      %v5727 = vld [vmem:[#allocation4 + $0x82] sm:$0xff]
      %v5728 = vld [vmem:[#allocation4 + $0x8a] sm:$0xff]
      %v5729 = vpack.c.bf16 %v5721, %v5720
      %v5730 = vpack.c.bf16 %v5723, %v5722
      %v5731 = vpack.c.bf16 %v5725, %v5724
      %v5732 = vpack.c.bf16 %v5727, %v5726
      %v5733 = vpack.c.bf16 %v5728, %v5728
      %v5734 = vld [vmem:[%s4433] sm:$0xf]
      %v5735 = vld [vmem:[%s4433 + $0x4] sm:$0xf]
      %v5736 = vld [vmem:[%s4433 + $0x8] sm:$0xf]
      %v5737 = vld [vmem:[%s4433 + $0xc] sm:$0xf]
      %v5738 = vld [vmem:[%s4433 + $0x10] sm:$0xf]
      %v5739 = vld [vmem:[%s4433 + $0x14] sm:$0xf]
      %v5740 = vld [vmem:[%s4433 + $0x18] sm:$0xf]
      %v5741 = vld [vmem:[%s4433 + $0x1c] sm:$0xf]
      %v5750 = vunpack.c.l.b16 %v5734
      %v5751 = vunpack.c.l.b16 %v5735
      %v5752 = vunpack.c.l.b16 %v5736
      %v5753 = vunpack.c.l.b16 %v5737
      %v5754 = vunpack.c.l.b16 %v5738
      %v5755 = vunpack.c.l.b16 %v5739
      %v5756 = vunpack.c.l.b16 %v5740
      %v5757 = vunpack.c.l.b16 %v5741
      %v5758 = vpack.c.b16 %v5751, %v5750
      %v5759 = vpack.c.b16 %v5753, %v5752
      %v5760 = vpack.c.b16 %v5755, %v5754
      %v5761 = vpack.c.b16 %v5757, %v5756
      %v5767 = vsel %vm826, %v5729, 0
      %v5770 = vsel %vm826, %v5730, 0
      %v5773 = vsel %vm826, %v5731, 0
      %v5776 = vsel %vm826, %v5732, 0
      %v5779 = vsel %vm826, %v5733, 0
      %5781 = vmatprep.subr.bf16.mxu0 0
      %5782 = vmatpush1.bf16.msra.mxu0 %v5758
      %5783 = vmatprep.subr.bf16.mxu0 0
      %5784 = vmatpush1.bf16.msra.mxu0 %v5759
      %5785 = vmatprep.subr.bf16.mxu0 0
      %5786 = vmatpush1.bf16.msra.mxu0 %v5760
      %5787 = vmatprep.subr.bf16.mxu0 0
      %5788 = vmatpush1.bf16.msra.mxu0 %v5761
      %5789 = vmatprep.subr.bf16.mxu0 0
      %5790 = vmatpush1.bf16.msra.mxu0 0
      %5791 = vmatprep.subr.bf16.mxu0 0
      %5792 = vmatpush1.bf16.msra.mxu0 0
      %5793 = vmatprep.subr.bf16.mxu0 0
      %5794 = vmatpush1.bf16.msra.mxu0 0
      %5795 = vmatprep.subr.bf16.mxu0 0
      %5796 = vmatpush1.bf16.msra.mxu0 0
      %5797 = vmatprep.subr.bf16.mxu0 0
      %5798 = vmatpush1.bf16.msra.mxu0 0
      %5799 = vmatprep.subr.bf16.mxu0 0
      %5800 = vmatpush1.bf16.msra.mxu0 0
      %5801 = vmatprep.subr.bf16.mxu0 0
      %5802 = vmatpush1.bf16.msra.mxu0 0
      %5803 = vmatprep.subr.bf16.mxu0 0
      %5804 = vmatpush1.bf16.msra.mxu0 0
      %5805 = vmatprep.subr.bf16.mxu0 0
      %5806 = vmatpush1.bf16.msra.mxu0 0
      %5807 = vmatprep.subr.bf16.mxu0 0
      %5808 = vmatpush1.bf16.msra.mxu0 0
      %5809 = vmatprep.subr.bf16.mxu0 0
      %5810 = vmatpush1.bf16.msra.mxu0 0
      %5811 = vmatprep.subr.bf16.mxu0 0
      %5812 = vmatpush1.bf16.msra.mxu0 0
      %5813 = vmatprep.mubr.bf16.mxu0 0
      %5814 = vmatmul.mubr.bf16.gmra.mrb[0].mxu0 %v5767
      %v5815 = vpop.f32.mrb[0].mxu0
      %v5816 = vadd.f32 0.0, %v5815
      %v5817 = vpop.f32.mrb[0].mxu0
      %v5818 = vpop.f32.mrb[0].mxu0
      %v5819 = vadd.f32 0.0, %v5818
      %v5820 = vpop.f32.mrb[0].mxu0
      %5821 = vmatprep.mubr.bf16.mxu0 0
      %5822 = vmatmul.mubr.bf16.gmra.mrb[0].mxu0 %v5770
      %v5823 = vpop.f32.mrb[0].mxu0
      %v5824 = vadd.f32 0.0, %v5823
      %v5825 = vpop.f32.mrb[0].mxu0
      %v5826 = vpop.f32.mrb[0].mxu0
      %v5827 = vadd.f32 0.0, %v5826
      %v5828 = vpop.f32.mrb[0].mxu0
      %5829 = vmatprep.mubr.bf16.mxu0 0
      %5830 = vmatmul.mubr.bf16.gmra.mrb[0].mxu0 %v5773
      %v5831 = vpop.f32.mrb[0].mxu0
      %v5832 = vadd.f32 0.0, %v5831
      %v5833 = vpop.f32.mrb[0].mxu0
      %v5834 = vpop.f32.mrb[0].mxu0
      %v5835 = vadd.f32 0.0, %v5834
      %v5836 = vpop.f32.mrb[0].mxu0
      %5837 = vmatprep.mubr.bf16.mxu0 0
      %5838 = vmatmul.mubr.bf16.gmra.mrb[0].mxu0 %v5776
      %v5839 = vpop.f32.mrb[0].mxu0
      %v5840 = vadd.f32 0.0, %v5839
      %v5841 = vpop.f32.mrb[0].mxu0
      %v5842 = vpop.f32.mrb[0].mxu0
      %v5843 = vadd.f32 0.0, %v5842
      %v5844 = vpop.f32.mrb[0].mxu0
      %5845 = vmatprep.mubr.bf16.mxu0 0
      %5846 = vmatmul.mubr.bf16.gmra.mrb[0].mxu0 %v5779
      %v5847 = vpop.f32.mrb[0].mxu0
      %v5848 = vadd.f32 0.0, %v5847
      %v5849 = vpop.f32.mrb[0].mxu0
      %v5850 = vpop.f32.mrb[0].mxu0
      %v5851 = vpop.f32.mrb[0].mxu0
      %5852 = vdwg.mxu0
      %v5853 = vadd.f32 %v5683, %v5816
      %v5854 = vadd.f32 %v5686, %v5819
      %v5855 = vadd.f32 %v5691, %v5824
      %v5856 = vadd.f32 %v5694, %v5827
      %v5857 = vadd.f32 %v5699, %v5832
      %v5858 = vadd.f32 %v5702, %v5835
      %v5859 = vadd.f32 %v5707, %v5840
      %v5860 = vadd.f32 %v5710, %v5843
      %v5861 = vadd.f32 %v5715, %v5848
      %v5862 = vld [vmem:[#allocation4 + $0x5a] sm:$0xff]
      %v5863 = vld [vmem:[#allocation4 + $0x62] sm:$0xff]
      %v5864 = vld [vmem:[#allocation4 + $0x6a] sm:$0xff]
      %v5865 = vld [vmem:[#allocation4 + $0x72] sm:$0xff]
      %v5866 = vld [vmem:[#allocation4 + $0x7a] sm:$0xff]
      %v5867 = vld [vmem:[#allocation4 + $0x82] sm:$0xff]
      %v5868 = vld [vmem:[#allocation4 + $0x8a] sm:$0xff]
      %v5869 = vld [vmem:[#allocation4 + $0x92] sm:$0xff]
      %v5870 = vld [vmem:[#allocation4 + $0x9a] sm:$0xff]
      %v5871 = vpack.c.bf16 %v5863, %v5862
      %v5872 = vpack.c.bf16 %v5865, %v5864
      %v5873 = vpack.c.bf16 %v5867, %v5866
      %v5874 = vpack.c.bf16 %v5869, %v5868
      %v5875 = vpack.c.bf16 %v5870, %v5870
      %v5876 = vld [vmem:[%s4576] sm:$0xf]
      %v5877 = vld [vmem:[%s4576 + $0x4] sm:$0xf]
      %v5878 = vld [vmem:[%s4576 + $0x8] sm:$0xf]
      %v5879 = vld [vmem:[%s4576 + $0xc] sm:$0xf]
      %v5880 = vld [vmem:[%s4576 + $0x10] sm:$0xf]
      %v5881 = vld [vmem:[%s4576 + $0x14] sm:$0xf]
      %v5882 = vld [vmem:[%s4576 + $0x18] sm:$0xf]
      %v5883 = vld [vmem:[%s4576 + $0x1c] sm:$0xf]
      %v5892 = vunpack.c.l.b16 %v5876
      %v5893 = vunpack.c.l.b16 %v5877
      %v5894 = vunpack.c.l.b16 %v5878
      %v5895 = vunpack.c.l.b16 %v5879
      %v5896 = vunpack.c.l.b16 %v5880
      %v5897 = vunpack.c.l.b16 %v5881
      %v5898 = vunpack.c.l.b16 %v5882
      %v5899 = vunpack.c.l.b16 %v5883
      %v5900 = vpack.c.b16 %v5893, %v5892
      %v5901 = vpack.c.b16 %v5895, %v5894
      %v5902 = vpack.c.b16 %v5897, %v5896
      %v5903 = vpack.c.b16 %v5899, %v5898
      %v5909 = vsel %vm826, %v5871, 0
      %v5912 = vsel %vm826, %v5872, 0
      %v5915 = vsel %vm826, %v5873, 0
      %v5918 = vsel %vm826, %v5874, 0
      %v5921 = vsel %vm826, %v5875, 0
      %5923 = vmatprep.subr.bf16.mxu0 0
      %5924 = vmatpush1.bf16.msra.mxu0 %v5900
      %5925 = vmatprep.subr.bf16.mxu0 0
      %5926 = vmatpush1.bf16.msra.mxu0 %v5901
      %5927 = vmatprep.subr.bf16.mxu0 0
      %5928 = vmatpush1.bf16.msra.mxu0 %v5902
      %5929 = vmatprep.subr.bf16.mxu0 0
      %5930 = vmatpush1.bf16.msra.mxu0 %v5903
      %5931 = vmatprep.subr.bf16.mxu0 0
      %5932 = vmatpush1.bf16.msra.mxu0 0
      %5933 = vmatprep.subr.bf16.mxu0 0
      %5934 = vmatpush1.bf16.msra.mxu0 0
      %5935 = vmatprep.subr.bf16.mxu0 0
      %5936 = vmatpush1.bf16.msra.mxu0 0
      %5937 = vmatprep.subr.bf16.mxu0 0
      %5938 = vmatpush1.bf16.msra.mxu0 0
      %5939 = vmatprep.subr.bf16.mxu0 0
      %5940 = vmatpush1.bf16.msra.mxu0 0
      %5941 = vmatprep.subr.bf16.mxu0 0
      %5942 = vmatpush1.bf16.msra.mxu0 0
      %5943 = vmatprep.subr.bf16.mxu0 0
      %5944 = vmatpush1.bf16.msra.mxu0 0
      %5945 = vmatprep.subr.bf16.mxu0 0
      %5946 = vmatpush1.bf16.msra.mxu0 0
      %5947 = vmatprep.subr.bf16.mxu0 0
      %5948 = vmatpush1.bf16.msra.mxu0 0
      %5949 = vmatprep.subr.bf16.mxu0 0
      %5950 = vmatpush1.bf16.msra.mxu0 0
      %5951 = vmatprep.subr.bf16.mxu0 0
      %5952 = vmatpush1.bf16.msra.mxu0 0
      %5953 = vmatprep.subr.bf16.mxu0 0
      %5954 = vmatpush1.bf16.msra.mxu0 0
      %5955 = vmatprep.mubr.bf16.mxu0 0
      %5956 = vmatmul.mubr.bf16.gmra.mrb[0].mxu0 %v5909
      %v5957 = vpop.f32.mrb[0].mxu0
      %v5958 = vadd.f32 0.0, %v5957
      %v5959 = vpop.f32.mrb[0].mxu0
      %v5960 = vpop.f32.mrb[0].mxu0
      %v5961 = vadd.f32 0.0, %v5960
      %v5962 = vpop.f32.mrb[0].mxu0
      %5963 = vmatprep.mubr.bf16.mxu0 0
      %5964 = vmatmul.mubr.bf16.gmra.mrb[0].mxu0 %v5912
      %v5965 = vpop.f32.mrb[0].mxu0
      %v5966 = vadd.f32 0.0, %v5965
      %v5967 = vpop.f32.mrb[0].mxu0
      %v5968 = vpop.f32.mrb[0].mxu0
      %v5969 = vadd.f32 0.0, %v5968
      %v5970 = vpop.f32.mrb[0].mxu0
      %5971 = vmatprep.mubr.bf16.mxu0 0
      %5972 = vmatmul.mubr.bf16.gmra.mrb[0].mxu0 %v5915
      %v5973 = vpop.f32.mrb[0].mxu0
      %v5974 = vadd.f32 0.0, %v5973
      %v5975 = vpop.f32.mrb[0].mxu0
      %v5976 = vpop.f32.mrb[0].mxu0
      %v5977 = vadd.f32 0.0, %v5976
      %v5978 = vpop.f32.mrb[0].mxu0
      %5979 = vmatprep.mubr.bf16.mxu0 0
      %5980 = vmatmul.mubr.bf16.gmra.mrb[0].mxu0 %v5918
      %v5981 = vpop.f32.mrb[0].mxu0
      %v5982 = vadd.f32 0.0, %v5981
      %v5983 = vpop.f32.mrb[0].mxu0
      %v5984 = vpop.f32.mrb[0].mxu0
      %v5985 = vadd.f32 0.0, %v5984
      %v5986 = vpop.f32.mrb[0].mxu0
      %5987 = vmatprep.mubr.bf16.mxu0 0
      %5988 = vmatmul.mubr.bf16.gmra.mrb[0].mxu0 %v5921
      %v5989 = vpop.f32.mrb[0].mxu0
      %v5990 = vadd.f32 0.0, %v5989
      %v5991 = vpop.f32.mrb[0].mxu0
      %v5992 = vpop.f32.mrb[0].mxu0
      %v5993 = vpop.f32.mrb[0].mxu0
      %5994 = vdwg.mxu0
      %v5995 = vadd.f32 %v5853, %v5958
      %v5996 = vadd.f32 %v5854, %v5961
      %v5997 = vadd.f32 %v5855, %v5966
      %v5998 = vadd.f32 %v5856, %v5969
      %v5999 = vadd.f32 %v5857, %v5974
      %v6000 = vadd.f32 %v5858, %v5977
      %v6001 = vadd.f32 %v5859, %v5982
      %v6002 = vadd.f32 %v5860, %v5985
      %v6003 = vadd.f32 %v5861, %v5990
      %v6004 = vld [vmem:[#allocation4 + $0x5b] sm:$0xff]
      %v6005 = vld [vmem:[#allocation4 + $0x63] sm:$0xff]
      %v6006 = vld [vmem:[#allocation4 + $0x6b] sm:$0xff]
      %v6007 = vld [vmem:[#allocation4 + $0x73] sm:$0xff]
      %v6008 = vld [vmem:[#allocation4 + $0x7b] sm:$0xff]
      %v6009 = vld [vmem:[#allocation4 + $0x83] sm:$0xff]
      %v6010 = vld [vmem:[#allocation4 + $0x8b] sm:$0xff]
      %v6011 = vld [vmem:[#allocation4 + $0x93] sm:$0xff]
      %v6012 = vld [vmem:[#allocation4 + $0x9b] sm:$0xff]
      %v6013 = vpack.c.bf16 %v6005, %v6004
      %v6014 = vpack.c.bf16 %v6007, %v6006
      %v6015 = vpack.c.bf16 %v6009, %v6008
      %v6016 = vpack.c.bf16 %v6011, %v6010
      %v6017 = vpack.c.bf16 %v6012, %v6012
      %v6018 = vld [vmem:[%s4719] sm:$0xf]
      %v6019 = vld [vmem:[%s4719 + $0x4] sm:$0xf]
      %v6020 = vld [vmem:[%s4719 + $0x8] sm:$0xf]
      %v6021 = vld [vmem:[%s4719 + $0xc] sm:$0xf]
      %v6022 = vld [vmem:[%s4719 + $0x10] sm:$0xf]
      %v6023 = vld [vmem:[%s4719 + $0x14] sm:$0xf]
      %v6024 = vld [vmem:[%s4719 + $0x18] sm:$0xf]
      %v6025 = vld [vmem:[%s4719 + $0x1c] sm:$0xf]
      %v6034 = vunpack.c.l.b16 %v6018
      %v6035 = vunpack.c.l.b16 %v6019
      %v6036 = vunpack.c.l.b16 %v6020
      %v6037 = vunpack.c.l.b16 %v6021
      %v6038 = vunpack.c.l.b16 %v6022
      %v6039 = vunpack.c.l.b16 %v6023
      %v6040 = vunpack.c.l.b16 %v6024
      %v6041 = vunpack.c.l.b16 %v6025
      %v6042 = vpack.c.b16 %v6035, %v6034
      %v6043 = vpack.c.b16 %v6037, %v6036
      %v6044 = vpack.c.b16 %v6039, %v6038
      %v6045 = vpack.c.b16 %v6041, %v6040
      %v6051 = vsel %vm826, %v6013, 0
      %v6054 = vsel %vm826, %v6014, 0
      %v6057 = vsel %vm826, %v6015, 0
      %v6060 = vsel %vm826, %v6016, 0
      %v6063 = vsel %vm826, %v6017, 0
      %6065 = vmatprep.subr.bf16.mxu0 0
      %6066 = vmatpush1.bf16.msra.mxu0 %v6042
      %6067 = vmatprep.subr.bf16.mxu0 0
      %6068 = vmatpush1.bf16.msra.mxu0 %v6043
      %6069 = vmatprep.subr.bf16.mxu0 0
      %6070 = vmatpush1.bf16.msra.mxu0 %v6044
      %6071 = vmatprep.subr.bf16.mxu0 0
      %6072 = vmatpush1.bf16.msra.mxu0 %v6045
      %6073 = vmatprep.subr.bf16.mxu0 0
      %6074 = vmatpush1.bf16.msra.mxu0 0
      %6075 = vmatprep.subr.bf16.mxu0 0
      %6076 = vmatpush1.bf16.msra.mxu0 0
      %6077 = vmatprep.subr.bf16.mxu0 0
      %6078 = vmatpush1.bf16.msra.mxu0 0
      %6079 = vmatprep.subr.bf16.mxu0 0
      %6080 = vmatpush1.bf16.msra.mxu0 0
      %6081 = vmatprep.subr.bf16.mxu0 0
      %6082 = vmatpush1.bf16.msra.mxu0 0
      %6083 = vmatprep.subr.bf16.mxu0 0
      %6084 = vmatpush1.bf16.msra.mxu0 0
      %6085 = vmatprep.subr.bf16.mxu0 0
      %6086 = vmatpush1.bf16.msra.mxu0 0
      %6087 = vmatprep.subr.bf16.mxu0 0
      %6088 = vmatpush1.bf16.msra.mxu0 0
      %6089 = vmatprep.subr.bf16.mxu0 0
      %6090 = vmatpush1.bf16.msra.mxu0 0
      %6091 = vmatprep.subr.bf16.mxu0 0
      %6092 = vmatpush1.bf16.msra.mxu0 0
      %6093 = vmatprep.subr.bf16.mxu0 0
      %6094 = vmatpush1.bf16.msra.mxu0 0
      %6095 = vmatprep.subr.bf16.mxu0 0
      %6096 = vmatpush1.bf16.msra.mxu0 0
      %6097 = vmatprep.mubr.bf16.mxu0 0
      %6098 = vmatmul.mubr.bf16.gmra.mrb[0].mxu0 %v6051
      %v6099 = vpop.f32.mrb[0].mxu0
      %v6100 = vadd.f32 0.0, %v6099
      %v6101 = vpop.f32.mrb[0].mxu0
      %v6102 = vpop.f32.mrb[0].mxu0
      %v6103 = vadd.f32 0.0, %v6102
      %v6104 = vpop.f32.mrb[0].mxu0
      %6105 = vmatprep.mubr.bf16.mxu0 0
      %6106 = vmatmul.mubr.bf16.gmra.mrb[0].mxu0 %v6054
      %v6107 = vpop.f32.mrb[0].mxu0
      %v6108 = vadd.f32 0.0, %v6107
      %v6109 = vpop.f32.mrb[0].mxu0
      %v6110 = vpop.f32.mrb[0].mxu0
      %v6111 = vadd.f32 0.0, %v6110
      %v6112 = vpop.f32.mrb[0].mxu0
      %6113 = vmatprep.mubr.bf16.mxu0 0
      %6114 = vmatmul.mubr.bf16.gmra.mrb[0].mxu0 %v6057
      %v6115 = vpop.f32.mrb[0].mxu0
      %v6116 = vadd.f32 0.0, %v6115
      %v6117 = vpop.f32.mrb[0].mxu0
      %v6118 = vpop.f32.mrb[0].mxu0
      %v6119 = vadd.f32 0.0, %v6118
      %v6120 = vpop.f32.mrb[0].mxu0
      %6121 = vmatprep.mubr.bf16.mxu0 0
      %6122 = vmatmul.mubr.bf16.gmra.mrb[0].mxu0 %v6060
      %v6123 = vpop.f32.mrb[0].mxu0
      %v6124 = vadd.f32 0.0, %v6123
      %v6125 = vpop.f32.mrb[0].mxu0
      %v6126 = vpop.f32.mrb[0].mxu0
      %v6127 = vadd.f32 0.0, %v6126
      %v6128 = vpop.f32.mrb[0].mxu0
      %6129 = vmatprep.mubr.bf16.mxu0 0
      %6130 = vmatmul.mubr.bf16.gmra.mrb[0].mxu0 %v6063
      %v6131 = vpop.f32.mrb[0].mxu0
      %v6132 = vadd.f32 0.0, %v6131
      %v6133 = vpop.f32.mrb[0].mxu0
      %v6134 = vpop.f32.mrb[0].mxu0
      %v6135 = vpop.f32.mrb[0].mxu0
      %6136 = vdwg.mxu0
      %v6137 = vadd.f32 %v5995, %v6100
      %v6138 = vadd.f32 %v5996, %v6103
      %v6139 = vadd.f32 %v5997, %v6108
      %v6140 = vadd.f32 %v5998, %v6111
      %v6141 = vadd.f32 %v5999, %v6116
      %v6142 = vadd.f32 %v6000, %v6119
      %v6143 = vadd.f32 %v6001, %v6124
      %v6144 = vadd.f32 %v6002, %v6127
      %v6145 = vadd.f32 %v6003, %v6132
      %v6146 = vld [vmem:[#allocation4 + $0x5c] sm:$0xff]
      %v6147 = vld [vmem:[#allocation4 + $0x64] sm:$0xff]
      %v6148 = vld [vmem:[#allocation4 + $0x6c] sm:$0xff]
      %v6149 = vld [vmem:[#allocation4 + $0x74] sm:$0xff]
      %v6150 = vld [vmem:[#allocation4 + $0x7c] sm:$0xff]
      %v6151 = vld [vmem:[#allocation4 + $0x84] sm:$0xff]
      %v6152 = vld [vmem:[#allocation4 + $0x8c] sm:$0xff]
      %v6153 = vld [vmem:[#allocation4 + $0x94] sm:$0xff]
      %v6154 = vld [vmem:[#allocation4 + $0x9c] sm:$0xff]
      %v6155 = vpack.c.bf16 %v6147, %v6146
      %v6156 = vpack.c.bf16 %v6149, %v6148
      %v6157 = vpack.c.bf16 %v6151, %v6150
      %v6158 = vpack.c.bf16 %v6153, %v6152
      %v6159 = vpack.c.bf16 %v6154, %v6154
      %v6160 = vld [vmem:[%s4862] sm:$0xf]
      %v6161 = vld [vmem:[%s4862 + $0x4] sm:$0xf]
      %v6162 = vld [vmem:[%s4862 + $0x8] sm:$0xf]
      %v6163 = vld [vmem:[%s4862 + $0xc] sm:$0xf]
      %v6164 = vld [vmem:[%s4862 + $0x10] sm:$0xf]
      %v6165 = vld [vmem:[%s4862 + $0x14] sm:$0xf]
      %v6166 = vld [vmem:[%s4862 + $0x18] sm:$0xf]
      %v6167 = vld [vmem:[%s4862 + $0x1c] sm:$0xf]
      %v6176 = vunpack.c.l.b16 %v6160
      %v6177 = vunpack.c.l.b16 %v6161
      %v6178 = vunpack.c.l.b16 %v6162
      %v6179 = vunpack.c.l.b16 %v6163
      %v6180 = vunpack.c.l.b16 %v6164
      %v6181 = vunpack.c.l.b16 %v6165
      %v6182 = vunpack.c.l.b16 %v6166
      %v6183 = vunpack.c.l.b16 %v6167
      %v6184 = vpack.c.b16 %v6177, %v6176
      %v6185 = vpack.c.b16 %v6179, %v6178
      %v6186 = vpack.c.b16 %v6181, %v6180
      %v6187 = vpack.c.b16 %v6183, %v6182
      %v6193 = vsel %vm826, %v6155, 0
      %v6196 = vsel %vm826, %v6156, 0
      %v6199 = vsel %vm826, %v6157, 0
      %v6202 = vsel %vm826, %v6158, 0
      %v6205 = vsel %vm826, %v6159, 0
      %6207 = vmatprep.subr.bf16.mxu0 0
      %6208 = vmatpush1.bf16.msra.mxu0 %v6184
      %6209 = vmatprep.subr.bf16.mxu0 0
      %6210 = vmatpush1.bf16.msra.mxu0 %v6185
      %6211 = vmatprep.subr.bf16.mxu0 0
      %6212 = vmatpush1.bf16.msra.mxu0 %v6186
      %6213 = vmatprep.subr.bf16.mxu0 0
      %6214 = vmatpush1.bf16.msra.mxu0 %v6187
      %6215 = vmatprep.subr.bf16.mxu0 0
      %6216 = vmatpush1.bf16.msra.mxu0 0
      %6217 = vmatprep.subr.bf16.mxu0 0
      %6218 = vmatpush1.bf16.msra.mxu0 0
      %6219 = vmatprep.subr.bf16.mxu0 0
      %6220 = vmatpush1.bf16.msra.mxu0 0
      %6221 = vmatprep.subr.bf16.mxu0 0
      %6222 = vmatpush1.bf16.msra.mxu0 0
      %6223 = vmatprep.subr.bf16.mxu0 0
      %6224 = vmatpush1.bf16.msra.mxu0 0
      %6225 = vmatprep.subr.bf16.mxu0 0
      %6226 = vmatpush1.bf16.msra.mxu0 0
      %6227 = vmatprep.subr.bf16.mxu0 0
      %6228 = vmatpush1.bf16.msra.mxu0 0
      %6229 = vmatprep.subr.bf16.mxu0 0
      %6230 = vmatpush1.bf16.msra.mxu0 0
      %6231 = vmatprep.subr.bf16.mxu0 0
      %6232 = vmatpush1.bf16.msra.mxu0 0
      %6233 = vmatprep.subr.bf16.mxu0 0
      %6234 = vmatpush1.bf16.msra.mxu0 0
      %6235 = vmatprep.subr.bf16.mxu0 0
      %6236 = vmatpush1.bf16.msra.mxu0 0
      %6237 = vmatprep.subr.bf16.mxu0 0
      %6238 = vmatpush1.bf16.msra.mxu0 0
      %6239 = vmatprep.mubr.bf16.mxu0 0
      %6240 = vmatmul.mubr.bf16.gmra.mrb[0].mxu0 %v6193
      %v6241 = vpop.f32.mrb[0].mxu0
      %v6242 = vadd.f32 0.0, %v6241
      %v6243 = vpop.f32.mrb[0].mxu0
      %v6244 = vpop.f32.mrb[0].mxu0
      %v6245 = vadd.f32 0.0, %v6244
      %v6246 = vpop.f32.mrb[0].mxu0
      %6247 = vmatprep.mubr.bf16.mxu0 0
      %6248 = vmatmul.mubr.bf16.gmra.mrb[0].mxu0 %v6196
      %v6249 = vpop.f32.mrb[0].mxu0
      %v6250 = vadd.f32 0.0, %v6249
      %v6251 = vpop.f32.mrb[0].mxu0
      %v6252 = vpop.f32.mrb[0].mxu0
      %v6253 = vadd.f32 0.0, %v6252
      %v6254 = vpop.f32.mrb[0].mxu0
      %6255 = vmatprep.mubr.bf16.mxu0 0
      %6256 = vmatmul.mubr.bf16.gmra.mrb[0].mxu0 %v6199
      %v6257 = vpop.f32.mrb[0].mxu0
      %v6258 = vadd.f32 0.0, %v6257
      %v6259 = vpop.f32.mrb[0].mxu0
      %v6260 = vpop.f32.mrb[0].mxu0
      %v6261 = vadd.f32 0.0, %v6260
      %v6262 = vpop.f32.mrb[0].mxu0
      %6263 = vmatprep.mubr.bf16.mxu0 0
      %6264 = vmatmul.mubr.bf16.gmra.mrb[0].mxu0 %v6202
      %v6265 = vpop.f32.mrb[0].mxu0
      %v6266 = vadd.f32 0.0, %v6265
      %v6267 = vpop.f32.mrb[0].mxu0
      %v6268 = vpop.f32.mrb[0].mxu0
      %v6269 = vadd.f32 0.0, %v6268
      %v6270 = vpop.f32.mrb[0].mxu0
      %6271 = vmatprep.mubr.bf16.mxu0 0
      %6272 = vmatmul.mubr.bf16.gmra.mrb[0].mxu0 %v6205
      %v6273 = vpop.f32.mrb[0].mxu0
      %v6274 = vadd.f32 0.0, %v6273
      %v6275 = vpop.f32.mrb[0].mxu0
      %v6276 = vpop.f32.mrb[0].mxu0
      %v6277 = vpop.f32.mrb[0].mxu0
      %6278 = vdwg.mxu0
      %v6279 = vadd.f32 %v6137, %v6242
      %v6280 = vadd.f32 %v6138, %v6245
      %v6281 = vadd.f32 %v6139, %v6250
      %v6282 = vadd.f32 %v6140, %v6253
      %v6283 = vadd.f32 %v6141, %v6258
      %v6284 = vadd.f32 %v6142, %v6261
      %v6285 = vadd.f32 %v6143, %v6266
      %v6286 = vadd.f32 %v6144, %v6269
      %v6287 = vadd.f32 %v6145, %v6274
      %v6288 = vld [vmem:[#allocation4 + $0x6c] sm:$0xff]
      %v6289 = vld [vmem:[#allocation4 + $0x74] sm:$0xff]
      %v6290 = vld [vmem:[#allocation4 + $0x7c] sm:$0xff]
      %v6291 = vld [vmem:[#allocation4 + $0x84] sm:$0xff]
      %v6292 = vld [vmem:[#allocation4 + $0x8c] sm:$0xff]
      %v6293 = vld [vmem:[#allocation4 + $0x94] sm:$0xff]
      %v6294 = vld [vmem:[#allocation4 + $0x9c] sm:$0xff]
      %v6295 = vld [vmem:[#allocation4 + $0xa4] sm:$0xff]
      %v6296 = vld [vmem:[#allocation4 + $0xac] sm:$0xff]
      %v6297 = vpack.c.bf16 %v6289, %v6288
      %v6298 = vpack.c.bf16 %v6291, %v6290
      %v6299 = vpack.c.bf16 %v6293, %v6292
      %v6300 = vpack.c.bf16 %v6295, %v6294
      %v6301 = vpack.c.bf16 %v6296, %v6296
      %v6302 = vld [vmem:[%s5005] sm:$0xf]
      %v6303 = vld [vmem:[%s5005 + $0x4] sm:$0xf]
      %v6304 = vld [vmem:[%s5005 + $0x8] sm:$0xf]
      %v6305 = vld [vmem:[%s5005 + $0xc] sm:$0xf]
      %v6306 = vld [vmem:[%s5005 + $0x10] sm:$0xf]
      %v6307 = vld [vmem:[%s5005 + $0x14] sm:$0xf]
      %v6308 = vld [vmem:[%s5005 + $0x18] sm:$0xf]
      %v6309 = vld [vmem:[%s5005 + $0x1c] sm:$0xf]
      %v6318 = vunpack.c.l.b16 %v6302
      %v6319 = vunpack.c.l.b16 %v6303
      %v6320 = vunpack.c.l.b16 %v6304
      %v6321 = vunpack.c.l.b16 %v6305
      %v6322 = vunpack.c.l.b16 %v6306
      %v6323 = vunpack.c.l.b16 %v6307
      %v6324 = vunpack.c.l.b16 %v6308
      %v6325 = vunpack.c.l.b16 %v6309
      %v6326 = vpack.c.b16 %v6319, %v6318
      %v6327 = vpack.c.b16 %v6321, %v6320
      %v6328 = vpack.c.b16 %v6323, %v6322
      %v6329 = vpack.c.b16 %v6325, %v6324
      %v6335 = vsel %vm826, %v6297, 0
      %v6338 = vsel %vm826, %v6298, 0
      %v6341 = vsel %vm826, %v6299, 0
      %v6344 = vsel %vm826, %v6300, 0
      %v6347 = vsel %vm826, %v6301, 0
      %6349 = vmatprep.subr.bf16.mxu0 0
      %6350 = vmatpush1.bf16.msra.mxu0 %v6326
      %6351 = vmatprep.subr.bf16.mxu0 0
      %6352 = vmatpush1.bf16.msra.mxu0 %v6327
      %6353 = vmatprep.subr.bf16.mxu0 0
      %6354 = vmatpush1.bf16.msra.mxu0 %v6328
      %6355 = vmatprep.subr.bf16.mxu0 0
      %6356 = vmatpush1.bf16.msra.mxu0 %v6329
      %6357 = vmatprep.subr.bf16.mxu0 0
      %6358 = vmatpush1.bf16.msra.mxu0 0
      %6359 = vmatprep.subr.bf16.mxu0 0
      %6360 = vmatpush1.bf16.msra.mxu0 0
      %6361 = vmatprep.subr.bf16.mxu0 0
      %6362 = vmatpush1.bf16.msra.mxu0 0
      %6363 = vmatprep.subr.bf16.mxu0 0
      %6364 = vmatpush1.bf16.msra.mxu0 0
      %6365 = vmatprep.subr.bf16.mxu0 0
      %6366 = vmatpush1.bf16.msra.mxu0 0
      %6367 = vmatprep.subr.bf16.mxu0 0
      %6368 = vmatpush1.bf16.msra.mxu0 0
      %6369 = vmatprep.subr.bf16.mxu0 0
      %6370 = vmatpush1.bf16.msra.mxu0 0
      %6371 = vmatprep.subr.bf16.mxu0 0
      %6372 = vmatpush1.bf16.msra.mxu0 0
      %6373 = vmatprep.subr.bf16.mxu0 0
      %6374 = vmatpush1.bf16.msra.mxu0 0
      %6375 = vmatprep.subr.bf16.mxu0 0
      %6376 = vmatpush1.bf16.msra.mxu0 0
      %6377 = vmatprep.subr.bf16.mxu0 0
      %6378 = vmatpush1.bf16.msra.mxu0 0
      %6379 = vmatprep.subr.bf16.mxu0 0
      %6380 = vmatpush1.bf16.msra.mxu0 0
      %6381 = vmatprep.mubr.bf16.mxu0 0
      %6382 = vmatmul.mubr.bf16.gmra.mrb[0].mxu0 %v6335
      %v6383 = vpop.f32.mrb[0].mxu0
      %v6384 = vadd.f32 0.0, %v6383
      %v6385 = vpop.f32.mrb[0].mxu0
      %v6386 = vpop.f32.mrb[0].mxu0
      %v6387 = vadd.f32 0.0, %v6386
      %v6388 = vpop.f32.mrb[0].mxu0
      %6389 = vmatprep.mubr.bf16.mxu0 0
      %6390 = vmatmul.mubr.bf16.gmra.mrb[0].mxu0 %v6338
      %v6391 = vpop.f32.mrb[0].mxu0
      %v6392 = vadd.f32 0.0, %v6391
      %v6393 = vpop.f32.mrb[0].mxu0
      %v6394 = vpop.f32.mrb[0].mxu0
      %v6395 = vadd.f32 0.0, %v6394
      %v6396 = vpop.f32.mrb[0].mxu0
      %6397 = vmatprep.mubr.bf16.mxu0 0
      %6398 = vmatmul.mubr.bf16.gmra.mrb[0].mxu0 %v6341
      %v6399 = vpop.f32.mrb[0].mxu0
      %v6400 = vadd.f32 0.0, %v6399
      %v6401 = vpop.f32.mrb[0].mxu0
      %v6402 = vpop.f32.mrb[0].mxu0
      %v6403 = vadd.f32 0.0, %v6402
      %v6404 = vpop.f32.mrb[0].mxu0
      %6405 = vmatprep.mubr.bf16.mxu0 0
      %6406 = vmatmul.mubr.bf16.gmra.mrb[0].mxu0 %v6344
      %v6407 = vpop.f32.mrb[0].mxu0
      %v6408 = vadd.f32 0.0, %v6407
      %v6409 = vpop.f32.mrb[0].mxu0
      %v6410 = vpop.f32.mrb[0].mxu0
      %v6411 = vadd.f32 0.0, %v6410
      %v6412 = vpop.f32.mrb[0].mxu0
      %6413 = vmatprep.mubr.bf16.mxu0 0
      %6414 = vmatmul.mubr.bf16.gmra.mrb[0].mxu0 %v6347
      %v6415 = vpop.f32.mrb[0].mxu0
      %v6416 = vadd.f32 0.0, %v6415
      %v6417 = vpop.f32.mrb[0].mxu0
      %v6418 = vpop.f32.mrb[0].mxu0
      %v6419 = vpop.f32.mrb[0].mxu0
      %6420 = vdwg.mxu0
      %v6421 = vadd.f32 %v6279, %v6384
      %v6422 = vadd.f32 %v6280, %v6387
      %v6423 = vadd.f32 %v6281, %v6392
      %v6424 = vadd.f32 %v6282, %v6395
      %v6425 = vadd.f32 %v6283, %v6400
      %v6426 = vadd.f32 %v6284, %v6403
      %v6427 = vadd.f32 %v6285, %v6408
      %v6428 = vadd.f32 %v6286, %v6411
      %v6429 = vadd.f32 %v6287, %v6416
      %v6430 = vld [vmem:[#allocation4 + $0x6d] sm:$0xff]
      %v6431 = vld [vmem:[#allocation4 + $0x75] sm:$0xff]
      %v6432 = vld [vmem:[#allocation4 + $0x7d] sm:$0xff]
      %v6433 = vld [vmem:[#allocation4 + $0x85] sm:$0xff]
      %v6434 = vld [vmem:[#allocation4 + $0x8d] sm:$0xff]
      %v6435 = vld [vmem:[#allocation4 + $0x95] sm:$0xff]
      %v6436 = vld [vmem:[#allocation4 + $0x9d] sm:$0xff]
      %v6437 = vld [vmem:[#allocation4 + $0xa5] sm:$0xff]
      %v6438 = vld [vmem:[#allocation4 + $0xad] sm:$0xff]
      %v6439 = vpack.c.bf16 %v6431, %v6430
      %v6440 = vpack.c.bf16 %v6433, %v6432
      %v6441 = vpack.c.bf16 %v6435, %v6434
      %v6442 = vpack.c.bf16 %v6437, %v6436
      %v6443 = vpack.c.bf16 %v6438, %v6438
      %v6444 = vld [vmem:[%s5148] sm:$0xf]
      %v6445 = vld [vmem:[%s5148 + $0x4] sm:$0xf]
      %v6446 = vld [vmem:[%s5148 + $0x8] sm:$0xf]
      %v6447 = vld [vmem:[%s5148 + $0xc] sm:$0xf]
      %v6448 = vld [vmem:[%s5148 + $0x10] sm:$0xf]
      %v6449 = vld [vmem:[%s5148 + $0x14] sm:$0xf]
      %v6450 = vld [vmem:[%s5148 + $0x18] sm:$0xf]
      %v6451 = vld [vmem:[%s5148 + $0x1c] sm:$0xf]
      %v6460 = vunpack.c.l.b16 %v6444
      %v6461 = vunpack.c.l.b16 %v6445
      %v6462 = vunpack.c.l.b16 %v6446
      %v6463 = vunpack.c.l.b16 %v6447
      %v6464 = vunpack.c.l.b16 %v6448
      %v6465 = vunpack.c.l.b16 %v6449
      %v6466 = vunpack.c.l.b16 %v6450
      %v6467 = vunpack.c.l.b16 %v6451
      %v6468 = vpack.c.b16 %v6461, %v6460
      %v6469 = vpack.c.b16 %v6463, %v6462
      %v6470 = vpack.c.b16 %v6465, %v6464
      %v6471 = vpack.c.b16 %v6467, %v6466
      %v6477 = vsel %vm826, %v6439, 0
      %v6480 = vsel %vm826, %v6440, 0
      %v6483 = vsel %vm826, %v6441, 0
      %v6486 = vsel %vm826, %v6442, 0
      %v6489 = vsel %vm826, %v6443, 0
      %6491 = vmatprep.subr.bf16.mxu0 0
      %6492 = vmatpush1.bf16.msra.mxu0 %v6468
      %6493 = vmatprep.subr.bf16.mxu0 0
      %6494 = vmatpush1.bf16.msra.mxu0 %v6469
      %6495 = vmatprep.subr.bf16.mxu0 0
      %6496 = vmatpush1.bf16.msra.mxu0 %v6470
      %6497 = vmatprep.subr.bf16.mxu0 0
      %6498 = vmatpush1.bf16.msra.mxu0 %v6471
      %6499 = vmatprep.subr.bf16.mxu0 0
      %6500 = vmatpush1.bf16.msra.mxu0 0
      %6501 = vmatprep.subr.bf16.mxu0 0
      %6502 = vmatpush1.bf16.msra.mxu0 0
      %6503 = vmatprep.subr.bf16.mxu0 0
      %6504 = vmatpush1.bf16.msra.mxu0 0
      %6505 = vmatprep.subr.bf16.mxu0 0
      %6506 = vmatpush1.bf16.msra.mxu0 0
      %6507 = vmatprep.subr.bf16.mxu0 0
      %6508 = vmatpush1.bf16.msra.mxu0 0
      %6509 = vmatprep.subr.bf16.mxu0 0
      %6510 = vmatpush1.bf16.msra.mxu0 0
      %6511 = vmatprep.subr.bf16.mxu0 0
      %6512 = vmatpush1.bf16.msra.mxu0 0
      %6513 = vmatprep.subr.bf16.mxu0 0
      %6514 = vmatpush1.bf16.msra.mxu0 0
      %6515 = vmatprep.subr.bf16.mxu0 0
      %6516 = vmatpush1.bf16.msra.mxu0 0
      %6517 = vmatprep.subr.bf16.mxu0 0
      %6518 = vmatpush1.bf16.msra.mxu0 0
      %6519 = vmatprep.subr.bf16.mxu0 0
      %6520 = vmatpush1.bf16.msra.mxu0 0
      %6521 = vmatprep.subr.bf16.mxu0 0
      %6522 = vmatpush1.bf16.msra.mxu0 0
      %6523 = vmatprep.mubr.bf16.mxu0 0
      %6524 = vmatmul.mubr.bf16.gmra.mrb[0].mxu0 %v6477
      %v6525 = vpop.f32.mrb[0].mxu0
      %v6526 = vadd.f32 0.0, %v6525
      %v6527 = vpop.f32.mrb[0].mxu0
      %v6528 = vpop.f32.mrb[0].mxu0
      %v6529 = vadd.f32 0.0, %v6528
      %v6530 = vpop.f32.mrb[0].mxu0
      %6531 = vmatprep.mubr.bf16.mxu0 0
      %6532 = vmatmul.mubr.bf16.gmra.mrb[0].mxu0 %v6480
      %v6533 = vpop.f32.mrb[0].mxu0
      %v6534 = vadd.f32 0.0, %v6533
      %v6535 = vpop.f32.mrb[0].mxu0
      %v6536 = vpop.f32.mrb[0].mxu0
      %v6537 = vadd.f32 0.0, %v6536
      %v6538 = vpop.f32.mrb[0].mxu0
      %6539 = vmatprep.mubr.bf16.mxu0 0
      %6540 = vmatmul.mubr.bf16.gmra.mrb[0].mxu0 %v6483
      %v6541 = vpop.f32.mrb[0].mxu0
      %v6542 = vadd.f32 0.0, %v6541
      %v6543 = vpop.f32.mrb[0].mxu0
      %v6544 = vpop.f32.mrb[0].mxu0
      %v6545 = vadd.f32 0.0, %v6544
      %v6546 = vpop.f32.mrb[0].mxu0
      %6547 = vmatprep.mubr.bf16.mxu0 0
      %6548 = vmatmul.mubr.bf16.gmra.mrb[0].mxu0 %v6486
      %v6549 = vpop.f32.mrb[0].mxu0
      %v6550 = vadd.f32 0.0, %v6549
      %v6551 = vpop.f32.mrb[0].mxu0
      %v6552 = vpop.f32.mrb[0].mxu0
      %v6553 = vadd.f32 0.0, %v6552
      %v6554 = vpop.f32.mrb[0].mxu0
      %6555 = vmatprep.mubr.bf16.mxu0 0
      %6556 = vmatmul.mubr.bf16.gmra.mrb[0].mxu0 %v6489
      %v6557 = vpop.f32.mrb[0].mxu0
      %v6558 = vadd.f32 0.0, %v6557
      %v6559 = vpop.f32.mrb[0].mxu0
      %v6560 = vpop.f32.mrb[0].mxu0
      %v6561 = vpop.f32.mrb[0].mxu0
      %6562 = vdwg.mxu0
      %v6563 = vadd.f32 %v6421, %v6526
      %v6564 = vadd.f32 %v6422, %v6529
      %v6565 = vadd.f32 %v6423, %v6534
      %v6566 = vadd.f32 %v6424, %v6537
      %v6567 = vadd.f32 %v6425, %v6542
      %v6568 = vadd.f32 %v6426, %v6545
      %v6569 = vadd.f32 %v6427, %v6550
      %v6570 = vadd.f32 %v6428, %v6553
      %v6571 = vadd.f32 %v6429, %v6558
      %v6572 = vld [vmem:[#allocation4 + $0x6e] sm:$0xff]
      %v6573 = vld [vmem:[#allocation4 + $0x76] sm:$0xff]
      %v6574 = vld [vmem:[#allocation4 + $0x7e] sm:$0xff]
      %v6575 = vld [vmem:[#allocation4 + $0x86] sm:$0xff]
      %v6576 = vld [vmem:[#allocation4 + $0x8e] sm:$0xff]
      %v6577 = vld [vmem:[#allocation4 + $0x96] sm:$0xff]
      %v6578 = vld [vmem:[#allocation4 + $0x9e] sm:$0xff]
      %v6579 = vld [vmem:[#allocation4 + $0xa6] sm:$0xff]
      %v6580 = vld [vmem:[#allocation4 + $0xae] sm:$0xff]
      %v6581 = vpack.c.bf16 %v6573, %v6572
      %v6582 = vpack.c.bf16 %v6575, %v6574
      %v6583 = vpack.c.bf16 %v6577, %v6576
      %v6584 = vpack.c.bf16 %v6579, %v6578
      %v6585 = vpack.c.bf16 %v6580, %v6580
      %v6586 = vld [vmem:[%s5291] sm:$0xf]
      %v6587 = vld [vmem:[%s5291 + $0x4] sm:$0xf]
      %v6588 = vld [vmem:[%s5291 + $0x8] sm:$0xf]
      %v6589 = vld [vmem:[%s5291 + $0xc] sm:$0xf]
      %v6590 = vld [vmem:[%s5291 + $0x10] sm:$0xf]
      %v6591 = vld [vmem:[%s5291 + $0x14] sm:$0xf]
      %v6592 = vld [vmem:[%s5291 + $0x18] sm:$0xf]
      %v6593 = vld [vmem:[%s5291 + $0x1c] sm:$0xf]
      %v6602 = vunpack.c.l.b16 %v6586
      %v6603 = vunpack.c.l.b16 %v6587
      %v6604 = vunpack.c.l.b16 %v6588
      %v6605 = vunpack.c.l.b16 %v6589
      %v6606 = vunpack.c.l.b16 %v6590
      %v6607 = vunpack.c.l.b16 %v6591
      %v6608 = vunpack.c.l.b16 %v6592
      %v6609 = vunpack.c.l.b16 %v6593
      %v6610 = vpack.c.b16 %v6603, %v6602
      %v6611 = vpack.c.b16 %v6605, %v6604
      %v6612 = vpack.c.b16 %v6607, %v6606
      %v6613 = vpack.c.b16 %v6609, %v6608
      %v6619 = vsel %vm826, %v6581, 0
      %v6622 = vsel %vm826, %v6582, 0
      %v6625 = vsel %vm826, %v6583, 0
      %v6628 = vsel %vm826, %v6584, 0
      %v6631 = vsel %vm826, %v6585, 0
      %6633 = vmatprep.subr.bf16.mxu0 0
      %6634 = vmatpush1.bf16.msra.mxu0 %v6610
      %6635 = vmatprep.subr.bf16.mxu0 0
      %6636 = vmatpush1.bf16.msra.mxu0 %v6611
      %6637 = vmatprep.subr.bf16.mxu0 0
      %6638 = vmatpush1.bf16.msra.mxu0 %v6612
      %6639 = vmatprep.subr.bf16.mxu0 0
      %6640 = vmatpush1.bf16.msra.mxu0 %v6613
      %6641 = vmatprep.subr.bf16.mxu0 0
      %6642 = vmatpush1.bf16.msra.mxu0 0
      %6643 = vmatprep.subr.bf16.mxu0 0
      %6644 = vmatpush1.bf16.msra.mxu0 0
      %6645 = vmatprep.subr.bf16.mxu0 0
      %6646 = vmatpush1.bf16.msra.mxu0 0
      %6647 = vmatprep.subr.bf16.mxu0 0
      %6648 = vmatpush1.bf16.msra.mxu0 0
      %6649 = vmatprep.subr.bf16.mxu0 0
      %6650 = vmatpush1.bf16.msra.mxu0 0
      %6651 = vmatprep.subr.bf16.mxu0 0
      %6652 = vmatpush1.bf16.msra.mxu0 0
      %6653 = vmatprep.subr.bf16.mxu0 0
      %6654 = vmatpush1.bf16.msra.mxu0 0
      %6655 = vmatprep.subr.bf16.mxu0 0
      %6656 = vmatpush1.bf16.msra.mxu0 0
      %6657 = vmatprep.subr.bf16.mxu0 0
      %6658 = vmatpush1.bf16.msra.mxu0 0
      %6659 = vmatprep.subr.bf16.mxu0 0
      %6660 = vmatpush1.bf16.msra.mxu0 0
      %6661 = vmatprep.subr.bf16.mxu0 0
      %6662 = vmatpush1.bf16.msra.mxu0 0
      %6663 = vmatprep.subr.bf16.mxu0 0
      %6664 = vmatpush1.bf16.msra.mxu0 0
      %6665 = vmatprep.mubr.bf16.mxu0 0
      %6666 = vmatmul.mubr.bf16.gmra.mrb[0].mxu0 %v6619
      %v6667 = vpop.f32.mrb[0].mxu0
      %v6668 = vadd.f32 0.0, %v6667
      %v6669 = vpop.f32.mrb[0].mxu0
      %v6670 = vpop.f32.mrb[0].mxu0
      %v6671 = vadd.f32 0.0, %v6670
      %v6672 = vpop.f32.mrb[0].mxu0
      %6673 = vmatprep.mubr.bf16.mxu0 0
      %6674 = vmatmul.mubr.bf16.gmra.mrb[0].mxu0 %v6622
      %v6675 = vpop.f32.mrb[0].mxu0
      %v6676 = vadd.f32 0.0, %v6675
      %v6677 = vpop.f32.mrb[0].mxu0
      %v6678 = vpop.f32.mrb[0].mxu0
      %v6679 = vadd.f32 0.0, %v6678
      %v6680 = vpop.f32.mrb[0].mxu0
      %6681 = vmatprep.mubr.bf16.mxu0 0
      %6682 = vmatmul.mubr.bf16.gmra.mrb[0].mxu0 %v6625
      %v6683 = vpop.f32.mrb[0].mxu0
      %v6684 = vadd.f32 0.0, %v6683
      %v6685 = vpop.f32.mrb[0].mxu0
      %v6686 = vpop.f32.mrb[0].mxu0
      %v6687 = vadd.f32 0.0, %v6686
      %v6688 = vpop.f32.mrb[0].mxu0
      %6689 = vmatprep.mubr.bf16.mxu0 0
      %6690 = vmatmul.mubr.bf16.gmra.mrb[0].mxu0 %v6628
      %v6691 = vpop.f32.mrb[0].mxu0
      %v6692 = vadd.f32 0.0, %v6691
      %v6693 = vpop.f32.mrb[0].mxu0
      %v6694 = vpop.f32.mrb[0].mxu0
      %v6695 = vadd.f32 0.0, %v6694
      %v6696 = vpop.f32.mrb[0].mxu0
      %6697 = vmatprep.mubr.bf16.mxu0 0
      %6698 = vmatmul.mubr.bf16.gmra.mrb[0].mxu0 %v6631
      %v6699 = vpop.f32.mrb[0].mxu0
      %v6700 = vadd.f32 0.0, %v6699
      %v6701 = vpop.f32.mrb[0].mxu0
      %v6702 = vpop.f32.mrb[0].mxu0
      %v6703 = vpop.f32.mrb[0].mxu0
      %6704 = vdwg.mxu0
      %v6705 = vadd.f32 %v6563, %v6668
      %v6706 = vadd.f32 %v6564, %v6671
      %v6707 = vadd.f32 %v6565, %v6676
      %v6708 = vadd.f32 %v6566, %v6679
      %v6709 = vadd.f32 %v6567, %v6684
      %v6710 = vadd.f32 %v6568, %v6687
      %v6711 = vadd.f32 %v6569, %v6692
      %v6712 = vadd.f32 %v6570, %v6695
      %v6713 = vadd.f32 %v6571, %v6700
      %v6714 = vld [vmem:[%s8] sm:$0x1]
      %v6716 = vlaneseq
      %v6717 = vshrl.u32 %v6716, 7
      %v6718 = vsub.s32 0, %v6717
      %v6719 = vrot.slane %v6714, %v6718
      %v6721 = vadd.f32 %v6705, %v6719
      %v6722 = vadd.f32 %v6706, %v6719
      %v6723 = vadd.f32 %v6707, %v6719
      %v6724 = vadd.f32 %v6708, %v6719
      %v6725 = vadd.f32 %v6709, %v6719
      %v6726 = vadd.f32 %v6710, %v6719
      %v6727 = vadd.f32 %v6711, %v6719
      %v6728 = vadd.f32 %v6712, %v6719
      %v6729 = vadd.f32 %v6713, %v6719
      %6730 = vst.msk [vmem:[%s332 + $0x40] sm:$0xff] %vm5436, %v6721
      %6731 = vst.msk [vmem:[%s332 + $0x48] sm:$0xff] %vm5436, %v6722
      %6732 = vst.msk [vmem:[%s332 + $0x4e] sm:$0xfc] %vm5439, %v6723
      %6733 = vst.msk [vmem:[%s332 + $0x56] sm:$0xff] %vm5436, %v6724
      %6734 = vst.msk [vmem:[%s332 + $0x5e] sm:$0x3] %vm5442, %v6725
      %6735 = vst.msk [vmem:[%s332 + $0x5c] sm:$0xf0] %vm5444, %v6725
      %6736 = vst.msk [vmem:[%s332 + $0x64] sm:$0xff] %vm5436, %v6726
      %6737 = vst.msk [vmem:[%s332 + $0x6c] sm:$0xf] %vm5447, %v6727
      %6738 = vst.msk [vmem:[%s332 + $0x6a] sm:$0xc0] %vm5449, %v6727
      %6739 = vst.msk [vmem:[%s332 + $0x72] sm:$0xff] %vm5436, %v6728
      %6740 = vst.msk [vmem:[%s332 + $0x7a] sm:$0x3f] %vm5452, %v6729
      %v6741 = vld [vmem:[#allocation4 + $0x90] sm:$0xff]
      %v6742 = vld [vmem:[#allocation4 + $0x98] sm:$0xff]
      %v6743 = vld [vmem:[#allocation4 + $0xa0] sm:$0xff]
      %v6744 = vld [vmem:[#allocation4 + $0xa8] sm:$0xff]
      %v6745 = vld [vmem:[#allocation4 + $0xb0] sm:$0xff]
      %v6746 = vld [vmem:[#allocation4 + $0xb8] sm:$0xff]
      %v6747 = vld [vmem:[#allocation4 + $0xc0] sm:$0xff]
      %v6748 = vld [vmem:[#allocation4 + $0xc8] sm:$0xff]
      %v6749 = vld [vmem:[#allocation4 + $0xd0] sm:$0xff]
      %v6750 = vpack.c.bf16 %v6742, %v6741
      %v6751 = vpack.c.bf16 %v6744, %v6743
      %v6752 = vpack.c.bf16 %v6746, %v6745
      %v6753 = vpack.c.bf16 %v6748, %v6747
      %v6754 = vpack.c.bf16 %v6749, %v6749
      %v6755 = vld [vmem:[%s7] sm:$0xf]
      %v6756 = vld [vmem:[%s7 + $0x4] sm:$0xf]
      %v6757 = vld [vmem:[%s7 + $0x8] sm:$0xf]
      %v6758 = vld [vmem:[%s7 + $0xc] sm:$0xf]
      %v6759 = vld [vmem:[%s7 + $0x10] sm:$0xf]
      %v6760 = vld [vmem:[%s7 + $0x14] sm:$0xf]
      %v6761 = vld [vmem:[%s7 + $0x18] sm:$0xf]
      %v6762 = vld [vmem:[%s7 + $0x1c] sm:$0xf]
      %v6763 = vld [vmem:[#allocation4 + $0x91] sm:$0xff]
      %v6764 = vld [vmem:[#allocation4 + $0x99] sm:$0xff]
      %v6765 = vld [vmem:[#allocation4 + $0xa1] sm:$0xff]
      %v6766 = vld [vmem:[#allocation4 + $0xa9] sm:$0xff]
      %v6767 = vld [vmem:[#allocation4 + $0xb1] sm:$0xff]
      %v6768 = vld [vmem:[#allocation4 + $0xb9] sm:$0xff]
      %v6769 = vld [vmem:[#allocation4 + $0xc1] sm:$0xff]
      %v6770 = vld [vmem:[#allocation4 + $0xc9] sm:$0xff]
      %v6771 = vld [vmem:[#allocation4 + $0xd1] sm:$0xff]
      %v6772 = vpack.c.bf16 %v6764, %v6763
      %v6773 = vpack.c.bf16 %v6766, %v6765
      %v6774 = vpack.c.bf16 %v6768, %v6767
      %v6775 = vpack.c.bf16 %v6770, %v6769
      %v6776 = vpack.c.bf16 %v6771, %v6771
      %v6777 = vld [vmem:[%s4188] sm:$0xf]
      %v6778 = vld [vmem:[%s4188 + $0x4] sm:$0xf]
      %v6779 = vld [vmem:[%s4188 + $0x8] sm:$0xf]
      %v6780 = vld [vmem:[%s4188 + $0xc] sm:$0xf]
      %v6781 = vld [vmem:[%s4188 + $0x10] sm:$0xf]
      %v6782 = vld [vmem:[%s4188 + $0x14] sm:$0xf]
      %v6783 = vld [vmem:[%s4188 + $0x18] sm:$0xf]
      %v6784 = vld [vmem:[%s4188 + $0x1c] sm:$0xf]
      %v6793 = vunpack.c.l.b16 %v6777
      %v6794 = vunpack.c.l.b16 %v6778
      %v6795 = vunpack.c.l.b16 %v6779
      %v6796 = vunpack.c.l.b16 %v6780
      %v6797 = vunpack.c.l.b16 %v6781
      %v6798 = vunpack.c.l.b16 %v6782
      %v6799 = vunpack.c.l.b16 %v6783
      %v6800 = vunpack.c.l.b16 %v6784
      %v6801 = vpack.c.b16 %v6794, %v6793
      %v6802 = vpack.c.b16 %v6796, %v6795
      %v6803 = vpack.c.b16 %v6798, %v6797
      %v6804 = vpack.c.b16 %v6800, %v6799
      %v6810 = vsel %vm826, %v6772, 0
      %v6813 = vsel %vm826, %v6773, 0
      %v6816 = vsel %vm826, %v6774, 0
      %v6819 = vsel %vm826, %v6775, 0
      %v6822 = vsel %vm826, %v6776, 0
      %6824 = vmatprep.subr.bf16.mxu0 0
      %6825 = vmatpush1.bf16.msra.mxu0 %v6801
      %6826 = vmatprep.subr.bf16.mxu0 0
      %6827 = vmatpush1.bf16.msra.mxu0 %v6802
      %6828 = vmatprep.subr.bf16.mxu0 0
      %6829 = vmatpush1.bf16.msra.mxu0 %v6803
      %6830 = vmatprep.subr.bf16.mxu0 0
      %6831 = vmatpush1.bf16.msra.mxu0 %v6804
      %6832 = vmatprep.subr.bf16.mxu0 0
      %6833 = vmatpush1.bf16.msra.mxu0 0
      %6834 = vmatprep.subr.bf16.mxu0 0
      %6835 = vmatpush1.bf16.msra.mxu0 0
      %6836 = vmatprep.subr.bf16.mxu0 0
      %6837 = vmatpush1.bf16.msra.mxu0 0
      %6838 = vmatprep.subr.bf16.mxu0 0
      %6839 = vmatpush1.bf16.msra.mxu0 0
      %6840 = vmatprep.subr.bf16.mxu0 0
      %6841 = vmatpush1.bf16.msra.mxu0 0
      %6842 = vmatprep.subr.bf16.mxu0 0
      %6843 = vmatpush1.bf16.msra.mxu0 0
      %6844 = vmatprep.subr.bf16.mxu0 0
      %6845 = vmatpush1.bf16.msra.mxu0 0
      %6846 = vmatprep.subr.bf16.mxu0 0
      %6847 = vmatpush1.bf16.msra.mxu0 0
      %6848 = vmatprep.subr.bf16.mxu0 0
      %6849 = vmatpush1.bf16.msra.mxu0 0
      %6850 = vmatprep.subr.bf16.mxu0 0
      %6851 = vmatpush1.bf16.msra.mxu0 0
      %6852 = vmatprep.subr.bf16.mxu0 0
      %6853 = vmatpush1.bf16.msra.mxu0 0
      %6854 = vmatprep.subr.bf16.mxu0 0
      %6855 = vmatpush1.bf16.msra.mxu0 0
      %6856 = vmatprep.mubr.bf16.mxu0 0
      %6857 = vmatmul.mubr.bf16.gmra.mrb[0].mxu0 %v6810
      %v6858 = vpop.f32.mrb[0].mxu0
      %v6859 = vadd.f32 0.0, %v6858
      %v6860 = vpop.f32.mrb[0].mxu0
      %v6861 = vpop.f32.mrb[0].mxu0
      %v6862 = vadd.f32 0.0, %v6861
      %v6863 = vpop.f32.mrb[0].mxu0
      %6864 = vmatprep.mubr.bf16.mxu0 0
      %6865 = vmatmul.mubr.bf16.gmra.mrb[0].mxu0 %v6813
      %v6866 = vpop.f32.mrb[0].mxu0
      %v6867 = vadd.f32 0.0, %v6866
      %v6868 = vpop.f32.mrb[0].mxu0
      %v6869 = vpop.f32.mrb[0].mxu0
      %v6870 = vadd.f32 0.0, %v6869
      %v6871 = vpop.f32.mrb[0].mxu0
      %6872 = vmatprep.mubr.bf16.mxu0 0
      %6873 = vmatmul.mubr.bf16.gmra.mrb[0].mxu0 %v6816
      %v6874 = vpop.f32.mrb[0].mxu0
      %v6875 = vadd.f32 0.0, %v6874
      %v6876 = vpop.f32.mrb[0].mxu0
      %v6877 = vpop.f32.mrb[0].mxu0
      %v6878 = vadd.f32 0.0, %v6877
      %v6879 = vpop.f32.mrb[0].mxu0
      %6880 = vmatprep.mubr.bf16.mxu0 0
      %6881 = vmatmul.mubr.bf16.gmra.mrb[0].mxu0 %v6819
      %v6882 = vpop.f32.mrb[0].mxu0
      %v6883 = vadd.f32 0.0, %v6882
      %v6884 = vpop.f32.mrb[0].mxu0
      %v6885 = vpop.f32.mrb[0].mxu0
      %v6886 = vadd.f32 0.0, %v6885
      %v6887 = vpop.f32.mrb[0].mxu0
      %6888 = vmatprep.mubr.bf16.mxu0 0
      %6889 = vmatmul.mubr.bf16.gmra.mrb[0].mxu0 %v6822
      %v6890 = vpop.f32.mrb[0].mxu0
      %v6891 = vadd.f32 0.0, %v6890
      %v6892 = vpop.f32.mrb[0].mxu0
      %v6893 = vpop.f32.mrb[0].mxu0
      %v6894 = vpop.f32.mrb[0].mxu0
      %6895 = vdwg.mxu0
      %v6904 = vunpack.c.l.b16 %v6755
      %v6905 = vunpack.c.l.b16 %v6756
      %v6906 = vunpack.c.l.b16 %v6757
      %v6907 = vunpack.c.l.b16 %v6758
      %v6908 = vunpack.c.l.b16 %v6759
      %v6909 = vunpack.c.l.b16 %v6760
      %v6910 = vunpack.c.l.b16 %v6761
      %v6911 = vunpack.c.l.b16 %v6762
      %v6912 = vpack.c.b16 %v6905, %v6904
      %v6913 = vpack.c.b16 %v6907, %v6906
      %v6914 = vpack.c.b16 %v6909, %v6908
      %v6915 = vpack.c.b16 %v6911, %v6910
      %v6921 = vsel %vm826, %v6750, 0
      %v6924 = vsel %vm826, %v6751, 0
      %v6927 = vsel %vm826, %v6752, 0
      %v6930 = vsel %vm826, %v6753, 0
      %v6933 = vsel %vm826, %v6754, 0
      %6935 = vmatprep.subr.bf16.mxu0 0
      %6936 = vmatpush1.bf16.msra.mxu0 %v6912
      %6937 = vmatprep.subr.bf16.mxu0 0
      %6938 = vmatpush1.bf16.msra.mxu0 %v6913
      %6939 = vmatprep.subr.bf16.mxu0 0
      %6940 = vmatpush1.bf16.msra.mxu0 %v6914
      %6941 = vmatprep.subr.bf16.mxu0 0
      %6942 = vmatpush1.bf16.msra.mxu0 %v6915
      %6943 = vmatprep.subr.bf16.mxu0 0
      %6944 = vmatpush1.bf16.msra.mxu0 0
      %6945 = vmatprep.subr.bf16.mxu0 0
      %6946 = vmatpush1.bf16.msra.mxu0 0
      %6947 = vmatprep.subr.bf16.mxu0 0
      %6948 = vmatpush1.bf16.msra.mxu0 0
      %6949 = vmatprep.subr.bf16.mxu0 0
      %6950 = vmatpush1.bf16.msra.mxu0 0
      %6951 = vmatprep.subr.bf16.mxu0 0
      %6952 = vmatpush1.bf16.msra.mxu0 0
      %6953 = vmatprep.subr.bf16.mxu0 0
      %6954 = vmatpush1.bf16.msra.mxu0 0
      %6955 = vmatprep.subr.bf16.mxu0 0
      %6956 = vmatpush1.bf16.msra.mxu0 0
      %6957 = vmatprep.subr.bf16.mxu0 0
      %6958 = vmatpush1.bf16.msra.mxu0 0
      %6959 = vmatprep.subr.bf16.mxu0 0
      %6960 = vmatpush1.bf16.msra.mxu0 0
      %6961 = vmatprep.subr.bf16.mxu0 0
      %6962 = vmatpush1.bf16.msra.mxu0 0
      %6963 = vmatprep.subr.bf16.mxu0 0
      %6964 = vmatpush1.bf16.msra.mxu0 0
      %6965 = vmatprep.subr.bf16.mxu0 0
      %6966 = vmatpush1.bf16.msra.mxu0 0
      %6967 = vmatprep.mubr.bf16.mxu0 0
      %6968 = vmatmul.mubr.bf16.gmra.mrb[0].mxu0 %v6921
      %v6969 = vpop.f32.mrb[0].mxu0
      %v6970 = vadd.f32 %v6859, %v6969
      %v6971 = vpop.f32.mrb[0].mxu0
      %v6972 = vpop.f32.mrb[0].mxu0
      %v6973 = vadd.f32 %v6862, %v6972
      %v6974 = vpop.f32.mrb[0].mxu0
      %6975 = vmatprep.mubr.bf16.mxu0 0
      %6976 = vmatmul.mubr.bf16.gmra.mrb[0].mxu0 %v6924
      %v6977 = vpop.f32.mrb[0].mxu0
      %v6978 = vadd.f32 %v6867, %v6977
      %v6979 = vpop.f32.mrb[0].mxu0
      %v6980 = vpop.f32.mrb[0].mxu0
      %v6981 = vadd.f32 %v6870, %v6980
      %v6982 = vpop.f32.mrb[0].mxu0
      %6983 = vmatprep.mubr.bf16.mxu0 0
      %6984 = vmatmul.mubr.bf16.gmra.mrb[0].mxu0 %v6927
      %v6985 = vpop.f32.mrb[0].mxu0
      %v6986 = vadd.f32 %v6875, %v6985
      %v6987 = vpop.f32.mrb[0].mxu0
      %v6988 = vpop.f32.mrb[0].mxu0
      %v6989 = vadd.f32 %v6878, %v6988
      %v6990 = vpop.f32.mrb[0].mxu0
      %6991 = vmatprep.mubr.bf16.mxu0 0
      %6992 = vmatmul.mubr.bf16.gmra.mrb[0].mxu0 %v6930
      %v6993 = vpop.f32.mrb[0].mxu0
      %v6994 = vadd.f32 %v6883, %v6993
      %v6995 = vpop.f32.mrb[0].mxu0
      %v6996 = vpop.f32.mrb[0].mxu0
      %v6997 = vadd.f32 %v6886, %v6996
      %v6998 = vpop.f32.mrb[0].mxu0
      %6999 = vmatprep.mubr.bf16.mxu0 0
      %7000 = vmatmul.mubr.bf16.gmra.mrb[0].mxu0 %v6933
      %v7001 = vpop.f32.mrb[0].mxu0
      %v7002 = vadd.f32 %v6891, %v7001
      %v7003 = vpop.f32.mrb[0].mxu0
      %v7004 = vpop.f32.mrb[0].mxu0
      %v7005 = vpop.f32.mrb[0].mxu0
      %7006 = vdwg.mxu0
      %v7007 = vld [vmem:[#allocation4 + $0x92] sm:$0xff]
      %v7008 = vld [vmem:[#allocation4 + $0x9a] sm:$0xff]
      %v7009 = vld [vmem:[#allocation4 + $0xa2] sm:$0xff]
      %v7010 = vld [vmem:[#allocation4 + $0xaa] sm:$0xff]
      %v7011 = vld [vmem:[#allocation4 + $0xb2] sm:$0xff]
      %v7012 = vld [vmem:[#allocation4 + $0xba] sm:$0xff]
      %v7013 = vld [vmem:[#allocation4 + $0xc2] sm:$0xff]
      %v7014 = vld [vmem:[#allocation4 + $0xca] sm:$0xff]
      %v7015 = vld [vmem:[#allocation4 + $0xd2] sm:$0xff]
      %v7016 = vpack.c.bf16 %v7008, %v7007
      %v7017 = vpack.c.bf16 %v7010, %v7009
      %v7018 = vpack.c.bf16 %v7012, %v7011
      %v7019 = vpack.c.bf16 %v7014, %v7013
      %v7020 = vpack.c.bf16 %v7015, %v7015
      %v7021 = vld [vmem:[%s4433] sm:$0xf]
      %v7022 = vld [vmem:[%s4433 + $0x4] sm:$0xf]
      %v7023 = vld [vmem:[%s4433 + $0x8] sm:$0xf]
      %v7024 = vld [vmem:[%s4433 + $0xc] sm:$0xf]
      %v7025 = vld [vmem:[%s4433 + $0x10] sm:$0xf]
      %v7026 = vld [vmem:[%s4433 + $0x14] sm:$0xf]
      %v7027 = vld [vmem:[%s4433 + $0x18] sm:$0xf]
      %v7028 = vld [vmem:[%s4433 + $0x1c] sm:$0xf]
      %v7037 = vunpack.c.l.b16 %v7021
      %v7038 = vunpack.c.l.b16 %v7022
      %v7039 = vunpack.c.l.b16 %v7023
      %v7040 = vunpack.c.l.b16 %v7024
      %v7041 = vunpack.c.l.b16 %v7025
      %v7042 = vunpack.c.l.b16 %v7026
      %v7043 = vunpack.c.l.b16 %v7027
      %v7044 = vunpack.c.l.b16 %v7028
      %v7045 = vpack.c.b16 %v7038, %v7037
      %v7046 = vpack.c.b16 %v7040, %v7039
      %v7047 = vpack.c.b16 %v7042, %v7041
      %v7048 = vpack.c.b16 %v7044, %v7043
      %v7054 = vsel %vm826, %v7016, 0
      %v7057 = vsel %vm826, %v7017, 0
      %v7060 = vsel %vm826, %v7018, 0
      %v7063 = vsel %vm826, %v7019, 0
      %v7066 = vsel %vm826, %v7020, 0
      %7068 = vmatprep.subr.bf16.mxu0 0
      %7069 = vmatpush1.bf16.msra.mxu0 %v7045
      %7070 = vmatprep.subr.bf16.mxu0 0
      %7071 = vmatpush1.bf16.msra.mxu0 %v7046
      %7072 = vmatprep.subr.bf16.mxu0 0
      %7073 = vmatpush1.bf16.msra.mxu0 %v7047
      %7074 = vmatprep.subr.bf16.mxu0 0
      %7075 = vmatpush1.bf16.msra.mxu0 %v7048
      %7076 = vmatprep.subr.bf16.mxu0 0
      %7077 = vmatpush1.bf16.msra.mxu0 0
      %7078 = vmatprep.subr.bf16.mxu0 0
      %7079 = vmatpush1.bf16.msra.mxu0 0
      %7080 = vmatprep.subr.bf16.mxu0 0
      %7081 = vmatpush1.bf16.msra.mxu0 0
      %7082 = vmatprep.subr.bf16.mxu0 0
      %7083 = vmatpush1.bf16.msra.mxu0 0
      %7084 = vmatprep.subr.bf16.mxu0 0
      %7085 = vmatpush1.bf16.msra.mxu0 0
      %7086 = vmatprep.subr.bf16.mxu0 0
      %7087 = vmatpush1.bf16.msra.mxu0 0
      %7088 = vmatprep.subr.bf16.mxu0 0
      %7089 = vmatpush1.bf16.msra.mxu0 0
      %7090 = vmatprep.subr.bf16.mxu0 0
      %7091 = vmatpush1.bf16.msra.mxu0 0
      %7092 = vmatprep.subr.bf16.mxu0 0
      %7093 = vmatpush1.bf16.msra.mxu0 0
      %7094 = vmatprep.subr.bf16.mxu0 0
      %7095 = vmatpush1.bf16.msra.mxu0 0
      %7096 = vmatprep.subr.bf16.mxu0 0
      %7097 = vmatpush1.bf16.msra.mxu0 0
      %7098 = vmatprep.subr.bf16.mxu0 0
      %7099 = vmatpush1.bf16.msra.mxu0 0
      %7100 = vmatprep.mubr.bf16.mxu0 0
      %7101 = vmatmul.mubr.bf16.gmra.mrb[0].mxu0 %v7054
      %v7102 = vpop.f32.mrb[0].mxu0
      %v7103 = vadd.f32 0.0, %v7102
      %v7104 = vpop.f32.mrb[0].mxu0
      %v7105 = vpop.f32.mrb[0].mxu0
      %v7106 = vadd.f32 0.0, %v7105
      %v7107 = vpop.f32.mrb[0].mxu0
      %7108 = vmatprep.mubr.bf16.mxu0 0
      %7109 = vmatmul.mubr.bf16.gmra.mrb[0].mxu0 %v7057
      %v7110 = vpop.f32.mrb[0].mxu0
      %v7111 = vadd.f32 0.0, %v7110
      %v7112 = vpop.f32.mrb[0].mxu0
      %v7113 = vpop.f32.mrb[0].mxu0
      %v7114 = vadd.f32 0.0, %v7113
      %v7115 = vpop.f32.mrb[0].mxu0
      %7116 = vmatprep.mubr.bf16.mxu0 0
      %7117 = vmatmul.mubr.bf16.gmra.mrb[0].mxu0 %v7060
      %v7118 = vpop.f32.mrb[0].mxu0
      %v7119 = vadd.f32 0.0, %v7118
      %v7120 = vpop.f32.mrb[0].mxu0
      %v7121 = vpop.f32.mrb[0].mxu0
      %v7122 = vadd.f32 0.0, %v7121
      %v7123 = vpop.f32.mrb[0].mxu0
      %7124 = vmatprep.mubr.bf16.mxu0 0
      %7125 = vmatmul.mubr.bf16.gmra.mrb[0].mxu0 %v7063
      %v7126 = vpop.f32.mrb[0].mxu0
      %v7127 = vadd.f32 0.0, %v7126
      %v7128 = vpop.f32.mrb[0].mxu0
      %v7129 = vpop.f32.mrb[0].mxu0
      %v7130 = vadd.f32 0.0, %v7129
      %v7131 = vpop.f32.mrb[0].mxu0
      %7132 = vmatprep.mubr.bf16.mxu0 0
      %7133 = vmatmul.mubr.bf16.gmra.mrb[0].mxu0 %v7066
      %v7134 = vpop.f32.mrb[0].mxu0
      %v7135 = vadd.f32 0.0, %v7134
      %v7136 = vpop.f32.mrb[0].mxu0
      %v7137 = vpop.f32.mrb[0].mxu0
      %v7138 = vpop.f32.mrb[0].mxu0
      %7139 = vdwg.mxu0
      %v7140 = vadd.f32 %v6970, %v7103
      %v7141 = vadd.f32 %v6973, %v7106
      %v7142 = vadd.f32 %v6978, %v7111
      %v7143 = vadd.f32 %v6981, %v7114
      %v7144 = vadd.f32 %v6986, %v7119
      %v7145 = vadd.f32 %v6989, %v7122
      %v7146 = vadd.f32 %v6994, %v7127
      %v7147 = vadd.f32 %v6997, %v7130
      %v7148 = vadd.f32 %v7002, %v7135
      %v7149 = vld [vmem:[#allocation4 + $0xa2] sm:$0xff]
      %v7150 = vld [vmem:[#allocation4 + $0xaa] sm:$0xff]
      %v7151 = vld [vmem:[#allocation4 + $0xb2] sm:$0xff]
      %v7152 = vld [vmem:[#allocation4 + $0xba] sm:$0xff]
      %v7153 = vld [vmem:[#allocation4 + $0xc2] sm:$0xff]
      %v7154 = vld [vmem:[#allocation4 + $0xca] sm:$0xff]
      %v7155 = vld [vmem:[#allocation4 + $0xd2] sm:$0xff]
      %v7156 = vld [vmem:[#allocation4 + $0xda] sm:$0xff]
      %v7157 = vld [vmem:[#allocation4 + $0xe2] sm:$0xff]
      %v7158 = vpack.c.bf16 %v7150, %v7149
      %v7159 = vpack.c.bf16 %v7152, %v7151
      %v7160 = vpack.c.bf16 %v7154, %v7153
      %v7161 = vpack.c.bf16 %v7156, %v7155
      %v7162 = vpack.c.bf16 %v7157, %v7157
      %v7163 = vld [vmem:[%s4576] sm:$0xf]
      %v7164 = vld [vmem:[%s4576 + $0x4] sm:$0xf]
      %v7165 = vld [vmem:[%s4576 + $0x8] sm:$0xf]
      %v7166 = vld [vmem:[%s4576 + $0xc] sm:$0xf]
      %v7167 = vld [vmem:[%s4576 + $0x10] sm:$0xf]
      %v7168 = vld [vmem:[%s4576 + $0x14] sm:$0xf]
      %v7169 = vld [vmem:[%s4576 + $0x18] sm:$0xf]
      %v7170 = vld [vmem:[%s4576 + $0x1c] sm:$0xf]
      %v7179 = vunpack.c.l.b16 %v7163
      %v7180 = vunpack.c.l.b16 %v7164
      %v7181 = vunpack.c.l.b16 %v7165
      %v7182 = vunpack.c.l.b16 %v7166
      %v7183 = vunpack.c.l.b16 %v7167
      %v7184 = vunpack.c.l.b16 %v7168
      %v7185 = vunpack.c.l.b16 %v7169
      %v7186 = vunpack.c.l.b16 %v7170
      %v7187 = vpack.c.b16 %v7180, %v7179
      %v7188 = vpack.c.b16 %v7182, %v7181
      %v7189 = vpack.c.b16 %v7184, %v7183
      %v7190 = vpack.c.b16 %v7186, %v7185
      %v7196 = vsel %vm826, %v7158, 0
      %v7199 = vsel %vm826, %v7159, 0
      %v7202 = vsel %vm826, %v7160, 0
      %v7205 = vsel %vm826, %v7161, 0
      %v7208 = vsel %vm826, %v7162, 0
      %7210 = vmatprep.subr.bf16.mxu0 0
      %7211 = vmatpush1.bf16.msra.mxu0 %v7187
      %7212 = vmatprep.subr.bf16.mxu0 0
      %7213 = vmatpush1.bf16.msra.mxu0 %v7188
      %7214 = vmatprep.subr.bf16.mxu0 0
      %7215 = vmatpush1.bf16.msra.mxu0 %v7189
      %7216 = vmatprep.subr.bf16.mxu0 0
      %7217 = vmatpush1.bf16.msra.mxu0 %v7190
      %7218 = vmatprep.subr.bf16.mxu0 0
      %7219 = vmatpush1.bf16.msra.mxu0 0
      %7220 = vmatprep.subr.bf16.mxu0 0
      %7221 = vmatpush1.bf16.msra.mxu0 0
      %7222 = vmatprep.subr.bf16.mxu0 0
      %7223 = vmatpush1.bf16.msra.mxu0 0
      %7224 = vmatprep.subr.bf16.mxu0 0
      %7225 = vmatpush1.bf16.msra.mxu0 0
      %7226 = vmatprep.subr.bf16.mxu0 0
      %7227 = vmatpush1.bf16.msra.mxu0 0
      %7228 = vmatprep.subr.bf16.mxu0 0
      %7229 = vmatpush1.bf16.msra.mxu0 0
      %7230 = vmatprep.subr.bf16.mxu0 0
      %7231 = vmatpush1.bf16.msra.mxu0 0
      %7232 = vmatprep.subr.bf16.mxu0 0
      %7233 = vmatpush1.bf16.msra.mxu0 0
      %7234 = vmatprep.subr.bf16.mxu0 0
      %7235 = vmatpush1.bf16.msra.mxu0 0
      %7236 = vmatprep.subr.bf16.mxu0 0
      %7237 = vmatpush1.bf16.msra.mxu0 0
      %7238 = vmatprep.subr.bf16.mxu0 0
      %7239 = vmatpush1.bf16.msra.mxu0 0
      %7240 = vmatprep.subr.bf16.mxu0 0
      %7241 = vmatpush1.bf16.msra.mxu0 0
      %7242 = vmatprep.mubr.bf16.mxu0 0
      %7243 = vmatmul.mubr.bf16.gmra.mrb[0].mxu0 %v7196
      %v7244 = vpop.f32.mrb[0].mxu0
      %v7245 = vadd.f32 0.0, %v7244
      %v7246 = vpop.f32.mrb[0].mxu0
      %v7247 = vpop.f32.mrb[0].mxu0
      %v7248 = vadd.f32 0.0, %v7247
      %v7249 = vpop.f32.mrb[0].mxu0
      %7250 = vmatprep.mubr.bf16.mxu0 0
      %7251 = vmatmul.mubr.bf16.gmra.mrb[0].mxu0 %v7199
      %v7252 = vpop.f32.mrb[0].mxu0
      %v7253 = vadd.f32 0.0, %v7252
      %v7254 = vpop.f32.mrb[0].mxu0
      %v7255 = vpop.f32.mrb[0].mxu0
      %v7256 = vadd.f32 0.0, %v7255
      %v7257 = vpop.f32.mrb[0].mxu0
      %7258 = vmatprep.mubr.bf16.mxu0 0
      %7259 = vmatmul.mubr.bf16.gmra.mrb[0].mxu0 %v7202
      %v7260 = vpop.f32.mrb[0].mxu0
      %v7261 = vadd.f32 0.0, %v7260
      %v7262 = vpop.f32.mrb[0].mxu0
      %v7263 = vpop.f32.mrb[0].mxu0
      %v7264 = vadd.f32 0.0, %v7263
      %v7265 = vpop.f32.mrb[0].mxu0
      %7266 = vmatprep.mubr.bf16.mxu0 0
      %7267 = vmatmul.mubr.bf16.gmra.mrb[0].mxu0 %v7205
      %v7268 = vpop.f32.mrb[0].mxu0
      %v7269 = vadd.f32 0.0, %v7268
      %v7270 = vpop.f32.mrb[0].mxu0
      %v7271 = vpop.f32.mrb[0].mxu0
      %v7272 = vadd.f32 0.0, %v7271
      %v7273 = vpop.f32.mrb[0].mxu0
      %7274 = vmatprep.mubr.bf16.mxu0 0
      %7275 = vmatmul.mubr.bf16.gmra.mrb[0].mxu0 %v7208
      %v7276 = vpop.f32.mrb[0].mxu0
      %v7277 = vadd.f32 0.0, %v7276
      %v7278 = vpop.f32.mrb[0].mxu0
      %v7279 = vpop.f32.mrb[0].mxu0
      %v7280 = vpop.f32.mrb[0].mxu0
      %7281 = vdwg.mxu0
      %v7282 = vadd.f32 %v7140, %v7245
      %v7283 = vadd.f32 %v7141, %v7248
      %v7284 = vadd.f32 %v7142, %v7253
      %v7285 = vadd.f32 %v7143, %v7256
      %v7286 = vadd.f32 %v7144, %v7261
      %v7287 = vadd.f32 %v7145, %v7264
      %v7288 = vadd.f32 %v7146, %v7269
      %v7289 = vadd.f32 %v7147, %v7272
      %v7290 = vadd.f32 %v7148, %v7277
      %v7291 = vld [vmem:[#allocation4 + $0xa3] sm:$0xff]
      %v7292 = vld [vmem:[#allocation4 + $0xab] sm:$0xff]
      %v7293 = vld [vmem:[#allocation4 + $0xb3] sm:$0xff]
      %v7294 = vld [vmem:[#allocation4 + $0xbb] sm:$0xff]
      %v7295 = vld [vmem:[#allocation4 + $0xc3] sm:$0xff]
      %v7296 = vld [vmem:[#allocation4 + $0xcb] sm:$0xff]
      %v7297 = vld [vmem:[#allocation4 + $0xd3] sm:$0xff]
      %v7298 = vld [vmem:[#allocation4 + $0xdb] sm:$0xff]
      %v7299 = vld [vmem:[#allocation4 + $0xe3] sm:$0xff]
      %v7300 = vpack.c.bf16 %v7292, %v7291
      %v7301 = vpack.c.bf16 %v7294, %v7293
      %v7302 = vpack.c.bf16 %v7296, %v7295
      %v7303 = vpack.c.bf16 %v7298, %v7297
      %v7304 = vpack.c.bf16 %v7299, %v7299
      %v7305 = vld [vmem:[%s4719] sm:$0xf]
      %v7306 = vld [vmem:[%s4719 + $0x4] sm:$0xf]
      %v7307 = vld [vmem:[%s4719 + $0x8] sm:$0xf]
      %v7308 = vld [vmem:[%s4719 + $0xc] sm:$0xf]
      %v7309 = vld [vmem:[%s4719 + $0x10] sm:$0xf]
      %v7310 = vld [vmem:[%s4719 + $0x14] sm:$0xf]
      %v7311 = vld [vmem:[%s4719 + $0x18] sm:$0xf]
      %v7312 = vld [vmem:[%s4719 + $0x1c] sm:$0xf]
      %v7321 = vunpack.c.l.b16 %v7305
      %v7322 = vunpack.c.l.b16 %v7306
      %v7323 = vunpack.c.l.b16 %v7307
      %v7324 = vunpack.c.l.b16 %v7308
      %v7325 = vunpack.c.l.b16 %v7309
      %v7326 = vunpack.c.l.b16 %v7310
      %v7327 = vunpack.c.l.b16 %v7311
      %v7328 = vunpack.c.l.b16 %v7312
      %v7329 = vpack.c.b16 %v7322, %v7321
      %v7330 = vpack.c.b16 %v7324, %v7323
      %v7331 = vpack.c.b16 %v7326, %v7325
      %v7332 = vpack.c.b16 %v7328, %v7327
      %v7338 = vsel %vm826, %v7300, 0
      %v7341 = vsel %vm826, %v7301, 0
      %v7344 = vsel %vm826, %v7302, 0
      %v7347 = vsel %vm826, %v7303, 0
      %v7350 = vsel %vm826, %v7304, 0
      %7352 = vmatprep.subr.bf16.mxu0 0
      %7353 = vmatpush1.bf16.msra.mxu0 %v7329
      %7354 = vmatprep.subr.bf16.mxu0 0
      %7355 = vmatpush1.bf16.msra.mxu0 %v7330
      %7356 = vmatprep.subr.bf16.mxu0 0
      %7357 = vmatpush1.bf16.msra.mxu0 %v7331
      %7358 = vmatprep.subr.bf16.mxu0 0
      %7359 = vmatpush1.bf16.msra.mxu0 %v7332
      %7360 = vmatprep.subr.bf16.mxu0 0
      %7361 = vmatpush1.bf16.msra.mxu0 0
      %7362 = vmatprep.subr.bf16.mxu0 0
      %7363 = vmatpush1.bf16.msra.mxu0 0
      %7364 = vmatprep.subr.bf16.mxu0 0
      %7365 = vmatpush1.bf16.msra.mxu0 0
      %7366 = vmatprep.subr.bf16.mxu0 0
      %7367 = vmatpush1.bf16.msra.mxu0 0
      %7368 = vmatprep.subr.bf16.mxu0 0
      %7369 = vmatpush1.bf16.msra.mxu0 0
      %7370 = vmatprep.subr.bf16.mxu0 0
      %7371 = vmatpush1.bf16.msra.mxu0 0
      %7372 = vmatprep.subr.bf16.mxu0 0
      %7373 = vmatpush1.bf16.msra.mxu0 0
      %7374 = vmatprep.subr.bf16.mxu0 0
      %7375 = vmatpush1.bf16.msra.mxu0 0
      %7376 = vmatprep.subr.bf16.mxu0 0
      %7377 = vmatpush1.bf16.msra.mxu0 0
      %7378 = vmatprep.subr.bf16.mxu0 0
      %7379 = vmatpush1.bf16.msra.mxu0 0
      %7380 = vmatprep.subr.bf16.mxu0 0
      %7381 = vmatpush1.bf16.msra.mxu0 0
      %7382 = vmatprep.subr.bf16.mxu0 0
      %7383 = vmatpush1.bf16.msra.mxu0 0
      %7384 = vmatprep.mubr.bf16.mxu0 0
      %7385 = vmatmul.mubr.bf16.gmra.mrb[0].mxu0 %v7338
      %v7386 = vpop.f32.mrb[0].mxu0
      %v7387 = vadd.f32 0.0, %v7386
      %v7388 = vpop.f32.mrb[0].mxu0
      %v7389 = vpop.f32.mrb[0].mxu0
      %v7390 = vadd.f32 0.0, %v7389
      %v7391 = vpop.f32.mrb[0].mxu0
      %7392 = vmatprep.mubr.bf16.mxu0 0
      %7393 = vmatmul.mubr.bf16.gmra.mrb[0].mxu0 %v7341
      %v7394 = vpop.f32.mrb[0].mxu0
      %v7395 = vadd.f32 0.0, %v7394
      %v7396 = vpop.f32.mrb[0].mxu0
      %v7397 = vpop.f32.mrb[0].mxu0
      %v7398 = vadd.f32 0.0, %v7397
      %v7399 = vpop.f32.mrb[0].mxu0
      %7400 = vmatprep.mubr.bf16.mxu0 0
      %7401 = vmatmul.mubr.bf16.gmra.mrb[0].mxu0 %v7344
      %v7402 = vpop.f32.mrb[0].mxu0
      %v7403 = vadd.f32 0.0, %v7402
      %v7404 = vpop.f32.mrb[0].mxu0
      %v7405 = vpop.f32.mrb[0].mxu0
      %v7406 = vadd.f32 0.0, %v7405
      %v7407 = vpop.f32.mrb[0].mxu0
      %7408 = vmatprep.mubr.bf16.mxu0 0
      %7409 = vmatmul.mubr.bf16.gmra.mrb[0].mxu0 %v7347
      %v7410 = vpop.f32.mrb[0].mxu0
      %v7411 = vadd.f32 0.0, %v7410
      %v7412 = vpop.f32.mrb[0].mxu0
      %v7413 = vpop.f32.mrb[0].mxu0
      %v7414 = vadd.f32 0.0, %v7413
      %v7415 = vpop.f32.mrb[0].mxu0
      %7416 = vmatprep.mubr.bf16.mxu0 0
      %7417 = vmatmul.mubr.bf16.gmra.mrb[0].mxu0 %v7350
      %v7418 = vpop.f32.mrb[0].mxu0
      %v7419 = vadd.f32 0.0, %v7418
      %v7420 = vpop.f32.mrb[0].mxu0
      %v7421 = vpop.f32.mrb[0].mxu0
      %v7422 = vpop.f32.mrb[0].mxu0
      %7423 = vdwg.mxu0
      %v7424 = vadd.f32 %v7282, %v7387
      %v7425 = vadd.f32 %v7283, %v7390
      %v7426 = vadd.f32 %v7284, %v7395
      %v7427 = vadd.f32 %v7285, %v7398
      %v7428 = vadd.f32 %v7286, %v7403
      %v7429 = vadd.f32 %v7287, %v7406
      %v7430 = vadd.f32 %v7288, %v7411
      %v7431 = vadd.f32 %v7289, %v7414
      %v7432 = vadd.f32 %v7290, %v7419
      %v7433 = vld [vmem:[#allocation4 + $0xa4] sm:$0xff]
      %v7434 = vld [vmem:[#allocation4 + $0xac] sm:$0xff]
      %v7435 = vld [vmem:[#allocation4 + $0xb4] sm:$0xff]
      %v7436 = vld [vmem:[#allocation4 + $0xbc] sm:$0xff]
      %v7437 = vld [vmem:[#allocation4 + $0xc4] sm:$0xff]
      %v7438 = vld [vmem:[#allocation4 + $0xcc] sm:$0xff]
      %v7439 = vld [vmem:[#allocation4 + $0xd4] sm:$0xff]
      %v7440 = vld [vmem:[#allocation4 + $0xdc] sm:$0xff]
      %v7441 = vld [vmem:[#allocation4 + $0xe4] sm:$0xff]
      %v7442 = vpack.c.bf16 %v7434, %v7433
      %v7443 = vpack.c.bf16 %v7436, %v7435
      %v7444 = vpack.c.bf16 %v7438, %v7437
      %v7445 = vpack.c.bf16 %v7440, %v7439
      %v7446 = vpack.c.bf16 %v7441, %v7441
      %v7447 = vld [vmem:[%s4862] sm:$0xf]
      %v7448 = vld [vmem:[%s4862 + $0x4] sm:$0xf]
      %v7449 = vld [vmem:[%s4862 + $0x8] sm:$0xf]
      %v7450 = vld [vmem:[%s4862 + $0xc] sm:$0xf]
      %v7451 = vld [vmem:[%s4862 + $0x10] sm:$0xf]
      %v7452 = vld [vmem:[%s4862 + $0x14] sm:$0xf]
      %v7453 = vld [vmem:[%s4862 + $0x18] sm:$0xf]
      %v7454 = vld [vmem:[%s4862 + $0x1c] sm:$0xf]
      %v7463 = vunpack.c.l.b16 %v7447
      %v7464 = vunpack.c.l.b16 %v7448
      %v7465 = vunpack.c.l.b16 %v7449
      %v7466 = vunpack.c.l.b16 %v7450
      %v7467 = vunpack.c.l.b16 %v7451
      %v7468 = vunpack.c.l.b16 %v7452
      %v7469 = vunpack.c.l.b16 %v7453
      %v7470 = vunpack.c.l.b16 %v7454
      %v7471 = vpack.c.b16 %v7464, %v7463
      %v7472 = vpack.c.b16 %v7466, %v7465
      %v7473 = vpack.c.b16 %v7468, %v7467
      %v7474 = vpack.c.b16 %v7470, %v7469
      %v7480 = vsel %vm826, %v7442, 0
      %v7483 = vsel %vm826, %v7443, 0
      %v7486 = vsel %vm826, %v7444, 0
      %v7489 = vsel %vm826, %v7445, 0
      %v7492 = vsel %vm826, %v7446, 0
      %7494 = vmatprep.subr.bf16.mxu0 0
      %7495 = vmatpush1.bf16.msra.mxu0 %v7471
      %7496 = vmatprep.subr.bf16.mxu0 0
      %7497 = vmatpush1.bf16.msra.mxu0 %v7472
      %7498 = vmatprep.subr.bf16.mxu0 0
      %7499 = vmatpush1.bf16.msra.mxu0 %v7473
      %7500 = vmatprep.subr.bf16.mxu0 0
      %7501 = vmatpush1.bf16.msra.mxu0 %v7474
      %7502 = vmatprep.subr.bf16.mxu0 0
      %7503 = vmatpush1.bf16.msra.mxu0 0
      %7504 = vmatprep.subr.bf16.mxu0 0
      %7505 = vmatpush1.bf16.msra.mxu0 0
      %7506 = vmatprep.subr.bf16.mxu0 0
      %7507 = vmatpush1.bf16.msra.mxu0 0
      %7508 = vmatprep.subr.bf16.mxu0 0
      %7509 = vmatpush1.bf16.msra.mxu0 0
      %7510 = vmatprep.subr.bf16.mxu0 0
      %7511 = vmatpush1.bf16.msra.mxu0 0
      %7512 = vmatprep.subr.bf16.mxu0 0
      %7513 = vmatpush1.bf16.msra.mxu0 0
      %7514 = vmatprep.subr.bf16.mxu0 0
      %7515 = vmatpush1.bf16.msra.mxu0 0
      %7516 = vmatprep.subr.bf16.mxu0 0
      %7517 = vmatpush1.bf16.msra.mxu0 0
      %7518 = vmatprep.subr.bf16.mxu0 0
      %7519 = vmatpush1.bf16.msra.mxu0 0
      %7520 = vmatprep.subr.bf16.mxu0 0
      %7521 = vmatpush1.bf16.msra.mxu0 0
      %7522 = vmatprep.subr.bf16.mxu0 0
      %7523 = vmatpush1.bf16.msra.mxu0 0
      %7524 = vmatprep.subr.bf16.mxu0 0
      %7525 = vmatpush1.bf16.msra.mxu0 0
      %7526 = vmatprep.mubr.bf16.mxu0 0
      %7527 = vmatmul.mubr.bf16.gmra.mrb[0].mxu0 %v7480
      %v7528 = vpop.f32.mrb[0].mxu0
      %v7529 = vadd.f32 0.0, %v7528
      %v7530 = vpop.f32.mrb[0].mxu0
      %v7531 = vpop.f32.mrb[0].mxu0
      %v7532 = vadd.f32 0.0, %v7531
      %v7533 = vpop.f32.mrb[0].mxu0
      %7534 = vmatprep.mubr.bf16.mxu0 0
      %7535 = vmatmul.mubr.bf16.gmra.mrb[0].mxu0 %v7483
      %v7536 = vpop.f32.mrb[0].mxu0
      %v7537 = vadd.f32 0.0, %v7536
      %v7538 = vpop.f32.mrb[0].mxu0
      %v7539 = vpop.f32.mrb[0].mxu0
      %v7540 = vadd.f32 0.0, %v7539
      %v7541 = vpop.f32.mrb[0].mxu0
      %7542 = vmatprep.mubr.bf16.mxu0 0
      %7543 = vmatmul.mubr.bf16.gmra.mrb[0].mxu0 %v7486
      %v7544 = vpop.f32.mrb[0].mxu0
      %v7545 = vadd.f32 0.0, %v7544
      %v7546 = vpop.f32.mrb[0].mxu0
      %v7547 = vpop.f32.mrb[0].mxu0
      %v7548 = vadd.f32 0.0, %v7547
      %v7549 = vpop.f32.mrb[0].mxu0
      %7550 = vmatprep.mubr.bf16.mxu0 0
      %7551 = vmatmul.mubr.bf16.gmra.mrb[0].mxu0 %v7489
      %v7552 = vpop.f32.mrb[0].mxu0
      %v7553 = vadd.f32 0.0, %v7552
      %v7554 = vpop.f32.mrb[0].mxu0
      %v7555 = vpop.f32.mrb[0].mxu0
      %v7556 = vadd.f32 0.0, %v7555
      %v7557 = vpop.f32.mrb[0].mxu0
      %7558 = vmatprep.mubr.bf16.mxu0 0
      %7559 = vmatmul.mubr.bf16.gmra.mrb[0].mxu0 %v7492
      %v7560 = vpop.f32.mrb[0].mxu0
      %v7561 = vadd.f32 0.0, %v7560
      %v7562 = vpop.f32.mrb[0].mxu0
      %v7563 = vpop.f32.mrb[0].mxu0
      %v7564 = vpop.f32.mrb[0].mxu0
      %7565 = vdwg.mxu0
      %v7566 = vadd.f32 %v7424, %v7529
      %v7567 = vadd.f32 %v7425, %v7532
      %v7568 = vadd.f32 %v7426, %v7537
      %v7569 = vadd.f32 %v7427, %v7540
      %v7570 = vadd.f32 %v7428, %v7545
      %v7571 = vadd.f32 %v7429, %v7548
      %v7572 = vadd.f32 %v7430, %v7553
      %v7573 = vadd.f32 %v7431, %v7556
      %v7574 = vadd.f32 %v7432, %v7561
      %v7575 = vld [vmem:[#allocation4 + $0xb4] sm:$0xff]
      %v7576 = vld [vmem:[#allocation4 + $0xbc] sm:$0xff]
      %v7577 = vld [vmem:[#allocation4 + $0xc4] sm:$0xff]
      %v7578 = vld [vmem:[#allocation4 + $0xcc] sm:$0xff]
      %v7579 = vld [vmem:[#allocation4 + $0xd4] sm:$0xff]
      %v7580 = vld [vmem:[#allocation4 + $0xdc] sm:$0xff]
      %v7581 = vld [vmem:[#allocation4 + $0xe4] sm:$0xff]
      %v7582 = vld [vmem:[#allocation4 + $0xec] sm:$0xff]
      %v7583 = vld [vmem:[#allocation4 + $0xf4] sm:$0xff]
      %v7584 = vpack.c.bf16 %v7576, %v7575
      %v7585 = vpack.c.bf16 %v7578, %v7577
      %v7586 = vpack.c.bf16 %v7580, %v7579
      %v7587 = vpack.c.bf16 %v7582, %v7581
      %v7588 = vpack.c.bf16 %v7583, %v7583
      %v7589 = vld [vmem:[%s5005] sm:$0xf]
      %v7590 = vld [vmem:[%s5005 + $0x4] sm:$0xf]
      %v7591 = vld [vmem:[%s5005 + $0x8] sm:$0xf]
      %v7592 = vld [vmem:[%s5005 + $0xc] sm:$0xf]
      %v7593 = vld [vmem:[%s5005 + $0x10] sm:$0xf]
      %v7594 = vld [vmem:[%s5005 + $0x14] sm:$0xf]
      %v7595 = vld [vmem:[%s5005 + $0x18] sm:$0xf]
      %v7596 = vld [vmem:[%s5005 + $0x1c] sm:$0xf]
      %v7605 = vunpack.c.l.b16 %v7589
      %v7606 = vunpack.c.l.b16 %v7590
      %v7607 = vunpack.c.l.b16 %v7591
      %v7608 = vunpack.c.l.b16 %v7592
      %v7609 = vunpack.c.l.b16 %v7593
      %v7610 = vunpack.c.l.b16 %v7594
      %v7611 = vunpack.c.l.b16 %v7595
      %v7612 = vunpack.c.l.b16 %v7596
      %v7613 = vpack.c.b16 %v7606, %v7605
      %v7614 = vpack.c.b16 %v7608, %v7607
      %v7615 = vpack.c.b16 %v7610, %v7609
      %v7616 = vpack.c.b16 %v7612, %v7611
      %v7622 = vsel %vm826, %v7584, 0
      %v7625 = vsel %vm826, %v7585, 0
      %v7628 = vsel %vm826, %v7586, 0
      %v7631 = vsel %vm826, %v7587, 0
      %v7634 = vsel %vm826, %v7588, 0
      %7636 = vmatprep.subr.bf16.mxu0 0
      %7637 = vmatpush1.bf16.msra.mxu0 %v7613
      %7638 = vmatprep.subr.bf16.mxu0 0
      %7639 = vmatpush1.bf16.msra.mxu0 %v7614
      %7640 = vmatprep.subr.bf16.mxu0 0
      %7641 = vmatpush1.bf16.msra.mxu0 %v7615
      %7642 = vmatprep.subr.bf16.mxu0 0
      %7643 = vmatpush1.bf16.msra.mxu0 %v7616
      %7644 = vmatprep.subr.bf16.mxu0 0
      %7645 = vmatpush1.bf16.msra.mxu0 0
      %7646 = vmatprep.subr.bf16.mxu0 0
      %7647 = vmatpush1.bf16.msra.mxu0 0
      %7648 = vmatprep.subr.bf16.mxu0 0
      %7649 = vmatpush1.bf16.msra.mxu0 0
      %7650 = vmatprep.subr.bf16.mxu0 0
      %7651 = vmatpush1.bf16.msra.mxu0 0
      %7652 = vmatprep.subr.bf16.mxu0 0
      %7653 = vmatpush1.bf16.msra.mxu0 0
      %7654 = vmatprep.subr.bf16.mxu0 0
      %7655 = vmatpush1.bf16.msra.mxu0 0
      %7656 = vmatprep.subr.bf16.mxu0 0
      %7657 = vmatpush1.bf16.msra.mxu0 0
      %7658 = vmatprep.subr.bf16.mxu0 0
      %7659 = vmatpush1.bf16.msra.mxu0 0
      %7660 = vmatprep.subr.bf16.mxu0 0
      %7661 = vmatpush1.bf16.msra.mxu0 0
      %7662 = vmatprep.subr.bf16.mxu0 0
      %7663 = vmatpush1.bf16.msra.mxu0 0
      %7664 = vmatprep.subr.bf16.mxu0 0
      %7665 = vmatpush1.bf16.msra.mxu0 0
      %7666 = vmatprep.subr.bf16.mxu0 0
      %7667 = vmatpush1.bf16.msra.mxu0 0
      %7668 = vmatprep.mubr.bf16.mxu0 0
      %7669 = vmatmul.mubr.bf16.gmra.mrb[0].mxu0 %v7622
      %v7670 = vpop.f32.mrb[0].mxu0
      %v7671 = vadd.f32 0.0, %v7670
      %v7672 = vpop.f32.mrb[0].mxu0
      %v7673 = vpop.f32.mrb[0].mxu0
      %v7674 = vadd.f32 0.0, %v7673
      %v7675 = vpop.f32.mrb[0].mxu0
      %7676 = vmatprep.mubr.bf16.mxu0 0
      %7677 = vmatmul.mubr.bf16.gmra.mrb[0].mxu0 %v7625
      %v7678 = vpop.f32.mrb[0].mxu0
      %v7679 = vadd.f32 0.0, %v7678
      %v7680 = vpop.f32.mrb[0].mxu0
      %v7681 = vpop.f32.mrb[0].mxu0
      %v7682 = vadd.f32 0.0, %v7681
      %v7683 = vpop.f32.mrb[0].mxu0
      %7684 = vmatprep.mubr.bf16.mxu0 0
      %7685 = vmatmul.mubr.bf16.gmra.mrb[0].mxu0 %v7628
      %v7686 = vpop.f32.mrb[0].mxu0
      %v7687 = vadd.f32 0.0, %v7686
      %v7688 = vpop.f32.mrb[0].mxu0
      %v7689 = vpop.f32.mrb[0].mxu0
      %v7690 = vadd.f32 0.0, %v7689
      %v7691 = vpop.f32.mrb[0].mxu0
      %7692 = vmatprep.mubr.bf16.mxu0 0
      %7693 = vmatmul.mubr.bf16.gmra.mrb[0].mxu0 %v7631
      %v7694 = vpop.f32.mrb[0].mxu0
      %v7695 = vadd.f32 0.0, %v7694
      %v7696 = vpop.f32.mrb[0].mxu0
      %v7697 = vpop.f32.mrb[0].mxu0
      %v7698 = vadd.f32 0.0, %v7697
      %v7699 = vpop.f32.mrb[0].mxu0
      %7700 = vmatprep.mubr.bf16.mxu0 0
      %7701 = vmatmul.mubr.bf16.gmra.mrb[0].mxu0 %v7634
      %v7702 = vpop.f32.mrb[0].mxu0
      %v7703 = vadd.f32 0.0, %v7702
      %v7704 = vpop.f32.mrb[0].mxu0
      %v7705 = vpop.f32.mrb[0].mxu0
      %v7706 = vpop.f32.mrb[0].mxu0
      %7707 = vdwg.mxu0
      %v7708 = vadd.f32 %v7566, %v7671
      %v7709 = vadd.f32 %v7567, %v7674
      %v7710 = vadd.f32 %v7568, %v7679
      %v7711 = vadd.f32 %v7569, %v7682
      %v7712 = vadd.f32 %v7570, %v7687
      %v7713 = vadd.f32 %v7571, %v7690
      %v7714 = vadd.f32 %v7572, %v7695
      %v7715 = vadd.f32 %v7573, %v7698
      %v7716 = vadd.f32 %v7574, %v7703
      %v7717 = vld [vmem:[#allocation4 + $0xb5] sm:$0xff]
      %v7718 = vld [vmem:[#allocation4 + $0xbd] sm:$0xff]
      %v7719 = vld [vmem:[#allocation4 + $0xc5] sm:$0xff]
      %v7720 = vld [vmem:[#allocation4 + $0xcd] sm:$0xff]
      %v7721 = vld [vmem:[#allocation4 + $0xd5] sm:$0xff]
      %v7722 = vld [vmem:[#allocation4 + $0xdd] sm:$0xff]
      %v7723 = vld [vmem:[#allocation4 + $0xe5] sm:$0xff]
      %v7724 = vld [vmem:[#allocation4 + $0xed] sm:$0xff]
      %v7725 = vld [vmem:[#allocation4 + $0xf5] sm:$0xff]
      %v7726 = vpack.c.bf16 %v7718, %v7717
      %v7727 = vpack.c.bf16 %v7720, %v7719
      %v7728 = vpack.c.bf16 %v7722, %v7721
      %v7729 = vpack.c.bf16 %v7724, %v7723
      %v7730 = vpack.c.bf16 %v7725, %v7725
      %v7731 = vld [vmem:[%s5148] sm:$0xf]
      %v7732 = vld [vmem:[%s5148 + $0x4] sm:$0xf]
      %v7733 = vld [vmem:[%s5148 + $0x8] sm:$0xf]
      %v7734 = vld [vmem:[%s5148 + $0xc] sm:$0xf]
      %v7735 = vld [vmem:[%s5148 + $0x10] sm:$0xf]
      %v7736 = vld [vmem:[%s5148 + $0x14] sm:$0xf]
      %v7737 = vld [vmem:[%s5148 + $0x18] sm:$0xf]
      %v7738 = vld [vmem:[%s5148 + $0x1c] sm:$0xf]
      %v7747 = vunpack.c.l.b16 %v7731
      %v7748 = vunpack.c.l.b16 %v7732
      %v7749 = vunpack.c.l.b16 %v7733
      %v7750 = vunpack.c.l.b16 %v7734
      %v7751 = vunpack.c.l.b16 %v7735
      %v7752 = vunpack.c.l.b16 %v7736
      %v7753 = vunpack.c.l.b16 %v7737
      %v7754 = vunpack.c.l.b16 %v7738
      %v7755 = vpack.c.b16 %v7748, %v7747
      %v7756 = vpack.c.b16 %v7750, %v7749
      %v7757 = vpack.c.b16 %v7752, %v7751
      %v7758 = vpack.c.b16 %v7754, %v7753
      %v7764 = vsel %vm826, %v7726, 0
      %v7767 = vsel %vm826, %v7727, 0
      %v7770 = vsel %vm826, %v7728, 0
      %v7773 = vsel %vm826, %v7729, 0
      %v7776 = vsel %vm826, %v7730, 0
      %7778 = vmatprep.subr.bf16.mxu0 0
      %7779 = vmatpush1.bf16.msra.mxu0 %v7755
      %7780 = vmatprep.subr.bf16.mxu0 0
      %7781 = vmatpush1.bf16.msra.mxu0 %v7756
      %7782 = vmatprep.subr.bf16.mxu0 0
      %7783 = vmatpush1.bf16.msra.mxu0 %v7757
      %7784 = vmatprep.subr.bf16.mxu0 0
      %7785 = vmatpush1.bf16.msra.mxu0 %v7758
      %7786 = vmatprep.subr.bf16.mxu0 0
      %7787 = vmatpush1.bf16.msra.mxu0 0
      %7788 = vmatprep.subr.bf16.mxu0 0
      %7789 = vmatpush1.bf16.msra.mxu0 0
      %7790 = vmatprep.subr.bf16.mxu0 0
      %7791 = vmatpush1.bf16.msra.mxu0 0
      %7792 = vmatprep.subr.bf16.mxu0 0
      %7793 = vmatpush1.bf16.msra.mxu0 0
      %7794 = vmatprep.subr.bf16.mxu0 0
      %7795 = vmatpush1.bf16.msra.mxu0 0
      %7796 = vmatprep.subr.bf16.mxu0 0
      %7797 = vmatpush1.bf16.msra.mxu0 0
      %7798 = vmatprep.subr.bf16.mxu0 0
      %7799 = vmatpush1.bf16.msra.mxu0 0
      %7800 = vmatprep.subr.bf16.mxu0 0
      %7801 = vmatpush1.bf16.msra.mxu0 0
      %7802 = vmatprep.subr.bf16.mxu0 0
      %7803 = vmatpush1.bf16.msra.mxu0 0
      %7804 = vmatprep.subr.bf16.mxu0 0
      %7805 = vmatpush1.bf16.msra.mxu0 0
      %7806 = vmatprep.subr.bf16.mxu0 0
      %7807 = vmatpush1.bf16.msra.mxu0 0
      %7808 = vmatprep.subr.bf16.mxu0 0
      %7809 = vmatpush1.bf16.msra.mxu0 0
      %7810 = vmatprep.mubr.bf16.mxu0 0
      %7811 = vmatmul.mubr.bf16.gmra.mrb[0].mxu0 %v7764
      %v7812 = vpop.f32.mrb[0].mxu0
      %v7813 = vadd.f32 0.0, %v7812
      %v7814 = vpop.f32.mrb[0].mxu0
      %v7815 = vpop.f32.mrb[0].mxu0
      %v7816 = vadd.f32 0.0, %v7815
      %v7817 = vpop.f32.mrb[0].mxu0
      %7818 = vmatprep.mubr.bf16.mxu0 0
      %7819 = vmatmul.mubr.bf16.gmra.mrb[0].mxu0 %v7767
      %v7820 = vpop.f32.mrb[0].mxu0
      %v7821 = vadd.f32 0.0, %v7820
      %v7822 = vpop.f32.mrb[0].mxu0
      %v7823 = vpop.f32.mrb[0].mxu0
      %v7824 = vadd.f32 0.0, %v7823
      %v7825 = vpop.f32.mrb[0].mxu0
      %7826 = vmatprep.mubr.bf16.mxu0 0
      %7827 = vmatmul.mubr.bf16.gmra.mrb[0].mxu0 %v7770
      %v7828 = vpop.f32.mrb[0].mxu0
      %v7829 = vadd.f32 0.0, %v7828
      %v7830 = vpop.f32.mrb[0].mxu0
      %v7831 = vpop.f32.mrb[0].mxu0
      %v7832 = vadd.f32 0.0, %v7831
      %v7833 = vpop.f32.mrb[0].mxu0
      %7834 = vmatprep.mubr.bf16.mxu0 0
      %7835 = vmatmul.mubr.bf16.gmra.mrb[0].mxu0 %v7773
      %v7836 = vpop.f32.mrb[0].mxu0
      %v7837 = vadd.f32 0.0, %v7836
      %v7838 = vpop.f32.mrb[0].mxu0
      %v7839 = vpop.f32.mrb[0].mxu0
      %v7840 = vadd.f32 0.0, %v7839
      %v7841 = vpop.f32.mrb[0].mxu0
      %7842 = vmatprep.mubr.bf16.mxu0 0
      %7843 = vmatmul.mubr.bf16.gmra.mrb[0].mxu0 %v7776
      %v7844 = vpop.f32.mrb[0].mxu0
      %v7845 = vadd.f32 0.0, %v7844
      %v7846 = vpop.f32.mrb[0].mxu0
      %v7847 = vpop.f32.mrb[0].mxu0
      %v7848 = vpop.f32.mrb[0].mxu0
      %7849 = vdwg.mxu0
      %v7850 = vadd.f32 %v7708, %v7813
      %v7851 = vadd.f32 %v7709, %v7816
      %v7852 = vadd.f32 %v7710, %v7821
      %v7853 = vadd.f32 %v7711, %v7824
      %v7854 = vadd.f32 %v7712, %v7829
      %v7855 = vadd.f32 %v7713, %v7832
      %v7856 = vadd.f32 %v7714, %v7837
      %v7857 = vadd.f32 %v7715, %v7840
      %v7858 = vadd.f32 %v7716, %v7845
      %v7859 = vld [vmem:[#allocation4 + $0xb6] sm:$0xff]
      %v7860 = vld [vmem:[#allocation4 + $0xbe] sm:$0xff]
      %v7861 = vld [vmem:[#allocation4 + $0xc6] sm:$0xff]
      %v7862 = vld [vmem:[#allocation4 + $0xce] sm:$0xff]
      %v7863 = vld [vmem:[#allocation4 + $0xd6] sm:$0xff]
      %v7864 = vld [vmem:[#allocation4 + $0xde] sm:$0xff]
      %v7865 = vld [vmem:[#allocation4 + $0xe6] sm:$0xff]
      %v7866 = vld [vmem:[#allocation4 + $0xee] sm:$0xff]
      %v7867 = vld [vmem:[#allocation4 + $0xf6] sm:$0xff]
      %v7868 = vpack.c.bf16 %v7860, %v7859
      %v7869 = vpack.c.bf16 %v7862, %v7861
      %v7870 = vpack.c.bf16 %v7864, %v7863
      %v7871 = vpack.c.bf16 %v7866, %v7865
      %v7872 = vpack.c.bf16 %v7867, %v7867
      %v7873 = vld [vmem:[%s5291] sm:$0xf]
      %v7874 = vld [vmem:[%s5291 + $0x4] sm:$0xf]
      %v7875 = vld [vmem:[%s5291 + $0x8] sm:$0xf]
      %v7876 = vld [vmem:[%s5291 + $0xc] sm:$0xf]
      %v7877 = vld [vmem:[%s5291 + $0x10] sm:$0xf]
      %v7878 = vld [vmem:[%s5291 + $0x14] sm:$0xf]
      %v7879 = vld [vmem:[%s5291 + $0x18] sm:$0xf]
      %v7880 = vld [vmem:[%s5291 + $0x1c] sm:$0xf]
      %v7889 = vunpack.c.l.b16 %v7873
      %v7890 = vunpack.c.l.b16 %v7874
      %v7891 = vunpack.c.l.b16 %v7875
      %v7892 = vunpack.c.l.b16 %v7876
      %v7893 = vunpack.c.l.b16 %v7877
      %v7894 = vunpack.c.l.b16 %v7878
      %v7895 = vunpack.c.l.b16 %v7879
      %v7896 = vunpack.c.l.b16 %v7880
      %v7897 = vpack.c.b16 %v7890, %v7889
      %v7898 = vpack.c.b16 %v7892, %v7891
      %v7899 = vpack.c.b16 %v7894, %v7893
      %v7900 = vpack.c.b16 %v7896, %v7895
      %v7906 = vsel %vm826, %v7868, 0
      %v7909 = vsel %vm826, %v7869, 0
      %v7912 = vsel %vm826, %v7870, 0
      %v7915 = vsel %vm826, %v7871, 0
      %v7918 = vsel %vm826, %v7872, 0
      %7920 = vmatprep.subr.bf16.mxu0 0
      %7921 = vmatpush1.bf16.msra.mxu0 %v7897
      %7922 = vmatprep.subr.bf16.mxu0 0
      %7923 = vmatpush1.bf16.msra.mxu0 %v7898
      %7924 = vmatprep.subr.bf16.mxu0 0
      %7925 = vmatpush1.bf16.msra.mxu0 %v7899
      %7926 = vmatprep.subr.bf16.mxu0 0
      %7927 = vmatpush1.bf16.msra.mxu0 %v7900
      %7928 = vmatprep.subr.bf16.mxu0 0
      %7929 = vmatpush1.bf16.msra.mxu0 0
      %7930 = vmatprep.subr.bf16.mxu0 0
      %7931 = vmatpush1.bf16.msra.mxu0 0
      %7932 = vmatprep.subr.bf16.mxu0 0
      %7933 = vmatpush1.bf16.msra.mxu0 0
      %7934 = vmatprep.subr.bf16.mxu0 0
      %7935 = vmatpush1.bf16.msra.mxu0 0
      %7936 = vmatprep.subr.bf16.mxu0 0
      %7937 = vmatpush1.bf16.msra.mxu0 0
      %7938 = vmatprep.subr.bf16.mxu0 0
      %7939 = vmatpush1.bf16.msra.mxu0 0
      %7940 = vmatprep.subr.bf16.mxu0 0
      %7941 = vmatpush1.bf16.msra.mxu0 0
      %7942 = vmatprep.subr.bf16.mxu0 0
      %7943 = vmatpush1.bf16.msra.mxu0 0
      %7944 = vmatprep.subr.bf16.mxu0 0
      %7945 = vmatpush1.bf16.msra.mxu0 0
      %7946 = vmatprep.subr.bf16.mxu0 0
      %7947 = vmatpush1.bf16.msra.mxu0 0
      %7948 = vmatprep.subr.bf16.mxu0 0
      %7949 = vmatpush1.bf16.msra.mxu0 0
      %7950 = vmatprep.subr.bf16.mxu0 0
      %7951 = vmatpush1.bf16.msra.mxu0 0
      %7952 = vmatprep.mubr.bf16.mxu0 0
      %7953 = vmatmul.mubr.bf16.gmra.mrb[0].mxu0 %v7906
      %v7954 = vpop.f32.mrb[0].mxu0
      %v7955 = vadd.f32 0.0, %v7954
      %v7956 = vpop.f32.mrb[0].mxu0
      %v7957 = vpop.f32.mrb[0].mxu0
      %v7958 = vadd.f32 0.0, %v7957
      %v7959 = vpop.f32.mrb[0].mxu0
      %7960 = vmatprep.mubr.bf16.mxu0 0
      %7961 = vmatmul.mubr.bf16.gmra.mrb[0].mxu0 %v7909
      %v7962 = vpop.f32.mrb[0].mxu0
      %v7963 = vadd.f32 0.0, %v7962
      %v7964 = vpop.f32.mrb[0].mxu0
      %v7965 = vpop.f32.mrb[0].mxu0
      %v7966 = vadd.f32 0.0, %v7965
      %v7967 = vpop.f32.mrb[0].mxu0
      %7968 = vmatprep.mubr.bf16.mxu0 0
      %7969 = vmatmul.mubr.bf16.gmra.mrb[0].mxu0 %v7912
      %v7970 = vpop.f32.mrb[0].mxu0
      %v7971 = vadd.f32 0.0, %v7970
      %v7972 = vpop.f32.mrb[0].mxu0
      %v7973 = vpop.f32.mrb[0].mxu0
      %v7974 = vadd.f32 0.0, %v7973
      %v7975 = vpop.f32.mrb[0].mxu0
      %7976 = vmatprep.mubr.bf16.mxu0 0
      %7977 = vmatmul.mubr.bf16.gmra.mrb[0].mxu0 %v7915
      %v7978 = vpop.f32.mrb[0].mxu0
      %v7979 = vadd.f32 0.0, %v7978
      %v7980 = vpop.f32.mrb[0].mxu0
      %v7981 = vpop.f32.mrb[0].mxu0
      %v7982 = vadd.f32 0.0, %v7981
      %v7983 = vpop.f32.mrb[0].mxu0
      %7984 = vmatprep.mubr.bf16.mxu0 0
      %7985 = vmatmul.mubr.bf16.gmra.mrb[0].mxu0 %v7918
      %v7986 = vpop.f32.mrb[0].mxu0
      %v7987 = vadd.f32 0.0, %v7986
      %v7988 = vpop.f32.mrb[0].mxu0
      %v7989 = vpop.f32.mrb[0].mxu0
      %v7990 = vpop.f32.mrb[0].mxu0
      %7991 = vdwg.mxu0
      %v7992 = vadd.f32 %v7850, %v7955
      %v7993 = vadd.f32 %v7851, %v7958
      %v7994 = vadd.f32 %v7852, %v7963
      %v7995 = vadd.f32 %v7853, %v7966
      %v7996 = vadd.f32 %v7854, %v7971
      %v7997 = vadd.f32 %v7855, %v7974
      %v7998 = vadd.f32 %v7856, %v7979
      %v7999 = vadd.f32 %v7857, %v7982
      %v8000 = vadd.f32 %v7858, %v7987
      %v8001 = vld [vmem:[%s8] sm:$0x1]
      %v8003 = vlaneseq
      %v8004 = vshrl.u32 %v8003, 7
      %v8005 = vsub.s32 0, %v8004
      %v8006 = vrot.slane %v8001, %v8005
      %v8008 = vadd.f32 %v7992, %v8006
      %v8009 = vadd.f32 %v7993, %v8006
      %v8010 = vadd.f32 %v7994, %v8006
      %v8011 = vadd.f32 %v7995, %v8006
      %v8012 = vadd.f32 %v7996, %v8006
      %v8013 = vadd.f32 %v7997, %v8006
      %v8014 = vadd.f32 %v7998, %v8006
      %v8015 = vadd.f32 %v7999, %v8006
      %v8016 = vadd.f32 %v8000, %v8006
      %8017 = vst.msk [vmem:[%s332 + $0x80] sm:$0xff] %vm5436, %v8008
      %8018 = vst.msk [vmem:[%s332 + $0x88] sm:$0xff] %vm5436, %v8009
      %8019 = vst.msk [vmem:[%s332 + $0x8e] sm:$0xfc] %vm5439, %v8010
      %8020 = vst.msk [vmem:[%s332 + $0x96] sm:$0xff] %vm5436, %v8011
      %8021 = vst.msk [vmem:[%s332 + $0x9e] sm:$0x3] %vm5442, %v8012
      %8022 = vst.msk [vmem:[%s332 + $0x9c] sm:$0xf0] %vm5444, %v8012
      %8023 = vst.msk [vmem:[%s332 + $0xa4] sm:$0xff] %vm5436, %v8013
      %8024 = vst.msk [vmem:[%s332 + $0xac] sm:$0xf] %vm5447, %v8014
      %8025 = vst.msk [vmem:[%s332 + $0xaa] sm:$0xc0] %vm5449, %v8014
      %8026 = vst.msk [vmem:[%s332 + $0xb2] sm:$0xff] %vm5436, %v8015
      %8027 = vst.msk [vmem:[%s332 + $0xba] sm:$0x3f] %vm5452, %v8016
      %v8028 = vld [vmem:[#allocation4 + $0xd8] sm:$0xff]
      %v8029 = vld [vmem:[#allocation4 + $0xe0] sm:$0xff]
      %v8030 = vld [vmem:[#allocation4 + $0xe8] sm:$0xff]
      %v8031 = vld [vmem:[#allocation4 + $0xf0] sm:$0xff]
      %v8032 = vld [vmem:[#allocation4 + $0xf8] sm:$0xff]
      %v8033 = vld [vmem:[#allocation4 + $0x100] sm:$0xff]
      %v8034 = vld [vmem:[#allocation4 + $0x108] sm:$0xff]
      %v8035 = vld [vmem:[#allocation4 + $0x110] sm:$0xff]
      %v8036 = vld [vmem:[#allocation4 + $0x118] sm:$0xff]
      %v8037 = vpack.c.bf16 %v8029, %v8028
      %v8038 = vpack.c.bf16 %v8031, %v8030
      %v8039 = vpack.c.bf16 %v8033, %v8032
      %v8040 = vpack.c.bf16 %v8035, %v8034
      %v8041 = vpack.c.bf16 %v8036, %v8036
      %v8042 = vld [vmem:[%s7] sm:$0xf]
      %v8043 = vld [vmem:[%s7 + $0x4] sm:$0xf]
      %v8044 = vld [vmem:[%s7 + $0x8] sm:$0xf]
      %v8045 = vld [vmem:[%s7 + $0xc] sm:$0xf]
      %v8046 = vld [vmem:[%s7 + $0x10] sm:$0xf]
      %v8047 = vld [vmem:[%s7 + $0x14] sm:$0xf]
      %v8048 = vld [vmem:[%s7 + $0x18] sm:$0xf]
      %v8049 = vld [vmem:[%s7 + $0x1c] sm:$0xf]
      %v8050 = vld [vmem:[#allocation4 + $0xd9] sm:$0xff]
      %v8051 = vld [vmem:[#allocation4 + $0xe1] sm:$0xff]
      %v8052 = vld [vmem:[#allocation4 + $0xe9] sm:$0xff]
      %v8053 = vld [vmem:[#allocation4 + $0xf1] sm:$0xff]
      %v8054 = vld [vmem:[#allocation4 + $0xf9] sm:$0xff]
      %v8055 = vld [vmem:[#allocation4 + $0x101] sm:$0xff]
      %v8056 = vld [vmem:[#allocation4 + $0x109] sm:$0xff]
      %v8057 = vld [vmem:[#allocation4 + $0x111] sm:$0xff]
      %v8058 = vld [vmem:[#allocation4 + $0x119] sm:$0xff]
      %v8059 = vpack.c.bf16 %v8051, %v8050
      %v8060 = vpack.c.bf16 %v8053, %v8052
      %v8061 = vpack.c.bf16 %v8055, %v8054
      %v8062 = vpack.c.bf16 %v8057, %v8056
      %v8063 = vpack.c.bf16 %v8058, %v8058
      %v8064 = vld [vmem:[%s4188] sm:$0xf]
      %v8065 = vld [vmem:[%s4188 + $0x4] sm:$0xf]
      %v8066 = vld [vmem:[%s4188 + $0x8] sm:$0xf]
      %v8067 = vld [vmem:[%s4188 + $0xc] sm:$0xf]
      %v8068 = vld [vmem:[%s4188 + $0x10] sm:$0xf]
      %v8069 = vld [vmem:[%s4188 + $0x14] sm:$0xf]
      %v8070 = vld [vmem:[%s4188 + $0x18] sm:$0xf]
      %v8071 = vld [vmem:[%s4188 + $0x1c] sm:$0xf]
      %v8080 = vunpack.c.l.b16 %v8064
      %v8081 = vunpack.c.l.b16 %v8065
      %v8082 = vunpack.c.l.b16 %v8066
      %v8083 = vunpack.c.l.b16 %v8067
      %v8084 = vunpack.c.l.b16 %v8068
      %v8085 = vunpack.c.l.b16 %v8069
      %v8086 = vunpack.c.l.b16 %v8070
      %v8087 = vunpack.c.l.b16 %v8071
      %v8088 = vpack.c.b16 %v8081, %v8080
      %v8089 = vpack.c.b16 %v8083, %v8082
      %v8090 = vpack.c.b16 %v8085, %v8084
      %v8091 = vpack.c.b16 %v8087, %v8086
      %v8097 = vsel %vm826, %v8059, 0
      %v8100 = vsel %vm826, %v8060, 0
      %v8103 = vsel %vm826, %v8061, 0
      %v8106 = vsel %vm826, %v8062, 0
      %v8109 = vsel %vm826, %v8063, 0
      %8111 = vmatprep.subr.bf16.mxu0 0
      %8112 = vmatpush1.bf16.msra.mxu0 %v8088
      %8113 = vmatprep.subr.bf16.mxu0 0
      %8114 = vmatpush1.bf16.msra.mxu0 %v8089
      %8115 = vmatprep.subr.bf16.mxu0 0
      %8116 = vmatpush1.bf16.msra.mxu0 %v8090
      %8117 = vmatprep.subr.bf16.mxu0 0
      %8118 = vmatpush1.bf16.msra.mxu0 %v8091
      %8119 = vmatprep.subr.bf16.mxu0 0
      %8120 = vmatpush1.bf16.msra.mxu0 0
      %8121 = vmatprep.subr.bf16.mxu0 0
      %8122 = vmatpush1.bf16.msra.mxu0 0
      %8123 = vmatprep.subr.bf16.mxu0 0
      %8124 = vmatpush1.bf16.msra.mxu0 0
      %8125 = vmatprep.subr.bf16.mxu0 0
      %8126 = vmatpush1.bf16.msra.mxu0 0
      %8127 = vmatprep.subr.bf16.mxu0 0
      %8128 = vmatpush1.bf16.msra.mxu0 0
      %8129 = vmatprep.subr.bf16.mxu0 0
      %8130 = vmatpush1.bf16.msra.mxu0 0
      %8131 = vmatprep.subr.bf16.mxu0 0
      %8132 = vmatpush1.bf16.msra.mxu0 0
      %8133 = vmatprep.subr.bf16.mxu0 0
      %8134 = vmatpush1.bf16.msra.mxu0 0
      %8135 = vmatprep.subr.bf16.mxu0 0
      %8136 = vmatpush1.bf16.msra.mxu0 0
      %8137 = vmatprep.subr.bf16.mxu0 0
      %8138 = vmatpush1.bf16.msra.mxu0 0
      %8139 = vmatprep.subr.bf16.mxu0 0
      %8140 = vmatpush1.bf16.msra.mxu0 0
      %8141 = vmatprep.subr.bf16.mxu0 0
      %8142 = vmatpush1.bf16.msra.mxu0 0
      %8143 = vmatprep.mubr.bf16.mxu0 0
      %8144 = vmatmul.mubr.bf16.gmra.mrb[0].mxu0 %v8097
      %v8145 = vpop.f32.mrb[0].mxu0
      %v8146 = vadd.f32 0.0, %v8145
      %v8147 = vpop.f32.mrb[0].mxu0
      %v8148 = vpop.f32.mrb[0].mxu0
      %v8149 = vadd.f32 0.0, %v8148
      %v8150 = vpop.f32.mrb[0].mxu0
      %8151 = vmatprep.mubr.bf16.mxu0 0
      %8152 = vmatmul.mubr.bf16.gmra.mrb[0].mxu0 %v8100
      %v8153 = vpop.f32.mrb[0].mxu0
      %v8154 = vadd.f32 0.0, %v8153
      %v8155 = vpop.f32.mrb[0].mxu0
      %v8156 = vpop.f32.mrb[0].mxu0
      %v8157 = vadd.f32 0.0, %v8156
      %v8158 = vpop.f32.mrb[0].mxu0
      %8159 = vmatprep.mubr.bf16.mxu0 0
      %8160 = vmatmul.mubr.bf16.gmra.mrb[0].mxu0 %v8103
      %v8161 = vpop.f32.mrb[0].mxu0
      %v8162 = vadd.f32 0.0, %v8161
      %v8163 = vpop.f32.mrb[0].mxu0
      %v8164 = vpop.f32.mrb[0].mxu0
      %v8165 = vadd.f32 0.0, %v8164
      %v8166 = vpop.f32.mrb[0].mxu0
      %8167 = vmatprep.mubr.bf16.mxu0 0
      %8168 = vmatmul.mubr.bf16.gmra.mrb[0].mxu0 %v8106
      %v8169 = vpop.f32.mrb[0].mxu0
      %v8170 = vadd.f32 0.0, %v8169
      %v8171 = vpop.f32.mrb[0].mxu0
      %v8172 = vpop.f32.mrb[0].mxu0
      %v8173 = vadd.f32 0.0, %v8172
      %v8174 = vpop.f32.mrb[0].mxu0
      %8175 = vmatprep.mubr.bf16.mxu0 0
      %8176 = vmatmul.mubr.bf16.gmra.mrb[0].mxu0 %v8109
      %v8177 = vpop.f32.mrb[0].mxu0
      %v8178 = vadd.f32 0.0, %v8177
      %v8179 = vpop.f32.mrb[0].mxu0
      %v8180 = vpop.f32.mrb[0].mxu0
      %v8181 = vpop.f32.mrb[0].mxu0
      %8182 = vdwg.mxu0
      %v8191 = vunpack.c.l.b16 %v8042
      %v8192 = vunpack.c.l.b16 %v8043
      %v8193 = vunpack.c.l.b16 %v8044
      %v8194 = vunpack.c.l.b16 %v8045
      %v8195 = vunpack.c.l.b16 %v8046
      %v8196 = vunpack.c.l.b16 %v8047
      %v8197 = vunpack.c.l.b16 %v8048
      %v8198 = vunpack.c.l.b16 %v8049
      %v8199 = vpack.c.b16 %v8192, %v8191
      %v8200 = vpack.c.b16 %v8194, %v8193
      %v8201 = vpack.c.b16 %v8196, %v8195
      %v8202 = vpack.c.b16 %v8198, %v8197
      %v8208 = vsel %vm826, %v8037, 0
      %v8211 = vsel %vm826, %v8038, 0
      %v8214 = vsel %vm826, %v8039, 0
      %v8217 = vsel %vm826, %v8040, 0
      %v8220 = vsel %vm826, %v8041, 0
      %8222 = vmatprep.subr.bf16.mxu0 0
      %8223 = vmatpush1.bf16.msra.mxu0 %v8199
      %8224 = vmatprep.subr.bf16.mxu0 0
      %8225 = vmatpush1.bf16.msra.mxu0 %v8200
      %8226 = vmatprep.subr.bf16.mxu0 0
      %8227 = vmatpush1.bf16.msra.mxu0 %v8201
      %8228 = vmatprep.subr.bf16.mxu0 0
      %8229 = vmatpush1.bf16.msra.mxu0 %v8202
      %8230 = vmatprep.subr.bf16.mxu0 0
      %8231 = vmatpush1.bf16.msra.mxu0 0
      %8232 = vmatprep.subr.bf16.mxu0 0
      %8233 = vmatpush1.bf16.msra.mxu0 0
      %8234 = vmatprep.subr.bf16.mxu0 0
      %8235 = vmatpush1.bf16.msra.mxu0 0
      %8236 = vmatprep.subr.bf16.mxu0 0
      %8237 = vmatpush1.bf16.msra.mxu0 0
      %8238 = vmatprep.subr.bf16.mxu0 0
      %8239 = vmatpush1.bf16.msra.mxu0 0
      %8240 = vmatprep.subr.bf16.mxu0 0
      %8241 = vmatpush1.bf16.msra.mxu0 0
      %8242 = vmatprep.subr.bf16.mxu0 0
      %8243 = vmatpush1.bf16.msra.mxu0 0
      %8244 = vmatprep.subr.bf16.mxu0 0
      %8245 = vmatpush1.bf16.msra.mxu0 0
      %8246 = vmatprep.subr.bf16.mxu0 0
      %8247 = vmatpush1.bf16.msra.mxu0 0
      %8248 = vmatprep.subr.bf16.mxu0 0
      %8249 = vmatpush1.bf16.msra.mxu0 0
      %8250 = vmatprep.subr.bf16.mxu0 0
      %8251 = vmatpush1.bf16.msra.mxu0 0
      %8252 = vmatprep.subr.bf16.mxu0 0
      %8253 = vmatpush1.bf16.msra.mxu0 0
      %8254 = vmatprep.mubr.bf16.mxu0 0
      %8255 = vmatmul.mubr.bf16.gmra.mrb[0].mxu0 %v8208
      %v8256 = vpop.f32.mrb[0].mxu0
      %v8257 = vadd.f32 %v8146, %v8256
      %v8258 = vpop.f32.mrb[0].mxu0
      %v8259 = vpop.f32.mrb[0].mxu0
      %v8260 = vadd.f32 %v8149, %v8259
      %v8261 = vpop.f32.mrb[0].mxu0
      %8262 = vmatprep.mubr.bf16.mxu0 0
      %8263 = vmatmul.mubr.bf16.gmra.mrb[0].mxu0 %v8211
      %v8264 = vpop.f32.mrb[0].mxu0
      %v8265 = vadd.f32 %v8154, %v8264
      %v8266 = vpop.f32.mrb[0].mxu0
      %v8267 = vpop.f32.mrb[0].mxu0
      %v8268 = vadd.f32 %v8157, %v8267
      %v8269 = vpop.f32.mrb[0].mxu0
      %8270 = vmatprep.mubr.bf16.mxu0 0
      %8271 = vmatmul.mubr.bf16.gmra.mrb[0].mxu0 %v8214
      %v8272 = vpop.f32.mrb[0].mxu0
      %v8273 = vadd.f32 %v8162, %v8272
      %v8274 = vpop.f32.mrb[0].mxu0
      %v8275 = vpop.f32.mrb[0].mxu0
      %v8276 = vadd.f32 %v8165, %v8275
      %v8277 = vpop.f32.mrb[0].mxu0
      %8278 = vmatprep.mubr.bf16.mxu0 0
      %8279 = vmatmul.mubr.bf16.gmra.mrb[0].mxu0 %v8217
      %v8280 = vpop.f32.mrb[0].mxu0
      %v8281 = vadd.f32 %v8170, %v8280
      %v8282 = vpop.f32.mrb[0].mxu0
      %v8283 = vpop.f32.mrb[0].mxu0
      %v8284 = vadd.f32 %v8173, %v8283
      %v8285 = vpop.f32.mrb[0].mxu0
      %8286 = vmatprep.mubr.bf16.mxu0 0
      %8287 = vmatmul.mubr.bf16.gmra.mrb[0].mxu0 %v8220
      %v8288 = vpop.f32.mrb[0].mxu0
      %v8289 = vadd.f32 %v8178, %v8288
      %v8290 = vpop.f32.mrb[0].mxu0
      %v8291 = vpop.f32.mrb[0].mxu0
      %v8292 = vpop.f32.mrb[0].mxu0
      %8293 = vdwg.mxu0
      %v8294 = vld [vmem:[#allocation4 + $0xda] sm:$0xff]
      %v8295 = vld [vmem:[#allocation4 + $0xe2] sm:$0xff]
      %v8296 = vld [vmem:[#allocation4 + $0xea] sm:$0xff]
      %v8297 = vld [vmem:[#allocation4 + $0xf2] sm:$0xff]
      %v8298 = vld [vmem:[#allocation4 + $0xfa] sm:$0xff]
      %v8299 = vld [vmem:[#allocation4 + $0x102] sm:$0xff]
      %v8300 = vld [vmem:[#allocation4 + $0x10a] sm:$0xff]
      %v8301 = vld [vmem:[#allocation4 + $0x112] sm:$0xff]
      %v8302 = vld [vmem:[#allocation4 + $0x11a] sm:$0xff]
      %v8303 = vpack.c.bf16 %v8295, %v8294
      %v8304 = vpack.c.bf16 %v8297, %v8296
      %v8305 = vpack.c.bf16 %v8299, %v8298
      %v8306 = vpack.c.bf16 %v8301, %v8300
      %v8307 = vpack.c.bf16 %v8302, %v8302
      %v8308 = vld [vmem:[%s4433] sm:$0xf]
      %v8309 = vld [vmem:[%s4433 + $0x4] sm:$0xf]
      %v8310 = vld [vmem:[%s4433 + $0x8] sm:$0xf]
      %v8311 = vld [vmem:[%s4433 + $0xc] sm:$0xf]
      %v8312 = vld [vmem:[%s4433 + $0x10] sm:$0xf]
      %v8313 = vld [vmem:[%s4433 + $0x14] sm:$0xf]
      %v8314 = vld [vmem:[%s4433 + $0x18] sm:$0xf]
      %v8315 = vld [vmem:[%s4433 + $0x1c] sm:$0xf]
      %v8324 = vunpack.c.l.b16 %v8308
      %v8325 = vunpack.c.l.b16 %v8309
      %v8326 = vunpack.c.l.b16 %v8310
      %v8327 = vunpack.c.l.b16 %v8311
      %v8328 = vunpack.c.l.b16 %v8312
      %v8329 = vunpack.c.l.b16 %v8313
      %v8330 = vunpack.c.l.b16 %v8314
      %v8331 = vunpack.c.l.b16 %v8315
      %v8332 = vpack.c.b16 %v8325, %v8324
      %v8333 = vpack.c.b16 %v8327, %v8326
      %v8334 = vpack.c.b16 %v8329, %v8328
      %v8335 = vpack.c.b16 %v8331, %v8330
      %v8341 = vsel %vm826, %v8303, 0
      %v8344 = vsel %vm826, %v8304, 0
      %v8347 = vsel %vm826, %v8305, 0
      %v8350 = vsel %vm826, %v8306, 0
      %v8353 = vsel %vm826, %v8307, 0
      %8355 = vmatprep.subr.bf16.mxu0 0
      %8356 = vmatpush1.bf16.msra.mxu0 %v8332
      %8357 = vmatprep.subr.bf16.mxu0 0
      %8358 = vmatpush1.bf16.msra.mxu0 %v8333
      %8359 = vmatprep.subr.bf16.mxu0 0
      %8360 = vmatpush1.bf16.msra.mxu0 %v8334
      %8361 = vmatprep.subr.bf16.mxu0 0
      %8362 = vmatpush1.bf16.msra.mxu0 %v8335
      %8363 = vmatprep.subr.bf16.mxu0 0
      %8364 = vmatpush1.bf16.msra.mxu0 0
      %8365 = vmatprep.subr.bf16.mxu0 0
      %8366 = vmatpush1.bf16.msra.mxu0 0
      %8367 = vmatprep.subr.bf16.mxu0 0
      %8368 = vmatpush1.bf16.msra.mxu0 0
      %8369 = vmatprep.subr.bf16.mxu0 0
      %8370 = vmatpush1.bf16.msra.mxu0 0
      %8371 = vmatprep.subr.bf16.mxu0 0
      %8372 = vmatpush1.bf16.msra.mxu0 0
      %8373 = vmatprep.subr.bf16.mxu0 0
      %8374 = vmatpush1.bf16.msra.mxu0 0
      %8375 = vmatprep.subr.bf16.mxu0 0
      %8376 = vmatpush1.bf16.msra.mxu0 0
      %8377 = vmatprep.subr.bf16.mxu0 0
      %8378 = vmatpush1.bf16.msra.mxu0 0
      %8379 = vmatprep.subr.bf16.mxu0 0
      %8380 = vmatpush1.bf16.msra.mxu0 0
      %8381 = vmatprep.subr.bf16.mxu0 0
      %8382 = vmatpush1.bf16.msra.mxu0 0
      %8383 = vmatprep.subr.bf16.mxu0 0
      %8384 = vmatpush1.bf16.msra.mxu0 0
      %8385 = vmatprep.subr.bf16.mxu0 0
      %8386 = vmatpush1.bf16.msra.mxu0 0
      %8387 = vmatprep.mubr.bf16.mxu0 0
      %8388 = vmatmul.mubr.bf16.gmra.mrb[0].mxu0 %v8341
      %v8389 = vpop.f32.mrb[0].mxu0
      %v8390 = vadd.f32 0.0, %v8389
      %v8391 = vpop.f32.mrb[0].mxu0
      %v8392 = vpop.f32.mrb[0].mxu0
      %v8393 = vadd.f32 0.0, %v8392
      %v8394 = vpop.f32.mrb[0].mxu0
      %8395 = vmatprep.mubr.bf16.mxu0 0
      %8396 = vmatmul.mubr.bf16.gmra.mrb[0].mxu0 %v8344
      %v8397 = vpop.f32.mrb[0].mxu0
      %v8398 = vadd.f32 0.0, %v8397
      %v8399 = vpop.f32.mrb[0].mxu0
      %v8400 = vpop.f32.mrb[0].mxu0
      %v8401 = vadd.f32 0.0, %v8400
      %v8402 = vpop.f32.mrb[0].mxu0
      %8403 = vmatprep.mubr.bf16.mxu0 0
      %8404 = vmatmul.mubr.bf16.gmra.mrb[0].mxu0 %v8347
      %v8405 = vpop.f32.mrb[0].mxu0
      %v8406 = vadd.f32 0.0, %v8405
      %v8407 = vpop.f32.mrb[0].mxu0
      %v8408 = vpop.f32.mrb[0].mxu0
      %v8409 = vadd.f32 0.0, %v8408
      %v8410 = vpop.f32.mrb[0].mxu0
      %8411 = vmatprep.mubr.bf16.mxu0 0
      %8412 = vmatmul.mubr.bf16.gmra.mrb[0].mxu0 %v8350
      %v8413 = vpop.f32.mrb[0].mxu0
      %v8414 = vadd.f32 0.0, %v8413
      %v8415 = vpop.f32.mrb[0].mxu0
      %v8416 = vpop.f32.mrb[0].mxu0
      %v8417 = vadd.f32 0.0, %v8416
      %v8418 = vpop.f32.mrb[0].mxu0
      %8419 = vmatprep.mubr.bf16.mxu0 0
      %8420 = vmatmul.mubr.bf16.gmra.mrb[0].mxu0 %v8353
      %v8421 = vpop.f32.mrb[0].mxu0
      %v8422 = vadd.f32 0.0, %v8421
      %v8423 = vpop.f32.mrb[0].mxu0
      %v8424 = vpop.f32.mrb[0].mxu0
      %v8425 = vpop.f32.mrb[0].mxu0
      %8426 = vdwg.mxu0
      %v8427 = vadd.f32 %v8257, %v8390
      %v8428 = vadd.f32 %v8260, %v8393
      %v8429 = vadd.f32 %v8265, %v8398
      %v8430 = vadd.f32 %v8268, %v8401
      %v8431 = vadd.f32 %v8273, %v8406
      %v8432 = vadd.f32 %v8276, %v8409
      %v8433 = vadd.f32 %v8281, %v8414
      %v8434 = vadd.f32 %v8284, %v8417
      %v8435 = vadd.f32 %v8289, %v8422
      %v8436 = vld [vmem:[#allocation4 + $0xea] sm:$0xff]
      %v8437 = vld [vmem:[#allocation4 + $0xf2] sm:$0xff]
      %v8438 = vld [vmem:[#allocation4 + $0xfa] sm:$0xff]
      %v8439 = vld [vmem:[#allocation4 + $0x102] sm:$0xff]
      %v8440 = vld [vmem:[#allocation4 + $0x10a] sm:$0xff]
      %v8441 = vld [vmem:[#allocation4 + $0x112] sm:$0xff]
      %v8442 = vld [vmem:[#allocation4 + $0x11a] sm:$0xff]
      %v8443 = vld [vmem:[#allocation4 + $0x122] sm:$0xff]
      %v8444 = vld [vmem:[#allocation4 + $0x12a] sm:$0xff]
      %v8445 = vpack.c.bf16 %v8437, %v8436
      %v8446 = vpack.c.bf16 %v8439, %v8438
      %v8447 = vpack.c.bf16 %v8441, %v8440
      %v8448 = vpack.c.bf16 %v8443, %v8442
      %v8449 = vpack.c.bf16 %v8444, %v8444
      %v8450 = vld [vmem:[%s4576] sm:$0xf]
      %v8451 = vld [vmem:[%s4576 + $0x4] sm:$0xf]
      %v8452 = vld [vmem:[%s4576 + $0x8] sm:$0xf]
      %v8453 = vld [vmem:[%s4576 + $0xc] sm:$0xf]
      %v8454 = vld [vmem:[%s4576 + $0x10] sm:$0xf]
      %v8455 = vld [vmem:[%s4576 + $0x14] sm:$0xf]
      %v8456 = vld [vmem:[%s4576 + $0x18] sm:$0xf]
      %v8457 = vld [vmem:[%s4576 + $0x1c] sm:$0xf]
      %v8466 = vunpack.c.l.b16 %v8450
      %v8467 = vunpack.c.l.b16 %v8451
      %v8468 = vunpack.c.l.b16 %v8452
      %v8469 = vunpack.c.l.b16 %v8453
      %v8470 = vunpack.c.l.b16 %v8454
      %v8471 = vunpack.c.l.b16 %v8455
      %v8472 = vunpack.c.l.b16 %v8456
      %v8473 = vunpack.c.l.b16 %v8457
      %v8474 = vpack.c.b16 %v8467, %v8466
      %v8475 = vpack.c.b16 %v8469, %v8468
      %v8476 = vpack.c.b16 %v8471, %v8470
      %v8477 = vpack.c.b16 %v8473, %v8472
      %v8483 = vsel %vm826, %v8445, 0
      %v8486 = vsel %vm826, %v8446, 0
      %v8489 = vsel %vm826, %v8447, 0
      %v8492 = vsel %vm826, %v8448, 0
      %v8495 = vsel %vm826, %v8449, 0
      %8497 = vmatprep.subr.bf16.mxu0 0
      %8498 = vmatpush1.bf16.msra.mxu0 %v8474
      %8499 = vmatprep.subr.bf16.mxu0 0
      %8500 = vmatpush1.bf16.msra.mxu0 %v8475
      %8501 = vmatprep.subr.bf16.mxu0 0
      %8502 = vmatpush1.bf16.msra.mxu0 %v8476
      %8503 = vmatprep.subr.bf16.mxu0 0
      %8504 = vmatpush1.bf16.msra.mxu0 %v8477
      %8505 = vmatprep.subr.bf16.mxu0 0
      %8506 = vmatpush1.bf16.msra.mxu0 0
      %8507 = vmatprep.subr.bf16.mxu0 0
      %8508 = vmatpush1.bf16.msra.mxu0 0
      %8509 = vmatprep.subr.bf16.mxu0 0
      %8510 = vmatpush1.bf16.msra.mxu0 0
      %8511 = vmatprep.subr.bf16.mxu0 0
      %8512 = vmatpush1.bf16.msra.mxu0 0
      %8513 = vmatprep.subr.bf16.mxu0 0
      %8514 = vmatpush1.bf16.msra.mxu0 0
      %8515 = vmatprep.subr.bf16.mxu0 0
      %8516 = vmatpush1.bf16.msra.mxu0 0
      %8517 = vmatprep.subr.bf16.mxu0 0
      %8518 = vmatpush1.bf16.msra.mxu0 0
      %8519 = vmatprep.subr.bf16.mxu0 0
      %8520 = vmatpush1.bf16.msra.mxu0 0
      %8521 = vmatprep.subr.bf16.mxu0 0
      %8522 = vmatpush1.bf16.msra.mxu0 0
      %8523 = vmatprep.subr.bf16.mxu0 0
      %8524 = vmatpush1.bf16.msra.mxu0 0
      %8525 = vmatprep.subr.bf16.mxu0 0
      %8526 = vmatpush1.bf16.msra.mxu0 0
      %8527 = vmatprep.subr.bf16.mxu0 0
      %8528 = vmatpush1.bf16.msra.mxu0 0
      %8529 = vmatprep.mubr.bf16.mxu0 0
      %8530 = vmatmul.mubr.bf16.gmra.mrb[0].mxu0 %v8483
      %v8531 = vpop.f32.mrb[0].mxu0
      %v8532 = vadd.f32 0.0, %v8531
      %v8533 = vpop.f32.mrb[0].mxu0
      %v8534 = vpop.f32.mrb[0].mxu0
      %v8535 = vadd.f32 0.0, %v8534
      %v8536 = vpop.f32.mrb[0].mxu0
      %8537 = vmatprep.mubr.bf16.mxu0 0
      %8538 = vmatmul.mubr.bf16.gmra.mrb[0].mxu0 %v8486
      %v8539 = vpop.f32.mrb[0].mxu0
      %v8540 = vadd.f32 0.0, %v8539
      %v8541 = vpop.f32.mrb[0].mxu0
      %v8542 = vpop.f32.mrb[0].mxu0
      %v8543 = vadd.f32 0.0, %v8542
      %v8544 = vpop.f32.mrb[0].mxu0
      %8545 = vmatprep.mubr.bf16.mxu0 0
      %8546 = vmatmul.mubr.bf16.gmra.mrb[0].mxu0 %v8489
      %v8547 = vpop.f32.mrb[0].mxu0
      %v8548 = vadd.f32 0.0, %v8547
      %v8549 = vpop.f32.mrb[0].mxu0
      %v8550 = vpop.f32.mrb[0].mxu0
      %v8551 = vadd.f32 0.0, %v8550
      %v8552 = vpop.f32.mrb[0].mxu0
      %8553 = vmatprep.mubr.bf16.mxu0 0
      %8554 = vmatmul.mubr.bf16.gmra.mrb[0].mxu0 %v8492
      %v8555 = vpop.f32.mrb[0].mxu0
      %v8556 = vadd.f32 0.0, %v8555
      %v8557 = vpop.f32.mrb[0].mxu0
      %v8558 = vpop.f32.mrb[0].mxu0
      %v8559 = vadd.f32 0.0, %v8558
      %v8560 = vpop.f32.mrb[0].mxu0
      %8561 = vmatprep.mubr.bf16.mxu0 0
      %8562 = vmatmul.mubr.bf16.gmra.mrb[0].mxu0 %v8495
      %v8563 = vpop.f32.mrb[0].mxu0
      %v8564 = vadd.f32 0.0, %v8563
      %v8565 = vpop.f32.mrb[0].mxu0
      %v8566 = vpop.f32.mrb[0].mxu0
      %v8567 = vpop.f32.mrb[0].mxu0
      %8568 = vdwg.mxu0
      %v8569 = vadd.f32 %v8427, %v8532
      %v8570 = vadd.f32 %v8428, %v8535
      %v8571 = vadd.f32 %v8429, %v8540
      %v8572 = vadd.f32 %v8430, %v8543
      %v8573 = vadd.f32 %v8431, %v8548
      %v8574 = vadd.f32 %v8432, %v8551
      %v8575 = vadd.f32 %v8433, %v8556
      %v8576 = vadd.f32 %v8434, %v8559
      %v8577 = vadd.f32 %v8435, %v8564
      %v8578 = vld [vmem:[#allocation4 + $0xeb] sm:$0xff]
      %v8579 = vld [vmem:[#allocation4 + $0xf3] sm:$0xff]
      %v8580 = vld [vmem:[#allocation4 + $0xfb] sm:$0xff]
      %v8581 = vld [vmem:[#allocation4 + $0x103] sm:$0xff]
      %v8582 = vld [vmem:[#allocation4 + $0x10b] sm:$0xff]
      %v8583 = vld [vmem:[#allocation4 + $0x113] sm:$0xff]
      %v8584 = vld [vmem:[#allocation4 + $0x11b] sm:$0xff]
      %v8585 = vld [vmem:[#allocation4 + $0x123] sm:$0xff]
      %v8586 = vld [vmem:[#allocation4 + $0x12b] sm:$0xff]
      %v8587 = vpack.c.bf16 %v8579, %v8578
      %v8588 = vpack.c.bf16 %v8581, %v8580
      %v8589 = vpack.c.bf16 %v8583, %v8582
      %v8590 = vpack.c.bf16 %v8585, %v8584
      %v8591 = vpack.c.bf16 %v8586, %v8586
      %v8592 = vld [vmem:[%s4719] sm:$0xf]
      %v8593 = vld [vmem:[%s4719 + $0x4] sm:$0xf]
      %v8594 = vld [vmem:[%s4719 + $0x8] sm:$0xf]
      %v8595 = vld [vmem:[%s4719 + $0xc] sm:$0xf]
      %v8596 = vld [vmem:[%s4719 + $0x10] sm:$0xf]
      %v8597 = vld [vmem:[%s4719 + $0x14] sm:$0xf]
      %v8598 = vld [vmem:[%s4719 + $0x18] sm:$0xf]
      %v8599 = vld [vmem:[%s4719 + $0x1c] sm:$0xf]
      %v8608 = vunpack.c.l.b16 %v8592
      %v8609 = vunpack.c.l.b16 %v8593
      %v8610 = vunpack.c.l.b16 %v8594
      %v8611 = vunpack.c.l.b16 %v8595
      %v8612 = vunpack.c.l.b16 %v8596
      %v8613 = vunpack.c.l.b16 %v8597
      %v8614 = vunpack.c.l.b16 %v8598
      %v8615 = vunpack.c.l.b16 %v8599
      %v8616 = vpack.c.b16 %v8609, %v8608
      %v8617 = vpack.c.b16 %v8611, %v8610
      %v8618 = vpack.c.b16 %v8613, %v8612
      %v8619 = vpack.c.b16 %v8615, %v8614
      %v8625 = vsel %vm826, %v8587, 0
      %v8628 = vsel %vm826, %v8588, 0
      %v8631 = vsel %vm826, %v8589, 0
      %v8634 = vsel %vm826, %v8590, 0
      %v8637 = vsel %vm826, %v8591, 0
      %8639 = vmatprep.subr.bf16.mxu0 0
      %8640 = vmatpush1.bf16.msra.mxu0 %v8616
      %8641 = vmatprep.subr.bf16.mxu0 0
      %8642 = vmatpush1.bf16.msra.mxu0 %v8617
      %8643 = vmatprep.subr.bf16.mxu0 0
      %8644 = vmatpush1.bf16.msra.mxu0 %v8618
      %8645 = vmatprep.subr.bf16.mxu0 0
      %8646 = vmatpush1.bf16.msra.mxu0 %v8619
      %8647 = vmatprep.subr.bf16.mxu0 0
      %8648 = vmatpush1.bf16.msra.mxu0 0
      %8649 = vmatprep.subr.bf16.mxu0 0
      %8650 = vmatpush1.bf16.msra.mxu0 0
      %8651 = vmatprep.subr.bf16.mxu0 0
      %8652 = vmatpush1.bf16.msra.mxu0 0
      %8653 = vmatprep.subr.bf16.mxu0 0
      %8654 = vmatpush1.bf16.msra.mxu0 0
      %8655 = vmatprep.subr.bf16.mxu0 0
      %8656 = vmatpush1.bf16.msra.mxu0 0
      %8657 = vmatprep.subr.bf16.mxu0 0
      %8658 = vmatpush1.bf16.msra.mxu0 0
      %8659 = vmatprep.subr.bf16.mxu0 0
      %8660 = vmatpush1.bf16.msra.mxu0 0
      %8661 = vmatprep.subr.bf16.mxu0 0
      %8662 = vmatpush1.bf16.msra.mxu0 0
      %8663 = vmatprep.subr.bf16.mxu0 0
      %8664 = vmatpush1.bf16.msra.mxu0 0
      %8665 = vmatprep.subr.bf16.mxu0 0
      %8666 = vmatpush1.bf16.msra.mxu0 0
      %8667 = vmatprep.subr.bf16.mxu0 0
      %8668 = vmatpush1.bf16.msra.mxu0 0
      %8669 = vmatprep.subr.bf16.mxu0 0
      %8670 = vmatpush1.bf16.msra.mxu0 0
      %8671 = vmatprep.mubr.bf16.mxu0 0
      %8672 = vmatmul.mubr.bf16.gmra.mrb[0].mxu0 %v8625
      %v8673 = vpop.f32.mrb[0].mxu0
      %v8674 = vadd.f32 0.0, %v8673
      %v8675 = vpop.f32.mrb[0].mxu0
      %v8676 = vpop.f32.mrb[0].mxu0
      %v8677 = vadd.f32 0.0, %v8676
      %v8678 = vpop.f32.mrb[0].mxu0
      %8679 = vmatprep.mubr.bf16.mxu0 0
      %8680 = vmatmul.mubr.bf16.gmra.mrb[0].mxu0 %v8628
      %v8681 = vpop.f32.mrb[0].mxu0
      %v8682 = vadd.f32 0.0, %v8681
      %v8683 = vpop.f32.mrb[0].mxu0
      %v8684 = vpop.f32.mrb[0].mxu0
      %v8685 = vadd.f32 0.0, %v8684
      %v8686 = vpop.f32.mrb[0].mxu0
      %8687 = vmatprep.mubr.bf16.mxu0 0
      %8688 = vmatmul.mubr.bf16.gmra.mrb[0].mxu0 %v8631
      %v8689 = vpop.f32.mrb[0].mxu0
      %v8690 = vadd.f32 0.0, %v8689
      %v8691 = vpop.f32.mrb[0].mxu0
      %v8692 = vpop.f32.mrb[0].mxu0
      %v8693 = vadd.f32 0.0, %v8692
      %v8694 = vpop.f32.mrb[0].mxu0
      %8695 = vmatprep.mubr.bf16.mxu0 0
      %8696 = vmatmul.mubr.bf16.gmra.mrb[0].mxu0 %v8634
      %v8697 = vpop.f32.mrb[0].mxu0
      %v8698 = vadd.f32 0.0, %v8697
      %v8699 = vpop.f32.mrb[0].mxu0
      %v8700 = vpop.f32.mrb[0].mxu0
      %v8701 = vadd.f32 0.0, %v8700
      %v8702 = vpop.f32.mrb[0].mxu0
      %8703 = vmatprep.mubr.bf16.mxu0 0
      %8704 = vmatmul.mubr.bf16.gmra.mrb[0].mxu0 %v8637
      %v8705 = vpop.f32.mrb[0].mxu0
      %v8706 = vadd.f32 0.0, %v8705
      %v8707 = vpop.f32.mrb[0].mxu0
      %v8708 = vpop.f32.mrb[0].mxu0
      %v8709 = vpop.f32.mrb[0].mxu0
      %8710 = vdwg.mxu0
      %v8711 = vadd.f32 %v8569, %v8674
      %v8712 = vadd.f32 %v8570, %v8677
      %v8713 = vadd.f32 %v8571, %v8682
      %v8714 = vadd.f32 %v8572, %v8685
      %v8715 = vadd.f32 %v8573, %v8690
      %v8716 = vadd.f32 %v8574, %v8693
      %v8717 = vadd.f32 %v8575, %v8698
      %v8718 = vadd.f32 %v8576, %v8701
      %v8719 = vadd.f32 %v8577, %v8706
      %v8720 = vld [vmem:[#allocation4 + $0xec] sm:$0xff]
      %v8721 = vld [vmem:[#allocation4 + $0xf4] sm:$0xff]
      %v8722 = vld [vmem:[#allocation4 + $0xfc] sm:$0xff]
      %v8723 = vld [vmem:[#allocation4 + $0x104] sm:$0xff]
      %v8724 = vld [vmem:[#allocation4 + $0x10c] sm:$0xff]
      %v8725 = vld [vmem:[#allocation4 + $0x114] sm:$0xff]
      %v8726 = vld [vmem:[#allocation4 + $0x11c] sm:$0xff]
      %v8727 = vld [vmem:[#allocation4 + $0x124] sm:$0xff]
      %v8728 = vld [vmem:[#allocation4 + $0x12c] sm:$0xff]
      %v8729 = vpack.c.bf16 %v8721, %v8720
      %v8730 = vpack.c.bf16 %v8723, %v8722
      %v8731 = vpack.c.bf16 %v8725, %v8724
      %v8732 = vpack.c.bf16 %v8727, %v8726
      %v8733 = vpack.c.bf16 %v8728, %v8728
      %v8734 = vld [vmem:[%s4862] sm:$0xf]
      %v8735 = vld [vmem:[%s4862 + $0x4] sm:$0xf]
      %v8736 = vld [vmem:[%s4862 + $0x8] sm:$0xf]
      %v8737 = vld [vmem:[%s4862 + $0xc] sm:$0xf]
      %v8738 = vld [vmem:[%s4862 + $0x10] sm:$0xf]
      %v8739 = vld [vmem:[%s4862 + $0x14] sm:$0xf]
      %v8740 = vld [vmem:[%s4862 + $0x18] sm:$0xf]
      %v8741 = vld [vmem:[%s4862 + $0x1c] sm:$0xf]
      %v8750 = vunpack.c.l.b16 %v8734
      %v8751 = vunpack.c.l.b16 %v8735
      %v8752 = vunpack.c.l.b16 %v8736
      %v8753 = vunpack.c.l.b16 %v8737
      %v8754 = vunpack.c.l.b16 %v8738
      %v8755 = vunpack.c.l.b16 %v8739
      %v8756 = vunpack.c.l.b16 %v8740
      %v8757 = vunpack.c.l.b16 %v8741
      %v8758 = vpack.c.b16 %v8751, %v8750
      %v8759 = vpack.c.b16 %v8753, %v8752
      %v8760 = vpack.c.b16 %v8755, %v8754
      %v8761 = vpack.c.b16 %v8757, %v8756
      %v8767 = vsel %vm826, %v8729, 0
      %v8770 = vsel %vm826, %v8730, 0
      %v8773 = vsel %vm826, %v8731, 0
      %v8776 = vsel %vm826, %v8732, 0
      %v8779 = vsel %vm826, %v8733, 0
      %8781 = vmatprep.subr.bf16.mxu0 0
      %8782 = vmatpush1.bf16.msra.mxu0 %v8758
      %8783 = vmatprep.subr.bf16.mxu0 0
      %8784 = vmatpush1.bf16.msra.mxu0 %v8759
      %8785 = vmatprep.subr.bf16.mxu0 0
      %8786 = vmatpush1.bf16.msra.mxu0 %v8760
      %8787 = vmatprep.subr.bf16.mxu0 0
      %8788 = vmatpush1.bf16.msra.mxu0 %v8761
      %8789 = vmatprep.subr.bf16.mxu0 0
      %8790 = vmatpush1.bf16.msra.mxu0 0
      %8791 = vmatprep.subr.bf16.mxu0 0
      %8792 = vmatpush1.bf16.msra.mxu0 0
      %8793 = vmatprep.subr.bf16.mxu0 0
      %8794 = vmatpush1.bf16.msra.mxu0 0
      %8795 = vmatprep.subr.bf16.mxu0 0
      %8796 = vmatpush1.bf16.msra.mxu0 0
      %8797 = vmatprep.subr.bf16.mxu0 0
      %8798 = vmatpush1.bf16.msra.mxu0 0
      %8799 = vmatprep.subr.bf16.mxu0 0
      %8800 = vmatpush1.bf16.msra.mxu0 0
      %8801 = vmatprep.subr.bf16.mxu0 0
      %8802 = vmatpush1.bf16.msra.mxu0 0
      %8803 = vmatprep.subr.bf16.mxu0 0
      %8804 = vmatpush1.bf16.msra.mxu0 0
      %8805 = vmatprep.subr.bf16.mxu0 0
      %8806 = vmatpush1.bf16.msra.mxu0 0
      %8807 = vmatprep.subr.bf16.mxu0 0
      %8808 = vmatpush1.bf16.msra.mxu0 0
      %8809 = vmatprep.subr.bf16.mxu0 0
      %8810 = vmatpush1.bf16.msra.mxu0 0
      %8811 = vmatprep.subr.bf16.mxu0 0
      %8812 = vmatpush1.bf16.msra.mxu0 0
      %8813 = vmatprep.mubr.bf16.mxu0 0
      %8814 = vmatmul.mubr.bf16.gmra.mrb[0].mxu0 %v8767
      %v8815 = vpop.f32.mrb[0].mxu0
      %v8816 = vadd.f32 0.0, %v8815
      %v8817 = vpop.f32.mrb[0].mxu0
      %v8818 = vpop.f32.mrb[0].mxu0
      %v8819 = vadd.f32 0.0, %v8818
      %v8820 = vpop.f32.mrb[0].mxu0
      %8821 = vmatprep.mubr.bf16.mxu0 0
      %8822 = vmatmul.mubr.bf16.gmra.mrb[0].mxu0 %v8770
      %v8823 = vpop.f32.mrb[0].mxu0
      %v8824 = vadd.f32 0.0, %v8823
      %v8825 = vpop.f32.mrb[0].mxu0
      %v8826 = vpop.f32.mrb[0].mxu0
      %v8827 = vadd.f32 0.0, %v8826
      %v8828 = vpop.f32.mrb[0].mxu0
      %8829 = vmatprep.mubr.bf16.mxu0 0
      %8830 = vmatmul.mubr.bf16.gmra.mrb[0].mxu0 %v8773
      %v8831 = vpop.f32.mrb[0].mxu0
      %v8832 = vadd.f32 0.0, %v8831
      %v8833 = vpop.f32.mrb[0].mxu0
      %v8834 = vpop.f32.mrb[0].mxu0
      %v8835 = vadd.f32 0.0, %v8834
      %v8836 = vpop.f32.mrb[0].mxu0
      %8837 = vmatprep.mubr.bf16.mxu0 0
      %8838 = vmatmul.mubr.bf16.gmra.mrb[0].mxu0 %v8776
      %v8839 = vpop.f32.mrb[0].mxu0
      %v8840 = vadd.f32 0.0, %v8839
      %v8841 = vpop.f32.mrb[0].mxu0
      %v8842 = vpop.f32.mrb[0].mxu0
      %v8843 = vadd.f32 0.0, %v8842
      %v8844 = vpop.f32.mrb[0].mxu0
      %8845 = vmatprep.mubr.bf16.mxu0 0
      %8846 = vmatmul.mubr.bf16.gmra.mrb[0].mxu0 %v8779
      %v8847 = vpop.f32.mrb[0].mxu0
      %v8848 = vadd.f32 0.0, %v8847
      %v8849 = vpop.f32.mrb[0].mxu0
      %v8850 = vpop.f32.mrb[0].mxu0
      %v8851 = vpop.f32.mrb[0].mxu0
      %8852 = vdwg.mxu0
      %v8853 = vadd.f32 %v8711, %v8816
      %v8854 = vadd.f32 %v8712, %v8819
      %v8855 = vadd.f32 %v8713, %v8824
      %v8856 = vadd.f32 %v8714, %v8827
      %v8857 = vadd.f32 %v8715, %v8832
      %v8858 = vadd.f32 %v8716, %v8835
      %v8859 = vadd.f32 %v8717, %v8840
      %v8860 = vadd.f32 %v8718, %v8843
      %v8861 = vadd.f32 %v8719, %v8848
      %v8862 = vld [vmem:[#allocation4 + $0xfc] sm:$0xff]
      %v8863 = vld [vmem:[#allocation4 + $0x104] sm:$0xff]
      %v8864 = vld [vmem:[#allocation4 + $0x10c] sm:$0xff]
      %v8865 = vld [vmem:[#allocation4 + $0x114] sm:$0xff]
      %v8866 = vld [vmem:[#allocation4 + $0x11c] sm:$0xff]
      %v8867 = vld [vmem:[#allocation4 + $0x124] sm:$0xff]
      %v8868 = vld [vmem:[#allocation4 + $0x12c] sm:$0xff]
      %v8869 = vld [vmem:[#allocation4 + $0x134] sm:$0xff]
      %v8870 = vld [vmem:[#allocation4 + $0x13c] sm:$0xff]
      %v8871 = vpack.c.bf16 %v8863, %v8862
      %v8872 = vpack.c.bf16 %v8865, %v8864
      %v8873 = vpack.c.bf16 %v8867, %v8866
      %v8874 = vpack.c.bf16 %v8869, %v8868
      %v8875 = vpack.c.bf16 %v8870, %v8870
      %v8876 = vld [vmem:[%s5005] sm:$0xf]
      %v8877 = vld [vmem:[%s5005 + $0x4] sm:$0xf]
      %v8878 = vld [vmem:[%s5005 + $0x8] sm:$0xf]
      %v8879 = vld [vmem:[%s5005 + $0xc] sm:$0xf]
      %v8880 = vld [vmem:[%s5005 + $0x10] sm:$0xf]
      %v8881 = vld [vmem:[%s5005 + $0x14] sm:$0xf]
      %v8882 = vld [vmem:[%s5005 + $0x18] sm:$0xf]
      %v8883 = vld [vmem:[%s5005 + $0x1c] sm:$0xf]
      %v8892 = vunpack.c.l.b16 %v8876
      %v8893 = vunpack.c.l.b16 %v8877
      %v8894 = vunpack.c.l.b16 %v8878
      %v8895 = vunpack.c.l.b16 %v8879
      %v8896 = vunpack.c.l.b16 %v8880
      %v8897 = vunpack.c.l.b16 %v8881
      %v8898 = vunpack.c.l.b16 %v8882
      %v8899 = vunpack.c.l.b16 %v8883
      %v8900 = vpack.c.b16 %v8893, %v8892
      %v8901 = vpack.c.b16 %v8895, %v8894
      %v8902 = vpack.c.b16 %v8897, %v8896
      %v8903 = vpack.c.b16 %v8899, %v8898
      %v8909 = vsel %vm826, %v8871, 0
      %v8912 = vsel %vm826, %v8872, 0
      %v8915 = vsel %vm826, %v8873, 0
      %v8918 = vsel %vm826, %v8874, 0
      %v8921 = vsel %vm826, %v8875, 0
      %8923 = vmatprep.subr.bf16.mxu0 0
      %8924 = vmatpush1.bf16.msra.mxu0 %v8900
      %8925 = vmatprep.subr.bf16.mxu0 0
      %8926 = vmatpush1.bf16.msra.mxu0 %v8901
      %8927 = vmatprep.subr.bf16.mxu0 0
      %8928 = vmatpush1.bf16.msra.mxu0 %v8902
      %8929 = vmatprep.subr.bf16.mxu0 0
      %8930 = vmatpush1.bf16.msra.mxu0 %v8903
      %8931 = vmatprep.subr.bf16.mxu0 0
      %8932 = vmatpush1.bf16.msra.mxu0 0
      %8933 = vmatprep.subr.bf16.mxu0 0
      %8934 = vmatpush1.bf16.msra.mxu0 0
      %8935 = vmatprep.subr.bf16.mxu0 0
      %8936 = vmatpush1.bf16.msra.mxu0 0
      %8937 = vmatprep.subr.bf16.mxu0 0
      %8938 = vmatpush1.bf16.msra.mxu0 0
      %8939 = vmatprep.subr.bf16.mxu0 0
      %8940 = vmatpush1.bf16.msra.mxu0 0
      %8941 = vmatprep.subr.bf16.mxu0 0
      %8942 = vmatpush1.bf16.msra.mxu0 0
      %8943 = vmatprep.subr.bf16.mxu0 0
      %8944 = vmatpush1.bf16.msra.mxu0 0
      %8945 = vmatprep.subr.bf16.mxu0 0
      %8946 = vmatpush1.bf16.msra.mxu0 0
      %8947 = vmatprep.subr.bf16.mxu0 0
      %8948 = vmatpush1.bf16.msra.mxu0 0
      %8949 = vmatprep.subr.bf16.mxu0 0
      %8950 = vmatpush1.bf16.msra.mxu0 0
      %8951 = vmatprep.subr.bf16.mxu0 0
      %8952 = vmatpush1.bf16.msra.mxu0 0
      %8953 = vmatprep.subr.bf16.mxu0 0
      %8954 = vmatpush1.bf16.msra.mxu0 0
      %8955 = vmatprep.mubr.bf16.mxu0 0
      %8956 = vmatmul.mubr.bf16.gmra.mrb[0].mxu0 %v8909
      %v8957 = vpop.f32.mrb[0].mxu0
      %v8958 = vadd.f32 0.0, %v8957
      %v8959 = vpop.f32.mrb[0].mxu0
      %v8960 = vpop.f32.mrb[0].mxu0
      %v8961 = vadd.f32 0.0, %v8960
      %v8962 = vpop.f32.mrb[0].mxu0
      %8963 = vmatprep.mubr.bf16.mxu0 0
      %8964 = vmatmul.mubr.bf16.gmra.mrb[0].mxu0 %v8912
      %v8965 = vpop.f32.mrb[0].mxu0
      %v8966 = vadd.f32 0.0, %v8965
      %v8967 = vpop.f32.mrb[0].mxu0
      %v8968 = vpop.f32.mrb[0].mxu0
      %v8969 = vadd.f32 0.0, %v8968
      %v8970 = vpop.f32.mrb[0].mxu0
      %8971 = vmatprep.mubr.bf16.mxu0 0
      %8972 = vmatmul.mubr.bf16.gmra.mrb[0].mxu0 %v8915
      %v8973 = vpop.f32.mrb[0].mxu0
      %v8974 = vadd.f32 0.0, %v8973
      %v8975 = vpop.f32.mrb[0].mxu0
      %v8976 = vpop.f32.mrb[0].mxu0
      %v8977 = vadd.f32 0.0, %v8976
      %v8978 = vpop.f32.mrb[0].mxu0
      %8979 = vmatprep.mubr.bf16.mxu0 0
      %8980 = vmatmul.mubr.bf16.gmra.mrb[0].mxu0 %v8918
      %v8981 = vpop.f32.mrb[0].mxu0
      %v8982 = vadd.f32 0.0, %v8981
      %v8983 = vpop.f32.mrb[0].mxu0
      %v8984 = vpop.f32.mrb[0].mxu0
      %v8985 = vadd.f32 0.0, %v8984
      %v8986 = vpop.f32.mrb[0].mxu0
      %8987 = vmatprep.mubr.bf16.mxu0 0
      %8988 = vmatmul.mubr.bf16.gmra.mrb[0].mxu0 %v8921
      %v8989 = vpop.f32.mrb[0].mxu0
      %v8990 = vadd.f32 0.0, %v8989
      %v8991 = vpop.f32.mrb[0].mxu0
      %v8992 = vpop.f32.mrb[0].mxu0
      %v8993 = vpop.f32.mrb[0].mxu0
      %8994 = vdwg.mxu0
      %v8995 = vadd.f32 %v8853, %v8958
      %v8996 = vadd.f32 %v8854, %v8961
      %v8997 = vadd.f32 %v8855, %v8966
      %v8998 = vadd.f32 %v8856, %v8969
      %v8999 = vadd.f32 %v8857, %v8974
      %v9000 = vadd.f32 %v8858, %v8977
      %v9001 = vadd.f32 %v8859, %v8982
      %v9002 = vadd.f32 %v8860, %v8985
      %v9003 = vadd.f32 %v8861, %v8990
      %v9004 = vld [vmem:[#allocation4 + $0xfd] sm:$0xff]
      %v9005 = vld [vmem:[#allocation4 + $0x105] sm:$0xff]
      %v9006 = vld [vmem:[#allocation4 + $0x10d] sm:$0xff]
      %v9007 = vld [vmem:[#allocation4 + $0x115] sm:$0xff]
      %v9008 = vld [vmem:[#allocation4 + $0x11d] sm:$0xff]
      %v9009 = vld [vmem:[#allocation4 + $0x125] sm:$0xff]
      %v9010 = vld [vmem:[#allocation4 + $0x12d] sm:$0xff]
      %v9011 = vld [vmem:[#allocation4 + $0x135] sm:$0xff]
      %v9012 = vld [vmem:[#allocation4 + $0x13d] sm:$0xff]
      %v9013 = vpack.c.bf16 %v9005, %v9004
      %v9014 = vpack.c.bf16 %v9007, %v9006
      %v9015 = vpack.c.bf16 %v9009, %v9008
      %v9016 = vpack.c.bf16 %v9011, %v9010
      %v9017 = vpack.c.bf16 %v9012, %v9012
      %v9018 = vld [vmem:[%s5148] sm:$0xf]
      %v9019 = vld [vmem:[%s5148 + $0x4] sm:$0xf]
      %v9020 = vld [vmem:[%s5148 + $0x8] sm:$0xf]
      %v9021 = vld [vmem:[%s5148 + $0xc] sm:$0xf]
      %v9022 = vld [vmem:[%s5148 + $0x10] sm:$0xf]
      %v9023 = vld [vmem:[%s5148 + $0x14] sm:$0xf]
      %v9024 = vld [vmem:[%s5148 + $0x18] sm:$0xf]
      %v9025 = vld [vmem:[%s5148 + $0x1c] sm:$0xf]
      %v9034 = vunpack.c.l.b16 %v9018
      %v9035 = vunpack.c.l.b16 %v9019
      %v9036 = vunpack.c.l.b16 %v9020
      %v9037 = vunpack.c.l.b16 %v9021
      %v9038 = vunpack.c.l.b16 %v9022
      %v9039 = vunpack.c.l.b16 %v9023
      %v9040 = vunpack.c.l.b16 %v9024
      %v9041 = vunpack.c.l.b16 %v9025
      %v9042 = vpack.c.b16 %v9035, %v9034
      %v9043 = vpack.c.b16 %v9037, %v9036
      %v9044 = vpack.c.b16 %v9039, %v9038
      %v9045 = vpack.c.b16 %v9041, %v9040
      %v9051 = vsel %vm826, %v9013, 0
      %v9054 = vsel %vm826, %v9014, 0
      %v9057 = vsel %vm826, %v9015, 0
      %v9060 = vsel %vm826, %v9016, 0
      %v9063 = vsel %vm826, %v9017, 0
      %9065 = vmatprep.subr.bf16.mxu0 0
      %9066 = vmatpush1.bf16.msra.mxu0 %v9042
      %9067 = vmatprep.subr.bf16.mxu0 0
      %9068 = vmatpush1.bf16.msra.mxu0 %v9043
      %9069 = vmatprep.subr.bf16.mxu0 0
      %9070 = vmatpush1.bf16.msra.mxu0 %v9044
      %9071 = vmatprep.subr.bf16.mxu0 0
      %9072 = vmatpush1.bf16.msra.mxu0 %v9045
      %9073 = vmatprep.subr.bf16.mxu0 0
      %9074 = vmatpush1.bf16.msra.mxu0 0
      %9075 = vmatprep.subr.bf16.mxu0 0
      %9076 = vmatpush1.bf16.msra.mxu0 0
      %9077 = vmatprep.subr.bf16.mxu0 0
      %9078 = vmatpush1.bf16.msra.mxu0 0
      %9079 = vmatprep.subr.bf16.mxu0 0
      %9080 = vmatpush1.bf16.msra.mxu0 0
      %9081 = vmatprep.subr.bf16.mxu0 0
      %9082 = vmatpush1.bf16.msra.mxu0 0
      %9083 = vmatprep.subr.bf16.mxu0 0
      %9084 = vmatpush1.bf16.msra.mxu0 0
      %9085 = vmatprep.subr.bf16.mxu0 0
      %9086 = vmatpush1.bf16.msra.mxu0 0
      %9087 = vmatprep.subr.bf16.mxu0 0
      %9088 = vmatpush1.bf16.msra.mxu0 0
      %9089 = vmatprep.subr.bf16.mxu0 0
      %9090 = vmatpush1.bf16.msra.mxu0 0
      %9091 = vmatprep.subr.bf16.mxu0 0
      %9092 = vmatpush1.bf16.msra.mxu0 0
      %9093 = vmatprep.subr.bf16.mxu0 0
      %9094 = vmatpush1.bf16.msra.mxu0 0
      %9095 = vmatprep.subr.bf16.mxu0 0
      %9096 = vmatpush1.bf16.msra.mxu0 0
      %9097 = vmatprep.mubr.bf16.mxu0 0
      %9098 = vmatmul.mubr.bf16.gmra.mrb[0].mxu0 %v9051
      %v9099 = vpop.f32.mrb[0].mxu0
      %v9100 = vadd.f32 0.0, %v9099
      %v9101 = vpop.f32.mrb[0].mxu0
      %v9102 = vpop.f32.mrb[0].mxu0
      %v9103 = vadd.f32 0.0, %v9102
      %v9104 = vpop.f32.mrb[0].mxu0
      %9105 = vmatprep.mubr.bf16.mxu0 0
      %9106 = vmatmul.mubr.bf16.gmra.mrb[0].mxu0 %v9054
      %v9107 = vpop.f32.mrb[0].mxu0
      %v9108 = vadd.f32 0.0, %v9107
      %v9109 = vpop.f32.mrb[0].mxu0
      %v9110 = vpop.f32.mrb[0].mxu0
      %v9111 = vadd.f32 0.0, %v9110
      %v9112 = vpop.f32.mrb[0].mxu0
      %9113 = vmatprep.mubr.bf16.mxu0 0
      %9114 = vmatmul.mubr.bf16.gmra.mrb[0].mxu0 %v9057
      %v9115 = vpop.f32.mrb[0].mxu0
      %v9116 = vadd.f32 0.0, %v9115
      %v9117 = vpop.f32.mrb[0].mxu0
      %v9118 = vpop.f32.mrb[0].mxu0
      %v9119 = vadd.f32 0.0, %v9118
      %v9120 = vpop.f32.mrb[0].mxu0
      %9121 = vmatprep.mubr.bf16.mxu0 0
      %9122 = vmatmul.mubr.bf16.gmra.mrb[0].mxu0 %v9060
      %v9123 = vpop.f32.mrb[0].mxu0
      %v9124 = vadd.f32 0.0, %v9123
      %v9125 = vpop.f32.mrb[0].mxu0
      %v9126 = vpop.f32.mrb[0].mxu0
      %v9127 = vadd.f32 0.0, %v9126
      %v9128 = vpop.f32.mrb[0].mxu0
      %9129 = vmatprep.mubr.bf16.mxu0 0
      %9130 = vmatmul.mubr.bf16.gmra.mrb[0].mxu0 %v9063
      %v9131 = vpop.f32.mrb[0].mxu0
      %v9132 = vadd.f32 0.0, %v9131
      %v9133 = vpop.f32.mrb[0].mxu0
      %v9134 = vpop.f32.mrb[0].mxu0
      %v9135 = vpop.f32.mrb[0].mxu0
      %9136 = vdwg.mxu0
      %v9137 = vadd.f32 %v8995, %v9100
      %v9138 = vadd.f32 %v8996, %v9103
      %v9139 = vadd.f32 %v8997, %v9108
      %v9140 = vadd.f32 %v8998, %v9111
      %v9141 = vadd.f32 %v8999, %v9116
      %v9142 = vadd.f32 %v9000, %v9119
      %v9143 = vadd.f32 %v9001, %v9124
      %v9144 = vadd.f32 %v9002, %v9127
      %v9145 = vadd.f32 %v9003, %v9132
      %v9146 = vld [vmem:[#allocation4 + $0xfe] sm:$0xff]
      %v9147 = vld [vmem:[#allocation4 + $0x106] sm:$0xff]
      %v9148 = vld [vmem:[#allocation4 + $0x10e] sm:$0xff]
      %v9149 = vld [vmem:[#allocation4 + $0x116] sm:$0xff]
      %v9150 = vld [vmem:[#allocation4 + $0x11e] sm:$0xff]
      %v9151 = vld [vmem:[#allocation4 + $0x126] sm:$0xff]
      %v9152 = vld [vmem:[#allocation4 + $0x12e] sm:$0xff]
      %v9153 = vld [vmem:[#allocation4 + $0x136] sm:$0xff]
      %v9154 = vld [vmem:[#allocation4 + $0x13e] sm:$0xff]
      %v9155 = vpack.c.bf16 %v9147, %v9146
      %v9156 = vpack.c.bf16 %v9149, %v9148
      %v9157 = vpack.c.bf16 %v9151, %v9150
      %v9158 = vpack.c.bf16 %v9153, %v9152
      %v9159 = vpack.c.bf16 %v9154, %v9154
      %v9160 = vld [vmem:[%s5291] sm:$0xf]
      %v9161 = vld [vmem:[%s5291 + $0x4] sm:$0xf]
      %v9162 = vld [vmem:[%s5291 + $0x8] sm:$0xf]
      %v9163 = vld [vmem:[%s5291 + $0xc] sm:$0xf]
      %v9164 = vld [vmem:[%s5291 + $0x10] sm:$0xf]
      %v9165 = vld [vmem:[%s5291 + $0x14] sm:$0xf]
      %v9166 = vld [vmem:[%s5291 + $0x18] sm:$0xf]
      %v9167 = vld [vmem:[%s5291 + $0x1c] sm:$0xf]
      %v9176 = vunpack.c.l.b16 %v9160
      %v9177 = vunpack.c.l.b16 %v9161
      %v9178 = vunpack.c.l.b16 %v9162
      %v9179 = vunpack.c.l.b16 %v9163
      %v9180 = vunpack.c.l.b16 %v9164
      %v9181 = vunpack.c.l.b16 %v9165
      %v9182 = vunpack.c.l.b16 %v9166
      %v9183 = vunpack.c.l.b16 %v9167
      %v9184 = vpack.c.b16 %v9177, %v9176
      %v9185 = vpack.c.b16 %v9179, %v9178
      %v9186 = vpack.c.b16 %v9181, %v9180
      %v9187 = vpack.c.b16 %v9183, %v9182
      %v9193 = vsel %vm826, %v9155, 0
      %v9196 = vsel %vm826, %v9156, 0
      %v9199 = vsel %vm826, %v9157, 0
      %v9202 = vsel %vm826, %v9158, 0
      %v9205 = vsel %vm826, %v9159, 0
      %9207 = vmatprep.subr.bf16.mxu0 0
      %9208 = vmatpush1.bf16.msra.mxu0 %v9184
      %9209 = vmatprep.subr.bf16.mxu0 0
      %9210 = vmatpush1.bf16.msra.mxu0 %v9185
      %9211 = vmatprep.subr.bf16.mxu0 0
      %9212 = vmatpush1.bf16.msra.mxu0 %v9186
      %9213 = vmatprep.subr.bf16.mxu0 0
      %9214 = vmatpush1.bf16.msra.mxu0 %v9187
      %9215 = vmatprep.subr.bf16.mxu0 0
      %9216 = vmatpush1.bf16.msra.mxu0 0
      %9217 = vmatprep.subr.bf16.mxu0 0
      %9218 = vmatpush1.bf16.msra.mxu0 0
      %9219 = vmatprep.subr.bf16.mxu0 0
      %9220 = vmatpush1.bf16.msra.mxu0 0
      %9221 = vmatprep.subr.bf16.mxu0 0
      %9222 = vmatpush1.bf16.msra.mxu0 0
      %9223 = vmatprep.subr.bf16.mxu0 0
      %9224 = vmatpush1.bf16.msra.mxu0 0
      %9225 = vmatprep.subr.bf16.mxu0 0
      %9226 = vmatpush1.bf16.msra.mxu0 0
      %9227 = vmatprep.subr.bf16.mxu0 0
      %9228 = vmatpush1.bf16.msra.mxu0 0
      %9229 = vmatprep.subr.bf16.mxu0 0
      %9230 = vmatpush1.bf16.msra.mxu0 0
      %9231 = vmatprep.subr.bf16.mxu0 0
      %9232 = vmatpush1.bf16.msra.mxu0 0
      %9233 = vmatprep.subr.bf16.mxu0 0
      %9234 = vmatpush1.bf16.msra.mxu0 0
      %9235 = vmatprep.subr.bf16.mxu0 0
      %9236 = vmatpush1.bf16.msra.mxu0 0
      %9237 = vmatprep.subr.bf16.mxu0 0
      %9238 = vmatpush1.bf16.msra.mxu0 0
      %9239 = vmatprep.mubr.bf16.mxu0 0
      %9240 = vmatmul.mubr.bf16.gmra.mrb[0].mxu0 %v9193
      %v9241 = vpop.f32.mrb[0].mxu0
      %v9242 = vadd.f32 0.0, %v9241
      %v9243 = vpop.f32.mrb[0].mxu0
      %v9244 = vpop.f32.mrb[0].mxu0
      %v9245 = vadd.f32 0.0, %v9244
      %v9246 = vpop.f32.mrb[0].mxu0
      %9247 = vmatprep.mubr.bf16.mxu0 0
      %9248 = vmatmul.mubr.bf16.gmra.mrb[0].mxu0 %v9196
      %v9249 = vpop.f32.mrb[0].mxu0
      %v9250 = vadd.f32 0.0, %v9249
      %v9251 = vpop.f32.mrb[0].mxu0
      %v9252 = vpop.f32.mrb[0].mxu0
      %v9253 = vadd.f32 0.0, %v9252
      %v9254 = vpop.f32.mrb[0].mxu0
      %9255 = vmatprep.mubr.bf16.mxu0 0
      %9256 = vmatmul.mubr.bf16.gmra.mrb[0].mxu0 %v9199
      %v9257 = vpop.f32.mrb[0].mxu0
      %v9258 = vadd.f32 0.0, %v9257
      %v9259 = vpop.f32.mrb[0].mxu0
      %v9260 = vpop.f32.mrb[0].mxu0
      %v9261 = vadd.f32 0.0, %v9260
      %v9262 = vpop.f32.mrb[0].mxu0
      %9263 = vmatprep.mubr.bf16.mxu0 0
      %9264 = vmatmul.mubr.bf16.gmra.mrb[0].mxu0 %v9202
      %v9265 = vpop.f32.mrb[0].mxu0
      %v9266 = vadd.f32 0.0, %v9265
      %v9267 = vpop.f32.mrb[0].mxu0
      %v9268 = vpop.f32.mrb[0].mxu0
      %v9269 = vadd.f32 0.0, %v9268
      %v9270 = vpop.f32.mrb[0].mxu0
      %9271 = vmatprep.mubr.bf16.mxu0 0
      %9272 = vmatmul.mubr.bf16.gmra.mrb[0].mxu0 %v9205
      %v9273 = vpop.f32.mrb[0].mxu0
      %v9274 = vadd.f32 0.0, %v9273
      %v9275 = vpop.f32.mrb[0].mxu0
      %v9276 = vpop.f32.mrb[0].mxu0
      %v9277 = vpop.f32.mrb[0].mxu0
      %9278 = vdwg.mxu0
      %v9279 = vadd.f32 %v9137, %v9242
      %v9280 = vadd.f32 %v9138, %v9245
      %v9281 = vadd.f32 %v9139, %v9250
      %v9282 = vadd.f32 %v9140, %v9253
      %v9283 = vadd.f32 %v9141, %v9258
      %v9284 = vadd.f32 %v9142, %v9261
      %v9285 = vadd.f32 %v9143, %v9266
      %v9286 = vadd.f32 %v9144, %v9269
      %v9287 = vadd.f32 %v9145, %v9274
      %v9288 = vld [vmem:[%s8] sm:$0x1]
      %v9290 = vlaneseq
      %v9291 = vshrl.u32 %v9290, 7
      %v9292 = vsub.s32 0, %v9291
      %v9293 = vrot.slane %v9288, %v9292
      %v9295 = vadd.f32 %v9279, %v9293
      %v9296 = vadd.f32 %v9280, %v9293
      %v9297 = vadd.f32 %v9281, %v9293
      %v9298 = vadd.f32 %v9282, %v9293
      %v9299 = vadd.f32 %v9283, %v9293
      %v9300 = vadd.f32 %v9284, %v9293
      %v9301 = vadd.f32 %v9285, %v9293
      %v9302 = vadd.f32 %v9286, %v9293
      %v9303 = vadd.f32 %v9287, %v9293
      %9304 = vst.msk [vmem:[%s332 + $0xc0] sm:$0xff] %vm5436, %v9295
      %9305 = vst.msk [vmem:[%s332 + $0xc8] sm:$0xff] %vm5436, %v9296
      %9306 = vst.msk [vmem:[%s332 + $0xce] sm:$0xfc] %vm5439, %v9297
      %9307 = vst.msk [vmem:[%s332 + $0xd6] sm:$0xff] %vm5436, %v9298
      %9308 = vst.msk [vmem:[%s332 + $0xde] sm:$0x3] %vm5442, %v9299
      %9309 = vst.msk [vmem:[%s332 + $0xdc] sm:$0xf0] %vm5444, %v9299
      %9310 = vst.msk [vmem:[%s332 + $0xe4] sm:$0xff] %vm5436, %v9300
      %9311 = vst.msk [vmem:[%s332 + $0xec] sm:$0xf] %vm5447, %v9301
      %9312 = vst.msk [vmem:[%s332 + $0xea] sm:$0xc0] %vm5449, %v9301
      %9313 = vst.msk [vmem:[%s332 + $0xf2] sm:$0xff] %vm5436, %v9302
      %9314 = vst.msk [vmem:[%s332 + $0xfa] sm:$0x3f] %vm5452, %v9303
      %p9315 = scmp.lt.s32.totalorder %s20, 1
      %s9316 = scalar_select %p9315, %s20, 1
      %s9317 = smul.addr %s9316, 32
      %s9318 = smul.addr %s9317, 8
      %s9319 = scalar_lea.vmem %s9, %s9318
      // Predicated region
      $region57: #{autoencoder_forward.1} parent=55 // pred_check
        %p9320 = pneg %p232
      $region58: #{autoencoder_forward.1} parent=55 // pred_check_branch
        %9322 = sbr.rel (%p9320) target = $region60
      $region59: #{autoencoder_forward.1} parent=55 // pred_region
        _
      $region60: #{autoencoder_forward.1} parent=55 // pred_fallthru
        _
    $region56: #{autoencoder_forward.1} parent=5 // pred_fallthru
      _
    %p9323 = scmp.le.s32.totalorder 2, %s15
    // Predicated region
    $region61: #{autoencoder_forward.1} parent=5 // pred_check
      %p9324 = pneg %p9323
    $region62: #{autoencoder_forward.1} parent=5 // pred_check_branch
      %9326 = sbr.rel (%p9324) target = $region64
    $region63: #{autoencoder_forward.1} parent=5 // pred_region
      %s9327 = ssub.s32 %s15, 2
      // Predicated region
      $region65: #{autoencoder_forward.1} parent=63 // pred_check
        %p9328 = pneg %p238
      $region66: #{autoencoder_forward.1} parent=63 // pred_check_branch
        %9330 = sbr.rel (%p9328) target = $region68
      $region67: #{autoencoder_forward.1} parent=63 // pred_region
        %p9331 = scmp.lt.s32.totalorder %s21, 1
        %s9332 = scalar_select %p9331, %s21, 1
        %s9333 = smul.addr %s9332, 32
        %s9334 = smul.addr %s9333, 8
        %s9335 = scalar_lea.vmem %s9, %s9334
      $region68: #{autoencoder_forward.1} parent=63 // pred_fallthru
        _
    $region64: #{autoencoder_forward.1} parent=5 // pred_fallthru
      _
  $region6: #{autoencoder_forward.1} parent=0 // loop_footer
    %s19 = sadd.s32 1, %s15
  $region7: #{autoencoder_forward.1} parent=0 // loop_footer_branch
    %14 = sbr.rel target = $region3
  $region8: #{autoencoder_forward.1} parent=0 // loop_exit
    _

</llo_original>
